<compile_context>
chip_gen: v6e
topology: v6e:2x2x1
jax: 0.10.0
libtpu: 0.0.40
codegen_flags: <defaults>
</compile_context>

<pallas_src>
import jax
import jax.numpy as jnp
from jax.experimental import pallas as pl
from jax.experimental.pallas import tpu as pltpu

EPS = 1e-5  # nn.InstanceNorm2d default eps (affine=False, no running stats)


def _round_up(a, b):
    return (a + b - 1) // b * b


def _residual_block_kernel(x_ref, w1_ref, w2_ref, o_ref, pad_ref, col_ref):
    # x_ref/o_ref : (H, W, C)     one batch element, channels-last, C lane-dense
    # w*_ref      : (9*C, C)      im2col-folded weights: row (kh*3+kw)*C + cin
    # pad_ref     : (H+2, Wp, C)  reflection-padded map scratch, Wp = roundup(W+2, 8)
    # col_ref     : (H, W, 9*C)   im2col slab scratch
    H, W, C = x_ref.shape
    HW = H * W

    def fill_reflect_borders():
        # ReflectionPad2d(1). Order matters (rows, then columns) so corners
        # pick up the already-reflected top/bottom rows.
        pad_ref[0:1, 1:W + 1, :] = pad_ref[2:3, 1:W + 1, :]          # top    = row 1
        pad_ref[H + 1:H + 2, 1:W + 1, :] = pad_ref[H - 1:H, 1:W + 1, :]  # bottom = row H-2
        pad_ref[:, 0:1, :] = pad_ref[:, 2:3, :]                      # left   = col 1
        pad_ref[:, W + 1:W + 2, :] = pad_ref[:, W - 1:W, :]          # right  = col W-2

    def conv3x3(w_ref):
        # Caller has already written the interior pad_ref[1:H+1, 1:W+1, :].
        fill_reflect_borders()
        # Pack the 9 taps along the lane axis -> single K = 9*C MXU matmul.
        for kh in range(3):
            for kw in range(3):
                t = kh * 3 + kw
                col_ref[:, :, t * C:(t + 1) * C] = pad_ref[kh:kh + H, kw:kw + W, :]
        # Conv bias omitted on purpose: exactly cancelled by the following
        # affine-less InstanceNorm's mean subtraction.
        return jnp.dot(col_ref[...].reshape(HW, 9 * C), w_ref[...],
                       preferred_element_type=jnp.float32)           # (HW, C) f32

    def instance_norm(a):
        # Single-pass biased per-channel stats over the spatial axis, f32.
        inv_hw = 1.0 / HW
        mean = jnp.sum(a, axis=0, keepdims=True) * inv_hw
        var = jnp.sum(a * a, axis=0, keepdims=True) * inv_hw - mean * mean
        var = jnp.maximum(var, 0.0)                                  # guard cancellation
        return (a - mean) * jax.lax.rsqrt(var + EPS)

    # ---- conv1 -> InstanceNorm -> ReLU --------------------------------------
    pad_ref[1:H + 1, 1:W + 1, :] = x_ref[...]                        # feed conv1 directly
    y = jnp.maximum(instance_norm(conv3x3(w1_ref)), 0.0)             # (HW, C) f32

    # ---- conv2 -> InstanceNorm -> residual add ------------------------------
    pad_ref[1:H + 1, 1:W + 1, :] = y.reshape(H, W, C).astype(pad_ref.dtype)
    out = instance_norm(conv3x3(w2_ref)) \
        + x_ref[...].astype(jnp.float32).reshape(HW, C)              # re-read x (no live copy)
    o_ref[...] = out.reshape(H, W, C).astype(o_ref.dtype)


def residual_block(x, w1, b1, w2, b2):
    # b1/b2 are part of the PyTorch module but are mathematically redundant:
    # InstanceNorm(affine=False) right after each conv cancels a per-channel
    # constant exactly. Drop them (saves VALU adds + DMA, zero numerical change).
    del b1, b2
    N, C, H, W = x.shape
    assert H >= 2 and W >= 2, "ReflectionPad2d(1) needs H, W >= 2"

    LANE = 128
    Cp = _round_up(C, LANE)          # lane-dense channel axis
    Wp = _round_up(W + 2, 8)         # sublane-aligned pad-scratch pitch

    # Layout plumbing (outside the kernel): NCHW -> NHWC, zero-pad channels.
    x_hwc = jnp.transpose(x, (0, 2, 3, 1))                           # (N, H, W, C)
    if Cp != C:
        x_hwc = jnp.pad(x_hwc, ((0, 0), (0, 0), (0, 0), (0, Cp - C)))

    def fold_weight(w):
        # OIHW -> (kh, kw, Cin, Cout) -> (9*Cp, Cp), channels zero-padded.
        wt = jnp.transpose(w, (2, 3, 1, 0))                          # (3, 3, Cin, Cout)
        if Cp != C:
            wt = jnp.pad(wt, ((0, 0), (0, 0), (0, Cp - C), (0, Cp - C)))
        return wt.reshape(9 * Cp, Cp).astype(x.dtype)

    w1_t = fold_weight(w1)
    w2_t = fold_weight(w2)

    itemsize = jnp.dtype(x.dtype).itemsize
    blk = H * W * Cp

    # Explicit scoped-VMEM budget: double-buffered in/out blocks + weights,
    # pad + im2col scratch, f32 SSA intermediates; capped for v7x (64 MiB phys).
    vmem_needed = (2 * 2 * blk * itemsize
                   + 2 * 2 * 9 * Cp * Cp * itemsize
                   + (H + 2) * Wp * Cp * itemsize
                   + H * W * 9 * Cp * itemsize
                   + 8 * blk * 4)
    vmem_limit = int(min(max(2 * vmem_needed, 32 * 2 ** 20), 56 * 2 ** 20))

    cost = pl.CostEstimate(
        flops=N * 2 * (2 * H * W * 9 * Cp * Cp),     # two convs, 2 flops/MAC
        transcendentals=N * 2 * Cp,                  # rsqrt per channel per IN
        bytes_accessed=2 * N * blk * itemsize + (w1_t.size + w2_t.size) * itemsize,
    )

    out_hwc = pl.pallas_call(
        _residual_block_kernel,
        out_shape=jax.ShapeDtypeStruct((N, H, W, Cp), x.dtype),
        grid=(N,),
        in_specs=[
            pl.BlockSpec((None, H, W, Cp), lambda n: (n, 0, 0, 0)),  # x: one batch elem
            pl.BlockSpec((9 * Cp, Cp), lambda n: (0, 0)),            # w1 (im2col-folded)
            pl.BlockSpec((9 * Cp, Cp), lambda n: (0, 0)),            # w2
        ],
        out_specs=pl.BlockSpec((None, H, W, Cp), lambda n: (n, 0, 0, 0)),
        scratch_shapes=[
            pltpu.VMEM((H + 2, Wp, Cp), x.dtype),                    # reflection-pad map
            pltpu.VMEM((H, W, 9 * Cp), x.dtype),                     # im2col slab
        ],
        compiler_params=pltpu.CompilerParams(
            dimension_semantics=("parallel",),
            vmem_limit_bytes=vmem_limit,
        ),
        cost_estimate=cost,
    )(x_hwc, w1_t, w2_t)

    return jnp.transpose(out_hwc[..., :C], (0, 3, 1, 2))             # back to NCHW


def residual_block_ref(x, w1, b1, w2, b2):
    # Pure-JAX reference (matches PyTorch semantics, including bias) for validation.
    def conv(a, w, b):
        p = jnp.pad(a, ((0, 0), (0, 0), (1, 1), (1, 1)), mode="reflect")
        y = jax.lax.conv_general_dilated(
            p, w, window_strides=(1, 1), padding="VALID",
            dimension_numbers=("NCHW", "OIHW", "NCHW"))
        return y + b[None, :, None, None]

    def inorm(a):
        m = jnp.mean(a, axis=(2, 3), keepdims=True)
        v = jnp.mean((a - m) ** 2, axis=(2, 3), keepdims=True)
        return (a - m) * jax.lax.rsqrt(v + EPS)

    y = jnp.maximum(inorm(conv(x, w1, b1)), 0.0)
    return x + inorm(conv(y, w2, b2))


if __name__ == "__main__":
    N, C, H, W = 2, 4, 16, 16
    key = jax.random.PRNGKey(0)
    kx, kw1, kb1, kw2, kb2 = jax.random.split(key, 5)

    x = jax.random.normal(kx, (N, C, H, W), dtype=jnp.float32)
    # Deterministic synthetic Conv2d(C, C, 3) parameters, kaiming-uniform-ish.
    bound = 1.0 / (C * 9) ** 0.5
    w1 = jax.random.uniform(kw1, (C, C, 3, 3), jnp.float32, -bound, bound)
    b1 = jax.random.uniform(kb1, (C,), jnp.float32, -bound, bound)
    w2 = jax.random.uniform(kw2, (C, C, 3, 3), jnp.float32, -bound, bound)
    b2 = jax.random.uniform(kb2, (C,), jnp.float32, -bound, bound)

    out = residual_block(x, w1, b1, w2, b2)
    out = jax.block_until_ready(out)

    ref = jax.block_until_ready(residual_block_ref(x, w1, b1, w2, b2))
    assert out.shape == (N, C, H, W) and out.dtype == x.dtype
    assert jnp.allclose(out, ref, atol=1e-3, rtol=1e-3), "mismatch vs reference"

    print("KERNEL_OK")
</pallas_src>

<mosaic_0001>
module attributes {stable_mosaic.version = 11 : i64} {
  func.func @_residual_block_kernel(%arg0: i32, %arg1: memref<1x16x16x128xf32, #tpu.memory_space<vmem>>, %arg2: memref<1152x128xf32, #tpu.memory_space<vmem>>, %arg3: memref<1152x128xf32, #tpu.memory_space<vmem>>, %arg4: memref<1x16x16x128xf32, #tpu.memory_space<vmem>>, %arg5: memref<18x24x128xf32, #tpu.memory_space<vmem>>, %arg6: memref<16x16x1152xf32, #tpu.memory_space<vmem>>) attributes {dimension_semantics = [#tpu.dimension_semantics<parallel>], iteration_bounds = array<i64: 2>, scalar_prefetch = 0 : i64, scratch_operands = 2 : i64, tpu.core_type = #tpu.core_type<tc>, window_params = [{transform_indices = @transform_0, window_bounds = array<i64: 1, 16, 16, 128>}, {pipeline_mode = #tpu.pipeline_mode<synchronous>, transform_indices = @transform_1, window_bounds = array<i64: 1152, 128>}, {pipeline_mode = #tpu.pipeline_mode<synchronous>, transform_indices = @transform_2, window_bounds = array<i64: 1152, 128>}, {transform_indices = @transform_3, window_bounds = array<i64: 1, 16, 16, 128>}]} {
    %c0 = arith.constant 0 : index
    %c0_0 = arith.constant 0 : index
    %c0_1 = arith.constant 0 : index
    %c0_2 = arith.constant 0 : index
    %0 = vector.load %arg1[%c0, %c0_0, %c0_1, %c0_2] : memref<1x16x16x128xf32, #tpu.memory_space<vmem>>, vector<1x16x16x128xf32>
    %1 = vector.shape_cast %0 : vector<1x16x16x128xf32> to vector<16x16x128xf32>
    %c1 = arith.constant 1 : index
    %c1_3 = arith.constant 1 : index
    %c0_4 = arith.constant 0 : index
    %2 = vector.load %arg5[%c1, %c1_3, %c0_4] : memref<18x24x128xf32, #tpu.memory_space<vmem>>, vector<16x16x128xf32>
    tpu.vector_store %arg5[%c1, %c1_3, %c0_4], %1 {strides = array<i32>} : memref<18x24x128xf32, #tpu.memory_space<vmem>>, vector<16x16x128xf32>,
    %c2 = arith.constant 2 : index
    %c1_5 = arith.constant 1 : index
    %c0_6 = arith.constant 0 : index
    %3 = vector.load %arg5[%c2, %c1_5, %c0_6] : memref<18x24x128xf32, #tpu.memory_space<vmem>>, vector<1x16x128xf32>
    %c0_7 = arith.constant 0 : index
    %c1_8 = arith.constant 1 : index
    %c0_9 = arith.constant 0 : index
    %4 = vector.load %arg5[%c0_7, %c1_8, %c0_9] : memref<18x24x128xf32, #tpu.memory_space<vmem>>, vector<1x16x128xf32>
    tpu.vector_store %arg5[%c0_7, %c1_8, %c0_9], %3 {strides = array<i32>} : memref<18x24x128xf32, #tpu.memory_space<vmem>>, vector<1x16x128xf32>,
    %c15 = arith.constant 15 : index
    %c1_10 = arith.constant 1 : index
    %c0_11 = arith.constant 0 : index
    %5 = vector.load %arg5[%c15, %c1_10, %c0_11] : memref<18x24x128xf32, #tpu.memory_space<vmem>>, vector<1x16x128xf32>
    %c17 = arith.constant 17 : index
    %c1_12 = arith.constant 1 : index
    %c0_13 = arith.constant 0 : index
    %6 = vector.load %arg5[%c17, %c1_12, %c0_13] : memref<18x24x128xf32, #tpu.memory_space<vmem>>, vector<1x16x128xf32>
    tpu.vector_store %arg5[%c17, %c1_12, %c0_13], %5 {strides = array<i32>} : memref<18x24x128xf32, #tpu.memory_space<vmem>>, vector<1x16x128xf32>,
    %c0_14 = arith.constant 0 : index
    %c2_15 = arith.constant 2 : index
    %c0_16 = arith.constant 0 : index
    %7 = vector.load %arg5[%c0_14, %c2_15, %c0_16] : memref<18x24x128xf32, #tpu.memory_space<vmem>>, vector<18x1x128xf32>
    %c0_17 = arith.constant 0 : index
    %c0_18 = arith.constant 0 : index
    %c0_19 = arith.constant 0 : index
    %8 = vector.load %arg5[%c0_17, %c0_18, %c0_19] : memref<18x24x128xf32, #tpu.memory_space<vmem>>, vector<18x1x128xf32>
    tpu.vector_store %arg5[%c0_17, %c0_18, %c0_19], %7 {strides = array<i32>} : memref<18x24x128xf32, #tpu.memory_space<vmem>>, vector<18x1x128xf32>,
    %c0_20 = arith.constant 0 : index
    %c15_21 = arith.constant 15 : index
    %c0_22 = arith.constant 0 : index
    %9 = vector.load %arg5[%c0_20, %c15_21, %c0_22] : memref<18x24x128xf32, #tpu.memory_space<vmem>>, vector<18x1x128xf32>
    %c0_23 = arith.constant 0 : index
    %c17_24 = arith.constant 17 : index
    %c0_25 = arith.constant 0 : index
    %10 = vector.load %arg5[%c0_23, %c17_24, %c0_25] : memref<18x24x128xf32, #tpu.memory_space<vmem>>, vector<18x1x128xf32>
    tpu.vector_store %arg5[%c0_23, %c17_24, %c0_25], %9 {strides = array<i32>} : memref<18x24x128xf32, #tpu.memory_space<vmem>>, vector<18x1x128xf32>,
    %c0_26 = arith.constant 0 : index
    %c0_27 = arith.constant 0 : index
    %c0_28 = arith.constant 0 : index
    %11 = vector.load %arg5[%c0_26, %c0_27, %c0_28] : memref<18x24x128xf32, #tpu.memory_space<vmem>>, vector<16x16x128xf32>
    %c0_29 = arith.constant 0 : index
    %c0_30 = arith.constant 0 : index
    %c0_31 = arith.constant 0 : index
    %12 = vector.load %arg6[%c0_29, %c0_30, %c0_31] : memref<16x16x1152xf32, #tpu.memory_space<vmem>>, vector<16x16x128xf32>
    tpu.vector_store %arg6[%c0_29, %c0_30, %c0_31], %11 {strides = array<i32>} : memref<16x16x1152xf32, #tpu.memory_space<vmem>>, vector<16x16x128xf32>,
    %c0_32 = arith.constant 0 : index
    %c1_33 = arith.constant 1 : index
    %c0_34 = arith.constant 0 : index
    %13 = vector.load %arg5[%c0_32, %c1_33, %c0_34] : memref<18x24x128xf32, #tpu.memory_space<vmem>>, vector<16x16x128xf32>
    %c0_35 = arith.constant 0 : index
    %c0_36 = arith.constant 0 : index
    %c128 = arith.constant 128 : index
    %14 = vector.load %arg6[%c0_35, %c0_36, %c128] : memref<16x16x1152xf32, #tpu.memory_space<vmem>>, vector<16x16x128xf32>
    tpu.vector_store %arg6[%c0_35, %c0_36, %c128], %13 {strides = array<i32>} : memref<16x16x1152xf32, #tpu.memory_space<vmem>>, vector<16x16x128xf32>,
    %c0_37 = arith.constant 0 : index
    %c2_38 = arith.constant 2 : index
    %c0_39 = arith.constant 0 : index
    %15 = vector.load %arg5[%c0_37, %c2_38, %c0_39] : memref<18x24x128xf32, #tpu.memory_space<vmem>>, vector<16x16x128xf32>
    %c0_40 = arith.constant 0 : index
    %c0_41 = arith.constant 0 : index
    %c256 = arith.constant 256 : index
    %16 = vector.load %arg6[%c0_40, %c0_41, %c256] : memref<16x16x1152xf32, #tpu.memory_space<vmem>>, vector<16x16x128xf32>
    tpu.vector_store %arg6[%c0_40, %c0_41, %c256], %15 {strides = array<i32>} : memref<16x16x1152xf32, #tpu.memory_space<vmem>>, vector<16x16x128xf32>,
    %c1_42 = arith.constant 1 : index
    %c0_43 = arith.constant 0 : index
    %c0_44 = arith.constant 0 : index
    %17 = vector.load %arg5[%c1_42, %c0_43, %c0_44] : memref<18x24x128xf32, #tpu.memory_space<vmem>>, vector<16x16x128xf32>
    %c0_45 = arith.constant 0 : index
    %c0_46 = arith.constant 0 : index
    %c384 = arith.constant 384 : index
    %18 = vector.load %arg6[%c0_45, %c0_46, %c384] : memref<16x16x1152xf32, #tpu.memory_space<vmem>>, vector<16x16x128xf32>
    tpu.vector_store %arg6[%c0_45, %c0_46, %c384], %17 {strides = array<i32>} : memref<16x16x1152xf32, #tpu.memory_space<vmem>>, vector<16x16x128xf32>,
    %c1_47 = arith.constant 1 : index
    %c1_48 = arith.constant 1 : index
    %c0_49 = arith.constant 0 : index
    %19 = vector.load %arg5[%c1_47, %c1_48, %c0_49] : memref<18x24x128xf32, #tpu.memory_space<vmem>>, vector<16x16x128xf32>
    %c0_50 = arith.constant 0 : index
    %c0_51 = arith.constant 0 : index
    %c512 = arith.constant 512 : index
    %20 = vector.load %arg6[%c0_50, %c0_51, %c512] : memref<16x16x1152xf32, #tpu.memory_space<vmem>>, vector<16x16x128xf32>
    tpu.vector_store %arg6[%c0_50, %c0_51, %c512], %19 {strides = array<i32>} : memref<16x16x1152xf32, #tpu.memory_space<vmem>>, vector<16x16x128xf32>,
    %c1_52 = arith.constant 1 : index
    %c2_53 = arith.constant 2 : index
    %c0_54 = arith.constant 0 : index
    %21 = vector.load %arg5[%c1_52, %c2_53, %c0_54] : memref<18x24x128xf32, #tpu.memory_space<vmem>>, vector<16x16x128xf32>
    %c0_55 = arith.constant 0 : index
    %c0_56 = arith.constant 0 : index
    %c640 = arith.constant 640 : index
    %22 = vector.load %arg6[%c0_55, %c0_56, %c640] : memref<16x16x1152xf32, #tpu.memory_space<vmem>>, vector<16x16x128xf32>
    tpu.vector_store %arg6[%c0_55, %c0_56, %c640], %21 {strides = array<i32>} : memref<16x16x1152xf32, #tpu.memory_space<vmem>>, vector<16x16x128xf32>,
    %c2_57 = arith.constant 2 : index
    %c0_58 = arith.constant 0 : index
    %c0_59 = arith.constant 0 : index
    %23 = vector.load %arg5[%c2_57, %c0_58, %c0_59] : memref<18x24x128xf32, #tpu.memory_space<vmem>>, vector<16x16x128xf32>
    %c0_60 = arith.constant 0 : index
    %c0_61 = arith.constant 0 : index
    %c768 = arith.constant 768 : index
    %24 = vector.load %arg6[%c0_60, %c0_61, %c768] : memref<16x16x1152xf32, #tpu.memory_space<vmem>>, vector<16x16x128xf32>
    tpu.vector_store %arg6[%c0_60, %c0_61, %c768], %23 {strides = array<i32>} : memref<16x16x1152xf32, #tpu.memory_space<vmem>>, vector<16x16x128xf32>,
    %c2_62 = arith.constant 2 : index
    %c1_63 = arith.constant 1 : index
    %c0_64 = arith.constant 0 : index
    %25 = vector.load %arg5[%c2_62, %c1_63, %c0_64] : memref<18x24x128xf32, #tpu.memory_space<vmem>>, vector<16x16x128xf32>
    %c0_65 = arith.constant 0 : index
    %c0_66 = arith.constant 0 : index
    %c896 = arith.constant 896 : index
    %26 = vector.load %arg6[%c0_65, %c0_66, %c896] : memref<16x16x1152xf32, #tpu.memory_space<vmem>>, vector<16x16x128xf32>
    tpu.vector_store %arg6[%c0_65, %c0_66, %c896], %25 {strides = array<i32>} : memref<16x16x1152xf32, #tpu.memory_space<vmem>>, vector<16x16x128xf32>,
    %c2_67 = arith.constant 2 : index
    %c2_68 = arith.constant 2 : index
    %c0_69 = arith.constant 0 : index
    %27 = vector.load %arg5[%c2_67, %c2_68, %c0_69] : memref<18x24x128xf32, #tpu.memory_space<vmem>>, vector<16x16x128xf32>
    %c0_70 = arith.constant 0 : index
    %c0_71 = arith.constant 0 : index
    %c1024 = arith.constant 1024 : index
    %28 = vector.load %arg6[%c0_70, %c0_71, %c1024] : memref<16x16x1152xf32, #tpu.memory_space<vmem>>, vector<16x16x128xf32>
    tpu.vector_store %arg6[%c0_70, %c0_71, %c1024], %27 {strides = array<i32>} : memref<16x16x1152xf32, #tpu.memory_space<vmem>>, vector<16x16x128xf32>,
    %c0_72 = arith.constant 0 : index
    %c0_73 = arith.constant 0 : index
    %c0_74 = arith.constant 0 : index
    %29 = vector.load %arg6[%c0_72, %c0_73, %c0_74] : memref<16x16x1152xf32, #tpu.memory_space<vmem>>, vector<16x16x1152xf32>
    %30 = vector.shape_cast %29 : vector<16x16x1152xf32> to vector<256x1152xf32>
    %c0_75 = arith.constant 0 : index
    %c0_76 = arith.constant 0 : index
    %31 = vector.load %arg2[%c0_75, %c0_76] : memref<1152x128xf32, #tpu.memory_space<vmem>>, vector<1152x128xf32>
    %cst = arith.constant dense<0.000000e+00> : vector<256x128xf32>
    %32 = tpu.matmul %30, %31, %cst {dimension_numbers = #tpu.dot_dimension_numbers<[1], [0], [0], [1], [0, 0, 1, 1], [], []>} : vector<256x1152xf32>, vector<1152x128xf32>, vector<256x128xf32> -> vector<256x128xf32>
    %cst_77 = arith.constant dense<0.000000e+00> : vector<128xf32>
    %33 = vector.multi_reduction <add>, %32, %cst_77 [0] : vector<256x128xf32> to vector<128xf32>
    %34 = vector.shape_cast %33 : vector<128xf32> to vector<1x128xf32>
    %cst_78 = arith.constant 3.906250e-03 : f32
    %35 = vector.broadcast %cst_78 : f32 to vector<1x128xf32>
    %36 = arith.mulf %34, %35 : vector<1x128xf32>
    %37 = arith.mulf %32, %32 : vector<256x128xf32>
    %cst_79 = arith.constant dense<0.000000e+00> : vector<128xf32>
    %38 = vector.multi_reduction <add>, %37, %cst_79 [0] : vector<256x128xf32> to vector<128xf32>
    %39 = vector.shape_cast %38 : vector<128xf32> to vector<1x128xf32>
    %cst_80 = arith.constant 3.906250e-03 : f32
    %40 = vector.broadcast %cst_80 : f32 to vector<1x128xf32>
    %41 = arith.mulf %39, %40 : vector<1x128xf32>
    %42 = arith.mulf %36, %36 : vector<1x128xf32>
    %43 = arith.subf %41, %42 : vector<1x128xf32>
    %cst_81 = arith.constant 0.000000e+00 : f32
    %44 = vector.broadcast %cst_81 : f32 to vector<1x128xf32>
    %45 = arith.maximumf %43, %44 : vector<1x128xf32>
    %46 = vector.broadcast %36 : vector<1x128xf32> to vector<256x128xf32>
    %47 = arith.subf %32, %46 : vector<256x128xf32>
    %cst_82 = arith.constant 9.99999974E-6 : f32
    %48 = vector.broadcast %cst_82 : f32 to vector<1x128xf32>
    %49 = arith.addf %45, %48 : vector<1x128xf32>
    %50 = math.rsqrt %49 : vector<1x128xf32>
    %51 = vector.broadcast %50 : vector<1x128xf32> to vector<256x128xf32>
    %52 = arith.mulf %47, %51 : vector<256x128xf32>
    %cst_83 = arith.constant 0.000000e+00 : f32
    %53 = vector.broadcast %cst_83 : f32 to vector<256x128xf32>
    %54 = arith.maximumf %52, %53 : vector<256x128xf32>
    %55 = vector.shape_cast %54 : vector<256x128xf32> to vector<16x16x128xf32>
    %c1_84 = arith.constant 1 : index
    %c1_85 = arith.constant 1 : index
    %c0_86 = arith.constant 0 : index
    %56 = vector.load %arg5[%c1_84, %c1_85, %c0_86] : memref<18x24x128xf32, #tpu.memory_space<vmem>>, vector<16x16x128xf32>
    tpu.vector_store %arg5[%c1_84, %c1_85, %c0_86], %55 {strides = array<i32>} : memref<18x24x128xf32, #tpu.memory_space<vmem>>, vector<16x16x128xf32>,
    %c2_87 = arith.constant 2 : index
    %c1_88 = arith.constant 1 : index
    %c0_89 = arith.constant 0 : index
    %57 = vector.load %arg5[%c2_87, %c1_88, %c0_89] : memref<18x24x128xf32, #tpu.memory_space<vmem>>, vector<1x16x128xf32>
    %c0_90 = arith.constant 0 : index
    %c1_91 = arith.constant 1 : index
    %c0_92 = arith.constant 0 : index
    %58 = vector.load %arg5[%c0_90, %c1_91, %c0_92] : memref<18x24x128xf32, #tpu.memory_space<vmem>>, vector<1x16x128xf32>
    tpu.vector_store %arg5[%c0_90, %c1_91, %c0_92], %57 {strides = array<i32>} : memref<18x24x128xf32, #tpu.memory_space<vmem>>, vector<1x16x128xf32>,
    %c15_93 = arith.constant 15 : index
    %c1_94 = arith.constant 1 : index
    %c0_95 = arith.constant 0 : index
    %59 = vector.load %arg5[%c15_93, %c1_94, %c0_95] : memref<18x24x128xf32, #tpu.memory_space<vmem>>, vector<1x16x128xf32>
    %c17_96 = arith.constant 17 : index
    %c1_97 = arith.constant 1 : index
    %c0_98 = arith.constant 0 : index
    %60 = vector.load %arg5[%c17_96, %c1_97, %c0_98] : memref<18x24x128xf32, #tpu.memory_space<vmem>>, vector<1x16x128xf32>
    tpu.vector_store %arg5[%c17_96, %c1_97, %c0_98], %59 {strides = array<i32>} : memref<18x24x128xf32, #tpu.memory_space<vmem>>, vector<1x16x128xf32>,
    %c0_99 = arith.constant 0 : index
    %c2_100 = arith.constant 2 : index
    %c0_101 = arith.constant 0 : index
    %61 = vector.load %arg5[%c0_99, %c2_100, %c0_101] : memref<18x24x128xf32, #tpu.memory_space<vmem>>, vector<18x1x128xf32>
    %c0_102 = arith.constant 0 : index
    %c0_103 = arith.constant 0 : index
    %c0_104 = arith.constant 0 : index
    %62 = vector.load %arg5[%c0_102, %c0_103, %c0_104] : memref<18x24x128xf32, #tpu.memory_space<vmem>>, vector<18x1x128xf32>
    tpu.vector_store %arg5[%c0_102, %c0_103, %c0_104], %61 {strides = array<i32>} : memref<18x24x128xf32, #tpu.memory_space<vmem>>, vector<18x1x128xf32>,
    %c0_105 = arith.constant 0 : index
    %c15_106 = arith.constant 15 : index
    %c0_107 = arith.constant 0 : index
    %63 = vector.load %arg5[%c0_105, %c15_106, %c0_107] : memref<18x24x128xf32, #tpu.memory_space<vmem>>, vector<18x1x128xf32>
    %c0_108 = arith.constant 0 : index
    %c17_109 = arith.constant 17 : index
    %c0_110 = arith.constant 0 : index
    %64 = vector.load %arg5[%c0_108, %c17_109, %c0_110] : memref<18x24x128xf32, #tpu.memory_space<vmem>>, vector<18x1x128xf32>
    tpu.vector_store %arg5[%c0_108, %c17_109, %c0_110], %63 {strides = array<i32>} : memref<18x24x128xf32, #tpu.memory_space<vmem>>, vector<18x1x128xf32>,
    %c0_111 = arith.constant 0 : index
    %c0_112 = arith.constant 0 : index
    %c0_113 = arith.constant 0 : index
    %65 = vector.load %arg5[%c0_111, %c0_112, %c0_113] : memref<18x24x128xf32, #tpu.memory_space<vmem>>, vector<16x16x128xf32>
    %c0_114 = arith.constant 0 : index
    %c0_115 = arith.constant 0 : index
    %c0_116 = arith.constant 0 : index
    %66 = vector.load %arg6[%c0_114, %c0_115, %c0_116] : memref<16x16x1152xf32, #tpu.memory_space<vmem>>, vector<16x16x128xf32>
    tpu.vector_store %arg6[%c0_114, %c0_115, %c0_116], %65 {strides = array<i32>} : memref<16x16x1152xf32, #tpu.memory_space<vmem>>, vector<16x16x128xf32>,
    %c0_117 = arith.constant 0 : index
    %c1_118 = arith.constant 1 : index
    %c0_119 = arith.constant 0 : index
    %67 = vector.load %arg5[%c0_117, %c1_118, %c0_119] : memref<18x24x128xf32, #tpu.memory_space<vmem>>, vector<16x16x128xf32>
    %c0_120 = arith.constant 0 : index
    %c0_121 = arith.constant 0 : index
    %c128_122 = arith.constant 128 : index
    %68 = vector.load %arg6[%c0_120, %c0_121, %c128_122] : memref<16x16x1152xf32, #tpu.memory_space<vmem>>, vector<16x16x128xf32>
    tpu.vector_store %arg6[%c0_120, %c0_121, %c128_122], %67 {strides = array<i32>} : memref<16x16x1152xf32, #tpu.memory_space<vmem>>, vector<16x16x128xf32>,
    %c0_123 = arith.constant 0 : index
    %c2_124 = arith.constant 2 : index
    %c0_125 = arith.constant 0 : index
    %69 = vector.load %arg5[%c0_123, %c2_124, %c0_125] : memref<18x24x128xf32, #tpu.memory_space<vmem>>, vector<16x16x128xf32>
    %c0_126 = arith.constant 0 : index
    %c0_127 = arith.constant 0 : index
    %c256_128 = arith.constant 256 : index
    %70 = vector.load %arg6[%c0_126, %c0_127, %c256_128] : memref<16x16x1152xf32, #tpu.memory_space<vmem>>, vector<16x16x128xf32>
    tpu.vector_store %arg6[%c0_126, %c0_127, %c256_128], %69 {strides = array<i32>} : memref<16x16x1152xf32, #tpu.memory_space<vmem>>, vector<16x16x128xf32>,
    %c1_129 = arith.constant 1 : index
    %c0_130 = arith.constant 0 : index
    %c0_131 = arith.constant 0 : index
    %71 = vector.load %arg5[%c1_129, %c0_130, %c0_131] : memref<18x24x128xf32, #tpu.memory_space<vmem>>, vector<16x16x128xf32>
    %c0_132 = arith.constant 0 : index
    %c0_133 = arith.constant 0 : index
    %c384_134 = arith.constant 384 : index
    %72 = vector.load %arg6[%c0_132, %c0_133, %c384_134] : memref<16x16x1152xf32, #tpu.memory_space<vmem>>, vector<16x16x128xf32>
    tpu.vector_store %arg6[%c0_132, %c0_133, %c384_134], %71 {strides = array<i32>} : memref<16x16x1152xf32, #tpu.memory_space<vmem>>, vector<16x16x128xf32>,
    %c1_135 = arith.constant 1 : index
    %c1_136 = arith.constant 1 : index
    %c0_137 = arith.constant 0 : index
    %73 = vector.load %arg5[%c1_135, %c1_136, %c0_137] : memref<18x24x128xf32, #tpu.memory_space<vmem>>, vector<16x16x128xf32>
    %c0_138 = arith.constant 0 : index
    %c0_139 = arith.constant 0 : index
    %c512_140 = arith.constant 512 : index
    %74 = vector.load %arg6[%c0_138, %c0_139, %c512_140] : memref<16x16x1152xf32, #tpu.memory_space<vmem>>, vector<16x16x128xf32>
    tpu.vector_store %arg6[%c0_138, %c0_139, %c512_140], %73 {strides = array<i32>} : memref<16x16x1152xf32, #tpu.memory_space<vmem>>, vector<16x16x128xf32>,
    %c1_141 = arith.constant 1 : index
    %c2_142 = arith.constant 2 : index
    %c0_143 = arith.constant 0 : index
    %75 = vector.load %arg5[%c1_141, %c2_142, %c0_143] : memref<18x24x128xf32, #tpu.memory_space<vmem>>, vector<16x16x128xf32>
    %c0_144 = arith.constant 0 : index
    %c0_145 = arith.constant 0 : index
    %c640_146 = arith.constant 640 : index
    %76 = vector.load %arg6[%c0_144, %c0_145, %c640_146] : memref<16x16x1152xf32, #tpu.memory_space<vmem>>, vector<16x16x128xf32>
    tpu.vector_store %arg6[%c0_144, %c0_145, %c640_146], %75 {strides = array<i32>} : memref<16x16x1152xf32, #tpu.memory_space<vmem>>, vector<16x16x128xf32>,
    %c2_147 = arith.constant 2 : index
    %c0_148 = arith.constant 0 : index
    %c0_149 = arith.constant 0 : index
    %77 = vector.load %arg5[%c2_147, %c0_148, %c0_149] : memref<18x24x128xf32, #tpu.memory_space<vmem>>, vector<16x16x128xf32>
    %c0_150 = arith.constant 0 : index
    %c0_151 = arith.constant 0 : index
    %c768_152 = arith.constant 768 : index
    %78 = vector.load %arg6[%c0_150, %c0_151, %c768_152] : memref<16x16x1152xf32, #tpu.memory_space<vmem>>, vector<16x16x128xf32>
    tpu.vector_store %arg6[%c0_150, %c0_151, %c768_152], %77 {strides = array<i32>} : memref<16x16x1152xf32, #tpu.memory_space<vmem>>, vector<16x16x128xf32>,
    %c2_153 = arith.constant 2 : index
    %c1_154 = arith.constant 1 : index
    %c0_155 = arith.constant 0 : index
    %79 = vector.load %arg5[%c2_153, %c1_154, %c0_155] : memref<18x24x128xf32, #tpu.memory_space<vmem>>, vector<16x16x128xf32>
    %c0_156 = arith.constant 0 : index
    %c0_157 = arith.constant 0 : index
    %c896_158 = arith.constant 896 : index
    %80 = vector.load %arg6[%c0_156, %c0_157, %c896_158] : memref<16x16x1152xf32, #tpu.memory_space<vmem>>, vector<16x16x128xf32>
    tpu.vector_store %arg6[%c0_156, %c0_157, %c896_158], %79 {strides = array<i32>} : memref<16x16x1152xf32, #tpu.memory_space<vmem>>, vector<16x16x128xf32>,
    %c2_159 = arith.constant 2 : index
    %c2_160 = arith.constant 2 : index
    %c0_161 = arith.constant 0 : index
    %81 = vector.load %arg5[%c2_159, %c2_160, %c0_161] : memref<18x24x128xf32, #tpu.memory_space<vmem>>, vector<16x16x128xf32>
    %c0_162 = arith.constant 0 : index
    %c0_163 = arith.constant 0 : index
    %c1024_164 = arith.constant 1024 : index
    %82 = vector.load %arg6[%c0_162, %c0_163, %c1024_164] : memref<16x16x1152xf32, #tpu.memory_space<vmem>>, vector<16x16x128xf32>
    tpu.vector_store %arg6[%c0_162, %c0_163, %c1024_164], %81 {strides = array<i32>} : memref<16x16x1152xf32, #tpu.memory_space<vmem>>, vector<16x16x128xf32>,
    %c0_165 = arith.constant 0 : index
    %c0_166 = arith.constant 0 : index
    %c0_167 = arith.constant 0 : index
    %83 = vector.load %arg6[%c0_165, %c0_166, %c0_167] : memref<16x16x1152xf32, #tpu.memory_space<vmem>>, vector<16x16x1152xf32>
    %84 = vector.shape_cast %83 : vector<16x16x1152xf32> to vector<256x1152xf32>
    %c0_168 = arith.constant 0 : index
    %c0_169 = arith.constant 0 : index
    %85 = vector.load %arg3[%c0_168, %c0_169] : memref<1152x128xf32, #tpu.memory_space<vmem>>, vector<1152x128xf32>
    %cst_170 = arith.constant dense<0.000000e+00> : vector<256x128xf32>
    %86 = tpu.matmul %84, %85, %cst_170 {dimension_numbers = #tpu.dot_dimension_numbers<[1], [0], [0], [1], [0, 0, 1, 1], [], []>} : vector<256x1152xf32>, vector<1152x128xf32>, vector<256x128xf32> -> vector<256x128xf32>
    %cst_171 = arith.constant dense<0.000000e+00> : vector<128xf32>
    %87 = vector.multi_reduction <add>, %86, %cst_171 [0] : vector<256x128xf32> to vector<128xf32>
    %88 = vector.shape_cast %87 : vector<128xf32> to vector<1x128xf32>
    %cst_172 = arith.constant 3.906250e-03 : f32
    %89 = vector.broadcast %cst_172 : f32 to vector<1x128xf32>
    %90 = arith.mulf %88, %89 : vector<1x128xf32>
    %91 = arith.mulf %86, %86 : vector<256x128xf32>
    %cst_173 = arith.constant dense<0.000000e+00> : vector<128xf32>
    %92 = vector.multi_reduction <add>, %91, %cst_173 [0] : vector<256x128xf32> to vector<128xf32>
    %93 = vector.shape_cast %92 : vector<128xf32> to vector<1x128xf32>
    %cst_174 = arith.constant 3.906250e-03 : f32
    %94 = vector.broadcast %cst_174 : f32 to vector<1x128xf32>
    %95 = arith.mulf %93, %94 : vector<1x128xf32>
    %96 = arith.mulf %90, %90 : vector<1x128xf32>
    %97 = arith.subf %95, %96 : vector<1x128xf32>
    %cst_175 = arith.constant 0.000000e+00 : f32
    %98 = vector.broadcast %cst_175 : f32 to vector<1x128xf32>
    %99 = arith.maximumf %97, %98 : vector<1x128xf32>
    %100 = vector.broadcast %90 : vector<1x128xf32> to vector<256x128xf32>
    %101 = arith.subf %86, %100 : vector<256x128xf32>
    %cst_176 = arith.constant 9.99999974E-6 : f32
    %102 = vector.broadcast %cst_176 : f32 to vector<1x128xf32>
    %103 = arith.addf %99, %102 : vector<1x128xf32>
    %104 = math.rsqrt %103 : vector<1x128xf32>
    %105 = vector.broadcast %104 : vector<1x128xf32> to vector<256x128xf32>
    %106 = arith.mulf %101, %105 : vector<256x128xf32>
    %c0_177 = arith.constant 0 : index
    %c0_178 = arith.constant 0 : index
    %c0_179 = arith.constant 0 : index
    %c0_180 = arith.constant 0 : index
    %107 = vector.load %arg1[%c0_177, %c0_178, %c0_179, %c0_180] : memref<1x16x16x128xf32, #tpu.memory_space<vmem>>, vector<1x16x16x128xf32>
    %108 = vector.shape_cast %107 : vector<1x16x16x128xf32> to vector<16x16x128xf32>
    %109 = vector.shape_cast %108 : vector<16x16x128xf32> to vector<256x128xf32>
    %110 = arith.addf %106, %109 : vector<256x128xf32>
    %111 = vector.shape_cast %110 : vector<256x128xf32> to vector<16x16x128xf32>
    %c0_181 = arith.constant 0 : index
    %c0_182 = arith.constant 0 : index
    %c0_183 = arith.constant 0 : index
    %c0_184 = arith.constant 0 : index
    %112 = vector.load %arg4[%c0_181, %c0_182, %c0_183, %c0_184] : memref<1x16x16x128xf32, #tpu.memory_space<vmem>>, vector<1x16x16x128xf32>
    %113 = vector.shape_cast %112 : vector<1x16x16x128xf32> to vector<16x16x128xf32>
    %114 = vector.shape_cast %111 : vector<16x16x128xf32> to vector<1x16x16x128xf32>
    tpu.vector_store %arg4[%c0_181, %c0_182, %c0_183, %c0_184], %114 {strides = array<i32>} : memref<1x16x16x128xf32, #tpu.memory_space<vmem>>, vector<1x16x16x128xf32>,
    return
  }
  func.func @transform_0(%arg0: i32) -> (i32, i32, i32, i32) {
    %c0_i32 = arith.constant 0 : i32
    %c0_i32_0 = arith.constant 0 : i32
    %c0_i32_1 = arith.constant 0 : i32
    %c0_i32_2 = arith.constant 0 : i32
    return %arg0, %c0_i32, %c0_i32_0, %c0_i32_1 : i32, i32, i32, i32
  }
  func.func @transform_1(%arg0: i32) -> (i32, i32) {
    %c0_i32 = arith.constant 0 : i32
    %c0_i32_0 = arith.constant 0 : i32
    %c0_i32_1 = arith.constant 0 : i32
    return %c0_i32, %c0_i32_0 : i32, i32
  }
  func.func @transform_2(%arg0: i32) -> (i32, i32) {
    %c0_i32 = arith.constant 0 : i32
    %c0_i32_0 = arith.constant 0 : i32
    %c0_i32_1 = arith.constant 0 : i32
    return %c0_i32, %c0_i32_0 : i32, i32
  }
  func.func @transform_3(%arg0: i32) -> (i32, i32, i32, i32) {
    %c0_i32 = arith.constant 0 : i32
    %c0_i32_0 = arith.constant 0 : i32
    %c0_i32_1 = arith.constant 0 : i32
    %c0_i32_2 = arith.constant 0 : i32
    return %arg0, %c0_i32, %c0_i32_0, %c0_i32_1 : i32, i32, i32, i32
  }
}

</mosaic_0001>

<llo_original>
// kernel: tpu_custom_call.1
$region0: #{tpu_custom_call.1}
  #allocation0 [shape = 'u32[]', space=smem, size = 0x4, offset = 0x4, fixed_abs, tag = 'smem constant byte address 0x4 - core index']
  #allocation1 [shape = 'u32[144,128]{1,0:T(1,128)}', space=vmem, size = 0x12000, scoped, tag = 'internal scratch']
  #allocation2 [shape = 'f32[18,24,128]{2,1,0:T(8,128)}', space=vmem, size = 0x36000, scoped, tag = 'scratch operand']
  #allocation3 [shape = 'f32[16,16,1152]{2,1,0:T(8,128)}', space=vmem, size = 0x120000, scoped, tag = 'scratch operand']
  %s0 = inlined_call_operand.hbm [shape: f32[2,16,16,128], index: 0, kind: input, shape index: {}]
  %s1 = inlined_call_operand.hbm [shape: f32[1152,128], index: 1, kind: input, shape index: {}]
  %s2 = inlined_call_operand.hbm [shape: f32[1152,128], index: 2, kind: input, shape index: {}]
  %s3 = inlined_call_operand.hbm [shape: f32[2,16,16,128], index: 3, kind: output, shape index: {}]
  %s4 = sld [smem:[#allocation0]]
  $region57: #{tpu_custom_call.1} parent=0
    _
  %s6 = ssub.s32 1, %s4
  %s7 = scalar_select 0, %s6, %s4
  $region1: #{tpu_custom_call.1} parent=0
    #allocation4 [shape = 'u8[262144]{0}', space=vmem, size = 0x40000, scoped, tag = 'input window, operand 0']
    #allocation5 [shape = 's32[2]{0}', space=sflag, size = 0x8, scoped, tag = 'scoped memory for tpu_custom_call.1']
    #allocation6 [shape = 's32[2]{0}', space=sflag, size = 0x8, scoped, tag = 'scoped memory for tpu_custom_call.1']
    #allocation7 [shape = 'u8[589824]{0}', space=vmem, size = 0x90000, scoped, tag = 'input window, operand 1, single buffered']
    #allocation8 [shape = 's32[1]{0}', space=sflag, size = 0x4, scoped, tag = 'scoped memory for tpu_custom_call.1']
    #allocation9 [shape = 'u8[589824]{0}', space=vmem, size = 0x90000, scoped, tag = 'input window, operand 2, single buffered']
    #allocation10 [shape = 'u8[262144]{0}', space=vmem, size = 0x40000, scoped, tag = 'output window, operand 0']
    %8 = vsyncpa [#allocation5], 0
    %s9 = scalar_lea.sflag [#allocation5], 1
    %10 = vsyncpa %s9, 0
    %11 = vsyncpa [#allocation8], 0
    %12 = vsyncpa [#allocation6], 0
    %s13 = scalar_lea.sflag [#allocation6], 1
    %14 = vsyncpa %s13, 0
    loop: start=0, step=1, limit=4
    $region2: #{tpu_custom_call.1} parent=1 // loop_pre_header
      _
    $region3: #{tpu_custom_call.1} parent=1 // loop_header
      %s16 = sphi 0, %s20
      %p17 = scmp.ge.s32.totalorder %s16, 4
      %s26 = sphi 0, %s28
      %s29 = sphi 0, %s26
      %s30 = sphi 0, %s29
      %s46 = sphi 0, %s30
      %s50 = sphi 0, %s50
      %s52 = sphi 0, %s50
      %s53 = sphi 0, %s52
      %s67 = sphi 0, %s53
      %s71 = sphi 0, %s71
      %s73 = sphi 0, %s71
      %s74 = sphi 0, %s73
      %s88 = sphi 0, %s74
      %s94 = sphi 0, %s96
      %s97 = sphi 0, %s94
      %s98 = sphi 0, %s97
      %s114 = sphi 0, %s98
    $region4: #{tpu_custom_call.1} parent=1 // loop_header_branch
      %19 = sbr.rel (%p17) target = $region8
    $region5: #{tpu_custom_call.1} parent=1 // loop_body
      %s21 = ssub.s32 %s16, 1
      %s22 = ssub.s32 %s16, 2
      %s23 = sadd.s32 %s16, 1
      %s24 = ssub.s32 %s16, %s23
      %p25 = scmp.eq.s32.totalorder %s24, 0
      %s27 = sadd.s32 %s26, 1
      %s28 = scalar_select %p25, %s26, %s27
      %p31 = pneg %p25
      %p32 = scmp.eq.s32.totalorder %s16, 1
      %p33 = por %p31, %p32
      %p34 = scmp.ne.s32.totalorder %s26, %s29
      %p35 = scmp.eq.s32.totalorder %s16, 0
      %p36 = por %p34, %p35
      %p37 = scmp.ne.s32.totalorder %s26, %s29
      %p38 = scmp.eq.s32.totalorder %s21, 1
      %p39 = por %p37, %p38
      %p40 = scmp.ne.s32.totalorder %s29, %s30
      %p41 = scmp.eq.s32.totalorder %s21, 0
      %p42 = por %p40, %p41
      %p43 = scmp.ne.s32.totalorder %s29, %s30
      %p44 = scmp.eq.s32.totalorder %s22, 1
      %p45 = por %p43, %p44
      %p47 = scmp.ne.s32.totalorder %s30, %s46
      %p48 = scmp.eq.s32.totalorder %s22, 0
      %p49 = por %p47, %p48
      %s51 = sadd.s32 %s50, 1
      %p54 = scmp.eq.s32.totalorder %s16, 1
      %p55 = scmp.ne.s32.totalorder %s50, %s52
      %p56 = scmp.eq.s32.totalorder %s16, 0
      %p57 = por %p55, %p56
      %p58 = scmp.ne.s32.totalorder %s50, %s52
      %p59 = scmp.eq.s32.totalorder %s21, 1
      %p60 = por %p58, %p59
      %p61 = scmp.ne.s32.totalorder %s52, %s53
      %p62 = scmp.eq.s32.totalorder %s21, 0
      %p63 = por %p61, %p62
      %p64 = scmp.ne.s32.totalorder %s52, %s53
      %p65 = scmp.eq.s32.totalorder %s22, 1
      %p66 = por %p64, %p65
      %p68 = scmp.ne.s32.totalorder %s53, %s67
      %p69 = scmp.eq.s32.totalorder %s22, 0
      %p70 = por %p68, %p69
      %s72 = sadd.s32 %s71, 1
      %p75 = scmp.eq.s32.totalorder %s16, 1
      %p76 = scmp.ne.s32.totalorder %s71, %s73
      %p77 = scmp.eq.s32.totalorder %s16, 0
      %p78 = por %p76, %p77
      %p79 = scmp.ne.s32.totalorder %s71, %s73
      %p80 = scmp.eq.s32.totalorder %s21, 1
      %p81 = por %p79, %p80
      %p82 = scmp.ne.s32.totalorder %s73, %s74
      %p83 = scmp.eq.s32.totalorder %s21, 0
      %p84 = por %p82, %p83
      %p85 = scmp.ne.s32.totalorder %s73, %s74
      %p86 = scmp.eq.s32.totalorder %s22, 1
      %p87 = por %p85, %p86
      %p89 = scmp.ne.s32.totalorder %s74, %s88
      %p90 = scmp.eq.s32.totalorder %s22, 0
      %p91 = por %p89, %p90
      %s92 = ssub.s32 %s16, %s23
      %p93 = scmp.eq.s32.totalorder %s92, 0
      %s95 = sadd.s32 %s94, 1
      %s96 = scalar_select %p93, %s94, %s95
      %p99 = pneg %p93
      %p100 = scmp.eq.s32.totalorder %s16, 1
      %p101 = por %p99, %p100
      %p102 = scmp.ne.s32.totalorder %s94, %s97
      %p103 = scmp.eq.s32.totalorder %s16, 0
      %p104 = por %p102, %p103
      %p105 = scmp.ne.s32.totalorder %s94, %s97
      %p106 = scmp.eq.s32.totalorder %s21, 1
      %p107 = por %p105, %p106
      %p108 = scmp.ne.s32.totalorder %s97, %s98
      %p109 = scmp.eq.s32.totalorder %s21, 0
      %p110 = por %p108, %p109
      %p111 = scmp.ne.s32.totalorder %s97, %s98
      %p112 = scmp.eq.s32.totalorder %s22, 1
      %p113 = por %p111, %p112
      %p115 = scmp.ne.s32.totalorder %s98, %s114
      %p116 = scmp.eq.s32.totalorder %s22, 0
      %p117 = por %p115, %p116
      %p118 = scmp.le.s32.totalorder 1, %s16
      %p119 = scmp.lt.s32.totalorder %s16, 3
      %p120 = pnand %p118, %p119
      %p121 = pneg %p120
      // Predicated region
      $region9: #{tpu_custom_call.1} parent=5 // pred_check
        _
      $region10: #{tpu_custom_call.1} parent=5 // pred_check_branch
        %123 = sbr.rel (%p120) target = $region12
      $region11: #{tpu_custom_call.1} parent=5 // pred_region
        %s124 = ssub.s32 %s16, 1
        // Predicated region
        $region13: #{tpu_custom_call.1} parent=11 // pred_check
          %p125 = pneg %p63
        $region14: #{tpu_custom_call.1} parent=11 // pred_check_branch
          %127 = sbr.rel (%p125) target = $region16
        $region15: #{tpu_custom_call.1} parent=11 // pred_region
          %s129 = ssub.s32 18432, 18432
          %130 = vsyncadd [#allocation8], %s129
          %s131 = sshll.u32 [#allocation7], 4
          %s132 = int_to_ptr.vmem [resolvable:$true] %s131
          %137 = dma.hbm_to_vmem [thread:$0]  %s1, 18432, %s132, [#allocation8], 128, 128, 8
        $region16: #{tpu_custom_call.1} parent=11 // pred_fallthru
          _
        // Predicated region
        $region17: #{tpu_custom_call.1} parent=11 // pred_check
          %p138 = pneg %p84
        $region18: #{tpu_custom_call.1} parent=11 // pred_check_branch
          %140 = sbr.rel (%p138) target = $region20
        $region19: #{tpu_custom_call.1} parent=11 // pred_region
          %s142 = ssub.s32 18432, 18432
          %143 = vsyncadd [#allocation8], %s142
          %s144 = sshll.u32 [#allocation9], 4
          %s145 = int_to_ptr.vmem [resolvable:$true] %s144
          %150 = dma.hbm_to_vmem [thread:$0]  %s2, 18432, %s145, [#allocation8], 128, 128, 8
        $region20: #{tpu_custom_call.1} parent=11 // pred_fallthru
          _
      $region12: #{tpu_custom_call.1} parent=5 // pred_fallthru
        _
      %p151 = scmp.lt.s32.totalorder %s16, 2
      // Predicated region
      $region21: #{tpu_custom_call.1} parent=5 // pred_check
        %p152 = pneg %p151
      $region22: #{tpu_custom_call.1} parent=5 // pred_check_branch
        %154 = sbr.rel (%p152) target = $region24
      $region23: #{tpu_custom_call.1} parent=5 // pred_region
        // Predicated region
        $region25: #{tpu_custom_call.1} parent=23 // pred_check
          %p155 = pneg %p36
        $region26: #{tpu_custom_call.1} parent=23 // pred_check_branch
          %157 = sbr.rel (%p155) target = $region28
        $region27: #{tpu_custom_call.1} parent=23 // pred_region
          %s158 = sand.u32 %s26, 1
          %s159 = scalar_lea.sflag [#allocation5], %s158
          %s160 = sand.u32 %s26, 1
          %s161 = smul.addr %s160, 256
          %s162 = scalar_lea.vmem [#allocation4], %s161
          %s164 = ssub.s32 4096, 4096
          %165 = vsyncadd %s159, %s164
          %s166 = smul.addr %s16, 32
          %s167 = smul.addr %s166, 128
          %s168 = scalar_lea.hbm %s0, %s167
          %s169 = sshll.u32 %s162, 4
          %s170 = int_to_ptr.vmem [resolvable:$true] %s169
          %175 = dma.hbm_to_vmem [thread:$0]  %s168, 4096, %s170, %s159, 128, 128, 8
        $region28: #{tpu_custom_call.1} parent=23 // pred_fallthru
          _
      $region24: #{tpu_custom_call.1} parent=5 // pred_fallthru
        _
      %p176 = scmp.le.s32.totalorder 1, %s16
      %p177 = scmp.lt.s32.totalorder %s16, 3
      %p178 = pnand %p176, %p177
      %p179 = pneg %p178
      // Predicated region
      $region29: #{tpu_custom_call.1} parent=5 // pred_check
        _
      $region30: #{tpu_custom_call.1} parent=5 // pred_check_branch
        %181 = sbr.rel (%p178) target = $region32
      $region31: #{tpu_custom_call.1} parent=5 // pred_region
        %s182 = ssub.s32 %s16, 1
        %s183 = sand.u32 %s29, 1
        %s184 = scalar_lea.sflag [#allocation5], %s183
        %s185 = sand.u32 %s29, 1
        %s186 = smul.addr %s185, 256
        %s187 = scalar_lea.vmem [#allocation4], %s186
        // Predicated region
        $region33: #{tpu_custom_call.1} parent=31 // pred_check
          %p188 = pneg %p42
        $region34: #{tpu_custom_call.1} parent=31 // pred_check_branch
          %190 = sbr.rel (%p188) target = $region36
        $region35: #{tpu_custom_call.1} parent=31 // pred_region
          %191 = dma.done %s184, 4096
        $region36: #{tpu_custom_call.1} parent=31 // pred_fallthru
          _
        // Predicated region
        $region37: #{tpu_custom_call.1} parent=31 // pred_check
          %p192 = pneg %p63
        $region38: #{tpu_custom_call.1} parent=31 // pred_check_branch
          %194 = sbr.rel (%p192) target = $region40
        $region39: #{tpu_custom_call.1} parent=31 // pred_region
          %195 = dma.done [#allocation8], 18432
        $region40: #{tpu_custom_call.1} parent=31 // pred_fallthru
          _
        // Predicated region
        $region41: #{tpu_custom_call.1} parent=31 // pred_check
          %p196 = pneg %p84
        $region42: #{tpu_custom_call.1} parent=31 // pred_check_branch
          %198 = sbr.rel (%p196) target = $region44
        $region43: #{tpu_custom_call.1} parent=31 // pred_region
          %199 = dma.done [#allocation8], 18432
        $region44: #{tpu_custom_call.1} parent=31 // pred_fallthru
          _
        %s200 = sand.u32 %s29, 1
        %s201 = scalar_lea.sflag [#allocation5], %s200
        %s202 = sand.u32 %s29, 1
        %s203 = smul.addr %s202, 256
        %s204 = scalar_lea.vmem [#allocation4], %s203
        %p205 = pneg %p42
        %p206 = pneg %p39
        %p207 = pneg %p63
        %p208 = pneg %p60
        %p209 = pneg %p84
        %p210 = pneg %p81
        %p211 = pneg %p110
        %p212 = pneg %p107
        %s213 = sand.u32 %s97, 1
        %s214 = scalar_lea.sflag [#allocation6], %s213
        %s215 = sand.u32 %s97, 1
        %s216 = smul.addr %s215, 256
        %s217 = scalar_lea.vmem [#allocation10], %s216
        %v218 = vld [vmem:[%s187] sm:$0xff]
        %v219 = vld [vmem:[%s187 + $0x8] sm:$0xff]
        %v220 = vld [vmem:[%s187 + $0x10] sm:$0xff]
        %v221 = vld [vmem:[%s187 + $0x18] sm:$0xff]
        %v222 = vld [vmem:[%s187 + $0x20] sm:$0xff]
        %v223 = vld [vmem:[%s187 + $0x28] sm:$0xff]
        %v224 = vld [vmem:[%s187 + $0x30] sm:$0xff]
        %v225 = vld [vmem:[%s187 + $0x38] sm:$0xff]
        %v226 = vld [vmem:[%s187 + $0x40] sm:$0xff]
        %v227 = vld [vmem:[%s187 + $0x48] sm:$0xff]
        %v228 = vld [vmem:[%s187 + $0x50] sm:$0xff]
        %v229 = vld [vmem:[%s187 + $0x58] sm:$0xff]
        %v230 = vld [vmem:[%s187 + $0x60] sm:$0xff]
        %v231 = vld [vmem:[%s187 + $0x68] sm:$0xff]
        %v232 = vld [vmem:[%s187 + $0x70] sm:$0xff]
        %v233 = vld [vmem:[%s187 + $0x78] sm:$0xff]
        %v234 = vld [vmem:[%s187 + $0x80] sm:$0xff]
        %v235 = vld [vmem:[%s187 + $0x88] sm:$0xff]
        %v236 = vld [vmem:[%s187 + $0x90] sm:$0xff]
        %v237 = vld [vmem:[%s187 + $0x98] sm:$0xff]
        %v238 = vld [vmem:[%s187 + $0xa0] sm:$0xff]
        %v239 = vld [vmem:[%s187 + $0xa8] sm:$0xff]
        %v240 = vld [vmem:[%s187 + $0xb0] sm:$0xff]
        %v241 = vld [vmem:[%s187 + $0xb8] sm:$0xff]
        %v242 = vld [vmem:[%s187 + $0xc0] sm:$0xff]
        %v243 = vld [vmem:[%s187 + $0xc8] sm:$0xff]
        %v244 = vld [vmem:[%s187 + $0xd0] sm:$0xff]
        %v245 = vld [vmem:[%s187 + $0xd8] sm:$0xff]
        %v246 = vld [vmem:[%s187 + $0xe0] sm:$0xff]
        %v247 = vld [vmem:[%s187 + $0xe8] sm:$0xff]
        %v248 = vld [vmem:[%s187 + $0xf0] sm:$0xff]
        %v249 = vld [vmem:[%s187 + $0xf8] sm:$0xff]
        %s250 = scalar_lea.vmem [#allocation2], 24
        %251 = vst [vmem:[%s250 + $0x1] sm:$0xff] %v218
        %252 = vst [vmem:[%s250 + $0x9] sm:$0xff] %v219
        %253 = vst [vmem:[%s250 + $0x19] sm:$0xff] %v220
        %254 = vst [vmem:[%s250 + $0x21] sm:$0xff] %v221
        %255 = vst [vmem:[%s250 + $0x31] sm:$0xff] %v222
        %256 = vst [vmem:[%s250 + $0x39] sm:$0xff] %v223
        %257 = vst [vmem:[%s250 + $0x49] sm:$0xff] %v224
        %258 = vst [vmem:[%s250 + $0x51] sm:$0xff] %v225
        %259 = vst [vmem:[%s250 + $0x61] sm:$0xff] %v226
        %260 = vst [vmem:[%s250 + $0x69] sm:$0xff] %v227
        %261 = vst [vmem:[%s250 + $0x79] sm:$0xff] %v228
        %262 = vst [vmem:[%s250 + $0x81] sm:$0xff] %v229
        %263 = vst [vmem:[%s250 + $0x91] sm:$0xff] %v230
        %264 = vst [vmem:[%s250 + $0x99] sm:$0xff] %v231
        %265 = vst [vmem:[%s250 + $0xa9] sm:$0xff] %v232
        %266 = vst [vmem:[%s250 + $0xb1] sm:$0xff] %v233
        %267 = vst [vmem:[%s250 + $0xc1] sm:$0xff] %v234
        %268 = vst [vmem:[%s250 + $0xc9] sm:$0xff] %v235
        %269 = vst [vmem:[%s250 + $0xd9] sm:$0xff] %v236
        %270 = vst [vmem:[%s250 + $0xe1] sm:$0xff] %v237
        %271 = vst [vmem:[%s250 + $0xf1] sm:$0xff] %v238
        %272 = vst [vmem:[%s250 + $0xf9] sm:$0xff] %v239
        %273 = vst [vmem:[%s250 + $0x109] sm:$0xff] %v240
        %274 = vst [vmem:[%s250 + $0x111] sm:$0xff] %v241
        %275 = vst [vmem:[%s250 + $0x121] sm:$0xff] %v242
        %276 = vst [vmem:[%s250 + $0x129] sm:$0xff] %v243
        %277 = vst [vmem:[%s250 + $0x139] sm:$0xff] %v244
        %278 = vst [vmem:[%s250 + $0x141] sm:$0xff] %v245
        %279 = vst [vmem:[%s250 + $0x151] sm:$0xff] %v246
        %280 = vst [vmem:[%s250 + $0x159] sm:$0xff] %v247
        %281 = vst [vmem:[%s250 + $0x169] sm:$0xff] %v248
        %282 = vst [vmem:[%s250 + $0x171] sm:$0xff] %v249
        %s283 = scalar_lea.vmem [#allocation2], 48
        %v284 = vld [vmem:[%s283 + $0x1] sm:$0xff]
        %v285 = vld [vmem:[%s283 + $0x9] sm:$0xff]
        %286 = vst [vmem:[#allocation2 + $0x1] sm:$0xff] %v284
        %287 = vst [vmem:[#allocation2 + $0x9] sm:$0xff] %v285
        %s288 = scalar_lea.vmem [#allocation2], 360
        %v289 = vld [vmem:[%s288 + $0x1] sm:$0xff]
        %v290 = vld [vmem:[%s288 + $0x9] sm:$0xff]
        %s291 = scalar_lea.vmem [#allocation2], 408
        %292 = vst [vmem:[%s291 + $0x1] sm:$0xff] %v289
        %293 = vst [vmem:[%s291 + $0x9] sm:$0xff] %v290
        %v294 = vld [vmem:[#allocation2 + $0x2] sm:$0x1]
        %v295 = vld [vmem:[#allocation2 + $0x1a] sm:$0x1]
        %v296 = vld [vmem:[#allocation2 + $0x32] sm:$0x1]
        %v297 = vld [vmem:[#allocation2 + $0x4a] sm:$0x1]
        %v298 = vld [vmem:[#allocation2 + $0x62] sm:$0x1]
        %v299 = vld [vmem:[#allocation2 + $0x7a] sm:$0x1]
        %v300 = vld [vmem:[#allocation2 + $0x92] sm:$0x1]
        %v301 = vld [vmem:[#allocation2 + $0xaa] sm:$0x1]
        %v302 = vld [vmem:[#allocation2 + $0xc2] sm:$0x1]
        %v303 = vld [vmem:[#allocation2 + $0xda] sm:$0x1]
        %v304 = vld [vmem:[#allocation2 + $0xf2] sm:$0x1]
        %v305 = vld [vmem:[#allocation2 + $0x10a] sm:$0x1]
        %v306 = vld [vmem:[#allocation2 + $0x122] sm:$0x1]
        %v307 = vld [vmem:[#allocation2 + $0x13a] sm:$0x1]
        %v308 = vld [vmem:[#allocation2 + $0x152] sm:$0x1]
        %v309 = vld [vmem:[#allocation2 + $0x16a] sm:$0x1]
        %v310 = vld [vmem:[#allocation2 + $0x182] sm:$0x1]
        %v311 = vld [vmem:[#allocation2 + $0x19a] sm:$0x1]
        %312 = vst [vmem:[#allocation2] sm:$0x1] %v294
        %313 = vst [vmem:[#allocation2 + $0x18] sm:$0x1] %v295
        %314 = vst [vmem:[#allocation2 + $0x30] sm:$0x1] %v296
        %315 = vst [vmem:[#allocation2 + $0x48] sm:$0x1] %v297
        %316 = vst [vmem:[#allocation2 + $0x60] sm:$0x1] %v298
        %317 = vst [vmem:[#allocation2 + $0x78] sm:$0x1] %v299
        %318 = vst [vmem:[#allocation2 + $0x90] sm:$0x1] %v300
        %319 = vst [vmem:[#allocation2 + $0xa8] sm:$0x1] %v301
        %320 = vst [vmem:[#allocation2 + $0xc0] sm:$0x1] %v302
        %321 = vst [vmem:[#allocation2 + $0xd8] sm:$0x1] %v303
        %322 = vst [vmem:[#allocation2 + $0xf0] sm:$0x1] %v304
        %323 = vst [vmem:[#allocation2 + $0x108] sm:$0x1] %v305
        %324 = vst [vmem:[#allocation2 + $0x120] sm:$0x1] %v306
        %325 = vst [vmem:[#allocation2 + $0x138] sm:$0x1] %v307
        %326 = vst [vmem:[#allocation2 + $0x150] sm:$0x1] %v308
        %327 = vst [vmem:[#allocation2 + $0x168] sm:$0x1] %v309
        %328 = vst [vmem:[#allocation2 + $0x180] sm:$0x1] %v310
        %329 = vst [vmem:[#allocation2 + $0x198] sm:$0x1] %v311
        %v330 = vld [vmem:[#allocation2 + $0xf] sm:$0x1]
        %v331 = vld [vmem:[#allocation2 + $0x27] sm:$0x1]
        %v332 = vld [vmem:[#allocation2 + $0x3f] sm:$0x1]
        %v333 = vld [vmem:[#allocation2 + $0x57] sm:$0x1]
        %v334 = vld [vmem:[#allocation2 + $0x6f] sm:$0x1]
        %v335 = vld [vmem:[#allocation2 + $0x87] sm:$0x1]
        %v336 = vld [vmem:[#allocation2 + $0x9f] sm:$0x1]
        %v337 = vld [vmem:[#allocation2 + $0xb7] sm:$0x1]
        %v338 = vld [vmem:[#allocation2 + $0xcf] sm:$0x1]
        %v339 = vld [vmem:[#allocation2 + $0xe7] sm:$0x1]
        %v340 = vld [vmem:[#allocation2 + $0xff] sm:$0x1]
        %v341 = vld [vmem:[#allocation2 + $0x117] sm:$0x1]
        %v342 = vld [vmem:[#allocation2 + $0x12f] sm:$0x1]
        %v343 = vld [vmem:[#allocation2 + $0x147] sm:$0x1]
        %v344 = vld [vmem:[#allocation2 + $0x15f] sm:$0x1]
        %v345 = vld [vmem:[#allocation2 + $0x177] sm:$0x1]
        %v346 = vld [vmem:[#allocation2 + $0x18f] sm:$0x1]
        %v347 = vld [vmem:[#allocation2 + $0x1a7] sm:$0x1]
        %348 = vst [vmem:[#allocation2 + $0x11] sm:$0x1] %v330
        %349 = vst [vmem:[#allocation2 + $0x29] sm:$0x1] %v331
        %350 = vst [vmem:[#allocation2 + $0x41] sm:$0x1] %v332
        %351 = vst [vmem:[#allocation2 + $0x59] sm:$0x1] %v333
        %352 = vst [vmem:[#allocation2 + $0x71] sm:$0x1] %v334
        %353 = vst [vmem:[#allocation2 + $0x89] sm:$0x1] %v335
        %354 = vst [vmem:[#allocation2 + $0xa1] sm:$0x1] %v336
        %355 = vst [vmem:[#allocation2 + $0xb9] sm:$0x1] %v337
        %356 = vst [vmem:[#allocation2 + $0xd1] sm:$0x1] %v338
        %357 = vst [vmem:[#allocation2 + $0xe9] sm:$0x1] %v339
        %358 = vst [vmem:[#allocation2 + $0x101] sm:$0x1] %v340
        %359 = vst [vmem:[#allocation2 + $0x119] sm:$0x1] %v341
        %360 = vst [vmem:[#allocation2 + $0x131] sm:$0x1] %v342
        %361 = vst [vmem:[#allocation2 + $0x149] sm:$0x1] %v343
        %362 = vst [vmem:[#allocation2 + $0x161] sm:$0x1] %v344
        %363 = vst [vmem:[#allocation2 + $0x179] sm:$0x1] %v345
        %364 = vst [vmem:[#allocation2 + $0x191] sm:$0x1] %v346
        %365 = vst [vmem:[#allocation2 + $0x1a9] sm:$0x1] %v347
        %v366 = vld [vmem:[#allocation2] sm:$0xff]
        %v367 = vld [vmem:[#allocation2 + $0x8] sm:$0xff]
        %v368 = vld [vmem:[#allocation2 + $0x18] sm:$0xff]
        %v369 = vld [vmem:[#allocation2 + $0x20] sm:$0xff]
        %v370 = vld [vmem:[#allocation2 + $0x30] sm:$0xff]
        %v371 = vld [vmem:[#allocation2 + $0x38] sm:$0xff]
        %v372 = vld [vmem:[#allocation2 + $0x48] sm:$0xff]
        %v373 = vld [vmem:[#allocation2 + $0x50] sm:$0xff]
        %v374 = vld [vmem:[#allocation2 + $0x60] sm:$0xff]
        %v375 = vld [vmem:[#allocation2 + $0x68] sm:$0xff]
        %v376 = vld [vmem:[#allocation2 + $0x78] sm:$0xff]
        %v377 = vld [vmem:[#allocation2 + $0x80] sm:$0xff]
        %v378 = vld [vmem:[#allocation2 + $0x90] sm:$0xff]
        %v379 = vld [vmem:[#allocation2 + $0x98] sm:$0xff]
        %v380 = vld [vmem:[#allocation2 + $0xa8] sm:$0xff]
        %v381 = vld [vmem:[#allocation2 + $0xb0] sm:$0xff]
        %v382 = vld [vmem:[#allocation2 + $0xc0] sm:$0xff]
        %v383 = vld [vmem:[#allocation2 + $0xc8] sm:$0xff]
        %v384 = vld [vmem:[#allocation2 + $0xd8] sm:$0xff]
        %v385 = vld [vmem:[#allocation2 + $0xe0] sm:$0xff]
        %v386 = vld [vmem:[#allocation2 + $0xf0] sm:$0xff]
        %v387 = vld [vmem:[#allocation2 + $0xf8] sm:$0xff]
        %v388 = vld [vmem:[#allocation2 + $0x108] sm:$0xff]
        %v389 = vld [vmem:[#allocation2 + $0x110] sm:$0xff]
        %v390 = vld [vmem:[#allocation2 + $0x120] sm:$0xff]
        %v391 = vld [vmem:[#allocation2 + $0x128] sm:$0xff]
        %v392 = vld [vmem:[#allocation2 + $0x138] sm:$0xff]
        %v393 = vld [vmem:[#allocation2 + $0x140] sm:$0xff]
        %v394 = vld [vmem:[#allocation2 + $0x150] sm:$0xff]
        %v395 = vld [vmem:[#allocation2 + $0x158] sm:$0xff]
        %v396 = vld [vmem:[#allocation2 + $0x168] sm:$0xff]
        %v397 = vld [vmem:[#allocation2 + $0x170] sm:$0xff]
        %398 = vst [vmem:[#allocation3] sm:$0xff] %v366
        %399 = vst [vmem:[#allocation3 + $0x48] sm:$0xff] %v367
        %400 = vst [vmem:[#allocation3 + $0x90] sm:$0xff] %v368
        %401 = vst [vmem:[#allocation3 + $0xd8] sm:$0xff] %v369
        %402 = vst [vmem:[#allocation3 + $0x120] sm:$0xff] %v370
        %403 = vst [vmem:[#allocation3 + $0x168] sm:$0xff] %v371
        %404 = vst [vmem:[#allocation3 + $0x1b0] sm:$0xff] %v372
        %405 = vst [vmem:[#allocation3 + $0x1f8] sm:$0xff] %v373
        %406 = vst [vmem:[#allocation3 + $0x240] sm:$0xff] %v374
        %407 = vst [vmem:[#allocation3 + $0x288] sm:$0xff] %v375
        %408 = vst [vmem:[#allocation3 + $0x2d0] sm:$0xff] %v376
        %409 = vst [vmem:[#allocation3 + $0x318] sm:$0xff] %v377
        %410 = vst [vmem:[#allocation3 + $0x360] sm:$0xff] %v378
        %411 = vst [vmem:[#allocation3 + $0x3a8] sm:$0xff] %v379
        %412 = vst [vmem:[#allocation3 + $0x3f0] sm:$0xff] %v380
        %413 = vst [vmem:[#allocation3 + $0x438] sm:$0xff] %v381
        %414 = vst [vmem:[#allocation3 + $0x480] sm:$0xff] %v382
        %415 = vst [vmem:[#allocation3 + $0x4c8] sm:$0xff] %v383
        %416 = vst [vmem:[#allocation3 + $0x510] sm:$0xff] %v384
        %417 = vst [vmem:[#allocation3 + $0x558] sm:$0xff] %v385
        %418 = vst [vmem:[#allocation3 + $0x5a0] sm:$0xff] %v386
        %419 = vst [vmem:[#allocation3 + $0x5e8] sm:$0xff] %v387
        %420 = vst [vmem:[#allocation3 + $0x630] sm:$0xff] %v388
        %421 = vst [vmem:[#allocation3 + $0x678] sm:$0xff] %v389
        %422 = vst [vmem:[#allocation3 + $0x6c0] sm:$0xff] %v390
        %423 = vst [vmem:[#allocation3 + $0x708] sm:$0xff] %v391
        %424 = vst [vmem:[#allocation3 + $0x750] sm:$0xff] %v392
        %425 = vst [vmem:[#allocation3 + $0x798] sm:$0xff] %v393
        %426 = vst [vmem:[#allocation3 + $0x7e0] sm:$0xff] %v394
        %427 = vst [vmem:[#allocation3 + $0x828] sm:$0xff] %v395
        %428 = vst [vmem:[#allocation3 + $0x870] sm:$0xff] %v396
        %429 = vst [vmem:[#allocation3 + $0x8b8] sm:$0xff] %v397
        %v430 = vld [vmem:[#allocation2 + $0x1] sm:$0xff]
        %v431 = vld [vmem:[#allocation2 + $0x9] sm:$0xff]
        %v432 = vld [vmem:[#allocation2 + $0x19] sm:$0xff]
        %v433 = vld [vmem:[#allocation2 + $0x21] sm:$0xff]
        %v434 = vld [vmem:[#allocation2 + $0x31] sm:$0xff]
        %v435 = vld [vmem:[#allocation2 + $0x39] sm:$0xff]
        %v436 = vld [vmem:[#allocation2 + $0x49] sm:$0xff]
        %v437 = vld [vmem:[#allocation2 + $0x51] sm:$0xff]
        %v438 = vld [vmem:[#allocation2 + $0x61] sm:$0xff]
        %v439 = vld [vmem:[#allocation2 + $0x69] sm:$0xff]
        %v440 = vld [vmem:[#allocation2 + $0x79] sm:$0xff]
        %v441 = vld [vmem:[#allocation2 + $0x81] sm:$0xff]
        %v442 = vld [vmem:[#allocation2 + $0x91] sm:$0xff]
        %v443 = vld [vmem:[#allocation2 + $0x99] sm:$0xff]
        %v444 = vld [vmem:[#allocation2 + $0xa9] sm:$0xff]
        %v445 = vld [vmem:[#allocation2 + $0xb1] sm:$0xff]
        %v446 = vld [vmem:[#allocation2 + $0xc1] sm:$0xff]
        %v447 = vld [vmem:[#allocation2 + $0xc9] sm:$0xff]
        %v448 = vld [vmem:[#allocation2 + $0xd9] sm:$0xff]
        %v449 = vld [vmem:[#allocation2 + $0xe1] sm:$0xff]
        %v450 = vld [vmem:[#allocation2 + $0xf1] sm:$0xff]
        %v451 = vld [vmem:[#allocation2 + $0xf9] sm:$0xff]
        %v452 = vld [vmem:[#allocation2 + $0x109] sm:$0xff]
        %v453 = vld [vmem:[#allocation2 + $0x111] sm:$0xff]
        %v454 = vld [vmem:[#allocation2 + $0x121] sm:$0xff]
        %v455 = vld [vmem:[#allocation2 + $0x129] sm:$0xff]
        %v456 = vld [vmem:[#allocation2 + $0x139] sm:$0xff]
        %v457 = vld [vmem:[#allocation2 + $0x141] sm:$0xff]
        %v458 = vld [vmem:[#allocation2 + $0x151] sm:$0xff]
        %v459 = vld [vmem:[#allocation2 + $0x159] sm:$0xff]
        %v460 = vld [vmem:[#allocation2 + $0x169] sm:$0xff]
        %v461 = vld [vmem:[#allocation2 + $0x171] sm:$0xff]
        %462 = vst [vmem:[#allocation3 + $0x8] sm:$0xff] %v430
        %463 = vst [vmem:[#allocation3 + $0x50] sm:$0xff] %v431
        %464 = vst [vmem:[#allocation3 + $0x98] sm:$0xff] %v432
        %465 = vst [vmem:[#allocation3 + $0xe0] sm:$0xff] %v433
        %466 = vst [vmem:[#allocation3 + $0x128] sm:$0xff] %v434
        %467 = vst [vmem:[#allocation3 + $0x170] sm:$0xff] %v435
        %468 = vst [vmem:[#allocation3 + $0x1b8] sm:$0xff] %v436
        %469 = vst [vmem:[#allocation3 + $0x200] sm:$0xff] %v437
        %470 = vst [vmem:[#allocation3 + $0x248] sm:$0xff] %v438
        %471 = vst [vmem:[#allocation3 + $0x290] sm:$0xff] %v439
        %472 = vst [vmem:[#allocation3 + $0x2d8] sm:$0xff] %v440
        %473 = vst [vmem:[#allocation3 + $0x320] sm:$0xff] %v441
        %474 = vst [vmem:[#allocation3 + $0x368] sm:$0xff] %v442
        %475 = vst [vmem:[#allocation3 + $0x3b0] sm:$0xff] %v443
        %476 = vst [vmem:[#allocation3 + $0x3f8] sm:$0xff] %v444
        %477 = vst [vmem:[#allocation3 + $0x440] sm:$0xff] %v445
        %478 = vst [vmem:[#allocation3 + $0x488] sm:$0xff] %v446
        %479 = vst [vmem:[#allocation3 + $0x4d0] sm:$0xff] %v447
        %480 = vst [vmem:[#allocation3 + $0x518] sm:$0xff] %v448
        %481 = vst [vmem:[#allocation3 + $0x560] sm:$0xff] %v449
        %482 = vst [vmem:[#allocation3 + $0x5a8] sm:$0xff] %v450
        %483 = vst [vmem:[#allocation3 + $0x5f0] sm:$0xff] %v451
        %484 = vst [vmem:[#allocation3 + $0x638] sm:$0xff] %v452
        %485 = vst [vmem:[#allocation3 + $0x680] sm:$0xff] %v453
        %486 = vst [vmem:[#allocation3 + $0x6c8] sm:$0xff] %v454
        %487 = vst [vmem:[#allocation3 + $0x710] sm:$0xff] %v455
        %488 = vst [vmem:[#allocation3 + $0x758] sm:$0xff] %v456
        %489 = vst [vmem:[#allocation3 + $0x7a0] sm:$0xff] %v457
        %490 = vst [vmem:[#allocation3 + $0x7e8] sm:$0xff] %v458
        %491 = vst [vmem:[#allocation3 + $0x830] sm:$0xff] %v459
        %492 = vst [vmem:[#allocation3 + $0x878] sm:$0xff] %v460
        %493 = vst [vmem:[#allocation3 + $0x8c0] sm:$0xff] %v461
        %v494 = vld [vmem:[#allocation2 + $0x2] sm:$0xff]
        %v495 = vld [vmem:[#allocation2 + $0xa] sm:$0xff]
        %v496 = vld [vmem:[#allocation2 + $0x1a] sm:$0xff]
        %v497 = vld [vmem:[#allocation2 + $0x22] sm:$0xff]
        %v498 = vld [vmem:[#allocation2 + $0x32] sm:$0xff]
        %v499 = vld [vmem:[#allocation2 + $0x3a] sm:$0xff]
        %v500 = vld [vmem:[#allocation2 + $0x4a] sm:$0xff]
        %v501 = vld [vmem:[#allocation2 + $0x52] sm:$0xff]
        %v502 = vld [vmem:[#allocation2 + $0x62] sm:$0xff]
        %v503 = vld [vmem:[#allocation2 + $0x6a] sm:$0xff]
        %v504 = vld [vmem:[#allocation2 + $0x7a] sm:$0xff]
        %v505 = vld [vmem:[#allocation2 + $0x82] sm:$0xff]
        %v506 = vld [vmem:[#allocation2 + $0x92] sm:$0xff]
        %v507 = vld [vmem:[#allocation2 + $0x9a] sm:$0xff]
        %v508 = vld [vmem:[#allocation2 + $0xaa] sm:$0xff]
        %v509 = vld [vmem:[#allocation2 + $0xb2] sm:$0xff]
        %v510 = vld [vmem:[#allocation2 + $0xc2] sm:$0xff]
        %v511 = vld [vmem:[#allocation2 + $0xca] sm:$0xff]
        %v512 = vld [vmem:[#allocation2 + $0xda] sm:$0xff]
        %v513 = vld [vmem:[#allocation2 + $0xe2] sm:$0xff]
        %v514 = vld [vmem:[#allocation2 + $0xf2] sm:$0xff]
        %v515 = vld [vmem:[#allocation2 + $0xfa] sm:$0xff]
        %v516 = vld [vmem:[#allocation2 + $0x10a] sm:$0xff]
        %v517 = vld [vmem:[#allocation2 + $0x112] sm:$0xff]
        %v518 = vld [vmem:[#allocation2 + $0x122] sm:$0xff]
        %v519 = vld [vmem:[#allocation2 + $0x12a] sm:$0xff]
        %v520 = vld [vmem:[#allocation2 + $0x13a] sm:$0xff]
        %v521 = vld [vmem:[#allocation2 + $0x142] sm:$0xff]
        %v522 = vld [vmem:[#allocation2 + $0x152] sm:$0xff]
        %v523 = vld [vmem:[#allocation2 + $0x15a] sm:$0xff]
        %v524 = vld [vmem:[#allocation2 + $0x16a] sm:$0xff]
        %v525 = vld [vmem:[#allocation2 + $0x172] sm:$0xff]
        %526 = vst [vmem:[#allocation3 + $0x10] sm:$0xff] %v494
        %527 = vst [vmem:[#allocation3 + $0x58] sm:$0xff] %v495
        %528 = vst [vmem:[#allocation3 + $0xa0] sm:$0xff] %v496
        %529 = vst [vmem:[#allocation3 + $0xe8] sm:$0xff] %v497
        %530 = vst [vmem:[#allocation3 + $0x130] sm:$0xff] %v498
        %531 = vst [vmem:[#allocation3 + $0x178] sm:$0xff] %v499
        %532 = vst [vmem:[#allocation3 + $0x1c0] sm:$0xff] %v500
        %533 = vst [vmem:[#allocation3 + $0x208] sm:$0xff] %v501
        %534 = vst [vmem:[#allocation3 + $0x250] sm:$0xff] %v502
        %535 = vst [vmem:[#allocation3 + $0x298] sm:$0xff] %v503
        %536 = vst [vmem:[#allocation3 + $0x2e0] sm:$0xff] %v504
        %537 = vst [vmem:[#allocation3 + $0x328] sm:$0xff] %v505
        %538 = vst [vmem:[#allocation3 + $0x370] sm:$0xff] %v506
        %539 = vst [vmem:[#allocation3 + $0x3b8] sm:$0xff] %v507
        %540 = vst [vmem:[#allocation3 + $0x400] sm:$0xff] %v508
        %541 = vst [vmem:[#allocation3 + $0x448] sm:$0xff] %v509
        %542 = vst [vmem:[#allocation3 + $0x490] sm:$0xff] %v510
        %543 = vst [vmem:[#allocation3 + $0x4d8] sm:$0xff] %v511
        %544 = vst [vmem:[#allocation3 + $0x520] sm:$0xff] %v512
        %545 = vst [vmem:[#allocation3 + $0x568] sm:$0xff] %v513
        %546 = vst [vmem:[#allocation3 + $0x5b0] sm:$0xff] %v514
        %547 = vst [vmem:[#allocation3 + $0x5f8] sm:$0xff] %v515
        %548 = vst [vmem:[#allocation3 + $0x640] sm:$0xff] %v516
        %549 = vst [vmem:[#allocation3 + $0x688] sm:$0xff] %v517
        %550 = vst [vmem:[#allocation3 + $0x6d0] sm:$0xff] %v518
        %551 = vst [vmem:[#allocation3 + $0x718] sm:$0xff] %v519
        %552 = vst [vmem:[#allocation3 + $0x760] sm:$0xff] %v520
        %553 = vst [vmem:[#allocation3 + $0x7a8] sm:$0xff] %v521
        %554 = vst [vmem:[#allocation3 + $0x7f0] sm:$0xff] %v522
        %555 = vst [vmem:[#allocation3 + $0x838] sm:$0xff] %v523
        %556 = vst [vmem:[#allocation3 + $0x880] sm:$0xff] %v524
        %557 = vst [vmem:[#allocation3 + $0x8c8] sm:$0xff] %v525
        %v558 = vld [vmem:[%s250] sm:$0xff]
        %v559 = vld [vmem:[%s250 + $0x8] sm:$0xff]
        %v560 = vld [vmem:[%s250 + $0x18] sm:$0xff]
        %v561 = vld [vmem:[%s250 + $0x20] sm:$0xff]
        %v562 = vld [vmem:[%s250 + $0x30] sm:$0xff]
        %v563 = vld [vmem:[%s250 + $0x38] sm:$0xff]
        %v564 = vld [vmem:[%s250 + $0x48] sm:$0xff]
        %v565 = vld [vmem:[%s250 + $0x50] sm:$0xff]
        %v566 = vld [vmem:[%s250 + $0x60] sm:$0xff]
        %v567 = vld [vmem:[%s250 + $0x68] sm:$0xff]
        %v568 = vld [vmem:[%s250 + $0x78] sm:$0xff]
        %v569 = vld [vmem:[%s250 + $0x80] sm:$0xff]
        %v570 = vld [vmem:[%s250 + $0x90] sm:$0xff]
        %v571 = vld [vmem:[%s250 + $0x98] sm:$0xff]
        %v572 = vld [vmem:[%s250 + $0xa8] sm:$0xff]
        %v573 = vld [vmem:[%s250 + $0xb0] sm:$0xff]
        %v574 = vld [vmem:[%s250 + $0xc0] sm:$0xff]
        %v575 = vld [vmem:[%s250 + $0xc8] sm:$0xff]
        %v576 = vld [vmem:[%s250 + $0xd8] sm:$0xff]
        %v577 = vld [vmem:[%s250 + $0xe0] sm:$0xff]
        %v578 = vld [vmem:[%s250 + $0xf0] sm:$0xff]
        %v579 = vld [vmem:[%s250 + $0xf8] sm:$0xff]
        %v580 = vld [vmem:[%s250 + $0x108] sm:$0xff]
        %v581 = vld [vmem:[%s250 + $0x110] sm:$0xff]
        %v582 = vld [vmem:[%s250 + $0x120] sm:$0xff]
        %v583 = vld [vmem:[%s250 + $0x128] sm:$0xff]
        %v584 = vld [vmem:[%s250 + $0x138] sm:$0xff]
        %v585 = vld [vmem:[%s250 + $0x140] sm:$0xff]
        %v586 = vld [vmem:[%s250 + $0x150] sm:$0xff]
        %v587 = vld [vmem:[%s250 + $0x158] sm:$0xff]
        %v588 = vld [vmem:[%s250 + $0x168] sm:$0xff]
        %v589 = vld [vmem:[%s250 + $0x170] sm:$0xff]
        %590 = vst [vmem:[#allocation3 + $0x18] sm:$0xff] %v558
        %591 = vst [vmem:[#allocation3 + $0x60] sm:$0xff] %v559
        %592 = vst [vmem:[#allocation3 + $0xa8] sm:$0xff] %v560
        %593 = vst [vmem:[#allocation3 + $0xf0] sm:$0xff] %v561
        %594 = vst [vmem:[#allocation3 + $0x138] sm:$0xff] %v562
        %595 = vst [vmem:[#allocation3 + $0x180] sm:$0xff] %v563
        %596 = vst [vmem:[#allocation3 + $0x1c8] sm:$0xff] %v564
        %597 = vst [vmem:[#allocation3 + $0x210] sm:$0xff] %v565
        %598 = vst [vmem:[#allocation3 + $0x258] sm:$0xff] %v566
        %599 = vst [vmem:[#allocation3 + $0x2a0] sm:$0xff] %v567
        %600 = vst [vmem:[#allocation3 + $0x2e8] sm:$0xff] %v568
        %601 = vst [vmem:[#allocation3 + $0x330] sm:$0xff] %v569
        %602 = vst [vmem:[#allocation3 + $0x378] sm:$0xff] %v570
        %603 = vst [vmem:[#allocation3 + $0x3c0] sm:$0xff] %v571
        %604 = vst [vmem:[#allocation3 + $0x408] sm:$0xff] %v572
        %605 = vst [vmem:[#allocation3 + $0x450] sm:$0xff] %v573
        %606 = vst [vmem:[#allocation3 + $0x498] sm:$0xff] %v574
        %607 = vst [vmem:[#allocation3 + $0x4e0] sm:$0xff] %v575
        %608 = vst [vmem:[#allocation3 + $0x528] sm:$0xff] %v576
        %609 = vst [vmem:[#allocation3 + $0x570] sm:$0xff] %v577
        %610 = vst [vmem:[#allocation3 + $0x5b8] sm:$0xff] %v578
        %611 = vst [vmem:[#allocation3 + $0x600] sm:$0xff] %v579
        %612 = vst [vmem:[#allocation3 + $0x648] sm:$0xff] %v580
        %613 = vst [vmem:[#allocation3 + $0x690] sm:$0xff] %v581
        %614 = vst [vmem:[#allocation3 + $0x6d8] sm:$0xff] %v582
        %615 = vst [vmem:[#allocation3 + $0x720] sm:$0xff] %v583
        %616 = vst [vmem:[#allocation3 + $0x768] sm:$0xff] %v584
        %617 = vst [vmem:[#allocation3 + $0x7b0] sm:$0xff] %v585
        %618 = vst [vmem:[#allocation3 + $0x7f8] sm:$0xff] %v586
        %619 = vst [vmem:[#allocation3 + $0x840] sm:$0xff] %v587
        %620 = vst [vmem:[#allocation3 + $0x888] sm:$0xff] %v588
        %621 = vst [vmem:[#allocation3 + $0x8d0] sm:$0xff] %v589
        %v622 = vld [vmem:[%s250 + $0x1] sm:$0xff]
        %v623 = vld [vmem:[%s250 + $0x9] sm:$0xff]
        %v624 = vld [vmem:[%s250 + $0x19] sm:$0xff]
        %v625 = vld [vmem:[%s250 + $0x21] sm:$0xff]
        %v626 = vld [vmem:[%s250 + $0x31] sm:$0xff]
        %v627 = vld [vmem:[%s250 + $0x39] sm:$0xff]
        %v628 = vld [vmem:[%s250 + $0x49] sm:$0xff]
        %v629 = vld [vmem:[%s250 + $0x51] sm:$0xff]
        %v630 = vld [vmem:[%s250 + $0x61] sm:$0xff]
        %v631 = vld [vmem:[%s250 + $0x69] sm:$0xff]
        %v632 = vld [vmem:[%s250 + $0x79] sm:$0xff]
        %v633 = vld [vmem:[%s250 + $0x81] sm:$0xff]
        %v634 = vld [vmem:[%s250 + $0x91] sm:$0xff]
        %v635 = vld [vmem:[%s250 + $0x99] sm:$0xff]
        %v636 = vld [vmem:[%s250 + $0xa9] sm:$0xff]
        %v637 = vld [vmem:[%s250 + $0xb1] sm:$0xff]
        %v638 = vld [vmem:[%s250 + $0xc1] sm:$0xff]
        %v639 = vld [vmem:[%s250 + $0xc9] sm:$0xff]
        %v640 = vld [vmem:[%s250 + $0xd9] sm:$0xff]
        %v641 = vld [vmem:[%s250 + $0xe1] sm:$0xff]
        %v642 = vld [vmem:[%s250 + $0xf1] sm:$0xff]
        %v643 = vld [vmem:[%s250 + $0xf9] sm:$0xff]
        %v644 = vld [vmem:[%s250 + $0x109] sm:$0xff]
        %v645 = vld [vmem:[%s250 + $0x111] sm:$0xff]
        %v646 = vld [vmem:[%s250 + $0x121] sm:$0xff]
        %v647 = vld [vmem:[%s250 + $0x129] sm:$0xff]
        %v648 = vld [vmem:[%s250 + $0x139] sm:$0xff]
        %v649 = vld [vmem:[%s250 + $0x141] sm:$0xff]
        %v650 = vld [vmem:[%s250 + $0x151] sm:$0xff]
        %v651 = vld [vmem:[%s250 + $0x159] sm:$0xff]
        %v652 = vld [vmem:[%s250 + $0x169] sm:$0xff]
        %v653 = vld [vmem:[%s250 + $0x171] sm:$0xff]
        %654 = vst [vmem:[#allocation3 + $0x20] sm:$0xff] %v622
        %655 = vst [vmem:[#allocation3 + $0x68] sm:$0xff] %v623
        %656 = vst [vmem:[#allocation3 + $0xb0] sm:$0xff] %v624
        %657 = vst [vmem:[#allocation3 + $0xf8] sm:$0xff] %v625
        %658 = vst [vmem:[#allocation3 + $0x140] sm:$0xff] %v626
        %659 = vst [vmem:[#allocation3 + $0x188] sm:$0xff] %v627
        %660 = vst [vmem:[#allocation3 + $0x1d0] sm:$0xff] %v628
        %661 = vst [vmem:[#allocation3 + $0x218] sm:$0xff] %v629
        %662 = vst [vmem:[#allocation3 + $0x260] sm:$0xff] %v630
        %663 = vst [vmem:[#allocation3 + $0x2a8] sm:$0xff] %v631
        %664 = vst [vmem:[#allocation3 + $0x2f0] sm:$0xff] %v632
        %665 = vst [vmem:[#allocation3 + $0x338] sm:$0xff] %v633
        %666 = vst [vmem:[#allocation3 + $0x380] sm:$0xff] %v634
        %667 = vst [vmem:[#allocation3 + $0x3c8] sm:$0xff] %v635
        %668 = vst [vmem:[#allocation3 + $0x410] sm:$0xff] %v636
        %669 = vst [vmem:[#allocation3 + $0x458] sm:$0xff] %v637
        %670 = vst [vmem:[#allocation3 + $0x4a0] sm:$0xff] %v638
        %671 = vst [vmem:[#allocation3 + $0x4e8] sm:$0xff] %v639
        %672 = vst [vmem:[#allocation3 + $0x530] sm:$0xff] %v640
        %673 = vst [vmem:[#allocation3 + $0x578] sm:$0xff] %v641
        %674 = vst [vmem:[#allocation3 + $0x5c0] sm:$0xff] %v642
        %675 = vst [vmem:[#allocation3 + $0x608] sm:$0xff] %v643
        %676 = vst [vmem:[#allocation3 + $0x650] sm:$0xff] %v644
        %677 = vst [vmem:[#allocation3 + $0x698] sm:$0xff] %v645
        %678 = vst [vmem:[#allocation3 + $0x6e0] sm:$0xff] %v646
        %679 = vst [vmem:[#allocation3 + $0x728] sm:$0xff] %v647
        %680 = vst [vmem:[#allocation3 + $0x770] sm:$0xff] %v648
        %681 = vst [vmem:[#allocation3 + $0x7b8] sm:$0xff] %v649
        %682 = vst [vmem:[#allocation3 + $0x800] sm:$0xff] %v650
        %683 = vst [vmem:[#allocation3 + $0x848] sm:$0xff] %v651
        %684 = vst [vmem:[#allocation3 + $0x890] sm:$0xff] %v652
        %685 = vst [vmem:[#allocation3 + $0x8d8] sm:$0xff] %v653
        %v686 = vld [vmem:[%s250 + $0x2] sm:$0xff]
        %v687 = vld [vmem:[%s250 + $0xa] sm:$0xff]
        %v688 = vld [vmem:[%s250 + $0x1a] sm:$0xff]
        %v689 = vld [vmem:[%s250 + $0x22] sm:$0xff]
        %v690 = vld [vmem:[%s250 + $0x32] sm:$0xff]
        %v691 = vld [vmem:[%s250 + $0x3a] sm:$0xff]
        %v692 = vld [vmem:[%s250 + $0x4a] sm:$0xff]
        %v693 = vld [vmem:[%s250 + $0x52] sm:$0xff]
        %v694 = vld [vmem:[%s250 + $0x62] sm:$0xff]
        %v695 = vld [vmem:[%s250 + $0x6a] sm:$0xff]
        %v696 = vld [vmem:[%s250 + $0x7a] sm:$0xff]
        %v697 = vld [vmem:[%s250 + $0x82] sm:$0xff]
        %v698 = vld [vmem:[%s250 + $0x92] sm:$0xff]
        %v699 = vld [vmem:[%s250 + $0x9a] sm:$0xff]
        %v700 = vld [vmem:[%s250 + $0xaa] sm:$0xff]
        %v701 = vld [vmem:[%s250 + $0xb2] sm:$0xff]
        %v702 = vld [vmem:[%s250 + $0xc2] sm:$0xff]
        %v703 = vld [vmem:[%s250 + $0xca] sm:$0xff]
        %v704 = vld [vmem:[%s250 + $0xda] sm:$0xff]
        %v705 = vld [vmem:[%s250 + $0xe2] sm:$0xff]
        %v706 = vld [vmem:[%s250 + $0xf2] sm:$0xff]
        %v707 = vld [vmem:[%s250 + $0xfa] sm:$0xff]
        %v708 = vld [vmem:[%s250 + $0x10a] sm:$0xff]
        %v709 = vld [vmem:[%s250 + $0x112] sm:$0xff]
        %v710 = vld [vmem:[%s250 + $0x122] sm:$0xff]
        %v711 = vld [vmem:[%s250 + $0x12a] sm:$0xff]
        %v712 = vld [vmem:[%s250 + $0x13a] sm:$0xff]
        %v713 = vld [vmem:[%s250 + $0x142] sm:$0xff]
        %v714 = vld [vmem:[%s250 + $0x152] sm:$0xff]
        %v715 = vld [vmem:[%s250 + $0x15a] sm:$0xff]
        %v716 = vld [vmem:[%s250 + $0x16a] sm:$0xff]
        %v717 = vld [vmem:[%s250 + $0x172] sm:$0xff]
        %718 = vst [vmem:[#allocation3 + $0x28] sm:$0xff] %v686
        %719 = vst [vmem:[#allocation3 + $0x70] sm:$0xff] %v687
        %720 = vst [vmem:[#allocation3 + $0xb8] sm:$0xff] %v688
        %721 = vst [vmem:[#allocation3 + $0x100] sm:$0xff] %v689
        %722 = vst [vmem:[#allocation3 + $0x148] sm:$0xff] %v690
        %723 = vst [vmem:[#allocation3 + $0x190] sm:$0xff] %v691
        %724 = vst [vmem:[#allocation3 + $0x1d8] sm:$0xff] %v692
        %725 = vst [vmem:[#allocation3 + $0x220] sm:$0xff] %v693
        %726 = vst [vmem:[#allocation3 + $0x268] sm:$0xff] %v694
        %727 = vst [vmem:[#allocation3 + $0x2b0] sm:$0xff] %v695
        %728 = vst [vmem:[#allocation3 + $0x2f8] sm:$0xff] %v696
        %729 = vst [vmem:[#allocation3 + $0x340] sm:$0xff] %v697
        %730 = vst [vmem:[#allocation3 + $0x388] sm:$0xff] %v698
        %731 = vst [vmem:[#allocation3 + $0x3d0] sm:$0xff] %v699
        %732 = vst [vmem:[#allocation3 + $0x418] sm:$0xff] %v700
        %733 = vst [vmem:[#allocation3 + $0x460] sm:$0xff] %v701
        %734 = vst [vmem:[#allocation3 + $0x4a8] sm:$0xff] %v702
        %735 = vst [vmem:[#allocation3 + $0x4f0] sm:$0xff] %v703
        %736 = vst [vmem:[#allocation3 + $0x538] sm:$0xff] %v704
        %737 = vst [vmem:[#allocation3 + $0x580] sm:$0xff] %v705
        %738 = vst [vmem:[#allocation3 + $0x5c8] sm:$0xff] %v706
        %739 = vst [vmem:[#allocation3 + $0x610] sm:$0xff] %v707
        %740 = vst [vmem:[#allocation3 + $0x658] sm:$0xff] %v708
        %741 = vst [vmem:[#allocation3 + $0x6a0] sm:$0xff] %v709
        %742 = vst [vmem:[#allocation3 + $0x6e8] sm:$0xff] %v710
        %743 = vst [vmem:[#allocation3 + $0x730] sm:$0xff] %v711
        %744 = vst [vmem:[#allocation3 + $0x778] sm:$0xff] %v712
        %745 = vst [vmem:[#allocation3 + $0x7c0] sm:$0xff] %v713
        %746 = vst [vmem:[#allocation3 + $0x808] sm:$0xff] %v714
        %747 = vst [vmem:[#allocation3 + $0x850] sm:$0xff] %v715
        %748 = vst [vmem:[#allocation3 + $0x898] sm:$0xff] %v716
        %749 = vst [vmem:[#allocation3 + $0x8e0] sm:$0xff] %v717
        %v750 = vld [vmem:[%s283] sm:$0xff]
        %v751 = vld [vmem:[%s283 + $0x8] sm:$0xff]
        %v752 = vld [vmem:[%s283 + $0x18] sm:$0xff]
        %v753 = vld [vmem:[%s283 + $0x20] sm:$0xff]
        %v754 = vld [vmem:[%s283 + $0x30] sm:$0xff]
        %v755 = vld [vmem:[%s283 + $0x38] sm:$0xff]
        %v756 = vld [vmem:[%s283 + $0x48] sm:$0xff]
        %v757 = vld [vmem:[%s283 + $0x50] sm:$0xff]
        %v758 = vld [vmem:[%s283 + $0x60] sm:$0xff]
        %v759 = vld [vmem:[%s283 + $0x68] sm:$0xff]
        %v760 = vld [vmem:[%s283 + $0x78] sm:$0xff]
        %v761 = vld [vmem:[%s283 + $0x80] sm:$0xff]
        %v762 = vld [vmem:[%s283 + $0x90] sm:$0xff]
        %v763 = vld [vmem:[%s283 + $0x98] sm:$0xff]
        %v764 = vld [vmem:[%s283 + $0xa8] sm:$0xff]
        %v765 = vld [vmem:[%s283 + $0xb0] sm:$0xff]
        %v766 = vld [vmem:[%s283 + $0xc0] sm:$0xff]
        %v767 = vld [vmem:[%s283 + $0xc8] sm:$0xff]
        %v768 = vld [vmem:[%s283 + $0xd8] sm:$0xff]
        %v769 = vld [vmem:[%s283 + $0xe0] sm:$0xff]
        %v770 = vld [vmem:[%s283 + $0xf0] sm:$0xff]
        %v771 = vld [vmem:[%s283 + $0xf8] sm:$0xff]
        %v772 = vld [vmem:[%s283 + $0x108] sm:$0xff]
        %v773 = vld [vmem:[%s283 + $0x110] sm:$0xff]
        %v774 = vld [vmem:[%s283 + $0x120] sm:$0xff]
        %v775 = vld [vmem:[%s283 + $0x128] sm:$0xff]
        %v776 = vld [vmem:[%s283 + $0x138] sm:$0xff]
        %v777 = vld [vmem:[%s283 + $0x140] sm:$0xff]
        %v778 = vld [vmem:[%s283 + $0x150] sm:$0xff]
        %v779 = vld [vmem:[%s283 + $0x158] sm:$0xff]
        %v780 = vld [vmem:[%s283 + $0x168] sm:$0xff]
        %v781 = vld [vmem:[%s283 + $0x170] sm:$0xff]
        %782 = vst [vmem:[#allocation3 + $0x30] sm:$0xff] %v750
        %783 = vst [vmem:[#allocation3 + $0x78] sm:$0xff] %v751
        %784 = vst [vmem:[#allocation3 + $0xc0] sm:$0xff] %v752
        %785 = vst [vmem:[#allocation3 + $0x108] sm:$0xff] %v753
        %786 = vst [vmem:[#allocation3 + $0x150] sm:$0xff] %v754
        %787 = vst [vmem:[#allocation3 + $0x198] sm:$0xff] %v755
        %788 = vst [vmem:[#allocation3 + $0x1e0] sm:$0xff] %v756
        %789 = vst [vmem:[#allocation3 + $0x228] sm:$0xff] %v757
        %790 = vst [vmem:[#allocation3 + $0x270] sm:$0xff] %v758
        %791 = vst [vmem:[#allocation3 + $0x2b8] sm:$0xff] %v759
        %792 = vst [vmem:[#allocation3 + $0x300] sm:$0xff] %v760
        %793 = vst [vmem:[#allocation3 + $0x348] sm:$0xff] %v761
        %794 = vst [vmem:[#allocation3 + $0x390] sm:$0xff] %v762
        %795 = vst [vmem:[#allocation3 + $0x3d8] sm:$0xff] %v763
        %796 = vst [vmem:[#allocation3 + $0x420] sm:$0xff] %v764
        %797 = vst [vmem:[#allocation3 + $0x468] sm:$0xff] %v765
        %798 = vst [vmem:[#allocation3 + $0x4b0] sm:$0xff] %v766
        %799 = vst [vmem:[#allocation3 + $0x4f8] sm:$0xff] %v767
        %800 = vst [vmem:[#allocation3 + $0x540] sm:$0xff] %v768
        %801 = vst [vmem:[#allocation3 + $0x588] sm:$0xff] %v769
        %802 = vst [vmem:[#allocation3 + $0x5d0] sm:$0xff] %v770
        %803 = vst [vmem:[#allocation3 + $0x618] sm:$0xff] %v771
        %804 = vst [vmem:[#allocation3 + $0x660] sm:$0xff] %v772
        %805 = vst [vmem:[#allocation3 + $0x6a8] sm:$0xff] %v773
        %806 = vst [vmem:[#allocation3 + $0x6f0] sm:$0xff] %v774
        %807 = vst [vmem:[#allocation3 + $0x738] sm:$0xff] %v775
        %808 = vst [vmem:[#allocation3 + $0x780] sm:$0xff] %v776
        %809 = vst [vmem:[#allocation3 + $0x7c8] sm:$0xff] %v777
        %810 = vst [vmem:[#allocation3 + $0x810] sm:$0xff] %v778
        %811 = vst [vmem:[#allocation3 + $0x858] sm:$0xff] %v779
        %812 = vst [vmem:[#allocation3 + $0x8a0] sm:$0xff] %v780
        %813 = vst [vmem:[#allocation3 + $0x8e8] sm:$0xff] %v781
        %v814 = vld [vmem:[%s283 + $0x1] sm:$0xff]
        %v815 = vld [vmem:[%s283 + $0x9] sm:$0xff]
        %v816 = vld [vmem:[%s283 + $0x19] sm:$0xff]
        %v817 = vld [vmem:[%s283 + $0x21] sm:$0xff]
        %v818 = vld [vmem:[%s283 + $0x31] sm:$0xff]
        %v819 = vld [vmem:[%s283 + $0x39] sm:$0xff]
        %v820 = vld [vmem:[%s283 + $0x49] sm:$0xff]
        %v821 = vld [vmem:[%s283 + $0x51] sm:$0xff]
        %v822 = vld [vmem:[%s283 + $0x61] sm:$0xff]
        %v823 = vld [vmem:[%s283 + $0x69] sm:$0xff]
        %v824 = vld [vmem:[%s283 + $0x79] sm:$0xff]
        %v825 = vld [vmem:[%s283 + $0x81] sm:$0xff]
        %v826 = vld [vmem:[%s283 + $0x91] sm:$0xff]
        %v827 = vld [vmem:[%s283 + $0x99] sm:$0xff]
        %v828 = vld [vmem:[%s283 + $0xa9] sm:$0xff]
        %v829 = vld [vmem:[%s283 + $0xb1] sm:$0xff]
        %v830 = vld [vmem:[%s283 + $0xc1] sm:$0xff]
        %v831 = vld [vmem:[%s283 + $0xc9] sm:$0xff]
        %v832 = vld [vmem:[%s283 + $0xd9] sm:$0xff]
        %v833 = vld [vmem:[%s283 + $0xe1] sm:$0xff]
        %v834 = vld [vmem:[%s283 + $0xf1] sm:$0xff]
        %v835 = vld [vmem:[%s283 + $0xf9] sm:$0xff]
        %v836 = vld [vmem:[%s283 + $0x109] sm:$0xff]
        %v837 = vld [vmem:[%s283 + $0x111] sm:$0xff]
        %v838 = vld [vmem:[%s283 + $0x121] sm:$0xff]
        %v839 = vld [vmem:[%s283 + $0x129] sm:$0xff]
        %v840 = vld [vmem:[%s283 + $0x139] sm:$0xff]
        %v841 = vld [vmem:[%s283 + $0x141] sm:$0xff]
        %v842 = vld [vmem:[%s283 + $0x151] sm:$0xff]
        %v843 = vld [vmem:[%s283 + $0x159] sm:$0xff]
        %v844 = vld [vmem:[%s283 + $0x169] sm:$0xff]
        %v845 = vld [vmem:[%s283 + $0x171] sm:$0xff]
        %846 = vst [vmem:[#allocation3 + $0x38] sm:$0xff] %v814
        %847 = vst [vmem:[#allocation3 + $0x80] sm:$0xff] %v815
        %848 = vst [vmem:[#allocation3 + $0xc8] sm:$0xff] %v816
        %849 = vst [vmem:[#allocation3 + $0x110] sm:$0xff] %v817
        %850 = vst [vmem:[#allocation3 + $0x158] sm:$0xff] %v818
        %851 = vst [vmem:[#allocation3 + $0x1a0] sm:$0xff] %v819
        %852 = vst [vmem:[#allocation3 + $0x1e8] sm:$0xff] %v820
        %853 = vst [vmem:[#allocation3 + $0x230] sm:$0xff] %v821
        %854 = vst [vmem:[#allocation3 + $0x278] sm:$0xff] %v822
        %855 = vst [vmem:[#allocation3 + $0x2c0] sm:$0xff] %v823
        %856 = vst [vmem:[#allocation3 + $0x308] sm:$0xff] %v824
        %857 = vst [vmem:[#allocation3 + $0x350] sm:$0xff] %v825
        %858 = vst [vmem:[#allocation3 + $0x398] sm:$0xff] %v826
        %859 = vst [vmem:[#allocation3 + $0x3e0] sm:$0xff] %v827
        %860 = vst [vmem:[#allocation3 + $0x428] sm:$0xff] %v828
        %861 = vst [vmem:[#allocation3 + $0x470] sm:$0xff] %v829
        %862 = vst [vmem:[#allocation3 + $0x4b8] sm:$0xff] %v830
        %863 = vst [vmem:[#allocation3 + $0x500] sm:$0xff] %v831
        %864 = vst [vmem:[#allocation3 + $0x548] sm:$0xff] %v832
        %865 = vst [vmem:[#allocation3 + $0x590] sm:$0xff] %v833
        %866 = vst [vmem:[#allocation3 + $0x5d8] sm:$0xff] %v834
        %867 = vst [vmem:[#allocation3 + $0x620] sm:$0xff] %v835
        %868 = vst [vmem:[#allocation3 + $0x668] sm:$0xff] %v836
        %869 = vst [vmem:[#allocation3 + $0x6b0] sm:$0xff] %v837
        %870 = vst [vmem:[#allocation3 + $0x6f8] sm:$0xff] %v838
        %871 = vst [vmem:[#allocation3 + $0x740] sm:$0xff] %v839
        %872 = vst [vmem:[#allocation3 + $0x788] sm:$0xff] %v840
        %873 = vst [vmem:[#allocation3 + $0x7d0] sm:$0xff] %v841
        %874 = vst [vmem:[#allocation3 + $0x818] sm:$0xff] %v842
        %875 = vst [vmem:[#allocation3 + $0x860] sm:$0xff] %v843
        %876 = vst [vmem:[#allocation3 + $0x8a8] sm:$0xff] %v844
        %877 = vst [vmem:[#allocation3 + $0x8f0] sm:$0xff] %v845
        %v878 = vld [vmem:[%s283 + $0x2] sm:$0xff]
        %v879 = vld [vmem:[%s283 + $0xa] sm:$0xff]
        %v880 = vld [vmem:[%s283 + $0x1a] sm:$0xff]
        %v881 = vld [vmem:[%s283 + $0x22] sm:$0xff]
        %v882 = vld [vmem:[%s283 + $0x32] sm:$0xff]
        %v883 = vld [vmem:[%s283 + $0x3a] sm:$0xff]
        %v884 = vld [vmem:[%s283 + $0x4a] sm:$0xff]
        %v885 = vld [vmem:[%s283 + $0x52] sm:$0xff]
        %v886 = vld [vmem:[%s283 + $0x62] sm:$0xff]
        %v887 = vld [vmem:[%s283 + $0x6a] sm:$0xff]
        %v888 = vld [vmem:[%s283 + $0x7a] sm:$0xff]
        %v889 = vld [vmem:[%s283 + $0x82] sm:$0xff]
        %v890 = vld [vmem:[%s283 + $0x92] sm:$0xff]
        %v891 = vld [vmem:[%s283 + $0x9a] sm:$0xff]
        %v892 = vld [vmem:[%s283 + $0xaa] sm:$0xff]
        %v893 = vld [vmem:[%s283 + $0xb2] sm:$0xff]
        %v894 = vld [vmem:[%s283 + $0xc2] sm:$0xff]
        %v895 = vld [vmem:[%s283 + $0xca] sm:$0xff]
        %v896 = vld [vmem:[%s283 + $0xda] sm:$0xff]
        %v897 = vld [vmem:[%s283 + $0xe2] sm:$0xff]
        %v898 = vld [vmem:[%s283 + $0xf2] sm:$0xff]
        %v899 = vld [vmem:[%s283 + $0xfa] sm:$0xff]
        %v900 = vld [vmem:[%s283 + $0x10a] sm:$0xff]
        %v901 = vld [vmem:[%s283 + $0x112] sm:$0xff]
        %v902 = vld [vmem:[%s283 + $0x122] sm:$0xff]
        %v903 = vld [vmem:[%s283 + $0x12a] sm:$0xff]
        %v904 = vld [vmem:[%s283 + $0x13a] sm:$0xff]
        %v905 = vld [vmem:[%s283 + $0x142] sm:$0xff]
        %v906 = vld [vmem:[%s283 + $0x152] sm:$0xff]
        %v907 = vld [vmem:[%s283 + $0x15a] sm:$0xff]
        %v908 = vld [vmem:[%s283 + $0x16a] sm:$0xff]
        %v909 = vld [vmem:[%s283 + $0x172] sm:$0xff]
        %910 = vst [vmem:[#allocation3 + $0x40] sm:$0xff] %v878
        %911 = vst [vmem:[#allocation3 + $0x88] sm:$0xff] %v879
        %912 = vst [vmem:[#allocation3 + $0xd0] sm:$0xff] %v880
        %913 = vst [vmem:[#allocation3 + $0x118] sm:$0xff] %v881
        %914 = vst [vmem:[#allocation3 + $0x160] sm:$0xff] %v882
        %915 = vst [vmem:[#allocation3 + $0x1a8] sm:$0xff] %v883
        %916 = vst [vmem:[#allocation3 + $0x1f0] sm:$0xff] %v884
        %917 = vst [vmem:[#allocation3 + $0x238] sm:$0xff] %v885
        %918 = vst [vmem:[#allocation3 + $0x280] sm:$0xff] %v886
        %919 = vst [vmem:[#allocation3 + $0x2c8] sm:$0xff] %v887
        %920 = vst [vmem:[#allocation3 + $0x310] sm:$0xff] %v888
        %921 = vst [vmem:[#allocation3 + $0x358] sm:$0xff] %v889
        %922 = vst [vmem:[#allocation3 + $0x3a0] sm:$0xff] %v890
        %923 = vst [vmem:[#allocation3 + $0x3e8] sm:$0xff] %v891
        %924 = vst [vmem:[#allocation3 + $0x430] sm:$0xff] %v892
        %925 = vst [vmem:[#allocation3 + $0x478] sm:$0xff] %v893
        %926 = vst [vmem:[#allocation3 + $0x4c0] sm:$0xff] %v894
        %927 = vst [vmem:[#allocation3 + $0x508] sm:$0xff] %v895
        %928 = vst [vmem:[#allocation3 + $0x550] sm:$0xff] %v896
        %929 = vst [vmem:[#allocation3 + $0x598] sm:$0xff] %v897
        %930 = vst [vmem:[#allocation3 + $0x5e0] sm:$0xff] %v898
        %931 = vst [vmem:[#allocation3 + $0x628] sm:$0xff] %v899
        %932 = vst [vmem:[#allocation3 + $0x670] sm:$0xff] %v900
        %933 = vst [vmem:[#allocation3 + $0x6b8] sm:$0xff] %v901
        %934 = vst [vmem:[#allocation3 + $0x700] sm:$0xff] %v902
        %935 = vst [vmem:[#allocation3 + $0x748] sm:$0xff] %v903
        %936 = vst [vmem:[#allocation3 + $0x790] sm:$0xff] %v904
        %937 = vst [vmem:[#allocation3 + $0x7d8] sm:$0xff] %v905
        %938 = vst [vmem:[#allocation3 + $0x820] sm:$0xff] %v906
        %939 = vst [vmem:[#allocation3 + $0x868] sm:$0xff] %v907
        %940 = vst [vmem:[#allocation3 + $0x8b0] sm:$0xff] %v908
        %941 = vst [vmem:[#allocation3 + $0x8f8] sm:$0xff] %v909
        %v942 = vld [vmem:[#allocation3] sm:$0xff]
        %v943 = vld [vmem:[#allocation3 + $0x8] sm:$0xff]
        %v944 = vld [vmem:[#allocation3 + $0x10] sm:$0xff]
        %v945 = vld [vmem:[#allocation3 + $0x18] sm:$0xff]
        %v946 = vld [vmem:[#allocation3 + $0x20] sm:$0xff]
        %v947 = vld [vmem:[#allocation3 + $0x28] sm:$0xff]
        %v948 = vld [vmem:[#allocation3 + $0x30] sm:$0xff]
        %v949 = vld [vmem:[#allocation3 + $0x38] sm:$0xff]
        %v950 = vld [vmem:[#allocation3 + $0x40] sm:$0xff]
        %v951 = vld [vmem:[#allocation3 + $0x48] sm:$0xff]
        %v952 = vld [vmem:[#allocation3 + $0x50] sm:$0xff]
        %v953 = vld [vmem:[#allocation3 + $0x58] sm:$0xff]
        %v954 = vld [vmem:[#allocation3 + $0x60] sm:$0xff]
        %v955 = vld [vmem:[#allocation3 + $0x68] sm:$0xff]
        %v956 = vld [vmem:[#allocation3 + $0x70] sm:$0xff]
        %v957 = vld [vmem:[#allocation3 + $0x78] sm:$0xff]
        %v958 = vld [vmem:[#allocation3 + $0x80] sm:$0xff]
        %v959 = vld [vmem:[#allocation3 + $0x88] sm:$0xff]
        %v960 = vld [vmem:[#allocation3 + $0x90] sm:$0xff]
        %v961 = vld [vmem:[#allocation3 + $0x98] sm:$0xff]
        %v962 = vld [vmem:[#allocation3 + $0xa0] sm:$0xff]
        %v963 = vld [vmem:[#allocation3 + $0xa8] sm:$0xff]
        %v964 = vld [vmem:[#allocation3 + $0xb0] sm:$0xff]
        %v965 = vld [vmem:[#allocation3 + $0xb8] sm:$0xff]
        %v966 = vld [vmem:[#allocation3 + $0xc0] sm:$0xff]
        %v967 = vld [vmem:[#allocation3 + $0xc8] sm:$0xff]
        %v968 = vld [vmem:[#allocation3 + $0xd0] sm:$0xff]
        %v969 = vld [vmem:[#allocation3 + $0xd8] sm:$0xff]
        %v970 = vld [vmem:[#allocation3 + $0xe0] sm:$0xff]
        %v971 = vld [vmem:[#allocation3 + $0xe8] sm:$0xff]
        %v972 = vld [vmem:[#allocation3 + $0xf0] sm:$0xff]
        %v973 = vld [vmem:[#allocation3 + $0xf8] sm:$0xff]
        %v974 = vld [vmem:[#allocation3 + $0x100] sm:$0xff]
        %v975 = vld [vmem:[#allocation3 + $0x108] sm:$0xff]
        %v976 = vld [vmem:[#allocation3 + $0x110] sm:$0xff]
        %v977 = vld [vmem:[#allocation3 + $0x118] sm:$0xff]
        %v978 = vld [vmem:[#allocation3 + $0x120] sm:$0xff]
        %v979 = vld [vmem:[#allocation3 + $0x128] sm:$0xff]
        %v980 = vld [vmem:[#allocation3 + $0x130] sm:$0xff]
        %v981 = vld [vmem:[#allocation3 + $0x138] sm:$0xff]
        %v982 = vld [vmem:[#allocation3 + $0x140] sm:$0xff]
        %v983 = vld [vmem:[#allocation3 + $0x148] sm:$0xff]
        %v984 = vld [vmem:[#allocation3 + $0x150] sm:$0xff]
        %v985 = vld [vmem:[#allocation3 + $0x158] sm:$0xff]
        %v986 = vld [vmem:[#allocation3 + $0x160] sm:$0xff]
        %v987 = vld [vmem:[#allocation3 + $0x168] sm:$0xff]
        %v988 = vld [vmem:[#allocation3 + $0x170] sm:$0xff]
        %v989 = vld [vmem:[#allocation3 + $0x178] sm:$0xff]
        %v990 = vld [vmem:[#allocation3 + $0x180] sm:$0xff]
        %v991 = vld [vmem:[#allocation3 + $0x188] sm:$0xff]
        %v992 = vld [vmem:[#allocation3 + $0x190] sm:$0xff]
        %v993 = vld [vmem:[#allocation3 + $0x198] sm:$0xff]
        %v994 = vld [vmem:[#allocation3 + $0x1a0] sm:$0xff]
        %v995 = vld [vmem:[#allocation3 + $0x1a8] sm:$0xff]
        %v996 = vld [vmem:[#allocation3 + $0x1b0] sm:$0xff]
        %v997 = vld [vmem:[#allocation3 + $0x1b8] sm:$0xff]
        %v998 = vld [vmem:[#allocation3 + $0x1c0] sm:$0xff]
        %v999 = vld [vmem:[#allocation3 + $0x1c8] sm:$0xff]
        %v1000 = vld [vmem:[#allocation3 + $0x1d0] sm:$0xff]
        %v1001 = vld [vmem:[#allocation3 + $0x1d8] sm:$0xff]
        %v1002 = vld [vmem:[#allocation3 + $0x1e0] sm:$0xff]
        %v1003 = vld [vmem:[#allocation3 + $0x1e8] sm:$0xff]
        %v1004 = vld [vmem:[#allocation3 + $0x1f0] sm:$0xff]
        %v1005 = vld [vmem:[#allocation3 + $0x1f8] sm:$0xff]
        %v1006 = vld [vmem:[#allocation3 + $0x200] sm:$0xff]
        %v1007 = vld [vmem:[#allocation3 + $0x208] sm:$0xff]
        %v1008 = vld [vmem:[#allocation3 + $0x210] sm:$0xff]
        %v1009 = vld [vmem:[#allocation3 + $0x218] sm:$0xff]
        %v1010 = vld [vmem:[#allocation3 + $0x220] sm:$0xff]
        %v1011 = vld [vmem:[#allocation3 + $0x228] sm:$0xff]
        %v1012 = vld [vmem:[#allocation3 + $0x230] sm:$0xff]
        %v1013 = vld [vmem:[#allocation3 + $0x238] sm:$0xff]
        %v1014 = vld [vmem:[#allocation3 + $0x240] sm:$0xff]
        %v1015 = vld [vmem:[#allocation3 + $0x248] sm:$0xff]
        %v1016 = vld [vmem:[#allocation3 + $0x250] sm:$0xff]
        %v1017 = vld [vmem:[#allocation3 + $0x258] sm:$0xff]
        %v1018 = vld [vmem:[#allocation3 + $0x260] sm:$0xff]
        %v1019 = vld [vmem:[#allocation3 + $0x268] sm:$0xff]
        %v1020 = vld [vmem:[#allocation3 + $0x270] sm:$0xff]
        %v1021 = vld [vmem:[#allocation3 + $0x278] sm:$0xff]
        %v1022 = vld [vmem:[#allocation3 + $0x280] sm:$0xff]
        %v1023 = vld [vmem:[#allocation3 + $0x288] sm:$0xff]
        %v1024 = vld [vmem:[#allocation3 + $0x290] sm:$0xff]
        %v1025 = vld [vmem:[#allocation3 + $0x298] sm:$0xff]
        %v1026 = vld [vmem:[#allocation3 + $0x2a0] sm:$0xff]
        %v1027 = vld [vmem:[#allocation3 + $0x2a8] sm:$0xff]
        %v1028 = vld [vmem:[#allocation3 + $0x2b0] sm:$0xff]
        %v1029 = vld [vmem:[#allocation3 + $0x2b8] sm:$0xff]
        %v1030 = vld [vmem:[#allocation3 + $0x2c0] sm:$0xff]
        %v1031 = vld [vmem:[#allocation3 + $0x2c8] sm:$0xff]
        %v1032 = vld [vmem:[#allocation3 + $0x2d0] sm:$0xff]
        %v1033 = vld [vmem:[#allocation3 + $0x2d8] sm:$0xff]
        %v1034 = vld [vmem:[#allocation3 + $0x2e0] sm:$0xff]
        %v1035 = vld [vmem:[#allocation3 + $0x2e8] sm:$0xff]
        %v1036 = vld [vmem:[#allocation3 + $0x2f0] sm:$0xff]
        %v1037 = vld [vmem:[#allocation3 + $0x2f8] sm:$0xff]
        %v1038 = vld [vmem:[#allocation3 + $0x300] sm:$0xff]
        %v1039 = vld [vmem:[#allocation3 + $0x308] sm:$0xff]
        %v1040 = vld [vmem:[#allocation3 + $0x310] sm:$0xff]
        %v1041 = vld [vmem:[#allocation3 + $0x318] sm:$0xff]
        %v1042 = vld [vmem:[#allocation3 + $0x320] sm:$0xff]
        %v1043 = vld [vmem:[#allocation3 + $0x328] sm:$0xff]
        %v1044 = vld [vmem:[#allocation3 + $0x330] sm:$0xff]
        %v1045 = vld [vmem:[#allocation3 + $0x338] sm:$0xff]
        %v1046 = vld [vmem:[#allocation3 + $0x340] sm:$0xff]
        %v1047 = vld [vmem:[#allocation3 + $0x348] sm:$0xff]
        %v1048 = vld [vmem:[#allocation3 + $0x350] sm:$0xff]
        %v1049 = vld [vmem:[#allocation3 + $0x358] sm:$0xff]
        %v1050 = vld [vmem:[#allocation3 + $0x360] sm:$0xff]
        %v1051 = vld [vmem:[#allocation3 + $0x368] sm:$0xff]
        %v1052 = vld [vmem:[#allocation3 + $0x370] sm:$0xff]
        %v1053 = vld [vmem:[#allocation3 + $0x378] sm:$0xff]
        %v1054 = vld [vmem:[#allocation3 + $0x380] sm:$0xff]
        %v1055 = vld [vmem:[#allocation3 + $0x388] sm:$0xff]
        %v1056 = vld [vmem:[#allocation3 + $0x390] sm:$0xff]
        %v1057 = vld [vmem:[#allocation3 + $0x398] sm:$0xff]
        %v1058 = vld [vmem:[#allocation3 + $0x3a0] sm:$0xff]
        %v1059 = vld [vmem:[#allocation3 + $0x3a8] sm:$0xff]
        %v1060 = vld [vmem:[#allocation3 + $0x3b0] sm:$0xff]
        %v1061 = vld [vmem:[#allocation3 + $0x3b8] sm:$0xff]
        %v1062 = vld [vmem:[#allocation3 + $0x3c0] sm:$0xff]
        %v1063 = vld [vmem:[#allocation3 + $0x3c8] sm:$0xff]
        %v1064 = vld [vmem:[#allocation3 + $0x3d0] sm:$0xff]
        %v1065 = vld [vmem:[#allocation3 + $0x3d8] sm:$0xff]
        %v1066 = vld [vmem:[#allocation3 + $0x3e0] sm:$0xff]
        %v1067 = vld [vmem:[#allocation3 + $0x3e8] sm:$0xff]
        %v1068 = vld [vmem:[#allocation3 + $0x3f0] sm:$0xff]
        %v1069 = vld [vmem:[#allocation3 + $0x3f8] sm:$0xff]
        %v1070 = vld [vmem:[#allocation3 + $0x400] sm:$0xff]
        %v1071 = vld [vmem:[#allocation3 + $0x408] sm:$0xff]
        %v1072 = vld [vmem:[#allocation3 + $0x410] sm:$0xff]
        %v1073 = vld [vmem:[#allocation3 + $0x418] sm:$0xff]
        %v1074 = vld [vmem:[#allocation3 + $0x420] sm:$0xff]
        %v1075 = vld [vmem:[#allocation3 + $0x428] sm:$0xff]
        %v1076 = vld [vmem:[#allocation3 + $0x430] sm:$0xff]
        %v1077 = vld [vmem:[#allocation3 + $0x438] sm:$0xff]
        %v1078 = vld [vmem:[#allocation3 + $0x440] sm:$0xff]
        %v1079 = vld [vmem:[#allocation3 + $0x448] sm:$0xff]
        %v1080 = vld [vmem:[#allocation3 + $0x450] sm:$0xff]
        %v1081 = vld [vmem:[#allocation3 + $0x458] sm:$0xff]
        %v1082 = vld [vmem:[#allocation3 + $0x460] sm:$0xff]
        %v1083 = vld [vmem:[#allocation3 + $0x468] sm:$0xff]
        %v1084 = vld [vmem:[#allocation3 + $0x470] sm:$0xff]
        %v1085 = vld [vmem:[#allocation3 + $0x478] sm:$0xff]
        %v1086 = vld [vmem:[#allocation3 + $0x480] sm:$0xff]
        %v1087 = vld [vmem:[#allocation3 + $0x488] sm:$0xff]
        %v1088 = vld [vmem:[#allocation3 + $0x490] sm:$0xff]
        %v1089 = vld [vmem:[#allocation3 + $0x498] sm:$0xff]
        %v1090 = vld [vmem:[#allocation3 + $0x4a0] sm:$0xff]
        %v1091 = vld [vmem:[#allocation3 + $0x4a8] sm:$0xff]
        %v1092 = vld [vmem:[#allocation3 + $0x4b0] sm:$0xff]
        %v1093 = vld [vmem:[#allocation3 + $0x4b8] sm:$0xff]
        %v1094 = vld [vmem:[#allocation3 + $0x4c0] sm:$0xff]
        %v1095 = vld [vmem:[#allocation3 + $0x4c8] sm:$0xff]
        %v1096 = vld [vmem:[#allocation3 + $0x4d0] sm:$0xff]
        %v1097 = vld [vmem:[#allocation3 + $0x4d8] sm:$0xff]
        %v1098 = vld [vmem:[#allocation3 + $0x4e0] sm:$0xff]
        %v1099 = vld [vmem:[#allocation3 + $0x4e8] sm:$0xff]
        %v1100 = vld [vmem:[#allocation3 + $0x4f0] sm:$0xff]
        %v1101 = vld [vmem:[#allocation3 + $0x4f8] sm:$0xff]
        %v1102 = vld [vmem:[#allocation3 + $0x500] sm:$0xff]
        %v1103 = vld [vmem:[#allocation3 + $0x508] sm:$0xff]
        %v1104 = vld [vmem:[#allocation3 + $0x510] sm:$0xff]
        %v1105 = vld [vmem:[#allocation3 + $0x518] sm:$0xff]
        %v1106 = vld [vmem:[#allocation3 + $0x520] sm:$0xff]
        %v1107 = vld [vmem:[#allocation3 + $0x528] sm:$0xff]
        %v1108 = vld [vmem:[#allocation3 + $0x530] sm:$0xff]
        %v1109 = vld [vmem:[#allocation3 + $0x538] sm:$0xff]
        %v1110 = vld [vmem:[#allocation3 + $0x540] sm:$0xff]
        %v1111 = vld [vmem:[#allocation3 + $0x548] sm:$0xff]
        %v1112 = vld [vmem:[#allocation3 + $0x550] sm:$0xff]
        %v1113 = vld [vmem:[#allocation3 + $0x558] sm:$0xff]
        %v1114 = vld [vmem:[#allocation3 + $0x560] sm:$0xff]
        %v1115 = vld [vmem:[#allocation3 + $0x568] sm:$0xff]
        %v1116 = vld [vmem:[#allocation3 + $0x570] sm:$0xff]
        %v1117 = vld [vmem:[#allocation3 + $0x578] sm:$0xff]
        %v1118 = vld [vmem:[#allocation3 + $0x580] sm:$0xff]
        %v1119 = vld [vmem:[#allocation3 + $0x588] sm:$0xff]
        %v1120 = vld [vmem:[#allocation3 + $0x590] sm:$0xff]
        %v1121 = vld [vmem:[#allocation3 + $0x598] sm:$0xff]
        %v1122 = vld [vmem:[#allocation3 + $0x5a0] sm:$0xff]
        %v1123 = vld [vmem:[#allocation3 + $0x5a8] sm:$0xff]
        %v1124 = vld [vmem:[#allocation3 + $0x5b0] sm:$0xff]
        %v1125 = vld [vmem:[#allocation3 + $0x5b8] sm:$0xff]
        %v1126 = vld [vmem:[#allocation3 + $0x5c0] sm:$0xff]
        %v1127 = vld [vmem:[#allocation3 + $0x5c8] sm:$0xff]
        %v1128 = vld [vmem:[#allocation3 + $0x5d0] sm:$0xff]
        %v1129 = vld [vmem:[#allocation3 + $0x5d8] sm:$0xff]
        %v1130 = vld [vmem:[#allocation3 + $0x5e0] sm:$0xff]
        %v1131 = vld [vmem:[#allocation3 + $0x5e8] sm:$0xff]
        %v1132 = vld [vmem:[#allocation3 + $0x5f0] sm:$0xff]
        %v1133 = vld [vmem:[#allocation3 + $0x5f8] sm:$0xff]
        %v1134 = vld [vmem:[#allocation3 + $0x600] sm:$0xff]
        %v1135 = vld [vmem:[#allocation3 + $0x608] sm:$0xff]
        %v1136 = vld [vmem:[#allocation3 + $0x610] sm:$0xff]
        %v1137 = vld [vmem:[#allocation3 + $0x618] sm:$0xff]
        %v1138 = vld [vmem:[#allocation3 + $0x620] sm:$0xff]
        %v1139 = vld [vmem:[#allocation3 + $0x628] sm:$0xff]
        %v1140 = vld [vmem:[#allocation3 + $0x630] sm:$0xff]
        %v1141 = vld [vmem:[#allocation3 + $0x638] sm:$0xff]
        %v1142 = vld [vmem:[#allocation3 + $0x640] sm:$0xff]
        %v1143 = vld [vmem:[#allocation3 + $0x648] sm:$0xff]
        %v1144 = vld [vmem:[#allocation3 + $0x650] sm:$0xff]
        %v1145 = vld [vmem:[#allocation3 + $0x658] sm:$0xff]
        %v1146 = vld [vmem:[#allocation3 + $0x660] sm:$0xff]
        %v1147 = vld [vmem:[#allocation3 + $0x668] sm:$0xff]
        %v1148 = vld [vmem:[#allocation3 + $0x670] sm:$0xff]
        %v1149 = vld [vmem:[#allocation3 + $0x678] sm:$0xff]
        %v1150 = vld [vmem:[#allocation3 + $0x680] sm:$0xff]
        %v1151 = vld [vmem:[#allocation3 + $0x688] sm:$0xff]
        %v1152 = vld [vmem:[#allocation3 + $0x690] sm:$0xff]
        %v1153 = vld [vmem:[#allocation3 + $0x698] sm:$0xff]
        %v1154 = vld [vmem:[#allocation3 + $0x6a0] sm:$0xff]
        %v1155 = vld [vmem:[#allocation3 + $0x6a8] sm:$0xff]
        %v1156 = vld [vmem:[#allocation3 + $0x6b0] sm:$0xff]
        %v1157 = vld [vmem:[#allocation3 + $0x6b8] sm:$0xff]
        %v1158 = vld [vmem:[#allocation3 + $0x6c0] sm:$0xff]
        %v1159 = vld [vmem:[#allocation3 + $0x6c8] sm:$0xff]
        %v1160 = vld [vmem:[#allocation3 + $0x6d0] sm:$0xff]
        %v1161 = vld [vmem:[#allocation3 + $0x6d8] sm:$0xff]
        %v1162 = vld [vmem:[#allocation3 + $0x6e0] sm:$0xff]
        %v1163 = vld [vmem:[#allocation3 + $0x6e8] sm:$0xff]
        %v1164 = vld [vmem:[#allocation3 + $0x6f0] sm:$0xff]
        %v1165 = vld [vmem:[#allocation3 + $0x6f8] sm:$0xff]
        %v1166 = vld [vmem:[#allocation3 + $0x700] sm:$0xff]
        %v1167 = vld [vmem:[#allocation3 + $0x708] sm:$0xff]
        %v1168 = vld [vmem:[#allocation3 + $0x710] sm:$0xff]
        %v1169 = vld [vmem:[#allocation3 + $0x718] sm:$0xff]
        %v1170 = vld [vmem:[#allocation3 + $0x720] sm:$0xff]
        %v1171 = vld [vmem:[#allocation3 + $0x728] sm:$0xff]
        %v1172 = vld [vmem:[#allocation3 + $0x730] sm:$0xff]
        %v1173 = vld [vmem:[#allocation3 + $0x738] sm:$0xff]
        %v1174 = vld [vmem:[#allocation3 + $0x740] sm:$0xff]
        %v1175 = vld [vmem:[#allocation3 + $0x748] sm:$0xff]
        %v1176 = vld [vmem:[#allocation3 + $0x750] sm:$0xff]
        %v1177 = vld [vmem:[#allocation3 + $0x758] sm:$0xff]
        %v1178 = vld [vmem:[#allocation3 + $0x760] sm:$0xff]
        %v1179 = vld [vmem:[#allocation3 + $0x768] sm:$0xff]
        %v1180 = vld [vmem:[#allocation3 + $0x770] sm:$0xff]
        %v1181 = vld [vmem:[#allocation3 + $0x778] sm:$0xff]
        %v1182 = vld [vmem:[#allocation3 + $0x780] sm:$0xff]
        %v1183 = vld [vmem:[#allocation3 + $0x788] sm:$0xff]
        %v1184 = vld [vmem:[#allocation3 + $0x790] sm:$0xff]
        %v1185 = vld [vmem:[#allocation3 + $0x798] sm:$0xff]
        %v1186 = vld [vmem:[#allocation3 + $0x7a0] sm:$0xff]
        %v1187 = vld [vmem:[#allocation3 + $0x7a8] sm:$0xff]
        %v1188 = vld [vmem:[#allocation3 + $0x7b0] sm:$0xff]
        %v1189 = vld [vmem:[#allocation3 + $0x7b8] sm:$0xff]
        %v1190 = vld [vmem:[#allocation3 + $0x7c0] sm:$0xff]
        %v1191 = vld [vmem:[#allocation3 + $0x7c8] sm:$0xff]
        %v1192 = vld [vmem:[#allocation3 + $0x7d0] sm:$0xff]
        %v1193 = vld [vmem:[#allocation3 + $0x7d8] sm:$0xff]
        %v1194 = vld [vmem:[#allocation3 + $0x7e0] sm:$0xff]
        %v1195 = vld [vmem:[#allocation3 + $0x7e8] sm:$0xff]
        %v1196 = vld [vmem:[#allocation3 + $0x7f0] sm:$0xff]
        %v1197 = vld [vmem:[#allocation3 + $0x7f8] sm:$0xff]
        %v1198 = vld [vmem:[#allocation3 + $0x800] sm:$0xff]
        %v1199 = vld [vmem:[#allocation3 + $0x808] sm:$0xff]
        %v1200 = vld [vmem:[#allocation3 + $0x810] sm:$0xff]
        %v1201 = vld [vmem:[#allocation3 + $0x818] sm:$0xff]
        %v1202 = vld [vmem:[#allocation3 + $0x820] sm:$0xff]
        %v1203 = vld [vmem:[#allocation3 + $0x828] sm:$0xff]
        %v1204 = vld [vmem:[#allocation3 + $0x830] sm:$0xff]
        %v1205 = vld [vmem:[#allocation3 + $0x838] sm:$0xff]
        %v1206 = vld [vmem:[#allocation3 + $0x840] sm:$0xff]
        %v1207 = vld [vmem:[#allocation3 + $0x848] sm:$0xff]
        %v1208 = vld [vmem:[#allocation3 + $0x850] sm:$0xff]
        %v1209 = vld [vmem:[#allocation3 + $0x858] sm:$0xff]
        %v1210 = vld [vmem:[#allocation3 + $0x860] sm:$0xff]
        %v1211 = vld [vmem:[#allocation3 + $0x868] sm:$0xff]
        %v1212 = vld [vmem:[#allocation3 + $0x870] sm:$0xff]
        %v1213 = vld [vmem:[#allocation3 + $0x878] sm:$0xff]
        %v1214 = vld [vmem:[#allocation3 + $0x880] sm:$0xff]
        %v1215 = vld [vmem:[#allocation3 + $0x888] sm:$0xff]
        %v1216 = vld [vmem:[#allocation3 + $0x890] sm:$0xff]
        %v1217 = vld [vmem:[#allocation3 + $0x898] sm:$0xff]
        %v1218 = vld [vmem:[#allocation3 + $0x8a0] sm:$0xff]
        %v1219 = vld [vmem:[#allocation3 + $0x8a8] sm:$0xff]
        %v1220 = vld [vmem:[#allocation3 + $0x8b0] sm:$0xff]
        %v1221 = vld [vmem:[#allocation3 + $0x8b8] sm:$0xff]
        %v1222 = vld [vmem:[#allocation3 + $0x8c0] sm:$0xff]
        %v1223 = vld [vmem:[#allocation3 + $0x8c8] sm:$0xff]
        %v1224 = vld [vmem:[#allocation3 + $0x8d0] sm:$0xff]
        %v1225 = vld [vmem:[#allocation3 + $0x8d8] sm:$0xff]
        %v1226 = vld [vmem:[#allocation3 + $0x8e0] sm:$0xff]
        %v1227 = vld [vmem:[#allocation3 + $0x8e8] sm:$0xff]
        %v1228 = vld [vmem:[#allocation3 + $0x8f0] sm:$0xff]
        %v1229 = vld [vmem:[#allocation3 + $0x8f8] sm:$0xff]
        %v1230 = vld [vmem:[#allocation7] sm:$0xff]
        %v1231 = vld [vmem:[#allocation7 + $0x8] sm:$0xff]
        %v1232 = vld [vmem:[#allocation7 + $0x10] sm:$0xff]
        %v1233 = vld [vmem:[#allocation7 + $0x18] sm:$0xff]
        %v1234 = vld [vmem:[#allocation7 + $0x20] sm:$0xff]
        %v1235 = vld [vmem:[#allocation7 + $0x28] sm:$0xff]
        %v1236 = vld [vmem:[#allocation7 + $0x30] sm:$0xff]
        %v1237 = vld [vmem:[#allocation7 + $0x38] sm:$0xff]
        %v1238 = vld [vmem:[#allocation7 + $0x40] sm:$0xff]
        %v1239 = vld [vmem:[#allocation7 + $0x48] sm:$0xff]
        %v1240 = vld [vmem:[#allocation7 + $0x50] sm:$0xff]
        %v1241 = vld [vmem:[#allocation7 + $0x58] sm:$0xff]
        %v1242 = vld [vmem:[#allocation7 + $0x60] sm:$0xff]
        %v1243 = vld [vmem:[#allocation7 + $0x68] sm:$0xff]
        %v1244 = vld [vmem:[#allocation7 + $0x70] sm:$0xff]
        %v1245 = vld [vmem:[#allocation7 + $0x78] sm:$0xff]
        %v1246 = vld [vmem:[#allocation7 + $0x80] sm:$0xff]
        %v1247 = vld [vmem:[#allocation7 + $0x88] sm:$0xff]
        %v1248 = vld [vmem:[#allocation7 + $0x90] sm:$0xff]
        %v1249 = vld [vmem:[#allocation7 + $0x98] sm:$0xff]
        %v1250 = vld [vmem:[#allocation7 + $0xa0] sm:$0xff]
        %v1251 = vld [vmem:[#allocation7 + $0xa8] sm:$0xff]
        %v1252 = vld [vmem:[#allocation7 + $0xb0] sm:$0xff]
        %v1253 = vld [vmem:[#allocation7 + $0xb8] sm:$0xff]
        %v1254 = vld [vmem:[#allocation7 + $0xc0] sm:$0xff]
        %v1255 = vld [vmem:[#allocation7 + $0xc8] sm:$0xff]
        %v1256 = vld [vmem:[#allocation7 + $0xd0] sm:$0xff]
        %v1257 = vld [vmem:[#allocation7 + $0xd8] sm:$0xff]
        %v1258 = vld [vmem:[#allocation7 + $0xe0] sm:$0xff]
        %v1259 = vld [vmem:[#allocation7 + $0xe8] sm:$0xff]
        %v1260 = vld [vmem:[#allocation7 + $0xf0] sm:$0xff]
        %v1261 = vld [vmem:[#allocation7 + $0xf8] sm:$0xff]
        %v1262 = vld [vmem:[#allocation7 + $0x100] sm:$0xff]
        %v1263 = vld [vmem:[#allocation7 + $0x108] sm:$0xff]
        %v1264 = vld [vmem:[#allocation7 + $0x110] sm:$0xff]
        %v1265 = vld [vmem:[#allocation7 + $0x118] sm:$0xff]
        %v1266 = vld [vmem:[#allocation7 + $0x120] sm:$0xff]
        %v1267 = vld [vmem:[#allocation7 + $0x128] sm:$0xff]
        %v1268 = vld [vmem:[#allocation7 + $0x130] sm:$0xff]
        %v1269 = vld [vmem:[#allocation7 + $0x138] sm:$0xff]
        %v1270 = vld [vmem:[#allocation7 + $0x140] sm:$0xff]
        %v1271 = vld [vmem:[#allocation7 + $0x148] sm:$0xff]
        %v1272 = vld [vmem:[#allocation7 + $0x150] sm:$0xff]
        %v1273 = vld [vmem:[#allocation7 + $0x158] sm:$0xff]
        %v1274 = vld [vmem:[#allocation7 + $0x160] sm:$0xff]
        %v1275 = vld [vmem:[#allocation7 + $0x168] sm:$0xff]
        %v1276 = vld [vmem:[#allocation7 + $0x170] sm:$0xff]
        %v1277 = vld [vmem:[#allocation7 + $0x178] sm:$0xff]
        %v1278 = vld [vmem:[#allocation7 + $0x180] sm:$0xff]
        %v1279 = vld [vmem:[#allocation7 + $0x188] sm:$0xff]
        %v1280 = vld [vmem:[#allocation7 + $0x190] sm:$0xff]
        %v1281 = vld [vmem:[#allocation7 + $0x198] sm:$0xff]
        %v1282 = vld [vmem:[#allocation7 + $0x1a0] sm:$0xff]
        %v1283 = vld [vmem:[#allocation7 + $0x1a8] sm:$0xff]
        %v1284 = vld [vmem:[#allocation7 + $0x1b0] sm:$0xff]
        %v1285 = vld [vmem:[#allocation7 + $0x1b8] sm:$0xff]
        %v1286 = vld [vmem:[#allocation7 + $0x1c0] sm:$0xff]
        %v1287 = vld [vmem:[#allocation7 + $0x1c8] sm:$0xff]
        %v1288 = vld [vmem:[#allocation7 + $0x1d0] sm:$0xff]
        %v1289 = vld [vmem:[#allocation7 + $0x1d8] sm:$0xff]
        %v1290 = vld [vmem:[#allocation7 + $0x1e0] sm:$0xff]
        %v1291 = vld [vmem:[#allocation7 + $0x1e8] sm:$0xff]
        %v1292 = vld [vmem:[#allocation7 + $0x1f0] sm:$0xff]
        %v1293 = vld [vmem:[#allocation7 + $0x1f8] sm:$0xff]
        %v1294 = vld [vmem:[#allocation7 + $0x200] sm:$0xff]
        %v1295 = vld [vmem:[#allocation7 + $0x208] sm:$0xff]
        %v1296 = vld [vmem:[#allocation7 + $0x210] sm:$0xff]
        %v1297 = vld [vmem:[#allocation7 + $0x218] sm:$0xff]
        %v1298 = vld [vmem:[#allocation7 + $0x220] sm:$0xff]
        %v1299 = vld [vmem:[#allocation7 + $0x228] sm:$0xff]
        %v1300 = vld [vmem:[#allocation7 + $0x230] sm:$0xff]
        %v1301 = vld [vmem:[#allocation7 + $0x238] sm:$0xff]
        %v1302 = vld [vmem:[#allocation7 + $0x240] sm:$0xff]
        %v1303 = vld [vmem:[#allocation7 + $0x248] sm:$0xff]
        %v1304 = vld [vmem:[#allocation7 + $0x250] sm:$0xff]
        %v1305 = vld [vmem:[#allocation7 + $0x258] sm:$0xff]
        %v1306 = vld [vmem:[#allocation7 + $0x260] sm:$0xff]
        %v1307 = vld [vmem:[#allocation7 + $0x268] sm:$0xff]
        %v1308 = vld [vmem:[#allocation7 + $0x270] sm:$0xff]
        %v1309 = vld [vmem:[#allocation7 + $0x278] sm:$0xff]
        %v1310 = vld [vmem:[#allocation7 + $0x280] sm:$0xff]
        %v1311 = vld [vmem:[#allocation7 + $0x288] sm:$0xff]
        %v1312 = vld [vmem:[#allocation7 + $0x290] sm:$0xff]
        %v1313 = vld [vmem:[#allocation7 + $0x298] sm:$0xff]
        %v1314 = vld [vmem:[#allocation7 + $0x2a0] sm:$0xff]
        %v1315 = vld [vmem:[#allocation7 + $0x2a8] sm:$0xff]
        %v1316 = vld [vmem:[#allocation7 + $0x2b0] sm:$0xff]
        %v1317 = vld [vmem:[#allocation7 + $0x2b8] sm:$0xff]
        %v1318 = vld [vmem:[#allocation7 + $0x2c0] sm:$0xff]
        %v1319 = vld [vmem:[#allocation7 + $0x2c8] sm:$0xff]
        %v1320 = vld [vmem:[#allocation7 + $0x2d0] sm:$0xff]
        %v1321 = vld [vmem:[#allocation7 + $0x2d8] sm:$0xff]
        %v1322 = vld [vmem:[#allocation7 + $0x2e0] sm:$0xff]
        %v1323 = vld [vmem:[#allocation7 + $0x2e8] sm:$0xff]
        %v1324 = vld [vmem:[#allocation7 + $0x2f0] sm:$0xff]
        %v1325 = vld [vmem:[#allocation7 + $0x2f8] sm:$0xff]
        %v1326 = vld [vmem:[#allocation7 + $0x300] sm:$0xff]
        %v1327 = vld [vmem:[#allocation7 + $0x308] sm:$0xff]
        %v1328 = vld [vmem:[#allocation7 + $0x310] sm:$0xff]
        %v1329 = vld [vmem:[#allocation7 + $0x318] sm:$0xff]
        %v1330 = vld [vmem:[#allocation7 + $0x320] sm:$0xff]
        %v1331 = vld [vmem:[#allocation7 + $0x328] sm:$0xff]
        %v1332 = vld [vmem:[#allocation7 + $0x330] sm:$0xff]
        %v1333 = vld [vmem:[#allocation7 + $0x338] sm:$0xff]
        %v1334 = vld [vmem:[#allocation7 + $0x340] sm:$0xff]
        %v1335 = vld [vmem:[#allocation7 + $0x348] sm:$0xff]
        %v1336 = vld [vmem:[#allocation7 + $0x350] sm:$0xff]
        %v1337 = vld [vmem:[#allocation7 + $0x358] sm:$0xff]
        %v1338 = vld [vmem:[#allocation7 + $0x360] sm:$0xff]
        %v1339 = vld [vmem:[#allocation7 + $0x368] sm:$0xff]
        %v1340 = vld [vmem:[#allocation7 + $0x370] sm:$0xff]
        %v1341 = vld [vmem:[#allocation7 + $0x378] sm:$0xff]
        %v1342 = vld [vmem:[#allocation7 + $0x380] sm:$0xff]
        %v1343 = vld [vmem:[#allocation7 + $0x388] sm:$0xff]
        %v1344 = vld [vmem:[#allocation7 + $0x390] sm:$0xff]
        %v1345 = vld [vmem:[#allocation7 + $0x398] sm:$0xff]
        %v1346 = vld [vmem:[#allocation7 + $0x3a0] sm:$0xff]
        %v1347 = vld [vmem:[#allocation7 + $0x3a8] sm:$0xff]
        %v1348 = vld [vmem:[#allocation7 + $0x3b0] sm:$0xff]
        %v1349 = vld [vmem:[#allocation7 + $0x3b8] sm:$0xff]
        %v1350 = vld [vmem:[#allocation7 + $0x3c0] sm:$0xff]
        %v1351 = vld [vmem:[#allocation7 + $0x3c8] sm:$0xff]
        %v1352 = vld [vmem:[#allocation7 + $0x3d0] sm:$0xff]
        %v1353 = vld [vmem:[#allocation7 + $0x3d8] sm:$0xff]
        %v1354 = vld [vmem:[#allocation7 + $0x3e0] sm:$0xff]
        %v1355 = vld [vmem:[#allocation7 + $0x3e8] sm:$0xff]
        %v1356 = vld [vmem:[#allocation7 + $0x3f0] sm:$0xff]
        %v1357 = vld [vmem:[#allocation7 + $0x3f8] sm:$0xff]
        %v1358 = vld [vmem:[#allocation7 + $0x400] sm:$0xff]
        %v1359 = vld [vmem:[#allocation7 + $0x408] sm:$0xff]
        %v1360 = vld [vmem:[#allocation7 + $0x410] sm:$0xff]
        %v1361 = vld [vmem:[#allocation7 + $0x418] sm:$0xff]
        %v1362 = vld [vmem:[#allocation7 + $0x420] sm:$0xff]
        %v1363 = vld [vmem:[#allocation7 + $0x428] sm:$0xff]
        %v1364 = vld [vmem:[#allocation7 + $0x430] sm:$0xff]
        %v1365 = vld [vmem:[#allocation7 + $0x438] sm:$0xff]
        %v1366 = vld [vmem:[#allocation7 + $0x440] sm:$0xff]
        %v1367 = vld [vmem:[#allocation7 + $0x448] sm:$0xff]
        %v1368 = vld [vmem:[#allocation7 + $0x450] sm:$0xff]
        %v1369 = vld [vmem:[#allocation7 + $0x458] sm:$0xff]
        %v1370 = vld [vmem:[#allocation7 + $0x460] sm:$0xff]
        %v1371 = vld [vmem:[#allocation7 + $0x468] sm:$0xff]
        %v1372 = vld [vmem:[#allocation7 + $0x470] sm:$0xff]
        %v1373 = vld [vmem:[#allocation7 + $0x478] sm:$0xff]
        %1374 = vmatprep.subr.mxu0 0.0
        %1375 = vmatpush1.msra.mxu0 %v1245
        %1376 = vmatprep.subr.mxu0 0.0
        %1377 = vmatpush1.msra.mxu0 %v1244
        %1378 = vmatprep.subr.mxu0 0.0
        %1379 = vmatpush1.msra.mxu0 %v1243
        %1380 = vmatprep.subr.mxu0 0.0
        %1381 = vmatpush1.msra.mxu0 %v1242
        %1382 = vmatprep.subr.mxu0 0.0
        %1383 = vmatpush1.msra.mxu0 %v1241
        %1384 = vmatprep.subr.mxu0 0.0
        %1385 = vmatpush1.msra.mxu0 %v1240
        %1386 = vmatprep.subr.mxu0 0.0
        %1387 = vmatpush1.msra.mxu0 %v1239
        %1388 = vmatprep.subr.mxu0 0.0
        %1389 = vmatpush1.msra.mxu0 %v1238
        %1390 = vmatprep.subr.mxu0 0.0
        %1391 = vmatpush1.msra.mxu0 %v1237
        %1392 = vmatprep.subr.mxu0 0.0
        %1393 = vmatpush1.msra.mxu0 %v1236
        %1394 = vmatprep.subr.mxu0 0.0
        %1395 = vmatpush1.msra.mxu0 %v1235
        %1396 = vmatprep.subr.mxu0 0.0
        %1397 = vmatpush1.msra.mxu0 %v1234
        %1398 = vmatprep.subr.mxu0 0.0
        %1399 = vmatpush1.msra.mxu0 %v1233
        %1400 = vmatprep.subr.mxu0 0.0
        %1401 = vmatpush1.msra.mxu0 %v1232
        %1402 = vmatprep.subr.mxu0 0.0
        %1403 = vmatpush1.msra.mxu0 %v1231
        %1404 = vmatprep.subr.mxu0 0.0
        %1405 = vmatpush1.msra.mxu0 %v1230
        %1406 = vmatprep.subr.mxu0 0.0
        %1407 = vmatpush2.msra.mxu0 %v1261
        %1408 = vmatprep.subr.mxu0 0.0
        %1409 = vmatpush2.msra.mxu0 %v1260
        %1410 = vmatprep.subr.mxu0 0.0
        %1411 = vmatpush2.msra.mxu0 %v1259
        %1412 = vmatprep.subr.mxu0 0.0
        %1413 = vmatpush2.msra.mxu0 %v1258
        %1414 = vmatprep.subr.mxu0 0.0
        %1415 = vmatpush2.msra.mxu0 %v1257
        %1416 = vmatprep.subr.mxu0 0.0
        %1417 = vmatpush2.msra.mxu0 %v1256
        %1418 = vmatprep.subr.mxu0 0.0
        %1419 = vmatpush2.msra.mxu0 %v1255
        %1420 = vmatprep.subr.mxu0 0.0
        %1421 = vmatpush2.msra.mxu0 %v1254
        %1422 = vmatprep.subr.mxu0 0.0
        %1423 = vmatpush2.msra.mxu0 %v1253
        %1424 = vmatprep.subr.mxu0 0.0
        %1425 = vmatpush2.msra.mxu0 %v1252
        %1426 = vmatprep.subr.mxu0 0.0
        %1427 = vmatpush2.msra.mxu0 %v1251
        %1428 = vmatprep.subr.mxu0 0.0
        %1429 = vmatpush2.msra.mxu0 %v1250
        %1430 = vmatprep.subr.mxu0 0.0
        %1431 = vmatpush2.msra.mxu0 %v1249
        %1432 = vmatprep.subr.mxu0 0.0
        %1433 = vmatpush2.msra.mxu0 %v1248
        %1434 = vmatprep.subr.mxu0 0.0
        %1435 = vmatpush2.msra.mxu0 %v1247
        %1436 = vmatprep.subr.mxu0 0.0
        %1437 = vmatpush2.msra.mxu0 %v1246
        %1438 = vmatprep.mubr.f32.mxu0 %v943
        %1439 = vmatmul.mubr.f32.gmra.mxu0 %v942
        %v1440 = vpop.f32.mrf.mxu0
        %v1441 = vadd.f32 0.0, %v1440
        %v1442 = vpop.f32.mrf.mxu0
        %1443 = vmatprep.mubr.f32.mxu0 %v952
        %1444 = vmatmul.mubr.f32.gmra.mxu0 %v951
        %v1445 = vpop.f32.mrf.mxu0
        %v1446 = vadd.f32 0.0, %v1445
        %v1447 = vpop.f32.mrf.mxu0
        %1448 = vmatprep.mubr.f32.mxu0 %v961
        %1449 = vmatmul.mubr.f32.gmra.mxu0 %v960
        %v1450 = vpop.f32.mrf.mxu0
        %v1451 = vadd.f32 0.0, %v1450
        %v1452 = vpop.f32.mrf.mxu0
        %1453 = vmatprep.mubr.f32.mxu0 %v970
        %1454 = vmatmul.mubr.f32.gmra.mxu0 %v969
        %v1455 = vpop.f32.mrf.mxu0
        %v1456 = vadd.f32 0.0, %v1455
        %v1457 = vpop.f32.mrf.mxu0
        %1458 = vmatprep.mubr.f32.mxu0 %v979
        %1459 = vmatmul.mubr.f32.gmra.mxu0 %v978
        %v1460 = vpop.f32.mrf.mxu0
        %v1461 = vadd.f32 0.0, %v1460
        %v1462 = vpop.f32.mrf.mxu0
        %1463 = vmatprep.mubr.f32.mxu0 %v988
        %1464 = vmatmul.mubr.f32.gmra.mxu0 %v987
        %v1465 = vpop.f32.mrf.mxu0
        %v1466 = vadd.f32 0.0, %v1465
        %v1467 = vpop.f32.mrf.mxu0
        %1468 = vmatprep.mubr.f32.mxu0 %v997
        %1469 = vmatmul.mubr.f32.gmra.mxu0 %v996
        %v1470 = vpop.f32.mrf.mxu0
        %v1471 = vadd.f32 0.0, %v1470
        %v1472 = vpop.f32.mrf.mxu0
        %1473 = vmatprep.mubr.f32.mxu0 %v1006
        %1474 = vmatmul.mubr.f32.gmra.mxu0 %v1005
        %v1475 = vpop.f32.mrf.mxu0
        %v1476 = vadd.f32 0.0, %v1475
        %v1477 = vpop.f32.mrf.mxu0
        %1478 = vmatprep.mubr.f32.mxu0 %v1015
        %1479 = vmatmul.mubr.f32.gmra.mxu0 %v1014
        %v1480 = vpop.f32.mrf.mxu0
        %v1481 = vadd.f32 0.0, %v1480
        %v1482 = vpop.f32.mrf.mxu0
        %1483 = vmatprep.mubr.f32.mxu0 %v1024
        %1484 = vmatmul.mubr.f32.gmra.mxu0 %v1023
        %v1485 = vpop.f32.mrf.mxu0
        %v1486 = vadd.f32 0.0, %v1485
        %v1487 = vpop.f32.mrf.mxu0
        %1488 = vmatprep.mubr.f32.mxu0 %v1033
        %1489 = vmatmul.mubr.f32.gmra.mxu0 %v1032
        %v1490 = vpop.f32.mrf.mxu0
        %v1491 = vadd.f32 0.0, %v1490
        %v1492 = vpop.f32.mrf.mxu0
        %1493 = vmatprep.mubr.f32.mxu0 %v1042
        %1494 = vmatmul.mubr.f32.gmra.mxu0 %v1041
        %v1495 = vpop.f32.mrf.mxu0
        %v1496 = vadd.f32 0.0, %v1495
        %v1497 = vpop.f32.mrf.mxu0
        %1498 = vmatprep.mubr.f32.mxu0 %v1051
        %1499 = vmatmul.mubr.f32.gmra.mxu0 %v1050
        %v1500 = vpop.f32.mrf.mxu0
        %v1501 = vadd.f32 0.0, %v1500
        %v1502 = vpop.f32.mrf.mxu0
        %1503 = vmatprep.mubr.f32.mxu0 %v1060
        %1504 = vmatmul.mubr.f32.gmra.mxu0 %v1059
        %v1505 = vpop.f32.mrf.mxu0
        %v1506 = vadd.f32 0.0, %v1505
        %v1507 = vpop.f32.mrf.mxu0
        %1508 = vmatprep.mubr.f32.mxu0 %v1069
        %1509 = vmatmul.mubr.f32.gmra.mxu0 %v1068
        %v1510 = vpop.f32.mrf.mxu0
        %v1511 = vadd.f32 0.0, %v1510
        %v1512 = vpop.f32.mrf.mxu0
        %1513 = vmatprep.mubr.f32.mxu0 %v1078
        %1514 = vmatmul.mubr.f32.gmra.mxu0 %v1077
        %v1515 = vpop.f32.mrf.mxu0
        %v1516 = vadd.f32 0.0, %v1515
        %v1517 = vpop.f32.mrf.mxu0
        %1518 = vmatprep.mubr.f32.mxu0 %v1087
        %1519 = vmatmul.mubr.f32.gmra.mxu0 %v1086
        %v1520 = vpop.f32.mrf.mxu0
        %v1521 = vadd.f32 0.0, %v1520
        %v1522 = vpop.f32.mrf.mxu0
        %1523 = vmatprep.mubr.f32.mxu0 %v1096
        %1524 = vmatmul.mubr.f32.gmra.mxu0 %v1095
        %v1525 = vpop.f32.mrf.mxu0
        %v1526 = vadd.f32 0.0, %v1525
        %v1527 = vpop.f32.mrf.mxu0
        %1528 = vmatprep.mubr.f32.mxu0 %v1105
        %1529 = vmatmul.mubr.f32.gmra.mxu0 %v1104
        %v1530 = vpop.f32.mrf.mxu0
        %v1531 = vadd.f32 0.0, %v1530
        %v1532 = vpop.f32.mrf.mxu0
        %1533 = vmatprep.mubr.f32.mxu0 %v1114
        %1534 = vmatmul.mubr.f32.gmra.mxu0 %v1113
        %v1535 = vpop.f32.mrf.mxu0
        %v1536 = vadd.f32 0.0, %v1535
        %v1537 = vpop.f32.mrf.mxu0
        %1538 = vmatprep.mubr.f32.mxu0 %v1123
        %1539 = vmatmul.mubr.f32.gmra.mxu0 %v1122
        %v1540 = vpop.f32.mrf.mxu0
        %v1541 = vadd.f32 0.0, %v1540
        %v1542 = vpop.f32.mrf.mxu0
        %1543 = vmatprep.mubr.f32.mxu0 %v1132
        %1544 = vmatmul.mubr.f32.gmra.mxu0 %v1131
        %v1545 = vpop.f32.mrf.mxu0
        %v1546 = vadd.f32 0.0, %v1545
        %v1547 = vpop.f32.mrf.mxu0
        %1548 = vmatprep.mubr.f32.mxu0 %v1141
        %1549 = vmatmul.mubr.f32.gmra.mxu0 %v1140
        %v1550 = vpop.f32.mrf.mxu0
        %v1551 = vadd.f32 0.0, %v1550
        %v1552 = vpop.f32.mrf.mxu0
        %1553 = vmatprep.mubr.f32.mxu0 %v1150
        %1554 = vmatmul.mubr.f32.gmra.mxu0 %v1149
        %v1555 = vpop.f32.mrf.mxu0
        %v1556 = vadd.f32 0.0, %v1555
        %v1557 = vpop.f32.mrf.mxu0
        %1558 = vmatprep.mubr.f32.mxu0 %v1159
        %1559 = vmatmul.mubr.f32.gmra.mxu0 %v1158
        %v1560 = vpop.f32.mrf.mxu0
        %v1561 = vadd.f32 0.0, %v1560
        %v1562 = vpop.f32.mrf.mxu0
        %1563 = vmatprep.mubr.f32.mxu0 %v1168
        %1564 = vmatmul.mubr.f32.gmra.mxu0 %v1167
        %v1565 = vpop.f32.mrf.mxu0
        %v1566 = vadd.f32 0.0, %v1565
        %v1567 = vpop.f32.mrf.mxu0
        %1568 = vmatprep.mubr.f32.mxu0 %v1177
        %1569 = vmatmul.mubr.f32.gmra.mxu0 %v1176
        %v1570 = vpop.f32.mrf.mxu0
        %v1571 = vadd.f32 0.0, %v1570
        %v1572 = vpop.f32.mrf.mxu0
        %1573 = vmatprep.mubr.f32.mxu0 %v1186
        %1574 = vmatmul.mubr.f32.gmra.mxu0 %v1185
        %v1575 = vpop.f32.mrf.mxu0
        %v1576 = vadd.f32 0.0, %v1575
        %v1577 = vpop.f32.mrf.mxu0
        %1578 = vmatprep.mubr.f32.mxu0 %v1195
        %1579 = vmatmul.mubr.f32.gmra.mxu0 %v1194
        %v1580 = vpop.f32.mrf.mxu0
        %v1581 = vadd.f32 0.0, %v1580
        %v1582 = vpop.f32.mrf.mxu0
        %1583 = vmatprep.mubr.f32.mxu0 %v1204
        %1584 = vmatmul.mubr.f32.gmra.mxu0 %v1203
        %v1585 = vpop.f32.mrf.mxu0
        %v1586 = vadd.f32 0.0, %v1585
        %v1587 = vpop.f32.mrf.mxu0
        %1588 = vmatprep.mubr.f32.mxu0 %v1213
        %1589 = vmatmul.mubr.f32.gmra.mxu0 %v1212
        %v1590 = vpop.f32.mrf.mxu0
        %v1591 = vadd.f32 0.0, %v1590
        %v1592 = vpop.f32.mrf.mxu0
        %1593 = vmatprep.mubr.f32.mxu0 %v1222
        %1594 = vmatmul.mubr.f32.gmra.mxu0 %v1221
        %v1595 = vpop.f32.mrf.mxu0
        %v1596 = vadd.f32 0.0, %v1595
        %v1597 = vpop.f32.mrf.mxu0
        %1598 = vdwg.mxu0
        %1599 = vmatprep.subr.mxu0 0.0
        %1600 = vmatpush1.msra.mxu0 %v1277
        %1601 = vmatprep.subr.mxu0 0.0
        %1602 = vmatpush1.msra.mxu0 %v1276
        %1603 = vmatprep.subr.mxu0 0.0
        %1604 = vmatpush1.msra.mxu0 %v1275
        %1605 = vmatprep.subr.mxu0 0.0
        %1606 = vmatpush1.msra.mxu0 %v1274
        %1607 = vmatprep.subr.mxu0 0.0
        %1608 = vmatpush1.msra.mxu0 %v1273
        %1609 = vmatprep.subr.mxu0 0.0
        %1610 = vmatpush1.msra.mxu0 %v1272
        %1611 = vmatprep.subr.mxu0 0.0
        %1612 = vmatpush1.msra.mxu0 %v1271
        %1613 = vmatprep.subr.mxu0 0.0
        %1614 = vmatpush1.msra.mxu0 %v1270
        %1615 = vmatprep.subr.mxu0 0.0
        %1616 = vmatpush1.msra.mxu0 %v1269
        %1617 = vmatprep.subr.mxu0 0.0
        %1618 = vmatpush1.msra.mxu0 %v1268
        %1619 = vmatprep.subr.mxu0 0.0
        %1620 = vmatpush1.msra.mxu0 %v1267
        %1621 = vmatprep.subr.mxu0 0.0
        %1622 = vmatpush1.msra.mxu0 %v1266
        %1623 = vmatprep.subr.mxu0 0.0
        %1624 = vmatpush1.msra.mxu0 %v1265
        %1625 = vmatprep.subr.mxu0 0.0
        %1626 = vmatpush1.msra.mxu0 %v1264
        %1627 = vmatprep.subr.mxu0 0.0
        %1628 = vmatpush1.msra.mxu0 %v1263
        %1629 = vmatprep.subr.mxu0 0.0
        %1630 = vmatpush1.msra.mxu0 %v1262
        %1631 = vmatprep.subr.mxu0 0.0
        %1632 = vmatpush2.msra.mxu0 %v1293
        %1633 = vmatprep.subr.mxu0 0.0
        %1634 = vmatpush2.msra.mxu0 %v1292
        %1635 = vmatprep.subr.mxu0 0.0
        %1636 = vmatpush2.msra.mxu0 %v1291
        %1637 = vmatprep.subr.mxu0 0.0
        %1638 = vmatpush2.msra.mxu0 %v1290
        %1639 = vmatprep.subr.mxu0 0.0
        %1640 = vmatpush2.msra.mxu0 %v1289
        %1641 = vmatprep.subr.mxu0 0.0
        %1642 = vmatpush2.msra.mxu0 %v1288
        %1643 = vmatprep.subr.mxu0 0.0
        %1644 = vmatpush2.msra.mxu0 %v1287
        %1645 = vmatprep.subr.mxu0 0.0
        %1646 = vmatpush2.msra.mxu0 %v1286
        %1647 = vmatprep.subr.mxu0 0.0
        %1648 = vmatpush2.msra.mxu0 %v1285
        %1649 = vmatprep.subr.mxu0 0.0
        %1650 = vmatpush2.msra.mxu0 %v1284
        %1651 = vmatprep.subr.mxu0 0.0
        %1652 = vmatpush2.msra.mxu0 %v1283
        %1653 = vmatprep.subr.mxu0 0.0
        %1654 = vmatpush2.msra.mxu0 %v1282
        %1655 = vmatprep.subr.mxu0 0.0
        %1656 = vmatpush2.msra.mxu0 %v1281
        %1657 = vmatprep.subr.mxu0 0.0
        %1658 = vmatpush2.msra.mxu0 %v1280
        %1659 = vmatprep.subr.mxu0 0.0
        %1660 = vmatpush2.msra.mxu0 %v1279
        %1661 = vmatprep.subr.mxu0 0.0
        %1662 = vmatpush2.msra.mxu0 %v1278
        %1663 = vmatprep.mubr.f32.mxu0 %v945
        %1664 = vmatmul.mubr.f32.gmra.mxu0 %v944
        %v1665 = vpop.f32.mrf.mxu0
        %v1666 = vadd.f32 %v1441, %v1665
        %v1667 = vpop.f32.mrf.mxu0
        %1668 = vmatprep.mubr.f32.mxu0 %v954
        %1669 = vmatmul.mubr.f32.gmra.mxu0 %v953
        %v1670 = vpop.f32.mrf.mxu0
        %v1671 = vadd.f32 %v1446, %v1670
        %v1672 = vpop.f32.mrf.mxu0
        %1673 = vmatprep.mubr.f32.mxu0 %v963
        %1674 = vmatmul.mubr.f32.gmra.mxu0 %v962
        %v1675 = vpop.f32.mrf.mxu0
        %v1676 = vadd.f32 %v1451, %v1675
        %v1677 = vpop.f32.mrf.mxu0
        %1678 = vmatprep.mubr.f32.mxu0 %v972
        %1679 = vmatmul.mubr.f32.gmra.mxu0 %v971
        %v1680 = vpop.f32.mrf.mxu0
        %v1681 = vadd.f32 %v1456, %v1680
        %v1682 = vpop.f32.mrf.mxu0
        %1683 = vmatprep.mubr.f32.mxu0 %v981
        %1684 = vmatmul.mubr.f32.gmra.mxu0 %v980
        %v1685 = vpop.f32.mrf.mxu0
        %v1686 = vadd.f32 %v1461, %v1685
        %v1687 = vpop.f32.mrf.mxu0
        %1688 = vmatprep.mubr.f32.mxu0 %v990
        %1689 = vmatmul.mubr.f32.gmra.mxu0 %v989
        %v1690 = vpop.f32.mrf.mxu0
        %v1691 = vadd.f32 %v1466, %v1690
        %v1692 = vpop.f32.mrf.mxu0
        %1693 = vmatprep.mubr.f32.mxu0 %v999
        %1694 = vmatmul.mubr.f32.gmra.mxu0 %v998
        %v1695 = vpop.f32.mrf.mxu0
        %v1696 = vadd.f32 %v1471, %v1695
        %v1697 = vpop.f32.mrf.mxu0
        %1698 = vmatprep.mubr.f32.mxu0 %v1008
        %1699 = vmatmul.mubr.f32.gmra.mxu0 %v1007
        %v1700 = vpop.f32.mrf.mxu0
        %v1701 = vadd.f32 %v1476, %v1700
        %v1702 = vpop.f32.mrf.mxu0
        %1703 = vmatprep.mubr.f32.mxu0 %v1017
        %1704 = vmatmul.mubr.f32.gmra.mxu0 %v1016
        %v1705 = vpop.f32.mrf.mxu0
        %v1706 = vadd.f32 %v1481, %v1705
        %v1707 = vpop.f32.mrf.mxu0
        %1708 = vmatprep.mubr.f32.mxu0 %v1026
        %1709 = vmatmul.mubr.f32.gmra.mxu0 %v1025
        %v1710 = vpop.f32.mrf.mxu0
        %v1711 = vadd.f32 %v1486, %v1710
        %v1712 = vpop.f32.mrf.mxu0
        %1713 = vmatprep.mubr.f32.mxu0 %v1035
        %1714 = vmatmul.mubr.f32.gmra.mxu0 %v1034
        %v1715 = vpop.f32.mrf.mxu0
        %v1716 = vadd.f32 %v1491, %v1715
        %v1717 = vpop.f32.mrf.mxu0
        %1718 = vmatprep.mubr.f32.mxu0 %v1044
        %1719 = vmatmul.mubr.f32.gmra.mxu0 %v1043
        %v1720 = vpop.f32.mrf.mxu0
        %v1721 = vadd.f32 %v1496, %v1720
        %v1722 = vpop.f32.mrf.mxu0
        %1723 = vmatprep.mubr.f32.mxu0 %v1053
        %1724 = vmatmul.mubr.f32.gmra.mxu0 %v1052
        %v1725 = vpop.f32.mrf.mxu0
        %v1726 = vadd.f32 %v1501, %v1725
        %v1727 = vpop.f32.mrf.mxu0
        %1728 = vmatprep.mubr.f32.mxu0 %v1062
        %1729 = vmatmul.mubr.f32.gmra.mxu0 %v1061
        %v1730 = vpop.f32.mrf.mxu0
        %v1731 = vadd.f32 %v1506, %v1730
        %v1732 = vpop.f32.mrf.mxu0
        %1733 = vmatprep.mubr.f32.mxu0 %v1071
        %1734 = vmatmul.mubr.f32.gmra.mxu0 %v1070
        %v1735 = vpop.f32.mrf.mxu0
        %v1736 = vadd.f32 %v1511, %v1735
        %v1737 = vpop.f32.mrf.mxu0
        %1738 = vmatprep.mubr.f32.mxu0 %v1080
        %1739 = vmatmul.mubr.f32.gmra.mxu0 %v1079
        %v1740 = vpop.f32.mrf.mxu0
        %v1741 = vadd.f32 %v1516, %v1740
        %v1742 = vpop.f32.mrf.mxu0
        %1743 = vmatprep.mubr.f32.mxu0 %v1089
        %1744 = vmatmul.mubr.f32.gmra.mxu0 %v1088
        %v1745 = vpop.f32.mrf.mxu0
        %v1746 = vadd.f32 %v1521, %v1745
        %v1747 = vpop.f32.mrf.mxu0
        %1748 = vmatprep.mubr.f32.mxu0 %v1098
        %1749 = vmatmul.mubr.f32.gmra.mxu0 %v1097
        %v1750 = vpop.f32.mrf.mxu0
        %v1751 = vadd.f32 %v1526, %v1750
        %v1752 = vpop.f32.mrf.mxu0
        %1753 = vmatprep.mubr.f32.mxu0 %v1107
        %1754 = vmatmul.mubr.f32.gmra.mxu0 %v1106
        %v1755 = vpop.f32.mrf.mxu0
        %v1756 = vadd.f32 %v1531, %v1755
        %v1757 = vpop.f32.mrf.mxu0
        %1758 = vmatprep.mubr.f32.mxu0 %v1116
        %1759 = vmatmul.mubr.f32.gmra.mxu0 %v1115
        %v1760 = vpop.f32.mrf.mxu0
        %v1761 = vadd.f32 %v1536, %v1760
        %v1762 = vpop.f32.mrf.mxu0
        %1763 = vmatprep.mubr.f32.mxu0 %v1125
        %1764 = vmatmul.mubr.f32.gmra.mxu0 %v1124
        %v1765 = vpop.f32.mrf.mxu0
        %v1766 = vadd.f32 %v1541, %v1765
        %v1767 = vpop.f32.mrf.mxu0
        %1768 = vmatprep.mubr.f32.mxu0 %v1134
        %1769 = vmatmul.mubr.f32.gmra.mxu0 %v1133
        %v1770 = vpop.f32.mrf.mxu0
        %v1771 = vadd.f32 %v1546, %v1770
        %v1772 = vpop.f32.mrf.mxu0
        %1773 = vmatprep.mubr.f32.mxu0 %v1143
        %1774 = vmatmul.mubr.f32.gmra.mxu0 %v1142
        %v1775 = vpop.f32.mrf.mxu0
        %v1776 = vadd.f32 %v1551, %v1775
        %v1777 = vpop.f32.mrf.mxu0
        %1778 = vmatprep.mubr.f32.mxu0 %v1152
        %1779 = vmatmul.mubr.f32.gmra.mxu0 %v1151
        %v1780 = vpop.f32.mrf.mxu0
        %v1781 = vadd.f32 %v1556, %v1780
        %v1782 = vpop.f32.mrf.mxu0
        %1783 = vmatprep.mubr.f32.mxu0 %v1161
        %1784 = vmatmul.mubr.f32.gmra.mxu0 %v1160
        %v1785 = vpop.f32.mrf.mxu0
        %v1786 = vadd.f32 %v1561, %v1785
        %v1787 = vpop.f32.mrf.mxu0
        %1788 = vmatprep.mubr.f32.mxu0 %v1170
        %1789 = vmatmul.mubr.f32.gmra.mxu0 %v1169
        %v1790 = vpop.f32.mrf.mxu0
        %v1791 = vadd.f32 %v1566, %v1790
        %v1792 = vpop.f32.mrf.mxu0
        %1793 = vmatprep.mubr.f32.mxu0 %v1179
        %1794 = vmatmul.mubr.f32.gmra.mxu0 %v1178
        %v1795 = vpop.f32.mrf.mxu0
        %v1796 = vadd.f32 %v1571, %v1795
        %v1797 = vpop.f32.mrf.mxu0
        %1798 = vmatprep.mubr.f32.mxu0 %v1188
        %1799 = vmatmul.mubr.f32.gmra.mxu0 %v1187
        %v1800 = vpop.f32.mrf.mxu0
        %v1801 = vadd.f32 %v1576, %v1800
        %v1802 = vpop.f32.mrf.mxu0
        %1803 = vmatprep.mubr.f32.mxu0 %v1197
        %1804 = vmatmul.mubr.f32.gmra.mxu0 %v1196
        %v1805 = vpop.f32.mrf.mxu0
        %v1806 = vadd.f32 %v1581, %v1805
        %v1807 = vpop.f32.mrf.mxu0
        %1808 = vmatprep.mubr.f32.mxu0 %v1206
        %1809 = vmatmul.mubr.f32.gmra.mxu0 %v1205
        %v1810 = vpop.f32.mrf.mxu0
        %v1811 = vadd.f32 %v1586, %v1810
        %v1812 = vpop.f32.mrf.mxu0
        %1813 = vmatprep.mubr.f32.mxu0 %v1215
        %1814 = vmatmul.mubr.f32.gmra.mxu0 %v1214
        %v1815 = vpop.f32.mrf.mxu0
        %v1816 = vadd.f32 %v1591, %v1815
        %v1817 = vpop.f32.mrf.mxu0
        %1818 = vmatprep.mubr.f32.mxu0 %v1224
        %1819 = vmatmul.mubr.f32.gmra.mxu0 %v1223
        %v1820 = vpop.f32.mrf.mxu0
        %v1821 = vadd.f32 %v1596, %v1820
        %v1822 = vpop.f32.mrf.mxu0
        %1823 = vdwg.mxu0
        %1824 = vmatprep.subr.mxu0 0.0
        %1825 = vmatpush1.msra.mxu0 %v1309
        %1826 = vmatprep.subr.mxu0 0.0
        %1827 = vmatpush1.msra.mxu0 %v1308
        %1828 = vmatprep.subr.mxu0 0.0
        %1829 = vmatpush1.msra.mxu0 %v1307
        %1830 = vmatprep.subr.mxu0 0.0
        %1831 = vmatpush1.msra.mxu0 %v1306
        %1832 = vmatprep.subr.mxu0 0.0
        %1833 = vmatpush1.msra.mxu0 %v1305
        %1834 = vmatprep.subr.mxu0 0.0
        %1835 = vmatpush1.msra.mxu0 %v1304
        %1836 = vmatprep.subr.mxu0 0.0
        %1837 = vmatpush1.msra.mxu0 %v1303
        %1838 = vmatprep.subr.mxu0 0.0
        %1839 = vmatpush1.msra.mxu0 %v1302
        %1840 = vmatprep.subr.mxu0 0.0
        %1841 = vmatpush1.msra.mxu0 %v1301
        %1842 = vmatprep.subr.mxu0 0.0
        %1843 = vmatpush1.msra.mxu0 %v1300
        %1844 = vmatprep.subr.mxu0 0.0
        %1845 = vmatpush1.msra.mxu0 %v1299
        %1846 = vmatprep.subr.mxu0 0.0
        %1847 = vmatpush1.msra.mxu0 %v1298
        %1848 = vmatprep.subr.mxu0 0.0
        %1849 = vmatpush1.msra.mxu0 %v1297
        %1850 = vmatprep.subr.mxu0 0.0
        %1851 = vmatpush1.msra.mxu0 %v1296
        %1852 = vmatprep.subr.mxu0 0.0
        %1853 = vmatpush1.msra.mxu0 %v1295
        %1854 = vmatprep.subr.mxu0 0.0
        %1855 = vmatpush1.msra.mxu0 %v1294
        %1856 = vmatprep.subr.mxu0 0.0
        %1857 = vmatpush2.msra.mxu0 %v1325
        %1858 = vmatprep.subr.mxu0 0.0
        %1859 = vmatpush2.msra.mxu0 %v1324
        %1860 = vmatprep.subr.mxu0 0.0
        %1861 = vmatpush2.msra.mxu0 %v1323
        %1862 = vmatprep.subr.mxu0 0.0
        %1863 = vmatpush2.msra.mxu0 %v1322
        %1864 = vmatprep.subr.mxu0 0.0
        %1865 = vmatpush2.msra.mxu0 %v1321
        %1866 = vmatprep.subr.mxu0 0.0
        %1867 = vmatpush2.msra.mxu0 %v1320
        %1868 = vmatprep.subr.mxu0 0.0
        %1869 = vmatpush2.msra.mxu0 %v1319
        %1870 = vmatprep.subr.mxu0 0.0
        %1871 = vmatpush2.msra.mxu0 %v1318
        %1872 = vmatprep.subr.mxu0 0.0
        %1873 = vmatpush2.msra.mxu0 %v1317
        %1874 = vmatprep.subr.mxu0 0.0
        %1875 = vmatpush2.msra.mxu0 %v1316
        %1876 = vmatprep.subr.mxu0 0.0
        %1877 = vmatpush2.msra.mxu0 %v1315
        %1878 = vmatprep.subr.mxu0 0.0
        %1879 = vmatpush2.msra.mxu0 %v1314
        %1880 = vmatprep.subr.mxu0 0.0
        %1881 = vmatpush2.msra.mxu0 %v1313
        %1882 = vmatprep.subr.mxu0 0.0
        %1883 = vmatpush2.msra.mxu0 %v1312
        %1884 = vmatprep.subr.mxu0 0.0
        %1885 = vmatpush2.msra.mxu0 %v1311
        %1886 = vmatprep.subr.mxu0 0.0
        %1887 = vmatpush2.msra.mxu0 %v1310
        %1888 = vmatprep.mubr.f32.mxu0 %v947
        %1889 = vmatmul.mubr.f32.gmra.mxu0 %v946
        %v1890 = vpop.f32.mrf.mxu0
        %v1891 = vadd.f32 %v1666, %v1890
        %v1892 = vpop.f32.mrf.mxu0
        %1893 = vmatprep.mubr.f32.mxu0 %v956
        %1894 = vmatmul.mubr.f32.gmra.mxu0 %v955
        %v1895 = vpop.f32.mrf.mxu0
        %v1896 = vadd.f32 %v1671, %v1895
        %v1897 = vpop.f32.mrf.mxu0
        %1898 = vmatprep.mubr.f32.mxu0 %v965
        %1899 = vmatmul.mubr.f32.gmra.mxu0 %v964
        %v1900 = vpop.f32.mrf.mxu0
        %v1901 = vadd.f32 %v1676, %v1900
        %v1902 = vpop.f32.mrf.mxu0
        %1903 = vmatprep.mubr.f32.mxu0 %v974
        %1904 = vmatmul.mubr.f32.gmra.mxu0 %v973
        %v1905 = vpop.f32.mrf.mxu0
        %v1906 = vadd.f32 %v1681, %v1905
        %v1907 = vpop.f32.mrf.mxu0
        %1908 = vmatprep.mubr.f32.mxu0 %v983
        %1909 = vmatmul.mubr.f32.gmra.mxu0 %v982
        %v1910 = vpop.f32.mrf.mxu0
        %v1911 = vadd.f32 %v1686, %v1910
        %v1912 = vpop.f32.mrf.mxu0
        %1913 = vmatprep.mubr.f32.mxu0 %v992
        %1914 = vmatmul.mubr.f32.gmra.mxu0 %v991
        %v1915 = vpop.f32.mrf.mxu0
        %v1916 = vadd.f32 %v1691, %v1915
        %v1917 = vpop.f32.mrf.mxu0
        %1918 = vmatprep.mubr.f32.mxu0 %v1001
        %1919 = vmatmul.mubr.f32.gmra.mxu0 %v1000
        %v1920 = vpop.f32.mrf.mxu0
        %v1921 = vadd.f32 %v1696, %v1920
        %v1922 = vpop.f32.mrf.mxu0
        %1923 = vmatprep.mubr.f32.mxu0 %v1010
        %1924 = vmatmul.mubr.f32.gmra.mxu0 %v1009
        %v1925 = vpop.f32.mrf.mxu0
        %v1926 = vadd.f32 %v1701, %v1925
        %v1927 = vpop.f32.mrf.mxu0
        %1928 = vmatprep.mubr.f32.mxu0 %v1019
        %1929 = vmatmul.mubr.f32.gmra.mxu0 %v1018
        %v1930 = vpop.f32.mrf.mxu0
        %v1931 = vadd.f32 %v1706, %v1930
        %v1932 = vpop.f32.mrf.mxu0
        %1933 = vmatprep.mubr.f32.mxu0 %v1028
        %1934 = vmatmul.mubr.f32.gmra.mxu0 %v1027
        %v1935 = vpop.f32.mrf.mxu0
        %v1936 = vadd.f32 %v1711, %v1935
        %v1937 = vpop.f32.mrf.mxu0
        %1938 = vmatprep.mubr.f32.mxu0 %v1037
        %1939 = vmatmul.mubr.f32.gmra.mxu0 %v1036
        %v1940 = vpop.f32.mrf.mxu0
        %v1941 = vadd.f32 %v1716, %v1940
        %v1942 = vpop.f32.mrf.mxu0
        %1943 = vmatprep.mubr.f32.mxu0 %v1046
        %1944 = vmatmul.mubr.f32.gmra.mxu0 %v1045
        %v1945 = vpop.f32.mrf.mxu0
        %v1946 = vadd.f32 %v1721, %v1945
        %v1947 = vpop.f32.mrf.mxu0
        %1948 = vmatprep.mubr.f32.mxu0 %v1055
        %1949 = vmatmul.mubr.f32.gmra.mxu0 %v1054
        %v1950 = vpop.f32.mrf.mxu0
        %v1951 = vadd.f32 %v1726, %v1950
        %v1952 = vpop.f32.mrf.mxu0
        %1953 = vmatprep.mubr.f32.mxu0 %v1064
        %1954 = vmatmul.mubr.f32.gmra.mxu0 %v1063
        %v1955 = vpop.f32.mrf.mxu0
        %v1956 = vadd.f32 %v1731, %v1955
        %v1957 = vpop.f32.mrf.mxu0
        %1958 = vmatprep.mubr.f32.mxu0 %v1073
        %1959 = vmatmul.mubr.f32.gmra.mxu0 %v1072
        %v1960 = vpop.f32.mrf.mxu0
        %v1961 = vadd.f32 %v1736, %v1960
        %v1962 = vpop.f32.mrf.mxu0
        %1963 = vmatprep.mubr.f32.mxu0 %v1082
        %1964 = vmatmul.mubr.f32.gmra.mxu0 %v1081
        %v1965 = vpop.f32.mrf.mxu0
        %v1966 = vadd.f32 %v1741, %v1965
        %v1967 = vpop.f32.mrf.mxu0
        %1968 = vmatprep.mubr.f32.mxu0 %v1091
        %1969 = vmatmul.mubr.f32.gmra.mxu0 %v1090
        %v1970 = vpop.f32.mrf.mxu0
        %v1971 = vadd.f32 %v1746, %v1970
        %v1972 = vpop.f32.mrf.mxu0
        %1973 = vmatprep.mubr.f32.mxu0 %v1100
        %1974 = vmatmul.mubr.f32.gmra.mxu0 %v1099
        %v1975 = vpop.f32.mrf.mxu0
        %v1976 = vadd.f32 %v1751, %v1975
        %v1977 = vpop.f32.mrf.mxu0
        %1978 = vmatprep.mubr.f32.mxu0 %v1109
        %1979 = vmatmul.mubr.f32.gmra.mxu0 %v1108
        %v1980 = vpop.f32.mrf.mxu0
        %v1981 = vadd.f32 %v1756, %v1980
        %v1982 = vpop.f32.mrf.mxu0
        %1983 = vmatprep.mubr.f32.mxu0 %v1118
        %1984 = vmatmul.mubr.f32.gmra.mxu0 %v1117
        %v1985 = vpop.f32.mrf.mxu0
        %v1986 = vadd.f32 %v1761, %v1985
        %v1987 = vpop.f32.mrf.mxu0
        %1988 = vmatprep.mubr.f32.mxu0 %v1127
        %1989 = vmatmul.mubr.f32.gmra.mxu0 %v1126
        %v1990 = vpop.f32.mrf.mxu0
        %v1991 = vadd.f32 %v1766, %v1990
        %v1992 = vpop.f32.mrf.mxu0
        %1993 = vmatprep.mubr.f32.mxu0 %v1136
        %1994 = vmatmul.mubr.f32.gmra.mxu0 %v1135
        %v1995 = vpop.f32.mrf.mxu0
        %v1996 = vadd.f32 %v1771, %v1995
        %v1997 = vpop.f32.mrf.mxu0
        %1998 = vmatprep.mubr.f32.mxu0 %v1145
        %1999 = vmatmul.mubr.f32.gmra.mxu0 %v1144
        %v2000 = vpop.f32.mrf.mxu0
        %v2001 = vadd.f32 %v1776, %v2000
        %v2002 = vpop.f32.mrf.mxu0
        %2003 = vmatprep.mubr.f32.mxu0 %v1154
        %2004 = vmatmul.mubr.f32.gmra.mxu0 %v1153
        %v2005 = vpop.f32.mrf.mxu0
        %v2006 = vadd.f32 %v1781, %v2005
        %v2007 = vpop.f32.mrf.mxu0
        %2008 = vmatprep.mubr.f32.mxu0 %v1163
        %2009 = vmatmul.mubr.f32.gmra.mxu0 %v1162
        %v2010 = vpop.f32.mrf.mxu0
        %v2011 = vadd.f32 %v1786, %v2010
        %v2012 = vpop.f32.mrf.mxu0
        %2013 = vmatprep.mubr.f32.mxu0 %v1172
        %2014 = vmatmul.mubr.f32.gmra.mxu0 %v1171
        %v2015 = vpop.f32.mrf.mxu0
        %v2016 = vadd.f32 %v1791, %v2015
        %v2017 = vpop.f32.mrf.mxu0
        %2018 = vmatprep.mubr.f32.mxu0 %v1181
        %2019 = vmatmul.mubr.f32.gmra.mxu0 %v1180
        %v2020 = vpop.f32.mrf.mxu0
        %v2021 = vadd.f32 %v1796, %v2020
        %v2022 = vpop.f32.mrf.mxu0
        %2023 = vmatprep.mubr.f32.mxu0 %v1190
        %2024 = vmatmul.mubr.f32.gmra.mxu0 %v1189
        %v2025 = vpop.f32.mrf.mxu0
        %v2026 = vadd.f32 %v1801, %v2025
        %v2027 = vpop.f32.mrf.mxu0
        %2028 = vmatprep.mubr.f32.mxu0 %v1199
        %2029 = vmatmul.mubr.f32.gmra.mxu0 %v1198
        %v2030 = vpop.f32.mrf.mxu0
        %v2031 = vadd.f32 %v1806, %v2030
        %v2032 = vpop.f32.mrf.mxu0
        %2033 = vmatprep.mubr.f32.mxu0 %v1208
        %2034 = vmatmul.mubr.f32.gmra.mxu0 %v1207
        %v2035 = vpop.f32.mrf.mxu0
        %v2036 = vadd.f32 %v1811, %v2035
        %v2037 = vpop.f32.mrf.mxu0
        %2038 = vmatprep.mubr.f32.mxu0 %v1217
        %2039 = vmatmul.mubr.f32.gmra.mxu0 %v1216
        %v2040 = vpop.f32.mrf.mxu0
        %v2041 = vadd.f32 %v1816, %v2040
        %v2042 = vpop.f32.mrf.mxu0
        %2043 = vmatprep.mubr.f32.mxu0 %v1226
        %2044 = vmatmul.mubr.f32.gmra.mxu0 %v1225
        %v2045 = vpop.f32.mrf.mxu0
        %v2046 = vadd.f32 %v1821, %v2045
        %v2047 = vpop.f32.mrf.mxu0
        %2048 = vdwg.mxu0
        %2049 = vmatprep.subr.mxu0 0.0
        %2050 = vmatpush1.msra.mxu0 %v1341
        %2051 = vmatprep.subr.mxu0 0.0
        %2052 = vmatpush1.msra.mxu0 %v1340
        %2053 = vmatprep.subr.mxu0 0.0
        %2054 = vmatpush1.msra.mxu0 %v1339
        %2055 = vmatprep.subr.mxu0 0.0
        %2056 = vmatpush1.msra.mxu0 %v1338
        %2057 = vmatprep.subr.mxu0 0.0
        %2058 = vmatpush1.msra.mxu0 %v1337
        %2059 = vmatprep.subr.mxu0 0.0
        %2060 = vmatpush1.msra.mxu0 %v1336
        %2061 = vmatprep.subr.mxu0 0.0
        %2062 = vmatpush1.msra.mxu0 %v1335
        %2063 = vmatprep.subr.mxu0 0.0
        %2064 = vmatpush1.msra.mxu0 %v1334
        %2065 = vmatprep.subr.mxu0 0.0
        %2066 = vmatpush1.msra.mxu0 %v1333
        %2067 = vmatprep.subr.mxu0 0.0
        %2068 = vmatpush1.msra.mxu0 %v1332
        %2069 = vmatprep.subr.mxu0 0.0
        %2070 = vmatpush1.msra.mxu0 %v1331
        %2071 = vmatprep.subr.mxu0 0.0
        %2072 = vmatpush1.msra.mxu0 %v1330
        %2073 = vmatprep.subr.mxu0 0.0
        %2074 = vmatpush1.msra.mxu0 %v1329
        %2075 = vmatprep.subr.mxu0 0.0
        %2076 = vmatpush1.msra.mxu0 %v1328
        %2077 = vmatprep.subr.mxu0 0.0
        %2078 = vmatpush1.msra.mxu0 %v1327
        %2079 = vmatprep.subr.mxu0 0.0
        %2080 = vmatpush1.msra.mxu0 %v1326
        %2081 = vmatprep.subr.mxu0 0.0
        %2082 = vmatpush2.msra.mxu0 %v1357
        %2083 = vmatprep.subr.mxu0 0.0
        %2084 = vmatpush2.msra.mxu0 %v1356
        %2085 = vmatprep.subr.mxu0 0.0
        %2086 = vmatpush2.msra.mxu0 %v1355
        %2087 = vmatprep.subr.mxu0 0.0
        %2088 = vmatpush2.msra.mxu0 %v1354
        %2089 = vmatprep.subr.mxu0 0.0
        %2090 = vmatpush2.msra.mxu0 %v1353
        %2091 = vmatprep.subr.mxu0 0.0
        %2092 = vmatpush2.msra.mxu0 %v1352
        %2093 = vmatprep.subr.mxu0 0.0
        %2094 = vmatpush2.msra.mxu0 %v1351
        %2095 = vmatprep.subr.mxu0 0.0
        %2096 = vmatpush2.msra.mxu0 %v1350
        %2097 = vmatprep.subr.mxu0 0.0
        %2098 = vmatpush2.msra.mxu0 %v1349
        %2099 = vmatprep.subr.mxu0 0.0
        %2100 = vmatpush2.msra.mxu0 %v1348
        %2101 = vmatprep.subr.mxu0 0.0
        %2102 = vmatpush2.msra.mxu0 %v1347
        %2103 = vmatprep.subr.mxu0 0.0
        %2104 = vmatpush2.msra.mxu0 %v1346
        %2105 = vmatprep.subr.mxu0 0.0
        %2106 = vmatpush2.msra.mxu0 %v1345
        %2107 = vmatprep.subr.mxu0 0.0
        %2108 = vmatpush2.msra.mxu0 %v1344
        %2109 = vmatprep.subr.mxu0 0.0
        %2110 = vmatpush2.msra.mxu0 %v1343
        %2111 = vmatprep.subr.mxu0 0.0
        %2112 = vmatpush2.msra.mxu0 %v1342
        %2113 = vmatprep.mubr.f32.mxu0 %v949
        %2114 = vmatmul.mubr.f32.gmra.mxu0 %v948
        %v2115 = vpop.f32.mrf.mxu0
        %v2116 = vadd.f32 %v1891, %v2115
        %v2117 = vpop.f32.mrf.mxu0
        %2118 = vmatprep.mubr.f32.mxu0 %v958
        %2119 = vmatmul.mubr.f32.gmra.mxu0 %v957
        %v2120 = vpop.f32.mrf.mxu0
        %v2121 = vadd.f32 %v1896, %v2120
        %v2122 = vpop.f32.mrf.mxu0
        %2123 = vmatprep.mubr.f32.mxu0 %v967
        %2124 = vmatmul.mubr.f32.gmra.mxu0 %v966
        %v2125 = vpop.f32.mrf.mxu0
        %v2126 = vadd.f32 %v1901, %v2125
        %v2127 = vpop.f32.mrf.mxu0
        %2128 = vmatprep.mubr.f32.mxu0 %v976
        %2129 = vmatmul.mubr.f32.gmra.mxu0 %v975
        %v2130 = vpop.f32.mrf.mxu0
        %v2131 = vadd.f32 %v1906, %v2130
        %v2132 = vpop.f32.mrf.mxu0
        %2133 = vmatprep.mubr.f32.mxu0 %v985
        %2134 = vmatmul.mubr.f32.gmra.mxu0 %v984
        %v2135 = vpop.f32.mrf.mxu0
        %v2136 = vadd.f32 %v1911, %v2135
        %v2137 = vpop.f32.mrf.mxu0
        %2138 = vmatprep.mubr.f32.mxu0 %v994
        %2139 = vmatmul.mubr.f32.gmra.mxu0 %v993
        %v2140 = vpop.f32.mrf.mxu0
        %v2141 = vadd.f32 %v1916, %v2140
        %v2142 = vpop.f32.mrf.mxu0
        %2143 = vmatprep.mubr.f32.mxu0 %v1003
        %2144 = vmatmul.mubr.f32.gmra.mxu0 %v1002
        %v2145 = vpop.f32.mrf.mxu0
        %v2146 = vadd.f32 %v1921, %v2145
        %v2147 = vpop.f32.mrf.mxu0
        %2148 = vmatprep.mubr.f32.mxu0 %v1012
        %2149 = vmatmul.mubr.f32.gmra.mxu0 %v1011
        %v2150 = vpop.f32.mrf.mxu0
        %v2151 = vadd.f32 %v1926, %v2150
        %v2152 = vpop.f32.mrf.mxu0
        %2153 = vmatprep.mubr.f32.mxu0 %v1021
        %2154 = vmatmul.mubr.f32.gmra.mxu0 %v1020
        %v2155 = vpop.f32.mrf.mxu0
        %v2156 = vadd.f32 %v1931, %v2155
        %v2157 = vpop.f32.mrf.mxu0
        %2158 = vmatprep.mubr.f32.mxu0 %v1030
        %2159 = vmatmul.mubr.f32.gmra.mxu0 %v1029
        %v2160 = vpop.f32.mrf.mxu0
        %v2161 = vadd.f32 %v1936, %v2160
        %v2162 = vpop.f32.mrf.mxu0
        %2163 = vmatprep.mubr.f32.mxu0 %v1039
        %2164 = vmatmul.mubr.f32.gmra.mxu0 %v1038
        %v2165 = vpop.f32.mrf.mxu0
        %v2166 = vadd.f32 %v1941, %v2165
        %v2167 = vpop.f32.mrf.mxu0
        %2168 = vmatprep.mubr.f32.mxu0 %v1048
        %2169 = vmatmul.mubr.f32.gmra.mxu0 %v1047
        %v2170 = vpop.f32.mrf.mxu0
        %v2171 = vadd.f32 %v1946, %v2170
        %v2172 = vpop.f32.mrf.mxu0
        %2173 = vmatprep.mubr.f32.mxu0 %v1057
        %2174 = vmatmul.mubr.f32.gmra.mxu0 %v1056
        %v2175 = vpop.f32.mrf.mxu0
        %v2176 = vadd.f32 %v1951, %v2175
        %v2177 = vpop.f32.mrf.mxu0
        %2178 = vmatprep.mubr.f32.mxu0 %v1066
        %2179 = vmatmul.mubr.f32.gmra.mxu0 %v1065
        %v2180 = vpop.f32.mrf.mxu0
        %v2181 = vadd.f32 %v1956, %v2180
        %v2182 = vpop.f32.mrf.mxu0
        %2183 = vmatprep.mubr.f32.mxu0 %v1075
        %2184 = vmatmul.mubr.f32.gmra.mxu0 %v1074
        %v2185 = vpop.f32.mrf.mxu0
        %v2186 = vadd.f32 %v1961, %v2185
        %v2187 = vpop.f32.mrf.mxu0
        %2188 = vmatprep.mubr.f32.mxu0 %v1084
        %2189 = vmatmul.mubr.f32.gmra.mxu0 %v1083
        %v2190 = vpop.f32.mrf.mxu0
        %v2191 = vadd.f32 %v1966, %v2190
        %v2192 = vpop.f32.mrf.mxu0
        %2193 = vmatprep.mubr.f32.mxu0 %v1093
        %2194 = vmatmul.mubr.f32.gmra.mxu0 %v1092
        %v2195 = vpop.f32.mrf.mxu0
        %v2196 = vadd.f32 %v1971, %v2195
        %v2197 = vpop.f32.mrf.mxu0
        %2198 = vmatprep.mubr.f32.mxu0 %v1102
        %2199 = vmatmul.mubr.f32.gmra.mxu0 %v1101
        %v2200 = vpop.f32.mrf.mxu0
        %v2201 = vadd.f32 %v1976, %v2200
        %v2202 = vpop.f32.mrf.mxu0
        %2203 = vmatprep.mubr.f32.mxu0 %v1111
        %2204 = vmatmul.mubr.f32.gmra.mxu0 %v1110
        %v2205 = vpop.f32.mrf.mxu0
        %v2206 = vadd.f32 %v1981, %v2205
        %v2207 = vpop.f32.mrf.mxu0
        %2208 = vmatprep.mubr.f32.mxu0 %v1120
        %2209 = vmatmul.mubr.f32.gmra.mxu0 %v1119
        %v2210 = vpop.f32.mrf.mxu0
        %v2211 = vadd.f32 %v1986, %v2210
        %v2212 = vpop.f32.mrf.mxu0
        %2213 = vmatprep.mubr.f32.mxu0 %v1129
        %2214 = vmatmul.mubr.f32.gmra.mxu0 %v1128
        %v2215 = vpop.f32.mrf.mxu0
        %v2216 = vadd.f32 %v1991, %v2215
        %v2217 = vpop.f32.mrf.mxu0
        %2218 = vmatprep.mubr.f32.mxu0 %v1138
        %2219 = vmatmul.mubr.f32.gmra.mxu0 %v1137
        %v2220 = vpop.f32.mrf.mxu0
        %v2221 = vadd.f32 %v1996, %v2220
        %v2222 = vpop.f32.mrf.mxu0
        %2223 = vmatprep.mubr.f32.mxu0 %v1147
        %2224 = vmatmul.mubr.f32.gmra.mxu0 %v1146
        %v2225 = vpop.f32.mrf.mxu0
        %v2226 = vadd.f32 %v2001, %v2225
        %v2227 = vpop.f32.mrf.mxu0
        %2228 = vmatprep.mubr.f32.mxu0 %v1156
        %2229 = vmatmul.mubr.f32.gmra.mxu0 %v1155
        %v2230 = vpop.f32.mrf.mxu0
        %v2231 = vadd.f32 %v2006, %v2230
        %v2232 = vpop.f32.mrf.mxu0
        %2233 = vmatprep.mubr.f32.mxu0 %v1165
        %2234 = vmatmul.mubr.f32.gmra.mxu0 %v1164
        %v2235 = vpop.f32.mrf.mxu0
        %v2236 = vadd.f32 %v2011, %v2235
        %v2237 = vpop.f32.mrf.mxu0
        %2238 = vmatprep.mubr.f32.mxu0 %v1174
        %2239 = vmatmul.mubr.f32.gmra.mxu0 %v1173
        %v2240 = vpop.f32.mrf.mxu0
        %v2241 = vadd.f32 %v2016, %v2240
        %v2242 = vpop.f32.mrf.mxu0
        %2243 = vmatprep.mubr.f32.mxu0 %v1183
        %2244 = vmatmul.mubr.f32.gmra.mxu0 %v1182
        %v2245 = vpop.f32.mrf.mxu0
        %v2246 = vadd.f32 %v2021, %v2245
        %v2247 = vpop.f32.mrf.mxu0
        %2248 = vmatprep.mubr.f32.mxu0 %v1192
        %2249 = vmatmul.mubr.f32.gmra.mxu0 %v1191
        %v2250 = vpop.f32.mrf.mxu0
        %v2251 = vadd.f32 %v2026, %v2250
        %v2252 = vpop.f32.mrf.mxu0
        %2253 = vmatprep.mubr.f32.mxu0 %v1201
        %2254 = vmatmul.mubr.f32.gmra.mxu0 %v1200
        %v2255 = vpop.f32.mrf.mxu0
        %v2256 = vadd.f32 %v2031, %v2255
        %v2257 = vpop.f32.mrf.mxu0
        %2258 = vmatprep.mubr.f32.mxu0 %v1210
        %2259 = vmatmul.mubr.f32.gmra.mxu0 %v1209
        %v2260 = vpop.f32.mrf.mxu0
        %v2261 = vadd.f32 %v2036, %v2260
        %v2262 = vpop.f32.mrf.mxu0
        %2263 = vmatprep.mubr.f32.mxu0 %v1219
        %2264 = vmatmul.mubr.f32.gmra.mxu0 %v1218
        %v2265 = vpop.f32.mrf.mxu0
        %v2266 = vadd.f32 %v2041, %v2265
        %v2267 = vpop.f32.mrf.mxu0
        %2268 = vmatprep.mubr.f32.mxu0 %v1228
        %2269 = vmatmul.mubr.f32.gmra.mxu0 %v1227
        %v2270 = vpop.f32.mrf.mxu0
        %v2271 = vadd.f32 %v2046, %v2270
        %v2272 = vpop.f32.mrf.mxu0
        %2273 = vdwg.mxu0
        %2274 = vmatprep.subr.mxu0 0.0
        %2275 = vmatpush1.msra.mxu0 %v1373
        %2276 = vmatprep.subr.mxu0 0.0
        %2277 = vmatpush1.msra.mxu0 %v1372
        %2278 = vmatprep.subr.mxu0 0.0
        %2279 = vmatpush1.msra.mxu0 %v1371
        %2280 = vmatprep.subr.mxu0 0.0
        %2281 = vmatpush1.msra.mxu0 %v1370
        %2282 = vmatprep.subr.mxu0 0.0
        %2283 = vmatpush1.msra.mxu0 %v1369
        %2284 = vmatprep.subr.mxu0 0.0
        %2285 = vmatpush1.msra.mxu0 %v1368
        %2286 = vmatprep.subr.mxu0 0.0
        %2287 = vmatpush1.msra.mxu0 %v1367
        %2288 = vmatprep.subr.mxu0 0.0
        %2289 = vmatpush1.msra.mxu0 %v1366
        %2290 = vmatprep.subr.mxu0 0.0
        %2291 = vmatpush1.msra.mxu0 %v1365
        %2292 = vmatprep.subr.mxu0 0.0
        %2293 = vmatpush1.msra.mxu0 %v1364
        %2294 = vmatprep.subr.mxu0 0.0
        %2295 = vmatpush1.msra.mxu0 %v1363
        %2296 = vmatprep.subr.mxu0 0.0
        %2297 = vmatpush1.msra.mxu0 %v1362
        %2298 = vmatprep.subr.mxu0 0.0
        %2299 = vmatpush1.msra.mxu0 %v1361
        %2300 = vmatprep.subr.mxu0 0.0
        %2301 = vmatpush1.msra.mxu0 %v1360
        %2302 = vmatprep.subr.mxu0 0.0
        %2303 = vmatpush1.msra.mxu0 %v1359
        %2304 = vmatprep.subr.mxu0 0.0
        %2305 = vmatpush1.msra.mxu0 %v1358
        %2306 = vmatprep.subr.mxu0 0.0
        %2307 = vmatpush2.msra.mxu0 0.0
        %2308 = vmatprep.subr.mxu0 0.0
        %2309 = vmatpush2.msra.mxu0 0.0
        %2310 = vmatprep.subr.mxu0 0.0
        %2311 = vmatpush2.msra.mxu0 0.0
        %2312 = vmatprep.subr.mxu0 0.0
        %2313 = vmatpush2.msra.mxu0 0.0
        %2314 = vmatprep.subr.mxu0 0.0
        %2315 = vmatpush2.msra.mxu0 0.0
        %2316 = vmatprep.subr.mxu0 0.0
        %2317 = vmatpush2.msra.mxu0 0.0
        %2318 = vmatprep.subr.mxu0 0.0
        %2319 = vmatpush2.msra.mxu0 0.0
        %2320 = vmatprep.subr.mxu0 0.0
        %2321 = vmatpush2.msra.mxu0 0.0
        %2322 = vmatprep.subr.mxu0 0.0
        %2323 = vmatpush2.msra.mxu0 0.0
        %2324 = vmatprep.subr.mxu0 0.0
        %2325 = vmatpush2.msra.mxu0 0.0
        %2326 = vmatprep.subr.mxu0 0.0
        %2327 = vmatpush2.msra.mxu0 0.0
        %2328 = vmatprep.subr.mxu0 0.0
        %2329 = vmatpush2.msra.mxu0 0.0
        %2330 = vmatprep.subr.mxu0 0.0
        %2331 = vmatpush2.msra.mxu0 0.0
        %2332 = vmatprep.subr.mxu0 0.0
        %2333 = vmatpush2.msra.mxu0 0.0
        %2334 = vmatprep.subr.mxu0 0.0
        %2335 = vmatpush2.msra.mxu0 0.0
        %2336 = vmatprep.subr.mxu0 0.0
        %2337 = vmatpush2.msra.mxu0 0.0
        %2338 = vmatprep.mubr.f32.mxu0 0.0
        %2339 = vmatmul.mubr.f32.gmra.mxu0 %v950
        %v2340 = vpop.f32.mrf.mxu0
        %v2341 = vadd.f32 %v2116, %v2340
        %v2342 = vpop.f32.mrf.mxu0
        %2343 = vmatprep.mubr.f32.mxu0 0.0
        %2344 = vmatmul.mubr.f32.gmra.mxu0 %v959
        %v2345 = vpop.f32.mrf.mxu0
        %v2346 = vadd.f32 %v2121, %v2345
        %v2347 = vpop.f32.mrf.mxu0
        %2348 = vmatprep.mubr.f32.mxu0 0.0
        %2349 = vmatmul.mubr.f32.gmra.mxu0 %v968
        %v2350 = vpop.f32.mrf.mxu0
        %v2351 = vadd.f32 %v2126, %v2350
        %v2352 = vpop.f32.mrf.mxu0
        %2353 = vmatprep.mubr.f32.mxu0 0.0
        %2354 = vmatmul.mubr.f32.gmra.mxu0 %v977
        %v2355 = vpop.f32.mrf.mxu0
        %v2356 = vadd.f32 %v2131, %v2355
        %v2357 = vpop.f32.mrf.mxu0
        %2358 = vmatprep.mubr.f32.mxu0 0.0
        %2359 = vmatmul.mubr.f32.gmra.mxu0 %v986
        %v2360 = vpop.f32.mrf.mxu0
        %v2361 = vadd.f32 %v2136, %v2360
        %v2362 = vpop.f32.mrf.mxu0
        %2363 = vmatprep.mubr.f32.mxu0 0.0
        %2364 = vmatmul.mubr.f32.gmra.mxu0 %v995
        %v2365 = vpop.f32.mrf.mxu0
        %v2366 = vadd.f32 %v2141, %v2365
        %v2367 = vpop.f32.mrf.mxu0
        %2368 = vmatprep.mubr.f32.mxu0 0.0
        %2369 = vmatmul.mubr.f32.gmra.mxu0 %v1004
        %v2370 = vpop.f32.mrf.mxu0
        %v2371 = vadd.f32 %v2146, %v2370
        %v2372 = vpop.f32.mrf.mxu0
        %2373 = vmatprep.mubr.f32.mxu0 0.0
        %2374 = vmatmul.mubr.f32.gmra.mxu0 %v1013
        %v2375 = vpop.f32.mrf.mxu0
        %v2376 = vadd.f32 %v2151, %v2375
        %v2377 = vpop.f32.mrf.mxu0
        %2378 = vmatprep.mubr.f32.mxu0 0.0
        %2379 = vmatmul.mubr.f32.gmra.mxu0 %v1022
        %v2380 = vpop.f32.mrf.mxu0
        %v2381 = vadd.f32 %v2156, %v2380
        %v2382 = vpop.f32.mrf.mxu0
        %2383 = vmatprep.mubr.f32.mxu0 0.0
        %2384 = vmatmul.mubr.f32.gmra.mxu0 %v1031
        %v2385 = vpop.f32.mrf.mxu0
        %v2386 = vadd.f32 %v2161, %v2385
        %v2387 = vpop.f32.mrf.mxu0
        %2388 = vmatprep.mubr.f32.mxu0 0.0
        %2389 = vmatmul.mubr.f32.gmra.mxu0 %v1040
        %v2390 = vpop.f32.mrf.mxu0
        %v2391 = vadd.f32 %v2166, %v2390
        %v2392 = vpop.f32.mrf.mxu0
        %2393 = vmatprep.mubr.f32.mxu0 0.0
        %2394 = vmatmul.mubr.f32.gmra.mxu0 %v1049
        %v2395 = vpop.f32.mrf.mxu0
        %v2396 = vadd.f32 %v2171, %v2395
        %v2397 = vpop.f32.mrf.mxu0
        %2398 = vmatprep.mubr.f32.mxu0 0.0
        %2399 = vmatmul.mubr.f32.gmra.mxu0 %v1058
        %v2400 = vpop.f32.mrf.mxu0
        %v2401 = vadd.f32 %v2176, %v2400
        %v2402 = vpop.f32.mrf.mxu0
        %2403 = vmatprep.mubr.f32.mxu0 0.0
        %2404 = vmatmul.mubr.f32.gmra.mxu0 %v1067
        %v2405 = vpop.f32.mrf.mxu0
        %v2406 = vadd.f32 %v2181, %v2405
        %v2407 = vpop.f32.mrf.mxu0
        %2408 = vmatprep.mubr.f32.mxu0 0.0
        %2409 = vmatmul.mubr.f32.gmra.mxu0 %v1076
        %v2410 = vpop.f32.mrf.mxu0
        %v2411 = vadd.f32 %v2186, %v2410
        %v2412 = vpop.f32.mrf.mxu0
        %2413 = vmatprep.mubr.f32.mxu0 0.0
        %2414 = vmatmul.mubr.f32.gmra.mxu0 %v1085
        %v2415 = vpop.f32.mrf.mxu0
        %v2416 = vadd.f32 %v2191, %v2415
        %v2417 = vpop.f32.mrf.mxu0
        %2418 = vmatprep.mubr.f32.mxu0 0.0
        %2419 = vmatmul.mubr.f32.gmra.mxu0 %v1094
        %v2420 = vpop.f32.mrf.mxu0
        %v2421 = vadd.f32 %v2196, %v2420
        %v2422 = vpop.f32.mrf.mxu0
        %2423 = vmatprep.mubr.f32.mxu0 0.0
        %2424 = vmatmul.mubr.f32.gmra.mxu0 %v1103
        %v2425 = vpop.f32.mrf.mxu0
        %v2426 = vadd.f32 %v2201, %v2425
        %v2427 = vpop.f32.mrf.mxu0
        %2428 = vmatprep.mubr.f32.mxu0 0.0
        %2429 = vmatmul.mubr.f32.gmra.mxu0 %v1112
        %v2430 = vpop.f32.mrf.mxu0
        %v2431 = vadd.f32 %v2206, %v2430
        %v2432 = vpop.f32.mrf.mxu0
        %2433 = vmatprep.mubr.f32.mxu0 0.0
        %2434 = vmatmul.mubr.f32.gmra.mxu0 %v1121
        %v2435 = vpop.f32.mrf.mxu0
        %v2436 = vadd.f32 %v2211, %v2435
        %v2437 = vpop.f32.mrf.mxu0
        %2438 = vmatprep.mubr.f32.mxu0 0.0
        %2439 = vmatmul.mubr.f32.gmra.mxu0 %v1130
        %v2440 = vpop.f32.mrf.mxu0
        %v2441 = vadd.f32 %v2216, %v2440
        %v2442 = vpop.f32.mrf.mxu0
        %2443 = vmatprep.mubr.f32.mxu0 0.0
        %2444 = vmatmul.mubr.f32.gmra.mxu0 %v1139
        %v2445 = vpop.f32.mrf.mxu0
        %v2446 = vadd.f32 %v2221, %v2445
        %v2447 = vpop.f32.mrf.mxu0
        %2448 = vmatprep.mubr.f32.mxu0 0.0
        %2449 = vmatmul.mubr.f32.gmra.mxu0 %v1148
        %v2450 = vpop.f32.mrf.mxu0
        %v2451 = vadd.f32 %v2226, %v2450
        %v2452 = vpop.f32.mrf.mxu0
        %2453 = vmatprep.mubr.f32.mxu0 0.0
        %2454 = vmatmul.mubr.f32.gmra.mxu0 %v1157
        %v2455 = vpop.f32.mrf.mxu0
        %v2456 = vadd.f32 %v2231, %v2455
        %v2457 = vpop.f32.mrf.mxu0
        %2458 = vmatprep.mubr.f32.mxu0 0.0
        %2459 = vmatmul.mubr.f32.gmra.mxu0 %v1166
        %v2460 = vpop.f32.mrf.mxu0
        %v2461 = vadd.f32 %v2236, %v2460
        %v2462 = vpop.f32.mrf.mxu0
        %2463 = vmatprep.mubr.f32.mxu0 0.0
        %2464 = vmatmul.mubr.f32.gmra.mxu0 %v1175
        %v2465 = vpop.f32.mrf.mxu0
        %v2466 = vadd.f32 %v2241, %v2465
        %v2467 = vpop.f32.mrf.mxu0
        %2468 = vmatprep.mubr.f32.mxu0 0.0
        %2469 = vmatmul.mubr.f32.gmra.mxu0 %v1184
        %v2470 = vpop.f32.mrf.mxu0
        %v2471 = vadd.f32 %v2246, %v2470
        %v2472 = vpop.f32.mrf.mxu0
        %2473 = vmatprep.mubr.f32.mxu0 0.0
        %2474 = vmatmul.mubr.f32.gmra.mxu0 %v1193
        %v2475 = vpop.f32.mrf.mxu0
        %v2476 = vadd.f32 %v2251, %v2475
        %v2477 = vpop.f32.mrf.mxu0
        %2478 = vmatprep.mubr.f32.mxu0 0.0
        %2479 = vmatmul.mubr.f32.gmra.mxu0 %v1202
        %v2480 = vpop.f32.mrf.mxu0
        %v2481 = vadd.f32 %v2256, %v2480
        %v2482 = vpop.f32.mrf.mxu0
        %2483 = vmatprep.mubr.f32.mxu0 0.0
        %2484 = vmatmul.mubr.f32.gmra.mxu0 %v1211
        %v2485 = vpop.f32.mrf.mxu0
        %v2486 = vadd.f32 %v2261, %v2485
        %v2487 = vpop.f32.mrf.mxu0
        %2488 = vmatprep.mubr.f32.mxu0 0.0
        %2489 = vmatmul.mubr.f32.gmra.mxu0 %v1220
        %v2490 = vpop.f32.mrf.mxu0
        %v2491 = vadd.f32 %v2266, %v2490
        %v2492 = vpop.f32.mrf.mxu0
        %2493 = vmatprep.mubr.f32.mxu0 0.0
        %2494 = vmatmul.mubr.f32.gmra.mxu0 %v1229
        %v2495 = vpop.f32.mrf.mxu0
        %v2496 = vadd.f32 %v2271, %v2495
        %v2497 = vpop.f32.mrf.mxu0
        %2498 = vdwg.mxu0
        %v2499 = vadd.f32 %v2341, %v2346
        %v2500 = vadd.f32 %v2499, %v2351
        %v2501 = vadd.f32 %v2500, %v2356
        %v2502 = vadd.f32 %v2501, %v2361
        %v2503 = vadd.f32 %v2502, %v2366
        %v2504 = vadd.f32 %v2503, %v2371
        %v2505 = vadd.f32 %v2504, %v2376
        %v2506 = vadd.f32 %v2505, %v2381
        %v2507 = vadd.f32 %v2506, %v2386
        %v2508 = vadd.f32 %v2507, %v2391
        %v2509 = vadd.f32 %v2508, %v2396
        %v2510 = vadd.f32 %v2509, %v2401
        %v2511 = vadd.f32 %v2510, %v2406
        %v2512 = vadd.f32 %v2511, %v2411
        %v2513 = vadd.f32 %v2512, %v2416
        %v2514 = vadd.f32 %v2513, %v2421
        %v2515 = vadd.f32 %v2514, %v2426
        %v2516 = vadd.f32 %v2515, %v2431
        %v2517 = vadd.f32 %v2516, %v2436
        %v2518 = vadd.f32 %v2517, %v2441
        %v2519 = vadd.f32 %v2518, %v2446
        %v2520 = vadd.f32 %v2519, %v2451
        %v2521 = vadd.f32 %v2520, %v2456
        %v2522 = vadd.f32 %v2521, %v2461
        %v2523 = vadd.f32 %v2522, %v2466
        %v2524 = vadd.f32 %v2523, %v2471
        %v2525 = vadd.f32 %v2524, %v2476
        %v2526 = vadd.f32 %v2525, %v2481
        %v2527 = vadd.f32 %v2526, %v2486
        %v2528 = vadd.f32 %v2527, %v2491
        %v2529 = vadd.f32 %v2528, %v2496
        %v2530 = vrot.slane %v2529, 4
        %v2531 = vadd.f32 %v2529, %v2530
        %v2532 = vrot.slane %v2531, 2
        %v2533 = vadd.f32 %v2531, %v2532
        %v2534 = vrot.slane %v2533, 1
        %v2535 = vadd.f32 %v2533, %v2534
        %v2536 = vmul.f32 %v2535, 0.00390625
        %v2537 = vmul.f32 %v2341, %v2341
        %v2538 = vmul.f32 %v2346, %v2346
        %v2539 = vmul.f32 %v2351, %v2351
        %v2540 = vmul.f32 %v2356, %v2356
        %v2541 = vmul.f32 %v2361, %v2361
        %v2542 = vmul.f32 %v2366, %v2366
        %v2543 = vmul.f32 %v2371, %v2371
        %v2544 = vmul.f32 %v2376, %v2376
        %v2545 = vmul.f32 %v2381, %v2381
        %v2546 = vmul.f32 %v2386, %v2386
        %v2547 = vmul.f32 %v2391, %v2391
        %v2548 = vmul.f32 %v2396, %v2396
        %v2549 = vmul.f32 %v2401, %v2401
        %v2550 = vmul.f32 %v2406, %v2406
        %v2551 = vmul.f32 %v2411, %v2411
        %v2552 = vmul.f32 %v2416, %v2416
        %v2553 = vmul.f32 %v2421, %v2421
        %v2554 = vmul.f32 %v2426, %v2426
        %v2555 = vmul.f32 %v2431, %v2431
        %v2556 = vmul.f32 %v2436, %v2436
        %v2557 = vmul.f32 %v2441, %v2441
        %v2558 = vmul.f32 %v2446, %v2446
        %v2559 = vmul.f32 %v2451, %v2451
        %v2560 = vmul.f32 %v2456, %v2456
        %v2561 = vmul.f32 %v2461, %v2461
        %v2562 = vmul.f32 %v2466, %v2466
        %v2563 = vmul.f32 %v2471, %v2471
        %v2564 = vmul.f32 %v2476, %v2476
        %v2565 = vmul.f32 %v2481, %v2481
        %v2566 = vmul.f32 %v2486, %v2486
        %v2567 = vmul.f32 %v2491, %v2491
        %v2568 = vmul.f32 %v2496, %v2496
        %v2569 = vadd.f32 %v2537, %v2538
        %v2570 = vadd.f32 %v2569, %v2539
        %v2571 = vadd.f32 %v2570, %v2540
        %v2572 = vadd.f32 %v2571, %v2541
        %v2573 = vadd.f32 %v2572, %v2542
        %v2574 = vadd.f32 %v2573, %v2543
        %v2575 = vadd.f32 %v2574, %v2544
        %v2576 = vadd.f32 %v2575, %v2545
        %v2577 = vadd.f32 %v2576, %v2546
        %v2578 = vadd.f32 %v2577, %v2547
        %v2579 = vadd.f32 %v2578, %v2548
        %v2580 = vadd.f32 %v2579, %v2549
        %v2581 = vadd.f32 %v2580, %v2550
        %v2582 = vadd.f32 %v2581, %v2551
        %v2583 = vadd.f32 %v2582, %v2552
        %v2584 = vadd.f32 %v2583, %v2553
        %v2585 = vadd.f32 %v2584, %v2554
        %v2586 = vadd.f32 %v2585, %v2555
        %v2587 = vadd.f32 %v2586, %v2556
        %v2588 = vadd.f32 %v2587, %v2557
        %v2589 = vadd.f32 %v2588, %v2558
        %v2590 = vadd.f32 %v2589, %v2559
        %v2591 = vadd.f32 %v2590, %v2560
        %v2592 = vadd.f32 %v2591, %v2561
        %v2593 = vadd.f32 %v2592, %v2562
        %v2594 = vadd.f32 %v2593, %v2563
        %v2595 = vadd.f32 %v2594, %v2564
        %v2596 = vadd.f32 %v2595, %v2565
        %v2597 = vadd.f32 %v2596, %v2566
        %v2598 = vadd.f32 %v2597, %v2567
        %v2599 = vadd.f32 %v2598, %v2568
        %v2600 = vrot.slane %v2599, 4
        %v2601 = vadd.f32 %v2599, %v2600
        %v2602 = vrot.slane %v2601, 2
        %v2603 = vadd.f32 %v2601, %v2602
        %v2604 = vrot.slane %v2603, 1
        %v2605 = vadd.f32 %v2603, %v2604
        %v2606 = vmul.f32 %v2605, 0.00390625
        %v2607 = vmul.f32 %v2536, %v2536
        %v2608 = vsub.f32 %v2606, %v2607
        %v2609 = vmax.f32 %v2608, 0.0
        %v2610 = vsub.f32 %v2341, %v2536
        %v2611 = vsub.f32 %v2346, %v2536
        %v2612 = vsub.f32 %v2351, %v2536
        %v2613 = vsub.f32 %v2356, %v2536
        %v2614 = vsub.f32 %v2361, %v2536
        %v2615 = vsub.f32 %v2366, %v2536
        %v2616 = vsub.f32 %v2371, %v2536
        %v2617 = vsub.f32 %v2376, %v2536
        %v2618 = vsub.f32 %v2381, %v2536
        %v2619 = vsub.f32 %v2386, %v2536
        %v2620 = vsub.f32 %v2391, %v2536
        %v2621 = vsub.f32 %v2396, %v2536
        %v2622 = vsub.f32 %v2401, %v2536
        %v2623 = vsub.f32 %v2406, %v2536
        %v2624 = vsub.f32 %v2411, %v2536
        %v2625 = vsub.f32 %v2416, %v2536
        %v2626 = vsub.f32 %v2421, %v2536
        %v2627 = vsub.f32 %v2426, %v2536
        %v2628 = vsub.f32 %v2431, %v2536
        %v2629 = vsub.f32 %v2436, %v2536
        %v2630 = vsub.f32 %v2441, %v2536
        %v2631 = vsub.f32 %v2446, %v2536
        %v2632 = vsub.f32 %v2451, %v2536
        %v2633 = vsub.f32 %v2456, %v2536
        %v2634 = vsub.f32 %v2461, %v2536
        %v2635 = vsub.f32 %v2466, %v2536
        %v2636 = vsub.f32 %v2471, %v2536
        %v2637 = vsub.f32 %v2476, %v2536
        %v2638 = vsub.f32 %v2481, %v2536
        %v2639 = vsub.f32 %v2486, %v2536
        %v2640 = vsub.f32 %v2491, %v2536
        %v2641 = vsub.f32 %v2496, %v2536
        %v2642 = vadd.f32 %v2609, 1e-05
        %v2643 = vrsqrt.pop %v2642
        %v2644 = vmul.f32 %v2610, %v2643
        %v2645 = vmul.f32 %v2611, %v2643
        %v2646 = vmul.f32 %v2612, %v2643
        %v2647 = vmul.f32 %v2613, %v2643
        %v2648 = vmul.f32 %v2614, %v2643
        %v2649 = vmul.f32 %v2615, %v2643
        %v2650 = vmul.f32 %v2616, %v2643
        %v2651 = vmul.f32 %v2617, %v2643
        %v2652 = vmul.f32 %v2618, %v2643
        %v2653 = vmul.f32 %v2619, %v2643
        %v2654 = vmul.f32 %v2620, %v2643
        %v2655 = vmul.f32 %v2621, %v2643
        %v2656 = vmul.f32 %v2622, %v2643
        %v2657 = vmul.f32 %v2623, %v2643
        %v2658 = vmul.f32 %v2624, %v2643
        %v2659 = vmul.f32 %v2625, %v2643
        %v2660 = vmul.f32 %v2626, %v2643
        %v2661 = vmul.f32 %v2627, %v2643
        %v2662 = vmul.f32 %v2628, %v2643
        %v2663 = vmul.f32 %v2629, %v2643
        %v2664 = vmul.f32 %v2630, %v2643
        %v2665 = vmul.f32 %v2631, %v2643
        %v2666 = vmul.f32 %v2632, %v2643
        %v2667 = vmul.f32 %v2633, %v2643
        %v2668 = vmul.f32 %v2634, %v2643
        %v2669 = vmul.f32 %v2635, %v2643
        %v2670 = vmul.f32 %v2636, %v2643
        %v2671 = vmul.f32 %v2637, %v2643
        %v2672 = vmul.f32 %v2638, %v2643
        %v2673 = vmul.f32 %v2639, %v2643
        %v2674 = vmul.f32 %v2640, %v2643
        %v2675 = vmul.f32 %v2641, %v2643
        %v2676 = vmax.f32 %v2644, 0.0
        %v2677 = vmax.f32 %v2645, 0.0
        %v2678 = vmax.f32 %v2646, 0.0
        %v2679 = vmax.f32 %v2647, 0.0
        %v2680 = vmax.f32 %v2648, 0.0
        %v2681 = vmax.f32 %v2649, 0.0
        %v2682 = vmax.f32 %v2650, 0.0
        %v2683 = vmax.f32 %v2651, 0.0
        %v2684 = vmax.f32 %v2652, 0.0
        %v2685 = vmax.f32 %v2653, 0.0
        %v2686 = vmax.f32 %v2654, 0.0
        %v2687 = vmax.f32 %v2655, 0.0
        %v2688 = vmax.f32 %v2656, 0.0
        %v2689 = vmax.f32 %v2657, 0.0
        %v2690 = vmax.f32 %v2658, 0.0
        %v2691 = vmax.f32 %v2659, 0.0
        %v2692 = vmax.f32 %v2660, 0.0
        %v2693 = vmax.f32 %v2661, 0.0
        %v2694 = vmax.f32 %v2662, 0.0
        %v2695 = vmax.f32 %v2663, 0.0
        %v2696 = vmax.f32 %v2664, 0.0
        %v2697 = vmax.f32 %v2665, 0.0
        %v2698 = vmax.f32 %v2666, 0.0
        %v2699 = vmax.f32 %v2667, 0.0
        %v2700 = vmax.f32 %v2668, 0.0
        %v2701 = vmax.f32 %v2669, 0.0
        %v2702 = vmax.f32 %v2670, 0.0
        %v2703 = vmax.f32 %v2671, 0.0
        %v2704 = vmax.f32 %v2672, 0.0
        %v2705 = vmax.f32 %v2673, 0.0
        %v2706 = vmax.f32 %v2674, 0.0
        %v2707 = vmax.f32 %v2675, 0.0
        %2708 = vst [vmem:[%s250 + $0x1] sm:$0xff] %v2676
        %2709 = vst [vmem:[%s250 + $0x9] sm:$0xff] %v2677
        %2710 = vst [vmem:[%s250 + $0x19] sm:$0xff] %v2678
        %2711 = vst [vmem:[%s250 + $0x21] sm:$0xff] %v2679
        %2712 = vst [vmem:[%s250 + $0x31] sm:$0xff] %v2680
        %2713 = vst [vmem:[%s250 + $0x39] sm:$0xff] %v2681
        %2714 = vst [vmem:[%s250 + $0x49] sm:$0xff] %v2682
        %2715 = vst [vmem:[%s250 + $0x51] sm:$0xff] %v2683
        %2716 = vst [vmem:[%s250 + $0x61] sm:$0xff] %v2684
        %2717 = vst [vmem:[%s250 + $0x69] sm:$0xff] %v2685
        %2718 = vst [vmem:[%s250 + $0x79] sm:$0xff] %v2686
        %2719 = vst [vmem:[%s250 + $0x81] sm:$0xff] %v2687
        %2720 = vst [vmem:[%s250 + $0x91] sm:$0xff] %v2688
        %2721 = vst [vmem:[%s250 + $0x99] sm:$0xff] %v2689
        %2722 = vst [vmem:[%s250 + $0xa9] sm:$0xff] %v2690
        %2723 = vst [vmem:[%s250 + $0xb1] sm:$0xff] %v2691
        %2724 = vst [vmem:[%s250 + $0xc1] sm:$0xff] %v2692
        %2725 = vst [vmem:[%s250 + $0xc9] sm:$0xff] %v2693
        %2726 = vst [vmem:[%s250 + $0xd9] sm:$0xff] %v2694
        %2727 = vst [vmem:[%s250 + $0xe1] sm:$0xff] %v2695
        %2728 = vst [vmem:[%s250 + $0xf1] sm:$0xff] %v2696
        %2729 = vst [vmem:[%s250 + $0xf9] sm:$0xff] %v2697
        %2730 = vst [vmem:[%s250 + $0x109] sm:$0xff] %v2698
        %2731 = vst [vmem:[%s250 + $0x111] sm:$0xff] %v2699
        %2732 = vst [vmem:[%s250 + $0x121] sm:$0xff] %v2700
        %2733 = vst [vmem:[%s250 + $0x129] sm:$0xff] %v2701
        %2734 = vst [vmem:[%s250 + $0x139] sm:$0xff] %v2702
        %2735 = vst [vmem:[%s250 + $0x141] sm:$0xff] %v2703
        %2736 = vst [vmem:[%s250 + $0x151] sm:$0xff] %v2704
        %2737 = vst [vmem:[%s250 + $0x159] sm:$0xff] %v2705
        %2738 = vst [vmem:[%s250 + $0x169] sm:$0xff] %v2706
        %2739 = vst [vmem:[%s250 + $0x171] sm:$0xff] %v2707
        %v2740 = vld [vmem:[%s283 + $0x1] sm:$0xff]
        %v2741 = vld [vmem:[%s283 + $0x9] sm:$0xff]
        %2742 = vst [vmem:[#allocation2 + $0x1] sm:$0xff] %v2740
        %2743 = vst [vmem:[#allocation2 + $0x9] sm:$0xff] %v2741
        %v2744 = vld [vmem:[%s288 + $0x1] sm:$0xff]
        %v2745 = vld [vmem:[%s288 + $0x9] sm:$0xff]
        %2746 = vst [vmem:[%s291 + $0x1] sm:$0xff] %v2744
        %2747 = vst [vmem:[%s291 + $0x9] sm:$0xff] %v2745
        %v2748 = vld [vmem:[#allocation2 + $0x2] sm:$0x1]
        %v2749 = vld [vmem:[#allocation2 + $0x1a] sm:$0x1]
        %v2750 = vld [vmem:[#allocation2 + $0x32] sm:$0x1]
        %v2751 = vld [vmem:[#allocation2 + $0x4a] sm:$0x1]
        %v2752 = vld [vmem:[#allocation2 + $0x62] sm:$0x1]
        %v2753 = vld [vmem:[#allocation2 + $0x7a] sm:$0x1]
        %v2754 = vld [vmem:[#allocation2 + $0x92] sm:$0x1]
        %v2755 = vld [vmem:[#allocation2 + $0xaa] sm:$0x1]
        %v2756 = vld [vmem:[#allocation2 + $0xc2] sm:$0x1]
        %v2757 = vld [vmem:[#allocation2 + $0xda] sm:$0x1]
        %v2758 = vld [vmem:[#allocation2 + $0xf2] sm:$0x1]
        %v2759 = vld [vmem:[#allocation2 + $0x10a] sm:$0x1]
        %v2760 = vld [vmem:[#allocation2 + $0x122] sm:$0x1]
        %v2761 = vld [vmem:[#allocation2 + $0x13a] sm:$0x1]
        %v2762 = vld [vmem:[#allocation2 + $0x152] sm:$0x1]
        %v2763 = vld [vmem:[#allocation2 + $0x16a] sm:$0x1]
        %v2764 = vld [vmem:[#allocation2 + $0x182] sm:$0x1]
        %v2765 = vld [vmem:[#allocation2 + $0x19a] sm:$0x1]
        %2766 = vst [vmem:[#allocation2] sm:$0x1] %v2748
        %2767 = vst [vmem:[#allocation2 + $0x18] sm:$0x1] %v2749
        %2768 = vst [vmem:[#allocation2 + $0x30] sm:$0x1] %v2750
        %2769 = vst [vmem:[#allocation2 + $0x48] sm:$0x1] %v2751
        %2770 = vst [vmem:[#allocation2 + $0x60] sm:$0x1] %v2752
        %2771 = vst [vmem:[#allocation2 + $0x78] sm:$0x1] %v2753
        %2772 = vst [vmem:[#allocation2 + $0x90] sm:$0x1] %v2754
        %2773 = vst [vmem:[#allocation2 + $0xa8] sm:$0x1] %v2755
        %2774 = vst [vmem:[#allocation2 + $0xc0] sm:$0x1] %v2756
        %2775 = vst [vmem:[#allocation2 + $0xd8] sm:$0x1] %v2757
        %2776 = vst [vmem:[#allocation2 + $0xf0] sm:$0x1] %v2758
        %2777 = vst [vmem:[#allocation2 + $0x108] sm:$0x1] %v2759
        %2778 = vst [vmem:[#allocation2 + $0x120] sm:$0x1] %v2760
        %2779 = vst [vmem:[#allocation2 + $0x138] sm:$0x1] %v2761
        %2780 = vst [vmem:[#allocation2 + $0x150] sm:$0x1] %v2762
        %2781 = vst [vmem:[#allocation2 + $0x168] sm:$0x1] %v2763
        %2782 = vst [vmem:[#allocation2 + $0x180] sm:$0x1] %v2764
        %2783 = vst [vmem:[#allocation2 + $0x198] sm:$0x1] %v2765
        %v2784 = vld [vmem:[#allocation2 + $0xf] sm:$0x1]
        %v2785 = vld [vmem:[#allocation2 + $0x27] sm:$0x1]
        %v2786 = vld [vmem:[#allocation2 + $0x3f] sm:$0x1]
        %v2787 = vld [vmem:[#allocation2 + $0x57] sm:$0x1]
        %v2788 = vld [vmem:[#allocation2 + $0x6f] sm:$0x1]
        %v2789 = vld [vmem:[#allocation2 + $0x87] sm:$0x1]
        %v2790 = vld [vmem:[#allocation2 + $0x9f] sm:$0x1]
        %v2791 = vld [vmem:[#allocation2 + $0xb7] sm:$0x1]
        %v2792 = vld [vmem:[#allocation2 + $0xcf] sm:$0x1]
        %v2793 = vld [vmem:[#allocation2 + $0xe7] sm:$0x1]
        %v2794 = vld [vmem:[#allocation2 + $0xff] sm:$0x1]
        %v2795 = vld [vmem:[#allocation2 + $0x117] sm:$0x1]
        %v2796 = vld [vmem:[#allocation2 + $0x12f] sm:$0x1]
        %v2797 = vld [vmem:[#allocation2 + $0x147] sm:$0x1]
        %v2798 = vld [vmem:[#allocation2 + $0x15f] sm:$0x1]
        %v2799 = vld [vmem:[#allocation2 + $0x177] sm:$0x1]
        %v2800 = vld [vmem:[#allocation2 + $0x18f] sm:$0x1]
        %v2801 = vld [vmem:[#allocation2 + $0x1a7] sm:$0x1]
        %2802 = vst [vmem:[#allocation2 + $0x11] sm:$0x1] %v2784
        %2803 = vst [vmem:[#allocation2 + $0x29] sm:$0x1] %v2785
        %2804 = vst [vmem:[#allocation2 + $0x41] sm:$0x1] %v2786
        %2805 = vst [vmem:[#allocation2 + $0x59] sm:$0x1] %v2787
        %2806 = vst [vmem:[#allocation2 + $0x71] sm:$0x1] %v2788
        %2807 = vst [vmem:[#allocation2 + $0x89] sm:$0x1] %v2789
        %2808 = vst [vmem:[#allocation2 + $0xa1] sm:$0x1] %v2790
        %2809 = vst [vmem:[#allocation2 + $0xb9] sm:$0x1] %v2791
        %2810 = vst [vmem:[#allocation2 + $0xd1] sm:$0x1] %v2792
        %2811 = vst [vmem:[#allocation2 + $0xe9] sm:$0x1] %v2793
        %2812 = vst [vmem:[#allocation2 + $0x101] sm:$0x1] %v2794
        %2813 = vst [vmem:[#allocation2 + $0x119] sm:$0x1] %v2795
        %2814 = vst [vmem:[#allocation2 + $0x131] sm:$0x1] %v2796
        %2815 = vst [vmem:[#allocation2 + $0x149] sm:$0x1] %v2797
        %2816 = vst [vmem:[#allocation2 + $0x161] sm:$0x1] %v2798
        %2817 = vst [vmem:[#allocation2 + $0x179] sm:$0x1] %v2799
        %2818 = vst [vmem:[#allocation2 + $0x191] sm:$0x1] %v2800
        %2819 = vst [vmem:[#allocation2 + $0x1a9] sm:$0x1] %v2801
        %v2820 = vld [vmem:[#allocation2] sm:$0xff]
        %v2821 = vld [vmem:[#allocation2 + $0x8] sm:$0xff]
        %v2822 = vld [vmem:[#allocation2 + $0x18] sm:$0xff]
        %v2823 = vld [vmem:[#allocation2 + $0x20] sm:$0xff]
        %v2824 = vld [vmem:[#allocation2 + $0x30] sm:$0xff]
        %v2825 = vld [vmem:[#allocation2 + $0x38] sm:$0xff]
        %v2826 = vld [vmem:[#allocation2 + $0x48] sm:$0xff]
        %v2827 = vld [vmem:[#allocation2 + $0x50] sm:$0xff]
        %v2828 = vld [vmem:[#allocation2 + $0x60] sm:$0xff]
        %v2829 = vld [vmem:[#allocation2 + $0x68] sm:$0xff]
        %v2830 = vld [vmem:[#allocation2 + $0x78] sm:$0xff]
        %v2831 = vld [vmem:[#allocation2 + $0x80] sm:$0xff]
        %v2832 = vld [vmem:[#allocation2 + $0x90] sm:$0xff]
        %v2833 = vld [vmem:[#allocation2 + $0x98] sm:$0xff]
        %v2834 = vld [vmem:[#allocation2 + $0xa8] sm:$0xff]
        %v2835 = vld [vmem:[#allocation2 + $0xb0] sm:$0xff]
        %v2836 = vld [vmem:[#allocation2 + $0xc0] sm:$0xff]
        %v2837 = vld [vmem:[#allocation2 + $0xc8] sm:$0xff]
        %v2838 = vld [vmem:[#allocation2 + $0xd8] sm:$0xff]
        %v2839 = vld [vmem:[#allocation2 + $0xe0] sm:$0xff]
        %v2840 = vld [vmem:[#allocation2 + $0xf0] sm:$0xff]
        %v2841 = vld [vmem:[#allocation2 + $0xf8] sm:$0xff]
        %v2842 = vld [vmem:[#allocation2 + $0x108] sm:$0xff]
        %v2843 = vld [vmem:[#allocation2 + $0x110] sm:$0xff]
        %v2844 = vld [vmem:[#allocation2 + $0x120] sm:$0xff]
        %v2845 = vld [vmem:[#allocation2 + $0x128] sm:$0xff]
        %v2846 = vld [vmem:[#allocation2 + $0x138] sm:$0xff]
        %v2847 = vld [vmem:[#allocation2 + $0x140] sm:$0xff]
        %v2848 = vld [vmem:[#allocation2 + $0x150] sm:$0xff]
        %v2849 = vld [vmem:[#allocation2 + $0x158] sm:$0xff]
        %v2850 = vld [vmem:[#allocation2 + $0x168] sm:$0xff]
        %v2851 = vld [vmem:[#allocation2 + $0x170] sm:$0xff]
        %2852 = vst [vmem:[#allocation3] sm:$0xff] %v2820
        %2853 = vst [vmem:[#allocation3 + $0x48] sm:$0xff] %v2821
        %2854 = vst [vmem:[#allocation3 + $0x90] sm:$0xff] %v2822
        %2855 = vst [vmem:[#allocation3 + $0xd8] sm:$0xff] %v2823
        %2856 = vst [vmem:[#allocation3 + $0x120] sm:$0xff] %v2824
        %2857 = vst [vmem:[#allocation3 + $0x168] sm:$0xff] %v2825
        %2858 = vst [vmem:[#allocation3 + $0x1b0] sm:$0xff] %v2826
        %2859 = vst [vmem:[#allocation3 + $0x1f8] sm:$0xff] %v2827
        %2860 = vst [vmem:[#allocation3 + $0x240] sm:$0xff] %v2828
        %2861 = vst [vmem:[#allocation3 + $0x288] sm:$0xff] %v2829
        %2862 = vst [vmem:[#allocation3 + $0x2d0] sm:$0xff] %v2830
        %2863 = vst [vmem:[#allocation3 + $0x318] sm:$0xff] %v2831
        %2864 = vst [vmem:[#allocation3 + $0x360] sm:$0xff] %v2832
        %2865 = vst [vmem:[#allocation3 + $0x3a8] sm:$0xff] %v2833
        %2866 = vst [vmem:[#allocation3 + $0x3f0] sm:$0xff] %v2834
        %2867 = vst [vmem:[#allocation3 + $0x438] sm:$0xff] %v2835
        %2868 = vst [vmem:[#allocation3 + $0x480] sm:$0xff] %v2836
        %2869 = vst [vmem:[#allocation3 + $0x4c8] sm:$0xff] %v2837
        %2870 = vst [vmem:[#allocation3 + $0x510] sm:$0xff] %v2838
        %2871 = vst [vmem:[#allocation3 + $0x558] sm:$0xff] %v2839
        %2872 = vst [vmem:[#allocation3 + $0x5a0] sm:$0xff] %v2840
        %2873 = vst [vmem:[#allocation3 + $0x5e8] sm:$0xff] %v2841
        %2874 = vst [vmem:[#allocation3 + $0x630] sm:$0xff] %v2842
        %2875 = vst [vmem:[#allocation3 + $0x678] sm:$0xff] %v2843
        %2876 = vst [vmem:[#allocation3 + $0x6c0] sm:$0xff] %v2844
        %2877 = vst [vmem:[#allocation3 + $0x708] sm:$0xff] %v2845
        %2878 = vst [vmem:[#allocation3 + $0x750] sm:$0xff] %v2846
        %2879 = vst [vmem:[#allocation3 + $0x798] sm:$0xff] %v2847
        %2880 = vst [vmem:[#allocation3 + $0x7e0] sm:$0xff] %v2848
        %2881 = vst [vmem:[#allocation3 + $0x828] sm:$0xff] %v2849
        %2882 = vst [vmem:[#allocation3 + $0x870] sm:$0xff] %v2850
        %2883 = vst [vmem:[#allocation3 + $0x8b8] sm:$0xff] %v2851
        %v2884 = vld [vmem:[#allocation2 + $0x1] sm:$0xff]
        %v2885 = vld [vmem:[#allocation2 + $0x9] sm:$0xff]
        %v2886 = vld [vmem:[#allocation2 + $0x19] sm:$0xff]
        %v2887 = vld [vmem:[#allocation2 + $0x21] sm:$0xff]
        %v2888 = vld [vmem:[#allocation2 + $0x31] sm:$0xff]
        %v2889 = vld [vmem:[#allocation2 + $0x39] sm:$0xff]
        %v2890 = vld [vmem:[#allocation2 + $0x49] sm:$0xff]
        %v2891 = vld [vmem:[#allocation2 + $0x51] sm:$0xff]
        %v2892 = vld [vmem:[#allocation2 + $0x61] sm:$0xff]
        %v2893 = vld [vmem:[#allocation2 + $0x69] sm:$0xff]
        %v2894 = vld [vmem:[#allocation2 + $0x79] sm:$0xff]
        %v2895 = vld [vmem:[#allocation2 + $0x81] sm:$0xff]
        %v2896 = vld [vmem:[#allocation2 + $0x91] sm:$0xff]
        %v2897 = vld [vmem:[#allocation2 + $0x99] sm:$0xff]
        %v2898 = vld [vmem:[#allocation2 + $0xa9] sm:$0xff]
        %v2899 = vld [vmem:[#allocation2 + $0xb1] sm:$0xff]
        %v2900 = vld [vmem:[#allocation2 + $0xc1] sm:$0xff]
        %v2901 = vld [vmem:[#allocation2 + $0xc9] sm:$0xff]
        %v2902 = vld [vmem:[#allocation2 + $0xd9] sm:$0xff]
        %v2903 = vld [vmem:[#allocation2 + $0xe1] sm:$0xff]
        %v2904 = vld [vmem:[#allocation2 + $0xf1] sm:$0xff]
        %v2905 = vld [vmem:[#allocation2 + $0xf9] sm:$0xff]
        %v2906 = vld [vmem:[#allocation2 + $0x109] sm:$0xff]
        %v2907 = vld [vmem:[#allocation2 + $0x111] sm:$0xff]
        %v2908 = vld [vmem:[#allocation2 + $0x121] sm:$0xff]
        %v2909 = vld [vmem:[#allocation2 + $0x129] sm:$0xff]
        %v2910 = vld [vmem:[#allocation2 + $0x139] sm:$0xff]
        %v2911 = vld [vmem:[#allocation2 + $0x141] sm:$0xff]
        %v2912 = vld [vmem:[#allocation2 + $0x151] sm:$0xff]
        %v2913 = vld [vmem:[#allocation2 + $0x159] sm:$0xff]
        %v2914 = vld [vmem:[#allocation2 + $0x169] sm:$0xff]
        %v2915 = vld [vmem:[#allocation2 + $0x171] sm:$0xff]
        %2916 = vst [vmem:[#allocation3 + $0x8] sm:$0xff] %v2884
        %2917 = vst [vmem:[#allocation3 + $0x50] sm:$0xff] %v2885
        %2918 = vst [vmem:[#allocation3 + $0x98] sm:$0xff] %v2886
        %2919 = vst [vmem:[#allocation3 + $0xe0] sm:$0xff] %v2887
        %2920 = vst [vmem:[#allocation3 + $0x128] sm:$0xff] %v2888
        %2921 = vst [vmem:[#allocation3 + $0x170] sm:$0xff] %v2889
        %2922 = vst [vmem:[#allocation3 + $0x1b8] sm:$0xff] %v2890
        %2923 = vst [vmem:[#allocation3 + $0x200] sm:$0xff] %v2891
        %2924 = vst [vmem:[#allocation3 + $0x248] sm:$0xff] %v2892
        %2925 = vst [vmem:[#allocation3 + $0x290] sm:$0xff] %v2893
        %2926 = vst [vmem:[#allocation3 + $0x2d8] sm:$0xff] %v2894
        %2927 = vst [vmem:[#allocation3 + $0x320] sm:$0xff] %v2895
        %2928 = vst [vmem:[#allocation3 + $0x368] sm:$0xff] %v2896
        %2929 = vst [vmem:[#allocation3 + $0x3b0] sm:$0xff] %v2897
        %2930 = vst [vmem:[#allocation3 + $0x3f8] sm:$0xff] %v2898
        %2931 = vst [vmem:[#allocation3 + $0x440] sm:$0xff] %v2899
        %2932 = vst [vmem:[#allocation3 + $0x488] sm:$0xff] %v2900
        %2933 = vst [vmem:[#allocation3 + $0x4d0] sm:$0xff] %v2901
        %2934 = vst [vmem:[#allocation3 + $0x518] sm:$0xff] %v2902
        %2935 = vst [vmem:[#allocation3 + $0x560] sm:$0xff] %v2903
        %2936 = vst [vmem:[#allocation3 + $0x5a8] sm:$0xff] %v2904
        %2937 = vst [vmem:[#allocation3 + $0x5f0] sm:$0xff] %v2905
        %2938 = vst [vmem:[#allocation3 + $0x638] sm:$0xff] %v2906
        %2939 = vst [vmem:[#allocation3 + $0x680] sm:$0xff] %v2907
        %2940 = vst [vmem:[#allocation3 + $0x6c8] sm:$0xff] %v2908
        %2941 = vst [vmem:[#allocation3 + $0x710] sm:$0xff] %v2909
        %2942 = vst [vmem:[#allocation3 + $0x758] sm:$0xff] %v2910
        %2943 = vst [vmem:[#allocation3 + $0x7a0] sm:$0xff] %v2911
        %2944 = vst [vmem:[#allocation3 + $0x7e8] sm:$0xff] %v2912
        %2945 = vst [vmem:[#allocation3 + $0x830] sm:$0xff] %v2913
        %2946 = vst [vmem:[#allocation3 + $0x878] sm:$0xff] %v2914
        %2947 = vst [vmem:[#allocation3 + $0x8c0] sm:$0xff] %v2915
        %v2948 = vld [vmem:[#allocation2 + $0x2] sm:$0xff]
        %v2949 = vld [vmem:[#allocation2 + $0xa] sm:$0xff]
        %v2950 = vld [vmem:[#allocation2 + $0x1a] sm:$0xff]
        %v2951 = vld [vmem:[#allocation2 + $0x22] sm:$0xff]
        %v2952 = vld [vmem:[#allocation2 + $0x32] sm:$0xff]
        %v2953 = vld [vmem:[#allocation2 + $0x3a] sm:$0xff]
        %v2954 = vld [vmem:[#allocation2 + $0x4a] sm:$0xff]
        %v2955 = vld [vmem:[#allocation2 + $0x52] sm:$0xff]
        %v2956 = vld [vmem:[#allocation2 + $0x62] sm:$0xff]
        %v2957 = vld [vmem:[#allocation2 + $0x6a] sm:$0xff]
        %v2958 = vld [vmem:[#allocation2 + $0x7a] sm:$0xff]
        %v2959 = vld [vmem:[#allocation2 + $0x82] sm:$0xff]
        %v2960 = vld [vmem:[#allocation2 + $0x92] sm:$0xff]
        %v2961 = vld [vmem:[#allocation2 + $0x9a] sm:$0xff]
        %v2962 = vld [vmem:[#allocation2 + $0xaa] sm:$0xff]
        %v2963 = vld [vmem:[#allocation2 + $0xb2] sm:$0xff]
        %v2964 = vld [vmem:[#allocation2 + $0xc2] sm:$0xff]
        %v2965 = vld [vmem:[#allocation2 + $0xca] sm:$0xff]
        %v2966 = vld [vmem:[#allocation2 + $0xda] sm:$0xff]
        %v2967 = vld [vmem:[#allocation2 + $0xe2] sm:$0xff]
        %v2968 = vld [vmem:[#allocation2 + $0xf2] sm:$0xff]
        %v2969 = vld [vmem:[#allocation2 + $0xfa] sm:$0xff]
        %v2970 = vld [vmem:[#allocation2 + $0x10a] sm:$0xff]
        %v2971 = vld [vmem:[#allocation2 + $0x112] sm:$0xff]
        %v2972 = vld [vmem:[#allocation2 + $0x122] sm:$0xff]
        %v2973 = vld [vmem:[#allocation2 + $0x12a] sm:$0xff]
        %v2974 = vld [vmem:[#allocation2 + $0x13a] sm:$0xff]
        %v2975 = vld [vmem:[#allocation2 + $0x142] sm:$0xff]
        %v2976 = vld [vmem:[#allocation2 + $0x152] sm:$0xff]
        %v2977 = vld [vmem:[#allocation2 + $0x15a] sm:$0xff]
        %v2978 = vld [vmem:[#allocation2 + $0x16a] sm:$0xff]
        %v2979 = vld [vmem:[#allocation2 + $0x172] sm:$0xff]
        %2980 = vst [vmem:[#allocation3 + $0x10] sm:$0xff] %v2948
        %2981 = vst [vmem:[#allocation3 + $0x58] sm:$0xff] %v2949
        %2982 = vst [vmem:[#allocation3 + $0xa0] sm:$0xff] %v2950
        %2983 = vst [vmem:[#allocation3 + $0xe8] sm:$0xff] %v2951
        %2984 = vst [vmem:[#allocation3 + $0x130] sm:$0xff] %v2952
        %2985 = vst [vmem:[#allocation3 + $0x178] sm:$0xff] %v2953
        %2986 = vst [vmem:[#allocation3 + $0x1c0] sm:$0xff] %v2954
        %2987 = vst [vmem:[#allocation3 + $0x208] sm:$0xff] %v2955
        %2988 = vst [vmem:[#allocation3 + $0x250] sm:$0xff] %v2956
        %2989 = vst [vmem:[#allocation3 + $0x298] sm:$0xff] %v2957
        %2990 = vst [vmem:[#allocation3 + $0x2e0] sm:$0xff] %v2958
        %2991 = vst [vmem:[#allocation3 + $0x328] sm:$0xff] %v2959
        %2992 = vst [vmem:[#allocation3 + $0x370] sm:$0xff] %v2960
        %2993 = vst [vmem:[#allocation3 + $0x3b8] sm:$0xff] %v2961
        %2994 = vst [vmem:[#allocation3 + $0x400] sm:$0xff] %v2962
        %2995 = vst [vmem:[#allocation3 + $0x448] sm:$0xff] %v2963
        %2996 = vst [vmem:[#allocation3 + $0x490] sm:$0xff] %v2964
        %2997 = vst [vmem:[#allocation3 + $0x4d8] sm:$0xff] %v2965
        %2998 = vst [vmem:[#allocation3 + $0x520] sm:$0xff] %v2966
        %2999 = vst [vmem:[#allocation3 + $0x568] sm:$0xff] %v2967
        %3000 = vst [vmem:[#allocation3 + $0x5b0] sm:$0xff] %v2968
        %3001 = vst [vmem:[#allocation3 + $0x5f8] sm:$0xff] %v2969
        %3002 = vst [vmem:[#allocation3 + $0x640] sm:$0xff] %v2970
        %3003 = vst [vmem:[#allocation3 + $0x688] sm:$0xff] %v2971
        %3004 = vst [vmem:[#allocation3 + $0x6d0] sm:$0xff] %v2972
        %3005 = vst [vmem:[#allocation3 + $0x718] sm:$0xff] %v2973
        %3006 = vst [vmem:[#allocation3 + $0x760] sm:$0xff] %v2974
        %3007 = vst [vmem:[#allocation3 + $0x7a8] sm:$0xff] %v2975
        %3008 = vst [vmem:[#allocation3 + $0x7f0] sm:$0xff] %v2976
        %3009 = vst [vmem:[#allocation3 + $0x838] sm:$0xff] %v2977
        %3010 = vst [vmem:[#allocation3 + $0x880] sm:$0xff] %v2978
        %3011 = vst [vmem:[#allocation3 + $0x8c8] sm:$0xff] %v2979
        %v3012 = vld [vmem:[%s250] sm:$0xff]
        %v3013 = vld [vmem:[%s250 + $0x8] sm:$0xff]
        %v3014 = vld [vmem:[%s250 + $0x18] sm:$0xff]
        %v3015 = vld [vmem:[%s250 + $0x20] sm:$0xff]
        %v3016 = vld [vmem:[%s250 + $0x30] sm:$0xff]
        %v3017 = vld [vmem:[%s250 + $0x38] sm:$0xff]
        %v3018 = vld [vmem:[%s250 + $0x48] sm:$0xff]
        %v3019 = vld [vmem:[%s250 + $0x50] sm:$0xff]
        %v3020 = vld [vmem:[%s250 + $0x60] sm:$0xff]
        %v3021 = vld [vmem:[%s250 + $0x68] sm:$0xff]
        %v3022 = vld [vmem:[%s250 + $0x78] sm:$0xff]
        %v3023 = vld [vmem:[%s250 + $0x80] sm:$0xff]
        %v3024 = vld [vmem:[%s250 + $0x90] sm:$0xff]
        %v3025 = vld [vmem:[%s250 + $0x98] sm:$0xff]
        %v3026 = vld [vmem:[%s250 + $0xa8] sm:$0xff]
        %v3027 = vld [vmem:[%s250 + $0xb0] sm:$0xff]
        %v3028 = vld [vmem:[%s250 + $0xc0] sm:$0xff]
        %v3029 = vld [vmem:[%s250 + $0xc8] sm:$0xff]
        %v3030 = vld [vmem:[%s250 + $0xd8] sm:$0xff]
        %v3031 = vld [vmem:[%s250 + $0xe0] sm:$0xff]
        %v3032 = vld [vmem:[%s250 + $0xf0] sm:$0xff]
        %v3033 = vld [vmem:[%s250 + $0xf8] sm:$0xff]
        %v3034 = vld [vmem:[%s250 + $0x108] sm:$0xff]
        %v3035 = vld [vmem:[%s250 + $0x110] sm:$0xff]
        %v3036 = vld [vmem:[%s250 + $0x120] sm:$0xff]
        %v3037 = vld [vmem:[%s250 + $0x128] sm:$0xff]
        %v3038 = vld [vmem:[%s250 + $0x138] sm:$0xff]
        %v3039 = vld [vmem:[%s250 + $0x140] sm:$0xff]
        %v3040 = vld [vmem:[%s250 + $0x150] sm:$0xff]
        %v3041 = vld [vmem:[%s250 + $0x158] sm:$0xff]
        %v3042 = vld [vmem:[%s250 + $0x168] sm:$0xff]
        %v3043 = vld [vmem:[%s250 + $0x170] sm:$0xff]
        %3044 = vst [vmem:[#allocation3 + $0x18] sm:$0xff] %v3012
        %3045 = vst [vmem:[#allocation3 + $0x60] sm:$0xff] %v3013
        %3046 = vst [vmem:[#allocation3 + $0xa8] sm:$0xff] %v3014
        %3047 = vst [vmem:[#allocation3 + $0xf0] sm:$0xff] %v3015
        %3048 = vst [vmem:[#allocation3 + $0x138] sm:$0xff] %v3016
        %3049 = vst [vmem:[#allocation3 + $0x180] sm:$0xff] %v3017
        %3050 = vst [vmem:[#allocation3 + $0x1c8] sm:$0xff] %v3018
        %3051 = vst [vmem:[#allocation3 + $0x210] sm:$0xff] %v3019
        %3052 = vst [vmem:[#allocation3 + $0x258] sm:$0xff] %v3020
        %3053 = vst [vmem:[#allocation3 + $0x2a0] sm:$0xff] %v3021
        %3054 = vst [vmem:[#allocation3 + $0x2e8] sm:$0xff] %v3022
        %3055 = vst [vmem:[#allocation3 + $0x330] sm:$0xff] %v3023
        %3056 = vst [vmem:[#allocation3 + $0x378] sm:$0xff] %v3024
        %3057 = vst [vmem:[#allocation3 + $0x3c0] sm:$0xff] %v3025
        %3058 = vst [vmem:[#allocation3 + $0x408] sm:$0xff] %v3026
        %3059 = vst [vmem:[#allocation3 + $0x450] sm:$0xff] %v3027
        %3060 = vst [vmem:[#allocation3 + $0x498] sm:$0xff] %v3028
        %3061 = vst [vmem:[#allocation3 + $0x4e0] sm:$0xff] %v3029
        %3062 = vst [vmem:[#allocation3 + $0x528] sm:$0xff] %v3030
        %3063 = vst [vmem:[#allocation3 + $0x570] sm:$0xff] %v3031
        %3064 = vst [vmem:[#allocation3 + $0x5b8] sm:$0xff] %v3032
        %3065 = vst [vmem:[#allocation3 + $0x600] sm:$0xff] %v3033
        %3066 = vst [vmem:[#allocation3 + $0x648] sm:$0xff] %v3034
        %3067 = vst [vmem:[#allocation3 + $0x690] sm:$0xff] %v3035
        %3068 = vst [vmem:[#allocation3 + $0x6d8] sm:$0xff] %v3036
        %3069 = vst [vmem:[#allocation3 + $0x720] sm:$0xff] %v3037
        %3070 = vst [vmem:[#allocation3 + $0x768] sm:$0xff] %v3038
        %3071 = vst [vmem:[#allocation3 + $0x7b0] sm:$0xff] %v3039
        %3072 = vst [vmem:[#allocation3 + $0x7f8] sm:$0xff] %v3040
        %3073 = vst [vmem:[#allocation3 + $0x840] sm:$0xff] %v3041
        %3074 = vst [vmem:[#allocation3 + $0x888] sm:$0xff] %v3042
        %3075 = vst [vmem:[#allocation3 + $0x8d0] sm:$0xff] %v3043
        %v3076 = vld [vmem:[%s250 + $0x1] sm:$0xff]
        %v3077 = vld [vmem:[%s250 + $0x9] sm:$0xff]
        %v3078 = vld [vmem:[%s250 + $0x19] sm:$0xff]
        %v3079 = vld [vmem:[%s250 + $0x21] sm:$0xff]
        %v3080 = vld [vmem:[%s250 + $0x31] sm:$0xff]
        %v3081 = vld [vmem:[%s250 + $0x39] sm:$0xff]
        %v3082 = vld [vmem:[%s250 + $0x49] sm:$0xff]
        %v3083 = vld [vmem:[%s250 + $0x51] sm:$0xff]
        %v3084 = vld [vmem:[%s250 + $0x61] sm:$0xff]
        %v3085 = vld [vmem:[%s250 + $0x69] sm:$0xff]
        %v3086 = vld [vmem:[%s250 + $0x79] sm:$0xff]
        %v3087 = vld [vmem:[%s250 + $0x81] sm:$0xff]
        %v3088 = vld [vmem:[%s250 + $0x91] sm:$0xff]
        %v3089 = vld [vmem:[%s250 + $0x99] sm:$0xff]
        %v3090 = vld [vmem:[%s250 + $0xa9] sm:$0xff]
        %v3091 = vld [vmem:[%s250 + $0xb1] sm:$0xff]
        %v3092 = vld [vmem:[%s250 + $0xc1] sm:$0xff]
        %v3093 = vld [vmem:[%s250 + $0xc9] sm:$0xff]
        %v3094 = vld [vmem:[%s250 + $0xd9] sm:$0xff]
        %v3095 = vld [vmem:[%s250 + $0xe1] sm:$0xff]
        %v3096 = vld [vmem:[%s250 + $0xf1] sm:$0xff]
        %v3097 = vld [vmem:[%s250 + $0xf9] sm:$0xff]
        %v3098 = vld [vmem:[%s250 + $0x109] sm:$0xff]
        %v3099 = vld [vmem:[%s250 + $0x111] sm:$0xff]
        %v3100 = vld [vmem:[%s250 + $0x121] sm:$0xff]
        %v3101 = vld [vmem:[%s250 + $0x129] sm:$0xff]
        %v3102 = vld [vmem:[%s250 + $0x139] sm:$0xff]
        %v3103 = vld [vmem:[%s250 + $0x141] sm:$0xff]
        %v3104 = vld [vmem:[%s250 + $0x151] sm:$0xff]
        %v3105 = vld [vmem:[%s250 + $0x159] sm:$0xff]
        %v3106 = vld [vmem:[%s250 + $0x169] sm:$0xff]
        %v3107 = vld [vmem:[%s250 + $0x171] sm:$0xff]
        %3108 = vst [vmem:[#allocation3 + $0x20] sm:$0xff] %v3076
        %3109 = vst [vmem:[#allocation3 + $0x68] sm:$0xff] %v3077
        %3110 = vst [vmem:[#allocation3 + $0xb0] sm:$0xff] %v3078
        %3111 = vst [vmem:[#allocation3 + $0xf8] sm:$0xff] %v3079
        %3112 = vst [vmem:[#allocation3 + $0x140] sm:$0xff] %v3080
        %3113 = vst [vmem:[#allocation3 + $0x188] sm:$0xff] %v3081
        %3114 = vst [vmem:[#allocation3 + $0x1d0] sm:$0xff] %v3082
        %3115 = vst [vmem:[#allocation3 + $0x218] sm:$0xff] %v3083
        %3116 = vst [vmem:[#allocation3 + $0x260] sm:$0xff] %v3084
        %3117 = vst [vmem:[#allocation3 + $0x2a8] sm:$0xff] %v3085
        %3118 = vst [vmem:[#allocation3 + $0x2f0] sm:$0xff] %v3086
        %3119 = vst [vmem:[#allocation3 + $0x338] sm:$0xff] %v3087
        %3120 = vst [vmem:[#allocation3 + $0x380] sm:$0xff] %v3088
        %3121 = vst [vmem:[#allocation3 + $0x3c8] sm:$0xff] %v3089
        %3122 = vst [vmem:[#allocation3 + $0x410] sm:$0xff] %v3090
        %3123 = vst [vmem:[#allocation3 + $0x458] sm:$0xff] %v3091
        %3124 = vst [vmem:[#allocation3 + $0x4a0] sm:$0xff] %v3092
        %3125 = vst [vmem:[#allocation3 + $0x4e8] sm:$0xff] %v3093
        %3126 = vst [vmem:[#allocation3 + $0x530] sm:$0xff] %v3094
        %3127 = vst [vmem:[#allocation3 + $0x578] sm:$0xff] %v3095
        %3128 = vst [vmem:[#allocation3 + $0x5c0] sm:$0xff] %v3096
        %3129 = vst [vmem:[#allocation3 + $0x608] sm:$0xff] %v3097
        %3130 = vst [vmem:[#allocation3 + $0x650] sm:$0xff] %v3098
        %3131 = vst [vmem:[#allocation3 + $0x698] sm:$0xff] %v3099
        %3132 = vst [vmem:[#allocation3 + $0x6e0] sm:$0xff] %v3100
        %3133 = vst [vmem:[#allocation3 + $0x728] sm:$0xff] %v3101
        %3134 = vst [vmem:[#allocation3 + $0x770] sm:$0xff] %v3102
        %3135 = vst [vmem:[#allocation3 + $0x7b8] sm:$0xff] %v3103
        %3136 = vst [vmem:[#allocation3 + $0x800] sm:$0xff] %v3104
        %3137 = vst [vmem:[#allocation3 + $0x848] sm:$0xff] %v3105
        %3138 = vst [vmem:[#allocation3 + $0x890] sm:$0xff] %v3106
        %3139 = vst [vmem:[#allocation3 + $0x8d8] sm:$0xff] %v3107
        %v3140 = vld [vmem:[%s250 + $0x2] sm:$0xff]
        %v3141 = vld [vmem:[%s250 + $0xa] sm:$0xff]
        %v3142 = vld [vmem:[%s250 + $0x1a] sm:$0xff]
        %v3143 = vld [vmem:[%s250 + $0x22] sm:$0xff]
        %v3144 = vld [vmem:[%s250 + $0x32] sm:$0xff]
        %v3145 = vld [vmem:[%s250 + $0x3a] sm:$0xff]
        %v3146 = vld [vmem:[%s250 + $0x4a] sm:$0xff]
        %v3147 = vld [vmem:[%s250 + $0x52] sm:$0xff]
        %v3148 = vld [vmem:[%s250 + $0x62] sm:$0xff]
        %v3149 = vld [vmem:[%s250 + $0x6a] sm:$0xff]
        %v3150 = vld [vmem:[%s250 + $0x7a] sm:$0xff]
        %v3151 = vld [vmem:[%s250 + $0x82] sm:$0xff]
        %v3152 = vld [vmem:[%s250 + $0x92] sm:$0xff]
        %v3153 = vld [vmem:[%s250 + $0x9a] sm:$0xff]
        %v3154 = vld [vmem:[%s250 + $0xaa] sm:$0xff]
        %v3155 = vld [vmem:[%s250 + $0xb2] sm:$0xff]
        %v3156 = vld [vmem:[%s250 + $0xc2] sm:$0xff]
        %v3157 = vld [vmem:[%s250 + $0xca] sm:$0xff]
        %v3158 = vld [vmem:[%s250 + $0xda] sm:$0xff]
        %v3159 = vld [vmem:[%s250 + $0xe2] sm:$0xff]
        %v3160 = vld [vmem:[%s250 + $0xf2] sm:$0xff]
        %v3161 = vld [vmem:[%s250 + $0xfa] sm:$0xff]
        %v3162 = vld [vmem:[%s250 + $0x10a] sm:$0xff]
        %v3163 = vld [vmem:[%s250 + $0x112] sm:$0xff]
        %v3164 = vld [vmem:[%s250 + $0x122] sm:$0xff]
        %v3165 = vld [vmem:[%s250 + $0x12a] sm:$0xff]
        %v3166 = vld [vmem:[%s250 + $0x13a] sm:$0xff]
        %v3167 = vld [vmem:[%s250 + $0x142] sm:$0xff]
        %v3168 = vld [vmem:[%s250 + $0x152] sm:$0xff]
        %v3169 = vld [vmem:[%s250 + $0x15a] sm:$0xff]
        %v3170 = vld [vmem:[%s250 + $0x16a] sm:$0xff]
        %v3171 = vld [vmem:[%s250 + $0x172] sm:$0xff]
        %3172 = vst [vmem:[#allocation3 + $0x28] sm:$0xff] %v3140
        %3173 = vst [vmem:[#allocation3 + $0x70] sm:$0xff] %v3141
        %3174 = vst [vmem:[#allocation3 + $0xb8] sm:$0xff] %v3142
        %3175 = vst [vmem:[#allocation3 + $0x100] sm:$0xff] %v3143
        %3176 = vst [vmem:[#allocation3 + $0x148] sm:$0xff] %v3144
        %3177 = vst [vmem:[#allocation3 + $0x190] sm:$0xff] %v3145
        %3178 = vst [vmem:[#allocation3 + $0x1d8] sm:$0xff] %v3146
        %3179 = vst [vmem:[#allocation3 + $0x220] sm:$0xff] %v3147
        %3180 = vst [vmem:[#allocation3 + $0x268] sm:$0xff] %v3148
        %3181 = vst [vmem:[#allocation3 + $0x2b0] sm:$0xff] %v3149
        %3182 = vst [vmem:[#allocation3 + $0x2f8] sm:$0xff] %v3150
        %3183 = vst [vmem:[#allocation3 + $0x340] sm:$0xff] %v3151
        %3184 = vst [vmem:[#allocation3 + $0x388] sm:$0xff] %v3152
        %3185 = vst [vmem:[#allocation3 + $0x3d0] sm:$0xff] %v3153
        %3186 = vst [vmem:[#allocation3 + $0x418] sm:$0xff] %v3154
        %3187 = vst [vmem:[#allocation3 + $0x460] sm:$0xff] %v3155
        %3188 = vst [vmem:[#allocation3 + $0x4a8] sm:$0xff] %v3156
        %3189 = vst [vmem:[#allocation3 + $0x4f0] sm:$0xff] %v3157
        %3190 = vst [vmem:[#allocation3 + $0x538] sm:$0xff] %v3158
        %3191 = vst [vmem:[#allocation3 + $0x580] sm:$0xff] %v3159
        %3192 = vst [vmem:[#allocation3 + $0x5c8] sm:$0xff] %v3160
        %3193 = vst [vmem:[#allocation3 + $0x610] sm:$0xff] %v3161
        %3194 = vst [vmem:[#allocation3 + $0x658] sm:$0xff] %v3162
        %3195 = vst [vmem:[#allocation3 + $0x6a0] sm:$0xff] %v3163
        %3196 = vst [vmem:[#allocation3 + $0x6e8] sm:$0xff] %v3164
        %3197 = vst [vmem:[#allocation3 + $0x730] sm:$0xff] %v3165
        %3198 = vst [vmem:[#allocation3 + $0x778] sm:$0xff] %v3166
        %3199 = vst [vmem:[#allocation3 + $0x7c0] sm:$0xff] %v3167
        %3200 = vst [vmem:[#allocation3 + $0x808] sm:$0xff] %v3168
        %3201 = vst [vmem:[#allocation3 + $0x850] sm:$0xff] %v3169
        %3202 = vst [vmem:[#allocation3 + $0x898] sm:$0xff] %v3170
        %3203 = vst [vmem:[#allocation3 + $0x8e0] sm:$0xff] %v3171
        %v3204 = vld [vmem:[%s283] sm:$0xff]
        %v3205 = vld [vmem:[%s283 + $0x8] sm:$0xff]
        %v3206 = vld [vmem:[%s283 + $0x18] sm:$0xff]
        %v3207 = vld [vmem:[%s283 + $0x20] sm:$0xff]
        %v3208 = vld [vmem:[%s283 + $0x30] sm:$0xff]
        %v3209 = vld [vmem:[%s283 + $0x38] sm:$0xff]
        %v3210 = vld [vmem:[%s283 + $0x48] sm:$0xff]
        %v3211 = vld [vmem:[%s283 + $0x50] sm:$0xff]
        %v3212 = vld [vmem:[%s283 + $0x60] sm:$0xff]
        %v3213 = vld [vmem:[%s283 + $0x68] sm:$0xff]
        %v3214 = vld [vmem:[%s283 + $0x78] sm:$0xff]
        %v3215 = vld [vmem:[%s283 + $0x80] sm:$0xff]
        %v3216 = vld [vmem:[%s283 + $0x90] sm:$0xff]
        %v3217 = vld [vmem:[%s283 + $0x98] sm:$0xff]
        %v3218 = vld [vmem:[%s283 + $0xa8] sm:$0xff]
        %v3219 = vld [vmem:[%s283 + $0xb0] sm:$0xff]
        %v3220 = vld [vmem:[%s283 + $0xc0] sm:$0xff]
        %v3221 = vld [vmem:[%s283 + $0xc8] sm:$0xff]
        %v3222 = vld [vmem:[%s283 + $0xd8] sm:$0xff]
        %v3223 = vld [vmem:[%s283 + $0xe0] sm:$0xff]
        %v3224 = vld [vmem:[%s283 + $0xf0] sm:$0xff]
        %v3225 = vld [vmem:[%s283 + $0xf8] sm:$0xff]
        %v3226 = vld [vmem:[%s283 + $0x108] sm:$0xff]
        %v3227 = vld [vmem:[%s283 + $0x110] sm:$0xff]
        %v3228 = vld [vmem:[%s283 + $0x120] sm:$0xff]
        %v3229 = vld [vmem:[%s283 + $0x128] sm:$0xff]
        %v3230 = vld [vmem:[%s283 + $0x138] sm:$0xff]
        %v3231 = vld [vmem:[%s283 + $0x140] sm:$0xff]
        %v3232 = vld [vmem:[%s283 + $0x150] sm:$0xff]
        %v3233 = vld [vmem:[%s283 + $0x158] sm:$0xff]
        %v3234 = vld [vmem:[%s283 + $0x168] sm:$0xff]
        %v3235 = vld [vmem:[%s283 + $0x170] sm:$0xff]
        %3236 = vst [vmem:[#allocation3 + $0x30] sm:$0xff] %v3204
        %3237 = vst [vmem:[#allocation3 + $0x78] sm:$0xff] %v3205
        %3238 = vst [vmem:[#allocation3 + $0xc0] sm:$0xff] %v3206
        %3239 = vst [vmem:[#allocation3 + $0x108] sm:$0xff] %v3207
        %3240 = vst [vmem:[#allocation3 + $0x150] sm:$0xff] %v3208
        %3241 = vst [vmem:[#allocation3 + $0x198] sm:$0xff] %v3209
        %3242 = vst [vmem:[#allocation3 + $0x1e0] sm:$0xff] %v3210
        %3243 = vst [vmem:[#allocation3 + $0x228] sm:$0xff] %v3211
        %3244 = vst [vmem:[#allocation3 + $0x270] sm:$0xff] %v3212
        %3245 = vst [vmem:[#allocation3 + $0x2b8] sm:$0xff] %v3213
        %3246 = vst [vmem:[#allocation3 + $0x300] sm:$0xff] %v3214
        %3247 = vst [vmem:[#allocation3 + $0x348] sm:$0xff] %v3215
        %3248 = vst [vmem:[#allocation3 + $0x390] sm:$0xff] %v3216
        %3249 = vst [vmem:[#allocation3 + $0x3d8] sm:$0xff] %v3217
        %3250 = vst [vmem:[#allocation3 + $0x420] sm:$0xff] %v3218
        %3251 = vst [vmem:[#allocation3 + $0x468] sm:$0xff] %v3219
        %3252 = vst [vmem:[#allocation3 + $0x4b0] sm:$0xff] %v3220
        %3253 = vst [vmem:[#allocation3 + $0x4f8] sm:$0xff] %v3221
        %3254 = vst [vmem:[#allocation3 + $0x540] sm:$0xff] %v3222
        %3255 = vst [vmem:[#allocation3 + $0x588] sm:$0xff] %v3223
        %3256 = vst [vmem:[#allocation3 + $0x5d0] sm:$0xff] %v3224
        %3257 = vst [vmem:[#allocation3 + $0x618] sm:$0xff] %v3225
        %3258 = vst [vmem:[#allocation3 + $0x660] sm:$0xff] %v3226
        %3259 = vst [vmem:[#allocation3 + $0x6a8] sm:$0xff] %v3227
        %3260 = vst [vmem:[#allocation3 + $0x6f0] sm:$0xff] %v3228
        %3261 = vst [vmem:[#allocation3 + $0x738] sm:$0xff] %v3229
        %3262 = vst [vmem:[#allocation3 + $0x780] sm:$0xff] %v3230
        %3263 = vst [vmem:[#allocation3 + $0x7c8] sm:$0xff] %v3231
        %3264 = vst [vmem:[#allocation3 + $0x810] sm:$0xff] %v3232
        %3265 = vst [vmem:[#allocation3 + $0x858] sm:$0xff] %v3233
        %3266 = vst [vmem:[#allocation3 + $0x8a0] sm:$0xff] %v3234
        %3267 = vst [vmem:[#allocation3 + $0x8e8] sm:$0xff] %v3235
        %v3268 = vld [vmem:[%s283 + $0x1] sm:$0xff]
        %v3269 = vld [vmem:[%s283 + $0x9] sm:$0xff]
        %v3270 = vld [vmem:[%s283 + $0x19] sm:$0xff]
        %v3271 = vld [vmem:[%s283 + $0x21] sm:$0xff]
        %v3272 = vld [vmem:[%s283 + $0x31] sm:$0xff]
        %v3273 = vld [vmem:[%s283 + $0x39] sm:$0xff]
        %v3274 = vld [vmem:[%s283 + $0x49] sm:$0xff]
        %v3275 = vld [vmem:[%s283 + $0x51] sm:$0xff]
        %v3276 = vld [vmem:[%s283 + $0x61] sm:$0xff]
        %v3277 = vld [vmem:[%s283 + $0x69] sm:$0xff]
        %v3278 = vld [vmem:[%s283 + $0x79] sm:$0xff]
        %v3279 = vld [vmem:[%s283 + $0x81] sm:$0xff]
        %v3280 = vld [vmem:[%s283 + $0x91] sm:$0xff]
        %v3281 = vld [vmem:[%s283 + $0x99] sm:$0xff]
        %v3282 = vld [vmem:[%s283 + $0xa9] sm:$0xff]
        %v3283 = vld [vmem:[%s283 + $0xb1] sm:$0xff]
        %v3284 = vld [vmem:[%s283 + $0xc1] sm:$0xff]
        %v3285 = vld [vmem:[%s283 + $0xc9] sm:$0xff]
        %v3286 = vld [vmem:[%s283 + $0xd9] sm:$0xff]
        %v3287 = vld [vmem:[%s283 + $0xe1] sm:$0xff]
        %v3288 = vld [vmem:[%s283 + $0xf1] sm:$0xff]
        %v3289 = vld [vmem:[%s283 + $0xf9] sm:$0xff]
        %v3290 = vld [vmem:[%s283 + $0x109] sm:$0xff]
        %v3291 = vld [vmem:[%s283 + $0x111] sm:$0xff]
        %v3292 = vld [vmem:[%s283 + $0x121] sm:$0xff]
        %v3293 = vld [vmem:[%s283 + $0x129] sm:$0xff]
        %v3294 = vld [vmem:[%s283 + $0x139] sm:$0xff]
        %v3295 = vld [vmem:[%s283 + $0x141] sm:$0xff]
        %v3296 = vld [vmem:[%s283 + $0x151] sm:$0xff]
        %v3297 = vld [vmem:[%s283 + $0x159] sm:$0xff]
        %v3298 = vld [vmem:[%s283 + $0x169] sm:$0xff]
        %v3299 = vld [vmem:[%s283 + $0x171] sm:$0xff]
        %3300 = vst [vmem:[#allocation3 + $0x38] sm:$0xff] %v3268
        %3301 = vst [vmem:[#allocation3 + $0x80] sm:$0xff] %v3269
        %3302 = vst [vmem:[#allocation3 + $0xc8] sm:$0xff] %v3270
        %3303 = vst [vmem:[#allocation3 + $0x110] sm:$0xff] %v3271
        %3304 = vst [vmem:[#allocation3 + $0x158] sm:$0xff] %v3272
        %3305 = vst [vmem:[#allocation3 + $0x1a0] sm:$0xff] %v3273
        %3306 = vst [vmem:[#allocation3 + $0x1e8] sm:$0xff] %v3274
        %3307 = vst [vmem:[#allocation3 + $0x230] sm:$0xff] %v3275
        %3308 = vst [vmem:[#allocation3 + $0x278] sm:$0xff] %v3276
        %3309 = vst [vmem:[#allocation3 + $0x2c0] sm:$0xff] %v3277
        %3310 = vst [vmem:[#allocation3 + $0x308] sm:$0xff] %v3278
        %3311 = vst [vmem:[#allocation3 + $0x350] sm:$0xff] %v3279
        %3312 = vst [vmem:[#allocation3 + $0x398] sm:$0xff] %v3280
        %3313 = vst [vmem:[#allocation3 + $0x3e0] sm:$0xff] %v3281
        %3314 = vst [vmem:[#allocation3 + $0x428] sm:$0xff] %v3282
        %3315 = vst [vmem:[#allocation3 + $0x470] sm:$0xff] %v3283
        %3316 = vst [vmem:[#allocation3 + $0x4b8] sm:$0xff] %v3284
        %3317 = vst [vmem:[#allocation3 + $0x500] sm:$0xff] %v3285
        %3318 = vst [vmem:[#allocation3 + $0x548] sm:$0xff] %v3286
        %3319 = vst [vmem:[#allocation3 + $0x590] sm:$0xff] %v3287
        %3320 = vst [vmem:[#allocation3 + $0x5d8] sm:$0xff] %v3288
        %3321 = vst [vmem:[#allocation3 + $0x620] sm:$0xff] %v3289
        %3322 = vst [vmem:[#allocation3 + $0x668] sm:$0xff] %v3290
        %3323 = vst [vmem:[#allocation3 + $0x6b0] sm:$0xff] %v3291
        %3324 = vst [vmem:[#allocation3 + $0x6f8] sm:$0xff] %v3292
        %3325 = vst [vmem:[#allocation3 + $0x740] sm:$0xff] %v3293
        %3326 = vst [vmem:[#allocation3 + $0x788] sm:$0xff] %v3294
        %3327 = vst [vmem:[#allocation3 + $0x7d0] sm:$0xff] %v3295
        %3328 = vst [vmem:[#allocation3 + $0x818] sm:$0xff] %v3296
        %3329 = vst [vmem:[#allocation3 + $0x860] sm:$0xff] %v3297
        %3330 = vst [vmem:[#allocation3 + $0x8a8] sm:$0xff] %v3298
        %3331 = vst [vmem:[#allocation3 + $0x8f0] sm:$0xff] %v3299
        %v3332 = vld [vmem:[%s283 + $0x2] sm:$0xff]
        %v3333 = vld [vmem:[%s283 + $0xa] sm:$0xff]
        %v3334 = vld [vmem:[%s283 + $0x1a] sm:$0xff]
        %v3335 = vld [vmem:[%s283 + $0x22] sm:$0xff]
        %v3336 = vld [vmem:[%s283 + $0x32] sm:$0xff]
        %v3337 = vld [vmem:[%s283 + $0x3a] sm:$0xff]
        %v3338 = vld [vmem:[%s283 + $0x4a] sm:$0xff]
        %v3339 = vld [vmem:[%s283 + $0x52] sm:$0xff]
        %v3340 = vld [vmem:[%s283 + $0x62] sm:$0xff]
        %v3341 = vld [vmem:[%s283 + $0x6a] sm:$0xff]
        %v3342 = vld [vmem:[%s283 + $0x7a] sm:$0xff]
        %v3343 = vld [vmem:[%s283 + $0x82] sm:$0xff]
        %v3344 = vld [vmem:[%s283 + $0x92] sm:$0xff]
        %v3345 = vld [vmem:[%s283 + $0x9a] sm:$0xff]
        %v3346 = vld [vmem:[%s283 + $0xaa] sm:$0xff]
        %v3347 = vld [vmem:[%s283 + $0xb2] sm:$0xff]
        %v3348 = vld [vmem:[%s283 + $0xc2] sm:$0xff]
        %v3349 = vld [vmem:[%s283 + $0xca] sm:$0xff]
        %v3350 = vld [vmem:[%s283 + $0xda] sm:$0xff]
        %v3351 = vld [vmem:[%s283 + $0xe2] sm:$0xff]
        %v3352 = vld [vmem:[%s283 + $0xf2] sm:$0xff]
        %v3353 = vld [vmem:[%s283 + $0xfa] sm:$0xff]
        %v3354 = vld [vmem:[%s283 + $0x10a] sm:$0xff]
        %v3355 = vld [vmem:[%s283 + $0x112] sm:$0xff]
        %v3356 = vld [vmem:[%s283 + $0x122] sm:$0xff]
        %v3357 = vld [vmem:[%s283 + $0x12a] sm:$0xff]
        %v3358 = vld [vmem:[%s283 + $0x13a] sm:$0xff]
        %v3359 = vld [vmem:[%s283 + $0x142] sm:$0xff]
        %v3360 = vld [vmem:[%s283 + $0x152] sm:$0xff]
        %v3361 = vld [vmem:[%s283 + $0x15a] sm:$0xff]
        %v3362 = vld [vmem:[%s283 + $0x16a] sm:$0xff]
        %v3363 = vld [vmem:[%s283 + $0x172] sm:$0xff]
        %3364 = vst [vmem:[#allocation3 + $0x40] sm:$0xff] %v3332
        %3365 = vst [vmem:[#allocation3 + $0x88] sm:$0xff] %v3333
        %3366 = vst [vmem:[#allocation3 + $0xd0] sm:$0xff] %v3334
        %3367 = vst [vmem:[#allocation3 + $0x118] sm:$0xff] %v3335
        %3368 = vst [vmem:[#allocation3 + $0x160] sm:$0xff] %v3336
        %3369 = vst [vmem:[#allocation3 + $0x1a8] sm:$0xff] %v3337
        %3370 = vst [vmem:[#allocation3 + $0x1f0] sm:$0xff] %v3338
        %3371 = vst [vmem:[#allocation3 + $0x238] sm:$0xff] %v3339
        %3372 = vst [vmem:[#allocation3 + $0x280] sm:$0xff] %v3340
        %3373 = vst [vmem:[#allocation3 + $0x2c8] sm:$0xff] %v3341
        %3374 = vst [vmem:[#allocation3 + $0x310] sm:$0xff] %v3342
        %3375 = vst [vmem:[#allocation3 + $0x358] sm:$0xff] %v3343
        %3376 = vst [vmem:[#allocation3 + $0x3a0] sm:$0xff] %v3344
        %3377 = vst [vmem:[#allocation3 + $0x3e8] sm:$0xff] %v3345
        %3378 = vst [vmem:[#allocation3 + $0x430] sm:$0xff] %v3346
        %3379 = vst [vmem:[#allocation3 + $0x478] sm:$0xff] %v3347
        %3380 = vst [vmem:[#allocation3 + $0x4c0] sm:$0xff] %v3348
        %3381 = vst [vmem:[#allocation3 + $0x508] sm:$0xff] %v3349
        %3382 = vst [vmem:[#allocation3 + $0x550] sm:$0xff] %v3350
        %3383 = vst [vmem:[#allocation3 + $0x598] sm:$0xff] %v3351
        %3384 = vst [vmem:[#allocation3 + $0x5e0] sm:$0xff] %v3352
        %3385 = vst [vmem:[#allocation3 + $0x628] sm:$0xff] %v3353
        %3386 = vst [vmem:[#allocation3 + $0x670] sm:$0xff] %v3354
        %3387 = vst [vmem:[#allocation3 + $0x6b8] sm:$0xff] %v3355
        %3388 = vst [vmem:[#allocation3 + $0x700] sm:$0xff] %v3356
        %3389 = vst [vmem:[#allocation3 + $0x748] sm:$0xff] %v3357
        %3390 = vst [vmem:[#allocation3 + $0x790] sm:$0xff] %v3358
        %3391 = vst [vmem:[#allocation3 + $0x7d8] sm:$0xff] %v3359
        %3392 = vst [vmem:[#allocation3 + $0x820] sm:$0xff] %v3360
        %3393 = vst [vmem:[#allocation3 + $0x868] sm:$0xff] %v3361
        %3394 = vst [vmem:[#allocation3 + $0x8b0] sm:$0xff] %v3362
        %3395 = vst [vmem:[#allocation3 + $0x8f8] sm:$0xff] %v3363
        %v3396 = vld [vmem:[#allocation3] sm:$0xff]
        %v3397 = vld [vmem:[#allocation3 + $0x8] sm:$0xff]
        %v3398 = vld [vmem:[#allocation3 + $0x10] sm:$0xff]
        %v3399 = vld [vmem:[#allocation3 + $0x18] sm:$0xff]
        %v3400 = vld [vmem:[#allocation3 + $0x20] sm:$0xff]
        %v3401 = vld [vmem:[#allocation3 + $0x28] sm:$0xff]
        %v3402 = vld [vmem:[#allocation3 + $0x30] sm:$0xff]
        %v3403 = vld [vmem:[#allocation3 + $0x38] sm:$0xff]
        %v3404 = vld [vmem:[#allocation3 + $0x40] sm:$0xff]
        %v3405 = vld [vmem:[#allocation3 + $0x48] sm:$0xff]
        %v3406 = vld [vmem:[#allocation3 + $0x50] sm:$0xff]
        %v3407 = vld [vmem:[#allocation3 + $0x58] sm:$0xff]
        %v3408 = vld [vmem:[#allocation3 + $0x60] sm:$0xff]
        %v3409 = vld [vmem:[#allocation3 + $0x68] sm:$0xff]
        %v3410 = vld [vmem:[#allocation3 + $0x70] sm:$0xff]
        %v3411 = vld [vmem:[#allocation3 + $0x78] sm:$0xff]
        %v3412 = vld [vmem:[#allocation3 + $0x80] sm:$0xff]
        %v3413 = vld [vmem:[#allocation3 + $0x88] sm:$0xff]
        %v3414 = vld [vmem:[#allocation3 + $0x90] sm:$0xff]
        %v3415 = vld [vmem:[#allocation3 + $0x98] sm:$0xff]
        %v3416 = vld [vmem:[#allocation3 + $0xa0] sm:$0xff]
        %v3417 = vld [vmem:[#allocation3 + $0xa8] sm:$0xff]
        %v3418 = vld [vmem:[#allocation3 + $0xb0] sm:$0xff]
        %v3419 = vld [vmem:[#allocation3 + $0xb8] sm:$0xff]
        %v3420 = vld [vmem:[#allocation3 + $0xc0] sm:$0xff]
        %v3421 = vld [vmem:[#allocation3 + $0xc8] sm:$0xff]
        %v3422 = vld [vmem:[#allocation3 + $0xd0] sm:$0xff]
        %v3423 = vld [vmem:[#allocation3 + $0xd8] sm:$0xff]
        %v3424 = vld [vmem:[#allocation3 + $0xe0] sm:$0xff]
        %v3425 = vld [vmem:[#allocation3 + $0xe8] sm:$0xff]
        %v3426 = vld [vmem:[#allocation3 + $0xf0] sm:$0xff]
        %v3427 = vld [vmem:[#allocation3 + $0xf8] sm:$0xff]
        %v3428 = vld [vmem:[#allocation3 + $0x100] sm:$0xff]
        %v3429 = vld [vmem:[#allocation3 + $0x108] sm:$0xff]
        %v3430 = vld [vmem:[#allocation3 + $0x110] sm:$0xff]
        %v3431 = vld [vmem:[#allocation3 + $0x118] sm:$0xff]
        %v3432 = vld [vmem:[#allocation3 + $0x120] sm:$0xff]
        %v3433 = vld [vmem:[#allocation3 + $0x128] sm:$0xff]
        %v3434 = vld [vmem:[#allocation3 + $0x130] sm:$0xff]
        %v3435 = vld [vmem:[#allocation3 + $0x138] sm:$0xff]
        %v3436 = vld [vmem:[#allocation3 + $0x140] sm:$0xff]
        %v3437 = vld [vmem:[#allocation3 + $0x148] sm:$0xff]
        %v3438 = vld [vmem:[#allocation3 + $0x150] sm:$0xff]
        %v3439 = vld [vmem:[#allocation3 + $0x158] sm:$0xff]
        %v3440 = vld [vmem:[#allocation3 + $0x160] sm:$0xff]
        %v3441 = vld [vmem:[#allocation3 + $0x168] sm:$0xff]
        %v3442 = vld [vmem:[#allocation3 + $0x170] sm:$0xff]
        %v3443 = vld [vmem:[#allocation3 + $0x178] sm:$0xff]
        %v3444 = vld [vmem:[#allocation3 + $0x180] sm:$0xff]
        %v3445 = vld [vmem:[#allocation3 + $0x188] sm:$0xff]
        %v3446 = vld [vmem:[#allocation3 + $0x190] sm:$0xff]
        %v3447 = vld [vmem:[#allocation3 + $0x198] sm:$0xff]
        %v3448 = vld [vmem:[#allocation3 + $0x1a0] sm:$0xff]
        %v3449 = vld [vmem:[#allocation3 + $0x1a8] sm:$0xff]
        %v3450 = vld [vmem:[#allocation3 + $0x1b0] sm:$0xff]
        %v3451 = vld [vmem:[#allocation3 + $0x1b8] sm:$0xff]
        %v3452 = vld [vmem:[#allocation3 + $0x1c0] sm:$0xff]
        %v3453 = vld [vmem:[#allocation3 + $0x1c8] sm:$0xff]
        %v3454 = vld [vmem:[#allocation3 + $0x1d0] sm:$0xff]
        %v3455 = vld [vmem:[#allocation3 + $0x1d8] sm:$0xff]
        %v3456 = vld [vmem:[#allocation3 + $0x1e0] sm:$0xff]
        %v3457 = vld [vmem:[#allocation3 + $0x1e8] sm:$0xff]
        %v3458 = vld [vmem:[#allocation3 + $0x1f0] sm:$0xff]
        %v3459 = vld [vmem:[#allocation3 + $0x1f8] sm:$0xff]
        %v3460 = vld [vmem:[#allocation3 + $0x200] sm:$0xff]
        %v3461 = vld [vmem:[#allocation3 + $0x208] sm:$0xff]
        %v3462 = vld [vmem:[#allocation3 + $0x210] sm:$0xff]
        %v3463 = vld [vmem:[#allocation3 + $0x218] sm:$0xff]
        %v3464 = vld [vmem:[#allocation3 + $0x220] sm:$0xff]
        %v3465 = vld [vmem:[#allocation3 + $0x228] sm:$0xff]
        %v3466 = vld [vmem:[#allocation3 + $0x230] sm:$0xff]
        %v3467 = vld [vmem:[#allocation3 + $0x238] sm:$0xff]
        %v3468 = vld [vmem:[#allocation3 + $0x240] sm:$0xff]
        %v3469 = vld [vmem:[#allocation3 + $0x248] sm:$0xff]
        %v3470 = vld [vmem:[#allocation3 + $0x250] sm:$0xff]
        %v3471 = vld [vmem:[#allocation3 + $0x258] sm:$0xff]
        %v3472 = vld [vmem:[#allocation3 + $0x260] sm:$0xff]
        %v3473 = vld [vmem:[#allocation3 + $0x268] sm:$0xff]
        %v3474 = vld [vmem:[#allocation3 + $0x270] sm:$0xff]
        %v3475 = vld [vmem:[#allocation3 + $0x278] sm:$0xff]
        %v3476 = vld [vmem:[#allocation3 + $0x280] sm:$0xff]
        %v3477 = vld [vmem:[#allocation3 + $0x288] sm:$0xff]
        %v3478 = vld [vmem:[#allocation3 + $0x290] sm:$0xff]
        %v3479 = vld [vmem:[#allocation3 + $0x298] sm:$0xff]
        %v3480 = vld [vmem:[#allocation3 + $0x2a0] sm:$0xff]
        %v3481 = vld [vmem:[#allocation3 + $0x2a8] sm:$0xff]
        %v3482 = vld [vmem:[#allocation3 + $0x2b0] sm:$0xff]
        %v3483 = vld [vmem:[#allocation3 + $0x2b8] sm:$0xff]
        %v3484 = vld [vmem:[#allocation3 + $0x2c0] sm:$0xff]
        %v3485 = vld [vmem:[#allocation3 + $0x2c8] sm:$0xff]
        %v3486 = vld [vmem:[#allocation3 + $0x2d0] sm:$0xff]
        %v3487 = vld [vmem:[#allocation3 + $0x2d8] sm:$0xff]
        %v3488 = vld [vmem:[#allocation3 + $0x2e0] sm:$0xff]
        %v3489 = vld [vmem:[#allocation3 + $0x2e8] sm:$0xff]
        %v3490 = vld [vmem:[#allocation3 + $0x2f0] sm:$0xff]
        %v3491 = vld [vmem:[#allocation3 + $0x2f8] sm:$0xff]
        %v3492 = vld [vmem:[#allocation3 + $0x300] sm:$0xff]
        %v3493 = vld [vmem:[#allocation3 + $0x308] sm:$0xff]
        %v3494 = vld [vmem:[#allocation3 + $0x310] sm:$0xff]
        %v3495 = vld [vmem:[#allocation3 + $0x318] sm:$0xff]
        %v3496 = vld [vmem:[#allocation3 + $0x320] sm:$0xff]
        %v3497 = vld [vmem:[#allocation3 + $0x328] sm:$0xff]
        %v3498 = vld [vmem:[#allocation3 + $0x330] sm:$0xff]
        %v3499 = vld [vmem:[#allocation3 + $0x338] sm:$0xff]
        %v3500 = vld [vmem:[#allocation3 + $0x340] sm:$0xff]
        %v3501 = vld [vmem:[#allocation3 + $0x348] sm:$0xff]
        %v3502 = vld [vmem:[#allocation3 + $0x350] sm:$0xff]
        %v3503 = vld [vmem:[#allocation3 + $0x358] sm:$0xff]
        %v3504 = vld [vmem:[#allocation3 + $0x360] sm:$0xff]
        %v3505 = vld [vmem:[#allocation3 + $0x368] sm:$0xff]
        %v3506 = vld [vmem:[#allocation3 + $0x370] sm:$0xff]
        %v3507 = vld [vmem:[#allocation3 + $0x378] sm:$0xff]
        %v3508 = vld [vmem:[#allocation3 + $0x380] sm:$0xff]
        %v3509 = vld [vmem:[#allocation3 + $0x388] sm:$0xff]
        %v3510 = vld [vmem:[#allocation3 + $0x390] sm:$0xff]
        %v3511 = vld [vmem:[#allocation3 + $0x398] sm:$0xff]
        %v3512 = vld [vmem:[#allocation3 + $0x3a0] sm:$0xff]
        %v3513 = vld [vmem:[#allocation3 + $0x3a8] sm:$0xff]
        %v3514 = vld [vmem:[#allocation3 + $0x3b0] sm:$0xff]
        %v3515 = vld [vmem:[#allocation3 + $0x3b8] sm:$0xff]
        %v3516 = vld [vmem:[#allocation3 + $0x3c0] sm:$0xff]
        %v3517 = vld [vmem:[#allocation3 + $0x3c8] sm:$0xff]
        %v3518 = vld [vmem:[#allocation3 + $0x3d0] sm:$0xff]
        %v3519 = vld [vmem:[#allocation3 + $0x3d8] sm:$0xff]
        %v3520 = vld [vmem:[#allocation3 + $0x3e0] sm:$0xff]
        %v3521 = vld [vmem:[#allocation3 + $0x3e8] sm:$0xff]
        %v3522 = vld [vmem:[#allocation3 + $0x3f0] sm:$0xff]
        %v3523 = vld [vmem:[#allocation3 + $0x3f8] sm:$0xff]
        %v3524 = vld [vmem:[#allocation3 + $0x400] sm:$0xff]
        %v3525 = vld [vmem:[#allocation3 + $0x408] sm:$0xff]
        %v3526 = vld [vmem:[#allocation3 + $0x410] sm:$0xff]
        %v3527 = vld [vmem:[#allocation3 + $0x418] sm:$0xff]
        %v3528 = vld [vmem:[#allocation3 + $0x420] sm:$0xff]
        %v3529 = vld [vmem:[#allocation3 + $0x428] sm:$0xff]
        %v3530 = vld [vmem:[#allocation3 + $0x430] sm:$0xff]
        %v3531 = vld [vmem:[#allocation3 + $0x438] sm:$0xff]
        %v3532 = vld [vmem:[#allocation3 + $0x440] sm:$0xff]
        %v3533 = vld [vmem:[#allocation3 + $0x448] sm:$0xff]
        %v3534 = vld [vmem:[#allocation3 + $0x450] sm:$0xff]
        %v3535 = vld [vmem:[#allocation3 + $0x458] sm:$0xff]
        %v3536 = vld [vmem:[#allocation3 + $0x460] sm:$0xff]
        %v3537 = vld [vmem:[#allocation3 + $0x468] sm:$0xff]
        %v3538 = vld [vmem:[#allocation3 + $0x470] sm:$0xff]
        %v3539 = vld [vmem:[#allocation3 + $0x478] sm:$0xff]
        %v3540 = vld [vmem:[#allocation3 + $0x480] sm:$0xff]
        %v3541 = vld [vmem:[#allocation3 + $0x488] sm:$0xff]
        %v3542 = vld [vmem:[#allocation3 + $0x490] sm:$0xff]
        %v3543 = vld [vmem:[#allocation3 + $0x498] sm:$0xff]
        %v3544 = vld [vmem:[#allocation3 + $0x4a0] sm:$0xff]
        %v3545 = vld [vmem:[#allocation3 + $0x4a8] sm:$0xff]
        %v3546 = vld [vmem:[#allocation3 + $0x4b0] sm:$0xff]
        %v3547 = vld [vmem:[#allocation3 + $0x4b8] sm:$0xff]
        %v3548 = vld [vmem:[#allocation3 + $0x4c0] sm:$0xff]
        %v3549 = vld [vmem:[#allocation3 + $0x4c8] sm:$0xff]
        %v3550 = vld [vmem:[#allocation3 + $0x4d0] sm:$0xff]
        %v3551 = vld [vmem:[#allocation3 + $0x4d8] sm:$0xff]
        %v3552 = vld [vmem:[#allocation3 + $0x4e0] sm:$0xff]
        %v3553 = vld [vmem:[#allocation3 + $0x4e8] sm:$0xff]
        %v3554 = vld [vmem:[#allocation3 + $0x4f0] sm:$0xff]
        %v3555 = vld [vmem:[#allocation3 + $0x4f8] sm:$0xff]
        %v3556 = vld [vmem:[#allocation3 + $0x500] sm:$0xff]
        %v3557 = vld [vmem:[#allocation3 + $0x508] sm:$0xff]
        %v3558 = vld [vmem:[#allocation3 + $0x510] sm:$0xff]
        %v3559 = vld [vmem:[#allocation3 + $0x518] sm:$0xff]
        %v3560 = vld [vmem:[#allocation3 + $0x520] sm:$0xff]
        %v3561 = vld [vmem:[#allocation3 + $0x528] sm:$0xff]
        %v3562 = vld [vmem:[#allocation3 + $0x530] sm:$0xff]
        %v3563 = vld [vmem:[#allocation3 + $0x538] sm:$0xff]
        %v3564 = vld [vmem:[#allocation3 + $0x540] sm:$0xff]
        %v3565 = vld [vmem:[#allocation3 + $0x548] sm:$0xff]
        %v3566 = vld [vmem:[#allocation3 + $0x550] sm:$0xff]
        %v3567 = vld [vmem:[#allocation3 + $0x558] sm:$0xff]
        %v3568 = vld [vmem:[#allocation3 + $0x560] sm:$0xff]
        %v3569 = vld [vmem:[#allocation3 + $0x568] sm:$0xff]
        %v3570 = vld [vmem:[#allocation3 + $0x570] sm:$0xff]
        %v3571 = vld [vmem:[#allocation3 + $0x578] sm:$0xff]
        %v3572 = vld [vmem:[#allocation3 + $0x580] sm:$0xff]
        %v3573 = vld [vmem:[#allocation3 + $0x588] sm:$0xff]
        %v3574 = vld [vmem:[#allocation3 + $0x590] sm:$0xff]
        %v3575 = vld [vmem:[#allocation3 + $0x598] sm:$0xff]
        %v3576 = vld [vmem:[#allocation3 + $0x5a0] sm:$0xff]
        %v3577 = vld [vmem:[#allocation3 + $0x5a8] sm:$0xff]
        %v3578 = vld [vmem:[#allocation3 + $0x5b0] sm:$0xff]
        %v3579 = vld [vmem:[#allocation3 + $0x5b8] sm:$0xff]
        %v3580 = vld [vmem:[#allocation3 + $0x5c0] sm:$0xff]
        %v3581 = vld [vmem:[#allocation3 + $0x5c8] sm:$0xff]
        %v3582 = vld [vmem:[#allocation3 + $0x5d0] sm:$0xff]
        %v3583 = vld [vmem:[#allocation3 + $0x5d8] sm:$0xff]
        %v3584 = vld [vmem:[#allocation3 + $0x5e0] sm:$0xff]
        %v3585 = vld [vmem:[#allocation3 + $0x5e8] sm:$0xff]
        %v3586 = vld [vmem:[#allocation3 + $0x5f0] sm:$0xff]
        %v3587 = vld [vmem:[#allocation3 + $0x5f8] sm:$0xff]
        %v3588 = vld [vmem:[#allocation3 + $0x600] sm:$0xff]
        %v3589 = vld [vmem:[#allocation3 + $0x608] sm:$0xff]
        %v3590 = vld [vmem:[#allocation3 + $0x610] sm:$0xff]
        %v3591 = vld [vmem:[#allocation3 + $0x618] sm:$0xff]
        %v3592 = vld [vmem:[#allocation3 + $0x620] sm:$0xff]
        %v3593 = vld [vmem:[#allocation3 + $0x628] sm:$0xff]
        %v3594 = vld [vmem:[#allocation3 + $0x630] sm:$0xff]
        %v3595 = vld [vmem:[#allocation3 + $0x638] sm:$0xff]
        %v3596 = vld [vmem:[#allocation3 + $0x640] sm:$0xff]
        %v3597 = vld [vmem:[#allocation3 + $0x648] sm:$0xff]
        %v3598 = vld [vmem:[#allocation3 + $0x650] sm:$0xff]
        %v3599 = vld [vmem:[#allocation3 + $0x658] sm:$0xff]
        %v3600 = vld [vmem:[#allocation3 + $0x660] sm:$0xff]
        %v3601 = vld [vmem:[#allocation3 + $0x668] sm:$0xff]
        %v3602 = vld [vmem:[#allocation3 + $0x670] sm:$0xff]
        %v3603 = vld [vmem:[#allocation3 + $0x678] sm:$0xff]
        %v3604 = vld [vmem:[#allocation3 + $0x680] sm:$0xff]
        %v3605 = vld [vmem:[#allocation3 + $0x688] sm:$0xff]
        %v3606 = vld [vmem:[#allocation3 + $0x690] sm:$0xff]
        %v3607 = vld [vmem:[#allocation3 + $0x698] sm:$0xff]
        %v3608 = vld [vmem:[#allocation3 + $0x6a0] sm:$0xff]
        %v3609 = vld [vmem:[#allocation3 + $0x6a8] sm:$0xff]
        %v3610 = vld [vmem:[#allocation3 + $0x6b0] sm:$0xff]
        %v3611 = vld [vmem:[#allocation3 + $0x6b8] sm:$0xff]
        %v3612 = vld [vmem:[#allocation3 + $0x6c0] sm:$0xff]
        %v3613 = vld [vmem:[#allocation3 + $0x6c8] sm:$0xff]
        %v3614 = vld [vmem:[#allocation3 + $0x6d0] sm:$0xff]
        %v3615 = vld [vmem:[#allocation3 + $0x6d8] sm:$0xff]
        %v3616 = vld [vmem:[#allocation3 + $0x6e0] sm:$0xff]
        %v3617 = vld [vmem:[#allocation3 + $0x6e8] sm:$0xff]
        %v3618 = vld [vmem:[#allocation3 + $0x6f0] sm:$0xff]
        %v3619 = vld [vmem:[#allocation3 + $0x6f8] sm:$0xff]
        %v3620 = vld [vmem:[#allocation3 + $0x700] sm:$0xff]
        %v3621 = vld [vmem:[#allocation3 + $0x708] sm:$0xff]
        %v3622 = vld [vmem:[#allocation3 + $0x710] sm:$0xff]
        %v3623 = vld [vmem:[#allocation3 + $0x718] sm:$0xff]
        %v3624 = vld [vmem:[#allocation3 + $0x720] sm:$0xff]
        %v3625 = vld [vmem:[#allocation3 + $0x728] sm:$0xff]
        %v3626 = vld [vmem:[#allocation3 + $0x730] sm:$0xff]
        %v3627 = vld [vmem:[#allocation3 + $0x738] sm:$0xff]
        %v3628 = vld [vmem:[#allocation3 + $0x740] sm:$0xff]
        %v3629 = vld [vmem:[#allocation3 + $0x748] sm:$0xff]
        %v3630 = vld [vmem:[#allocation3 + $0x750] sm:$0xff]
        %v3631 = vld [vmem:[#allocation3 + $0x758] sm:$0xff]
        %v3632 = vld [vmem:[#allocation3 + $0x760] sm:$0xff]
        %v3633 = vld [vmem:[#allocation3 + $0x768] sm:$0xff]
        %v3634 = vld [vmem:[#allocation3 + $0x770] sm:$0xff]
        %v3635 = vld [vmem:[#allocation3 + $0x778] sm:$0xff]
        %v3636 = vld [vmem:[#allocation3 + $0x780] sm:$0xff]
        %v3637 = vld [vmem:[#allocation3 + $0x788] sm:$0xff]
        %v3638 = vld [vmem:[#allocation3 + $0x790] sm:$0xff]
        %v3639 = vld [vmem:[#allocation3 + $0x798] sm:$0xff]
        %v3640 = vld [vmem:[#allocation3 + $0x7a0] sm:$0xff]
        %v3641 = vld [vmem:[#allocation3 + $0x7a8] sm:$0xff]
        %v3642 = vld [vmem:[#allocation3 + $0x7b0] sm:$0xff]
        %v3643 = vld [vmem:[#allocation3 + $0x7b8] sm:$0xff]
        %v3644 = vld [vmem:[#allocation3 + $0x7c0] sm:$0xff]
        %v3645 = vld [vmem:[#allocation3 + $0x7c8] sm:$0xff]
        %v3646 = vld [vmem:[#allocation3 + $0x7d0] sm:$0xff]
        %v3647 = vld [vmem:[#allocation3 + $0x7d8] sm:$0xff]
        %v3648 = vld [vmem:[#allocation3 + $0x7e0] sm:$0xff]
        %v3649 = vld [vmem:[#allocation3 + $0x7e8] sm:$0xff]
        %v3650 = vld [vmem:[#allocation3 + $0x7f0] sm:$0xff]
        %v3651 = vld [vmem:[#allocation3 + $0x7f8] sm:$0xff]
        %v3652 = vld [vmem:[#allocation3 + $0x800] sm:$0xff]
        %v3653 = vld [vmem:[#allocation3 + $0x808] sm:$0xff]
        %v3654 = vld [vmem:[#allocation3 + $0x810] sm:$0xff]
        %v3655 = vld [vmem:[#allocation3 + $0x818] sm:$0xff]
        %v3656 = vld [vmem:[#allocation3 + $0x820] sm:$0xff]
        %v3657 = vld [vmem:[#allocation3 + $0x828] sm:$0xff]
        %v3658 = vld [vmem:[#allocation3 + $0x830] sm:$0xff]
        %v3659 = vld [vmem:[#allocation3 + $0x838] sm:$0xff]
        %v3660 = vld [vmem:[#allocation3 + $0x840] sm:$0xff]
        %v3661 = vld [vmem:[#allocation3 + $0x848] sm:$0xff]
        %v3662 = vld [vmem:[#allocation3 + $0x850] sm:$0xff]
        %v3663 = vld [vmem:[#allocation3 + $0x858] sm:$0xff]
        %v3664 = vld [vmem:[#allocation3 + $0x860] sm:$0xff]
        %v3665 = vld [vmem:[#allocation3 + $0x868] sm:$0xff]
        %v3666 = vld [vmem:[#allocation3 + $0x870] sm:$0xff]
        %v3667 = vld [vmem:[#allocation3 + $0x878] sm:$0xff]
        %v3668 = vld [vmem:[#allocation3 + $0x880] sm:$0xff]
        %v3669 = vld [vmem:[#allocation3 + $0x888] sm:$0xff]
        %v3670 = vld [vmem:[#allocation3 + $0x890] sm:$0xff]
        %v3671 = vld [vmem:[#allocation3 + $0x898] sm:$0xff]
        %v3672 = vld [vmem:[#allocation3 + $0x8a0] sm:$0xff]
        %v3673 = vld [vmem:[#allocation3 + $0x8a8] sm:$0xff]
        %v3674 = vld [vmem:[#allocation3 + $0x8b0] sm:$0xff]
        %v3675 = vld [vmem:[#allocation3 + $0x8b8] sm:$0xff]
        %v3676 = vld [vmem:[#allocation3 + $0x8c0] sm:$0xff]
        %v3677 = vld [vmem:[#allocation3 + $0x8c8] sm:$0xff]
        %v3678 = vld [vmem:[#allocation3 + $0x8d0] sm:$0xff]
        %v3679 = vld [vmem:[#allocation3 + $0x8d8] sm:$0xff]
        %v3680 = vld [vmem:[#allocation3 + $0x8e0] sm:$0xff]
        %v3681 = vld [vmem:[#allocation3 + $0x8e8] sm:$0xff]
        %v3682 = vld [vmem:[#allocation3 + $0x8f0] sm:$0xff]
        %v3683 = vld [vmem:[#allocation3 + $0x8f8] sm:$0xff]
        %v3684 = vld [vmem:[#allocation9] sm:$0xff]
        %v3685 = vld [vmem:[#allocation9 + $0x8] sm:$0xff]
        %v3686 = vld [vmem:[#allocation9 + $0x10] sm:$0xff]
        %v3687 = vld [vmem:[#allocation9 + $0x18] sm:$0xff]
        %v3688 = vld [vmem:[#allocation9 + $0x20] sm:$0xff]
        %v3689 = vld [vmem:[#allocation9 + $0x28] sm:$0xff]
        %v3690 = vld [vmem:[#allocation9 + $0x30] sm:$0xff]
        %v3691 = vld [vmem:[#allocation9 + $0x38] sm:$0xff]
        %v3692 = vld [vmem:[#allocation9 + $0x40] sm:$0xff]
        %v3693 = vld [vmem:[#allocation9 + $0x48] sm:$0xff]
        %v3694 = vld [vmem:[#allocation9 + $0x50] sm:$0xff]
        %v3695 = vld [vmem:[#allocation9 + $0x58] sm:$0xff]
        %v3696 = vld [vmem:[#allocation9 + $0x60] sm:$0xff]
        %v3697 = vld [vmem:[#allocation9 + $0x68] sm:$0xff]
        %v3698 = vld [vmem:[#allocation9 + $0x70] sm:$0xff]
        %v3699 = vld [vmem:[#allocation9 + $0x78] sm:$0xff]
        %v3700 = vld [vmem:[#allocation9 + $0x80] sm:$0xff]
        %v3701 = vld [vmem:[#allocation9 + $0x88] sm:$0xff]
        %v3702 = vld [vmem:[#allocation9 + $0x90] sm:$0xff]
        %v3703 = vld [vmem:[#allocation9 + $0x98] sm:$0xff]
        %v3704 = vld [vmem:[#allocation9 + $0xa0] sm:$0xff]
        %v3705 = vld [vmem:[#allocation9 + $0xa8] sm:$0xff]
        %v3706 = vld [vmem:[#allocation9 + $0xb0] sm:$0xff]
        %v3707 = vld [vmem:[#allocation9 + $0xb8] sm:$0xff]
        %v3708 = vld [vmem:[#allocation9 + $0xc0] sm:$0xff]
        %v3709 = vld [vmem:[#allocation9 + $0xc8] sm:$0xff]
        %v3710 = vld [vmem:[#allocation9 + $0xd0] sm:$0xff]
        %v3711 = vld [vmem:[#allocation9 + $0xd8] sm:$0xff]
        %v3712 = vld [vmem:[#allocation9 + $0xe0] sm:$0xff]
        %v3713 = vld [vmem:[#allocation9 + $0xe8] sm:$0xff]
        %v3714 = vld [vmem:[#allocation9 + $0xf0] sm:$0xff]
        %v3715 = vld [vmem:[#allocation9 + $0xf8] sm:$0xff]
        %v3716 = vld [vmem:[#allocation9 + $0x100] sm:$0xff]
        %v3717 = vld [vmem:[#allocation9 + $0x108] sm:$0xff]
        %v3718 = vld [vmem:[#allocation9 + $0x110] sm:$0xff]
        %v3719 = vld [vmem:[#allocation9 + $0x118] sm:$0xff]
        %v3720 = vld [vmem:[#allocation9 + $0x120] sm:$0xff]
        %v3721 = vld [vmem:[#allocation9 + $0x128] sm:$0xff]
        %v3722 = vld [vmem:[#allocation9 + $0x130] sm:$0xff]
        %v3723 = vld [vmem:[#allocation9 + $0x138] sm:$0xff]
        %v3724 = vld [vmem:[#allocation9 + $0x140] sm:$0xff]
        %v3725 = vld [vmem:[#allocation9 + $0x148] sm:$0xff]
        %v3726 = vld [vmem:[#allocation9 + $0x150] sm:$0xff]
        %v3727 = vld [vmem:[#allocation9 + $0x158] sm:$0xff]
        %v3728 = vld [vmem:[#allocation9 + $0x160] sm:$0xff]
        %v3729 = vld [vmem:[#allocation9 + $0x168] sm:$0xff]
        %v3730 = vld [vmem:[#allocation9 + $0x170] sm:$0xff]
        %v3731 = vld [vmem:[#allocation9 + $0x178] sm:$0xff]
        %v3732 = vld [vmem:[#allocation9 + $0x180] sm:$0xff]
        %v3733 = vld [vmem:[#allocation9 + $0x188] sm:$0xff]
        %v3734 = vld [vmem:[#allocation9 + $0x190] sm:$0xff]
        %v3735 = vld [vmem:[#allocation9 + $0x198] sm:$0xff]
        %v3736 = vld [vmem:[#allocation9 + $0x1a0] sm:$0xff]
        %v3737 = vld [vmem:[#allocation9 + $0x1a8] sm:$0xff]
        %v3738 = vld [vmem:[#allocation9 + $0x1b0] sm:$0xff]
        %v3739 = vld [vmem:[#allocation9 + $0x1b8] sm:$0xff]
        %v3740 = vld [vmem:[#allocation9 + $0x1c0] sm:$0xff]
        %v3741 = vld [vmem:[#allocation9 + $0x1c8] sm:$0xff]
        %v3742 = vld [vmem:[#allocation9 + $0x1d0] sm:$0xff]
        %v3743 = vld [vmem:[#allocation9 + $0x1d8] sm:$0xff]
        %v3744 = vld [vmem:[#allocation9 + $0x1e0] sm:$0xff]
        %v3745 = vld [vmem:[#allocation9 + $0x1e8] sm:$0xff]
        %v3746 = vld [vmem:[#allocation9 + $0x1f0] sm:$0xff]
        %v3747 = vld [vmem:[#allocation9 + $0x1f8] sm:$0xff]
        %v3748 = vld [vmem:[#allocation9 + $0x200] sm:$0xff]
        %v3749 = vld [vmem:[#allocation9 + $0x208] sm:$0xff]
        %v3750 = vld [vmem:[#allocation9 + $0x210] sm:$0xff]
        %v3751 = vld [vmem:[#allocation9 + $0x218] sm:$0xff]
        %v3752 = vld [vmem:[#allocation9 + $0x220] sm:$0xff]
        %v3753 = vld [vmem:[#allocation9 + $0x228] sm:$0xff]
        %v3754 = vld [vmem:[#allocation9 + $0x230] sm:$0xff]
        %v3755 = vld [vmem:[#allocation9 + $0x238] sm:$0xff]
        %v3756 = vld [vmem:[#allocation9 + $0x240] sm:$0xff]
        %v3757 = vld [vmem:[#allocation9 + $0x248] sm:$0xff]
        %v3758 = vld [vmem:[#allocation9 + $0x250] sm:$0xff]
        %v3759 = vld [vmem:[#allocation9 + $0x258] sm:$0xff]
        %v3760 = vld [vmem:[#allocation9 + $0x260] sm:$0xff]
        %v3761 = vld [vmem:[#allocation9 + $0x268] sm:$0xff]
        %v3762 = vld [vmem:[#allocation9 + $0x270] sm:$0xff]
        %v3763 = vld [vmem:[#allocation9 + $0x278] sm:$0xff]
        %v3764 = vld [vmem:[#allocation9 + $0x280] sm:$0xff]
        %v3765 = vld [vmem:[#allocation9 + $0x288] sm:$0xff]
        %v3766 = vld [vmem:[#allocation9 + $0x290] sm:$0xff]
        %v3767 = vld [vmem:[#allocation9 + $0x298] sm:$0xff]
        %v3768 = vld [vmem:[#allocation9 + $0x2a0] sm:$0xff]
        %v3769 = vld [vmem:[#allocation9 + $0x2a8] sm:$0xff]
        %v3770 = vld [vmem:[#allocation9 + $0x2b0] sm:$0xff]
        %v3771 = vld [vmem:[#allocation9 + $0x2b8] sm:$0xff]
        %v3772 = vld [vmem:[#allocation9 + $0x2c0] sm:$0xff]
        %v3773 = vld [vmem:[#allocation9 + $0x2c8] sm:$0xff]
        %v3774 = vld [vmem:[#allocation9 + $0x2d0] sm:$0xff]
        %v3775 = vld [vmem:[#allocation9 + $0x2d8] sm:$0xff]
        %v3776 = vld [vmem:[#allocation9 + $0x2e0] sm:$0xff]
        %v3777 = vld [vmem:[#allocation9 + $0x2e8] sm:$0xff]
        %v3778 = vld [vmem:[#allocation9 + $0x2f0] sm:$0xff]
        %v3779 = vld [vmem:[#allocation9 + $0x2f8] sm:$0xff]
        %v3780 = vld [vmem:[#allocation9 + $0x300] sm:$0xff]
        %v3781 = vld [vmem:[#allocation9 + $0x308] sm:$0xff]
        %v3782 = vld [vmem:[#allocation9 + $0x310] sm:$0xff]
        %v3783 = vld [vmem:[#allocation9 + $0x318] sm:$0xff]
        %v3784 = vld [vmem:[#allocation9 + $0x320] sm:$0xff]
        %v3785 = vld [vmem:[#allocation9 + $0x328] sm:$0xff]
        %v3786 = vld [vmem:[#allocation9 + $0x330] sm:$0xff]
        %v3787 = vld [vmem:[#allocation9 + $0x338] sm:$0xff]
        %v3788 = vld [vmem:[#allocation9 + $0x340] sm:$0xff]
        %v3789 = vld [vmem:[#allocation9 + $0x348] sm:$0xff]
        %v3790 = vld [vmem:[#allocation9 + $0x350] sm:$0xff]
        %v3791 = vld [vmem:[#allocation9 + $0x358] sm:$0xff]
        %v3792 = vld [vmem:[#allocation9 + $0x360] sm:$0xff]
        %v3793 = vld [vmem:[#allocation9 + $0x368] sm:$0xff]
        %v3794 = vld [vmem:[#allocation9 + $0x370] sm:$0xff]
        %v3795 = vld [vmem:[#allocation9 + $0x378] sm:$0xff]
        %v3796 = vld [vmem:[#allocation9 + $0x380] sm:$0xff]
        %v3797 = vld [vmem:[#allocation9 + $0x388] sm:$0xff]
        %v3798 = vld [vmem:[#allocation9 + $0x390] sm:$0xff]
        %v3799 = vld [vmem:[#allocation9 + $0x398] sm:$0xff]
        %v3800 = vld [vmem:[#allocation9 + $0x3a0] sm:$0xff]
        %v3801 = vld [vmem:[#allocation9 + $0x3a8] sm:$0xff]
        %v3802 = vld [vmem:[#allocation9 + $0x3b0] sm:$0xff]
        %v3803 = vld [vmem:[#allocation9 + $0x3b8] sm:$0xff]
        %v3804 = vld [vmem:[#allocation9 + $0x3c0] sm:$0xff]
        %v3805 = vld [vmem:[#allocation9 + $0x3c8] sm:$0xff]
        %v3806 = vld [vmem:[#allocation9 + $0x3d0] sm:$0xff]
        %v3807 = vld [vmem:[#allocation9 + $0x3d8] sm:$0xff]
        %v3808 = vld [vmem:[#allocation9 + $0x3e0] sm:$0xff]
        %v3809 = vld [vmem:[#allocation9 + $0x3e8] sm:$0xff]
        %v3810 = vld [vmem:[#allocation9 + $0x3f0] sm:$0xff]
        %v3811 = vld [vmem:[#allocation9 + $0x3f8] sm:$0xff]
        %v3812 = vld [vmem:[#allocation9 + $0x400] sm:$0xff]
        %v3813 = vld [vmem:[#allocation9 + $0x408] sm:$0xff]
        %v3814 = vld [vmem:[#allocation9 + $0x410] sm:$0xff]
        %v3815 = vld [vmem:[#allocation9 + $0x418] sm:$0xff]
        %v3816 = vld [vmem:[#allocation9 + $0x420] sm:$0xff]
        %v3817 = vld [vmem:[#allocation9 + $0x428] sm:$0xff]
        %v3818 = vld [vmem:[#allocation9 + $0x430] sm:$0xff]
        %v3819 = vld [vmem:[#allocation9 + $0x438] sm:$0xff]
        %v3820 = vld [vmem:[#allocation9 + $0x440] sm:$0xff]
        %v3821 = vld [vmem:[#allocation9 + $0x448] sm:$0xff]
        %v3822 = vld [vmem:[#allocation9 + $0x450] sm:$0xff]
        %v3823 = vld [vmem:[#allocation9 + $0x458] sm:$0xff]
        %v3824 = vld [vmem:[#allocation9 + $0x460] sm:$0xff]
        %v3825 = vld [vmem:[#allocation9 + $0x468] sm:$0xff]
        %v3826 = vld [vmem:[#allocation9 + $0x470] sm:$0xff]
        %v3827 = vld [vmem:[#allocation9 + $0x478] sm:$0xff]
        %3828 = vmatprep.subr.mxu0 0.0
        %3829 = vmatpush1.msra.mxu0 %v3699
        %3830 = vmatprep.subr.mxu0 0.0
        %3831 = vmatpush1.msra.mxu0 %v3698
        %3832 = vmatprep.subr.mxu0 0.0
        %3833 = vmatpush1.msra.mxu0 %v3697
        %3834 = vmatprep.subr.mxu0 0.0
        %3835 = vmatpush1.msra.mxu0 %v3696
        %3836 = vmatprep.subr.mxu0 0.0
        %3837 = vmatpush1.msra.mxu0 %v3695
        %3838 = vmatprep.subr.mxu0 0.0
        %3839 = vmatpush1.msra.mxu0 %v3694
        %3840 = vmatprep.subr.mxu0 0.0
        %3841 = vmatpush1.msra.mxu0 %v3693
        %3842 = vmatprep.subr.mxu0 0.0
        %3843 = vmatpush1.msra.mxu0 %v3692
        %3844 = vmatprep.subr.mxu0 0.0
        %3845 = vmatpush1.msra.mxu0 %v3691
        %3846 = vmatprep.subr.mxu0 0.0
        %3847 = vmatpush1.msra.mxu0 %v3690
        %3848 = vmatprep.subr.mxu0 0.0
        %3849 = vmatpush1.msra.mxu0 %v3689
        %3850 = vmatprep.subr.mxu0 0.0
        %3851 = vmatpush1.msra.mxu0 %v3688
        %3852 = vmatprep.subr.mxu0 0.0
        %3853 = vmatpush1.msra.mxu0 %v3687
        %3854 = vmatprep.subr.mxu0 0.0
        %3855 = vmatpush1.msra.mxu0 %v3686
        %3856 = vmatprep.subr.mxu0 0.0
        %3857 = vmatpush1.msra.mxu0 %v3685
        %3858 = vmatprep.subr.mxu0 0.0
        %3859 = vmatpush1.msra.mxu0 %v3684
        %3860 = vmatprep.subr.mxu0 0.0
        %3861 = vmatpush2.msra.mxu0 %v3715
        %3862 = vmatprep.subr.mxu0 0.0
        %3863 = vmatpush2.msra.mxu0 %v3714
        %3864 = vmatprep.subr.mxu0 0.0
        %3865 = vmatpush2.msra.mxu0 %v3713
        %3866 = vmatprep.subr.mxu0 0.0
        %3867 = vmatpush2.msra.mxu0 %v3712
        %3868 = vmatprep.subr.mxu0 0.0
        %3869 = vmatpush2.msra.mxu0 %v3711
        %3870 = vmatprep.subr.mxu0 0.0
        %3871 = vmatpush2.msra.mxu0 %v3710
        %3872 = vmatprep.subr.mxu0 0.0
        %3873 = vmatpush2.msra.mxu0 %v3709
        %3874 = vmatprep.subr.mxu0 0.0
        %3875 = vmatpush2.msra.mxu0 %v3708
        %3876 = vmatprep.subr.mxu0 0.0
        %3877 = vmatpush2.msra.mxu0 %v3707
        %3878 = vmatprep.subr.mxu0 0.0
        %3879 = vmatpush2.msra.mxu0 %v3706
        %3880 = vmatprep.subr.mxu0 0.0
        %3881 = vmatpush2.msra.mxu0 %v3705
        %3882 = vmatprep.subr.mxu0 0.0
        %3883 = vmatpush2.msra.mxu0 %v3704
        %3884 = vmatprep.subr.mxu0 0.0
        %3885 = vmatpush2.msra.mxu0 %v3703
        %3886 = vmatprep.subr.mxu0 0.0
        %3887 = vmatpush2.msra.mxu0 %v3702
        %3888 = vmatprep.subr.mxu0 0.0
        %3889 = vmatpush2.msra.mxu0 %v3701
        %3890 = vmatprep.subr.mxu0 0.0
        %3891 = vmatpush2.msra.mxu0 %v3700
        %3892 = vmatprep.mubr.f32.mxu0 %v3397
        %3893 = vmatmul.mubr.f32.gmra.mxu0 %v3396
        %v3894 = vpop.f32.mrf.mxu0
        %v3895 = vadd.f32 0.0, %v3894
        %v3896 = vpop.f32.mrf.mxu0
        %3897 = vmatprep.mubr.f32.mxu0 %v3406
        %3898 = vmatmul.mubr.f32.gmra.mxu0 %v3405
        %v3899 = vpop.f32.mrf.mxu0
        %v3900 = vadd.f32 0.0, %v3899
        %v3901 = vpop.f32.mrf.mxu0
        %3902 = vmatprep.mubr.f32.mxu0 %v3415
        %3903 = vmatmul.mubr.f32.gmra.mxu0 %v3414
        %v3904 = vpop.f32.mrf.mxu0
        %v3905 = vadd.f32 0.0, %v3904
        %v3906 = vpop.f32.mrf.mxu0
        %3907 = vmatprep.mubr.f32.mxu0 %v3424
        %3908 = vmatmul.mubr.f32.gmra.mxu0 %v3423
        %v3909 = vpop.f32.mrf.mxu0
        %v3910 = vadd.f32 0.0, %v3909
        %v3911 = vpop.f32.mrf.mxu0
        %3912 = vmatprep.mubr.f32.mxu0 %v3433
        %3913 = vmatmul.mubr.f32.gmra.mxu0 %v3432
        %v3914 = vpop.f32.mrf.mxu0
        %v3915 = vadd.f32 0.0, %v3914
        %v3916 = vpop.f32.mrf.mxu0
        %3917 = vmatprep.mubr.f32.mxu0 %v3442
        %3918 = vmatmul.mubr.f32.gmra.mxu0 %v3441
        %v3919 = vpop.f32.mrf.mxu0
        %v3920 = vadd.f32 0.0, %v3919
        %v3921 = vpop.f32.mrf.mxu0
        %3922 = vmatprep.mubr.f32.mxu0 %v3451
        %3923 = vmatmul.mubr.f32.gmra.mxu0 %v3450
        %v3924 = vpop.f32.mrf.mxu0
        %v3925 = vadd.f32 0.0, %v3924
        %v3926 = vpop.f32.mrf.mxu0
        %3927 = vmatprep.mubr.f32.mxu0 %v3460
        %3928 = vmatmul.mubr.f32.gmra.mxu0 %v3459
        %v3929 = vpop.f32.mrf.mxu0
        %v3930 = vadd.f32 0.0, %v3929
        %v3931 = vpop.f32.mrf.mxu0
        %3932 = vmatprep.mubr.f32.mxu0 %v3469
        %3933 = vmatmul.mubr.f32.gmra.mxu0 %v3468
        %v3934 = vpop.f32.mrf.mxu0
        %v3935 = vadd.f32 0.0, %v3934
        %v3936 = vpop.f32.mrf.mxu0
        %3937 = vmatprep.mubr.f32.mxu0 %v3478
        %3938 = vmatmul.mubr.f32.gmra.mxu0 %v3477
        %v3939 = vpop.f32.mrf.mxu0
        %v3940 = vadd.f32 0.0, %v3939
        %v3941 = vpop.f32.mrf.mxu0
        %3942 = vmatprep.mubr.f32.mxu0 %v3487
        %3943 = vmatmul.mubr.f32.gmra.mxu0 %v3486
        %v3944 = vpop.f32.mrf.mxu0
        %v3945 = vadd.f32 0.0, %v3944
        %v3946 = vpop.f32.mrf.mxu0
        %3947 = vmatprep.mubr.f32.mxu0 %v3496
        %3948 = vmatmul.mubr.f32.gmra.mxu0 %v3495
        %v3949 = vpop.f32.mrf.mxu0
        %v3950 = vadd.f32 0.0, %v3949
        %v3951 = vpop.f32.mrf.mxu0
        %3952 = vmatprep.mubr.f32.mxu0 %v3505
        %3953 = vmatmul.mubr.f32.gmra.mxu0 %v3504
        %v3954 = vpop.f32.mrf.mxu0
        %v3955 = vadd.f32 0.0, %v3954
        %v3956 = vpop.f32.mrf.mxu0
        %3957 = vmatprep.mubr.f32.mxu0 %v3514
        %3958 = vmatmul.mubr.f32.gmra.mxu0 %v3513
        %v3959 = vpop.f32.mrf.mxu0
        %v3960 = vadd.f32 0.0, %v3959
        %v3961 = vpop.f32.mrf.mxu0
        %3962 = vmatprep.mubr.f32.mxu0 %v3523
        %3963 = vmatmul.mubr.f32.gmra.mxu0 %v3522
        %v3964 = vpop.f32.mrf.mxu0
        %v3965 = vadd.f32 0.0, %v3964
        %v3966 = vpop.f32.mrf.mxu0
        %3967 = vmatprep.mubr.f32.mxu0 %v3532
        %3968 = vmatmul.mubr.f32.gmra.mxu0 %v3531
        %v3969 = vpop.f32.mrf.mxu0
        %v3970 = vadd.f32 0.0, %v3969
        %v3971 = vpop.f32.mrf.mxu0
        %3972 = vmatprep.mubr.f32.mxu0 %v3541
        %3973 = vmatmul.mubr.f32.gmra.mxu0 %v3540
        %v3974 = vpop.f32.mrf.mxu0
        %v3975 = vadd.f32 0.0, %v3974
        %v3976 = vpop.f32.mrf.mxu0
        %3977 = vmatprep.mubr.f32.mxu0 %v3550
        %3978 = vmatmul.mubr.f32.gmra.mxu0 %v3549
        %v3979 = vpop.f32.mrf.mxu0
        %v3980 = vadd.f32 0.0, %v3979
        %v3981 = vpop.f32.mrf.mxu0
        %3982 = vmatprep.mubr.f32.mxu0 %v3559
        %3983 = vmatmul.mubr.f32.gmra.mxu0 %v3558
        %v3984 = vpop.f32.mrf.mxu0
        %v3985 = vadd.f32 0.0, %v3984
        %v3986 = vpop.f32.mrf.mxu0
        %3987 = vmatprep.mubr.f32.mxu0 %v3568
        %3988 = vmatmul.mubr.f32.gmra.mxu0 %v3567
        %v3989 = vpop.f32.mrf.mxu0
        %v3990 = vadd.f32 0.0, %v3989
        %v3991 = vpop.f32.mrf.mxu0
        %3992 = vmatprep.mubr.f32.mxu0 %v3577
        %3993 = vmatmul.mubr.f32.gmra.mxu0 %v3576
        %v3994 = vpop.f32.mrf.mxu0
        %v3995 = vadd.f32 0.0, %v3994
        %v3996 = vpop.f32.mrf.mxu0
        %3997 = vmatprep.mubr.f32.mxu0 %v3586
        %3998 = vmatmul.mubr.f32.gmra.mxu0 %v3585
        %v3999 = vpop.f32.mrf.mxu0
        %v4000 = vadd.f32 0.0, %v3999
        %v4001 = vpop.f32.mrf.mxu0
        %4002 = vmatprep.mubr.f32.mxu0 %v3595
        %4003 = vmatmul.mubr.f32.gmra.mxu0 %v3594
        %v4004 = vpop.f32.mrf.mxu0
        %v4005 = vadd.f32 0.0, %v4004
        %v4006 = vpop.f32.mrf.mxu0
        %4007 = vmatprep.mubr.f32.mxu0 %v3604
        %4008 = vmatmul.mubr.f32.gmra.mxu0 %v3603
        %v4009 = vpop.f32.mrf.mxu0
        %v4010 = vadd.f32 0.0, %v4009
        %v4011 = vpop.f32.mrf.mxu0
        %4012 = vmatprep.mubr.f32.mxu0 %v3613
        %4013 = vmatmul.mubr.f32.gmra.mxu0 %v3612
        %v4014 = vpop.f32.mrf.mxu0
        %v4015 = vadd.f32 0.0, %v4014
        %v4016 = vpop.f32.mrf.mxu0
        %4017 = vmatprep.mubr.f32.mxu0 %v3622
        %4018 = vmatmul.mubr.f32.gmra.mxu0 %v3621
        %v4019 = vpop.f32.mrf.mxu0
        %v4020 = vadd.f32 0.0, %v4019
        %v4021 = vpop.f32.mrf.mxu0
        %4022 = vmatprep.mubr.f32.mxu0 %v3631
        %4023 = vmatmul.mubr.f32.gmra.mxu0 %v3630
        %v4024 = vpop.f32.mrf.mxu0
        %v4025 = vadd.f32 0.0, %v4024
        %v4026 = vpop.f32.mrf.mxu0
        %4027 = vmatprep.mubr.f32.mxu0 %v3640
        %4028 = vmatmul.mubr.f32.gmra.mxu0 %v3639
        %v4029 = vpop.f32.mrf.mxu0
        %v4030 = vadd.f32 0.0, %v4029
        %v4031 = vpop.f32.mrf.mxu0
        %4032 = vmatprep.mubr.f32.mxu0 %v3649
        %4033 = vmatmul.mubr.f32.gmra.mxu0 %v3648
        %v4034 = vpop.f32.mrf.mxu0
        %v4035 = vadd.f32 0.0, %v4034
        %v4036 = vpop.f32.mrf.mxu0
        %4037 = vmatprep.mubr.f32.mxu0 %v3658
        %4038 = vmatmul.mubr.f32.gmra.mxu0 %v3657
        %v4039 = vpop.f32.mrf.mxu0
        %v4040 = vadd.f32 0.0, %v4039
        %v4041 = vpop.f32.mrf.mxu0
        %4042 = vmatprep.mubr.f32.mxu0 %v3667
        %4043 = vmatmul.mubr.f32.gmra.mxu0 %v3666
        %v4044 = vpop.f32.mrf.mxu0
        %v4045 = vadd.f32 0.0, %v4044
        %v4046 = vpop.f32.mrf.mxu0
        %4047 = vmatprep.mubr.f32.mxu0 %v3676
        %4048 = vmatmul.mubr.f32.gmra.mxu0 %v3675
        %v4049 = vpop.f32.mrf.mxu0
        %v4050 = vadd.f32 0.0, %v4049
        %v4051 = vpop.f32.mrf.mxu0
        %4052 = vdwg.mxu0
        %4053 = vmatprep.subr.mxu0 0.0
        %4054 = vmatpush1.msra.mxu0 %v3731
        %4055 = vmatprep.subr.mxu0 0.0
        %4056 = vmatpush1.msra.mxu0 %v3730
        %4057 = vmatprep.subr.mxu0 0.0
        %4058 = vmatpush1.msra.mxu0 %v3729
        %4059 = vmatprep.subr.mxu0 0.0
        %4060 = vmatpush1.msra.mxu0 %v3728
        %4061 = vmatprep.subr.mxu0 0.0
        %4062 = vmatpush1.msra.mxu0 %v3727
        %4063 = vmatprep.subr.mxu0 0.0
        %4064 = vmatpush1.msra.mxu0 %v3726
        %4065 = vmatprep.subr.mxu0 0.0
        %4066 = vmatpush1.msra.mxu0 %v3725
        %4067 = vmatprep.subr.mxu0 0.0
        %4068 = vmatpush1.msra.mxu0 %v3724
        %4069 = vmatprep.subr.mxu0 0.0
        %4070 = vmatpush1.msra.mxu0 %v3723
        %4071 = vmatprep.subr.mxu0 0.0
        %4072 = vmatpush1.msra.mxu0 %v3722
        %4073 = vmatprep.subr.mxu0 0.0
        %4074 = vmatpush1.msra.mxu0 %v3721
        %4075 = vmatprep.subr.mxu0 0.0
        %4076 = vmatpush1.msra.mxu0 %v3720
        %4077 = vmatprep.subr.mxu0 0.0
        %4078 = vmatpush1.msra.mxu0 %v3719
        %4079 = vmatprep.subr.mxu0 0.0
        %4080 = vmatpush1.msra.mxu0 %v3718
        %4081 = vmatprep.subr.mxu0 0.0
        %4082 = vmatpush1.msra.mxu0 %v3717
        %4083 = vmatprep.subr.mxu0 0.0
        %4084 = vmatpush1.msra.mxu0 %v3716
        %4085 = vmatprep.subr.mxu0 0.0
        %4086 = vmatpush2.msra.mxu0 %v3747
        %4087 = vmatprep.subr.mxu0 0.0
        %4088 = vmatpush2.msra.mxu0 %v3746
        %4089 = vmatprep.subr.mxu0 0.0
        %4090 = vmatpush2.msra.mxu0 %v3745
        %4091 = vmatprep.subr.mxu0 0.0
        %4092 = vmatpush2.msra.mxu0 %v3744
        %4093 = vmatprep.subr.mxu0 0.0
        %4094 = vmatpush2.msra.mxu0 %v3743
        %4095 = vmatprep.subr.mxu0 0.0
        %4096 = vmatpush2.msra.mxu0 %v3742
        %4097 = vmatprep.subr.mxu0 0.0
        %4098 = vmatpush2.msra.mxu0 %v3741
        %4099 = vmatprep.subr.mxu0 0.0
        %4100 = vmatpush2.msra.mxu0 %v3740
        %4101 = vmatprep.subr.mxu0 0.0
        %4102 = vmatpush2.msra.mxu0 %v3739
        %4103 = vmatprep.subr.mxu0 0.0
        %4104 = vmatpush2.msra.mxu0 %v3738
        %4105 = vmatprep.subr.mxu0 0.0
        %4106 = vmatpush2.msra.mxu0 %v3737
        %4107 = vmatprep.subr.mxu0 0.0
        %4108 = vmatpush2.msra.mxu0 %v3736
        %4109 = vmatprep.subr.mxu0 0.0
        %4110 = vmatpush2.msra.mxu0 %v3735
        %4111 = vmatprep.subr.mxu0 0.0
        %4112 = vmatpush2.msra.mxu0 %v3734
        %4113 = vmatprep.subr.mxu0 0.0
        %4114 = vmatpush2.msra.mxu0 %v3733
        %4115 = vmatprep.subr.mxu0 0.0
        %4116 = vmatpush2.msra.mxu0 %v3732
        %4117 = vmatprep.mubr.f32.mxu0 %v3399
        %4118 = vmatmul.mubr.f32.gmra.mxu0 %v3398
        %v4119 = vpop.f32.mrf.mxu0
        %v4120 = vadd.f32 %v3895, %v4119
        %v4121 = vpop.f32.mrf.mxu0
        %4122 = vmatprep.mubr.f32.mxu0 %v3408
        %4123 = vmatmul.mubr.f32.gmra.mxu0 %v3407
        %v4124 = vpop.f32.mrf.mxu0
        %v4125 = vadd.f32 %v3900, %v4124
        %v4126 = vpop.f32.mrf.mxu0
        %4127 = vmatprep.mubr.f32.mxu0 %v3417
        %4128 = vmatmul.mubr.f32.gmra.mxu0 %v3416
        %v4129 = vpop.f32.mrf.mxu0
        %v4130 = vadd.f32 %v3905, %v4129
        %v4131 = vpop.f32.mrf.mxu0
        %4132 = vmatprep.mubr.f32.mxu0 %v3426
        %4133 = vmatmul.mubr.f32.gmra.mxu0 %v3425
        %v4134 = vpop.f32.mrf.mxu0
        %v4135 = vadd.f32 %v3910, %v4134
        %v4136 = vpop.f32.mrf.mxu0
        %4137 = vmatprep.mubr.f32.mxu0 %v3435
        %4138 = vmatmul.mubr.f32.gmra.mxu0 %v3434
        %v4139 = vpop.f32.mrf.mxu0
        %v4140 = vadd.f32 %v3915, %v4139
        %v4141 = vpop.f32.mrf.mxu0
        %4142 = vmatprep.mubr.f32.mxu0 %v3444
        %4143 = vmatmul.mubr.f32.gmra.mxu0 %v3443
        %v4144 = vpop.f32.mrf.mxu0
        %v4145 = vadd.f32 %v3920, %v4144
        %v4146 = vpop.f32.mrf.mxu0
        %4147 = vmatprep.mubr.f32.mxu0 %v3453
        %4148 = vmatmul.mubr.f32.gmra.mxu0 %v3452
        %v4149 = vpop.f32.mrf.mxu0
        %v4150 = vadd.f32 %v3925, %v4149
        %v4151 = vpop.f32.mrf.mxu0
        %4152 = vmatprep.mubr.f32.mxu0 %v3462
        %4153 = vmatmul.mubr.f32.gmra.mxu0 %v3461
        %v4154 = vpop.f32.mrf.mxu0
        %v4155 = vadd.f32 %v3930, %v4154
        %v4156 = vpop.f32.mrf.mxu0
        %4157 = vmatprep.mubr.f32.mxu0 %v3471
        %4158 = vmatmul.mubr.f32.gmra.mxu0 %v3470
        %v4159 = vpop.f32.mrf.mxu0
        %v4160 = vadd.f32 %v3935, %v4159
        %v4161 = vpop.f32.mrf.mxu0
        %4162 = vmatprep.mubr.f32.mxu0 %v3480
        %4163 = vmatmul.mubr.f32.gmra.mxu0 %v3479
        %v4164 = vpop.f32.mrf.mxu0
        %v4165 = vadd.f32 %v3940, %v4164
        %v4166 = vpop.f32.mrf.mxu0
        %4167 = vmatprep.mubr.f32.mxu0 %v3489
        %4168 = vmatmul.mubr.f32.gmra.mxu0 %v3488
        %v4169 = vpop.f32.mrf.mxu0
        %v4170 = vadd.f32 %v3945, %v4169
        %v4171 = vpop.f32.mrf.mxu0
        %4172 = vmatprep.mubr.f32.mxu0 %v3498
        %4173 = vmatmul.mubr.f32.gmra.mxu0 %v3497
        %v4174 = vpop.f32.mrf.mxu0
        %v4175 = vadd.f32 %v3950, %v4174
        %v4176 = vpop.f32.mrf.mxu0
        %4177 = vmatprep.mubr.f32.mxu0 %v3507
        %4178 = vmatmul.mubr.f32.gmra.mxu0 %v3506
        %v4179 = vpop.f32.mrf.mxu0
        %v4180 = vadd.f32 %v3955, %v4179
        %v4181 = vpop.f32.mrf.mxu0
        %4182 = vmatprep.mubr.f32.mxu0 %v3516
        %4183 = vmatmul.mubr.f32.gmra.mxu0 %v3515
        %v4184 = vpop.f32.mrf.mxu0
        %v4185 = vadd.f32 %v3960, %v4184
        %v4186 = vpop.f32.mrf.mxu0
        %4187 = vmatprep.mubr.f32.mxu0 %v3525
        %4188 = vmatmul.mubr.f32.gmra.mxu0 %v3524
        %v4189 = vpop.f32.mrf.mxu0
        %v4190 = vadd.f32 %v3965, %v4189
        %v4191 = vpop.f32.mrf.mxu0
        %4192 = vmatprep.mubr.f32.mxu0 %v3534
        %4193 = vmatmul.mubr.f32.gmra.mxu0 %v3533
        %v4194 = vpop.f32.mrf.mxu0
        %v4195 = vadd.f32 %v3970, %v4194
        %v4196 = vpop.f32.mrf.mxu0
        %4197 = vmatprep.mubr.f32.mxu0 %v3543
        %4198 = vmatmul.mubr.f32.gmra.mxu0 %v3542
        %v4199 = vpop.f32.mrf.mxu0
        %v4200 = vadd.f32 %v3975, %v4199
        %v4201 = vpop.f32.mrf.mxu0
        %4202 = vmatprep.mubr.f32.mxu0 %v3552
        %4203 = vmatmul.mubr.f32.gmra.mxu0 %v3551
        %v4204 = vpop.f32.mrf.mxu0
        %v4205 = vadd.f32 %v3980, %v4204
        %v4206 = vpop.f32.mrf.mxu0
        %4207 = vmatprep.mubr.f32.mxu0 %v3561
        %4208 = vmatmul.mubr.f32.gmra.mxu0 %v3560
        %v4209 = vpop.f32.mrf.mxu0
        %v4210 = vadd.f32 %v3985, %v4209
        %v4211 = vpop.f32.mrf.mxu0
        %4212 = vmatprep.mubr.f32.mxu0 %v3570
        %4213 = vmatmul.mubr.f32.gmra.mxu0 %v3569
        %v4214 = vpop.f32.mrf.mxu0
        %v4215 = vadd.f32 %v3990, %v4214
        %v4216 = vpop.f32.mrf.mxu0
        %4217 = vmatprep.mubr.f32.mxu0 %v3579
        %4218 = vmatmul.mubr.f32.gmra.mxu0 %v3578
        %v4219 = vpop.f32.mrf.mxu0
        %v4220 = vadd.f32 %v3995, %v4219
        %v4221 = vpop.f32.mrf.mxu0
        %4222 = vmatprep.mubr.f32.mxu0 %v3588
        %4223 = vmatmul.mubr.f32.gmra.mxu0 %v3587
        %v4224 = vpop.f32.mrf.mxu0
        %v4225 = vadd.f32 %v4000, %v4224
        %v4226 = vpop.f32.mrf.mxu0
        %4227 = vmatprep.mubr.f32.mxu0 %v3597
        %4228 = vmatmul.mubr.f32.gmra.mxu0 %v3596
        %v4229 = vpop.f32.mrf.mxu0
        %v4230 = vadd.f32 %v4005, %v4229
        %v4231 = vpop.f32.mrf.mxu0
        %4232 = vmatprep.mubr.f32.mxu0 %v3606
        %4233 = vmatmul.mubr.f32.gmra.mxu0 %v3605
        %v4234 = vpop.f32.mrf.mxu0
        %v4235 = vadd.f32 %v4010, %v4234
        %v4236 = vpop.f32.mrf.mxu0
        %4237 = vmatprep.mubr.f32.mxu0 %v3615
        %4238 = vmatmul.mubr.f32.gmra.mxu0 %v3614
        %v4239 = vpop.f32.mrf.mxu0
        %v4240 = vadd.f32 %v4015, %v4239
        %v4241 = vpop.f32.mrf.mxu0
        %4242 = vmatprep.mubr.f32.mxu0 %v3624
        %4243 = vmatmul.mubr.f32.gmra.mxu0 %v3623
        %v4244 = vpop.f32.mrf.mxu0
        %v4245 = vadd.f32 %v4020, %v4244
        %v4246 = vpop.f32.mrf.mxu0
        %4247 = vmatprep.mubr.f32.mxu0 %v3633
        %4248 = vmatmul.mubr.f32.gmra.mxu0 %v3632
        %v4249 = vpop.f32.mrf.mxu0
        %v4250 = vadd.f32 %v4025, %v4249
        %v4251 = vpop.f32.mrf.mxu0
        %4252 = vmatprep.mubr.f32.mxu0 %v3642
        %4253 = vmatmul.mubr.f32.gmra.mxu0 %v3641
        %v4254 = vpop.f32.mrf.mxu0
        %v4255 = vadd.f32 %v4030, %v4254
        %v4256 = vpop.f32.mrf.mxu0
        %4257 = vmatprep.mubr.f32.mxu0 %v3651
        %4258 = vmatmul.mubr.f32.gmra.mxu0 %v3650
        %v4259 = vpop.f32.mrf.mxu0
        %v4260 = vadd.f32 %v4035, %v4259
        %v4261 = vpop.f32.mrf.mxu0
        %4262 = vmatprep.mubr.f32.mxu0 %v3660
        %4263 = vmatmul.mubr.f32.gmra.mxu0 %v3659
        %v4264 = vpop.f32.mrf.mxu0
        %v4265 = vadd.f32 %v4040, %v4264
        %v4266 = vpop.f32.mrf.mxu0
        %4267 = vmatprep.mubr.f32.mxu0 %v3669
        %4268 = vmatmul.mubr.f32.gmra.mxu0 %v3668
        %v4269 = vpop.f32.mrf.mxu0
        %v4270 = vadd.f32 %v4045, %v4269
        %v4271 = vpop.f32.mrf.mxu0
        %4272 = vmatprep.mubr.f32.mxu0 %v3678
        %4273 = vmatmul.mubr.f32.gmra.mxu0 %v3677
        %v4274 = vpop.f32.mrf.mxu0
        %v4275 = vadd.f32 %v4050, %v4274
        %v4276 = vpop.f32.mrf.mxu0
        %4277 = vdwg.mxu0
        %4278 = vmatprep.subr.mxu0 0.0
        %4279 = vmatpush1.msra.mxu0 %v3763
        %4280 = vmatprep.subr.mxu0 0.0
        %4281 = vmatpush1.msra.mxu0 %v3762
        %4282 = vmatprep.subr.mxu0 0.0
        %4283 = vmatpush1.msra.mxu0 %v3761
        %4284 = vmatprep.subr.mxu0 0.0
        %4285 = vmatpush1.msra.mxu0 %v3760
        %4286 = vmatprep.subr.mxu0 0.0
        %4287 = vmatpush1.msra.mxu0 %v3759
        %4288 = vmatprep.subr.mxu0 0.0
        %4289 = vmatpush1.msra.mxu0 %v3758
        %4290 = vmatprep.subr.mxu0 0.0
        %4291 = vmatpush1.msra.mxu0 %v3757
        %4292 = vmatprep.subr.mxu0 0.0
        %4293 = vmatpush1.msra.mxu0 %v3756
        %4294 = vmatprep.subr.mxu0 0.0
        %4295 = vmatpush1.msra.mxu0 %v3755
        %4296 = vmatprep.subr.mxu0 0.0
        %4297 = vmatpush1.msra.mxu0 %v3754
        %4298 = vmatprep.subr.mxu0 0.0
        %4299 = vmatpush1.msra.mxu0 %v3753
        %4300 = vmatprep.subr.mxu0 0.0
        %4301 = vmatpush1.msra.mxu0 %v3752
        %4302 = vmatprep.subr.mxu0 0.0
        %4303 = vmatpush1.msra.mxu0 %v3751
        %4304 = vmatprep.subr.mxu0 0.0
        %4305 = vmatpush1.msra.mxu0 %v3750
        %4306 = vmatprep.subr.mxu0 0.0
        %4307 = vmatpush1.msra.mxu0 %v3749
        %4308 = vmatprep.subr.mxu0 0.0
        %4309 = vmatpush1.msra.mxu0 %v3748
        %4310 = vmatprep.subr.mxu0 0.0
        %4311 = vmatpush2.msra.mxu0 %v3779
        %4312 = vmatprep.subr.mxu0 0.0
        %4313 = vmatpush2.msra.mxu0 %v3778
        %4314 = vmatprep.subr.mxu0 0.0
        %4315 = vmatpush2.msra.mxu0 %v3777
        %4316 = vmatprep.subr.mxu0 0.0
        %4317 = vmatpush2.msra.mxu0 %v3776
        %4318 = vmatprep.subr.mxu0 0.0
        %4319 = vmatpush2.msra.mxu0 %v3775
        %4320 = vmatprep.subr.mxu0 0.0
        %4321 = vmatpush2.msra.mxu0 %v3774
        %4322 = vmatprep.subr.mxu0 0.0
        %4323 = vmatpush2.msra.mxu0 %v3773
        %4324 = vmatprep.subr.mxu0 0.0
        %4325 = vmatpush2.msra.mxu0 %v3772
        %4326 = vmatprep.subr.mxu0 0.0
        %4327 = vmatpush2.msra.mxu0 %v3771
        %4328 = vmatprep.subr.mxu0 0.0
        %4329 = vmatpush2.msra.mxu0 %v3770
        %4330 = vmatprep.subr.mxu0 0.0
        %4331 = vmatpush2.msra.mxu0 %v3769
        %4332 = vmatprep.subr.mxu0 0.0
        %4333 = vmatpush2.msra.mxu0 %v3768
        %4334 = vmatprep.subr.mxu0 0.0
        %4335 = vmatpush2.msra.mxu0 %v3767
        %4336 = vmatprep.subr.mxu0 0.0
        %4337 = vmatpush2.msra.mxu0 %v3766
        %4338 = vmatprep.subr.mxu0 0.0
        %4339 = vmatpush2.msra.mxu0 %v3765
        %4340 = vmatprep.subr.mxu0 0.0
        %4341 = vmatpush2.msra.mxu0 %v3764
        %4342 = vmatprep.mubr.f32.mxu0 %v3401
        %4343 = vmatmul.mubr.f32.gmra.mxu0 %v3400
        %v4344 = vpop.f32.mrf.mxu0
        %v4345 = vadd.f32 %v4120, %v4344
        %v4346 = vpop.f32.mrf.mxu0
        %4347 = vmatprep.mubr.f32.mxu0 %v3410
        %4348 = vmatmul.mubr.f32.gmra.mxu0 %v3409
        %v4349 = vpop.f32.mrf.mxu0
        %v4350 = vadd.f32 %v4125, %v4349
        %v4351 = vpop.f32.mrf.mxu0
        %4352 = vmatprep.mubr.f32.mxu0 %v3419
        %4353 = vmatmul.mubr.f32.gmra.mxu0 %v3418
        %v4354 = vpop.f32.mrf.mxu0
        %v4355 = vadd.f32 %v4130, %v4354
        %v4356 = vpop.f32.mrf.mxu0
        %4357 = vmatprep.mubr.f32.mxu0 %v3428
        %4358 = vmatmul.mubr.f32.gmra.mxu0 %v3427
        %v4359 = vpop.f32.mrf.mxu0
        %v4360 = vadd.f32 %v4135, %v4359
        %v4361 = vpop.f32.mrf.mxu0
        %4362 = vmatprep.mubr.f32.mxu0 %v3437
        %4363 = vmatmul.mubr.f32.gmra.mxu0 %v3436
        %v4364 = vpop.f32.mrf.mxu0
        %v4365 = vadd.f32 %v4140, %v4364
        %v4366 = vpop.f32.mrf.mxu0
        %4367 = vmatprep.mubr.f32.mxu0 %v3446
        %4368 = vmatmul.mubr.f32.gmra.mxu0 %v3445
        %v4369 = vpop.f32.mrf.mxu0
        %v4370 = vadd.f32 %v4145, %v4369
        %v4371 = vpop.f32.mrf.mxu0
        %4372 = vmatprep.mubr.f32.mxu0 %v3455
        %4373 = vmatmul.mubr.f32.gmra.mxu0 %v3454
        %v4374 = vpop.f32.mrf.mxu0
        %v4375 = vadd.f32 %v4150, %v4374
        %v4376 = vpop.f32.mrf.mxu0
        %4377 = vmatprep.mubr.f32.mxu0 %v3464
        %4378 = vmatmul.mubr.f32.gmra.mxu0 %v3463
        %v4379 = vpop.f32.mrf.mxu0
        %v4380 = vadd.f32 %v4155, %v4379
        %v4381 = vpop.f32.mrf.mxu0
        %4382 = vmatprep.mubr.f32.mxu0 %v3473
        %4383 = vmatmul.mubr.f32.gmra.mxu0 %v3472
        %v4384 = vpop.f32.mrf.mxu0
        %v4385 = vadd.f32 %v4160, %v4384
        %v4386 = vpop.f32.mrf.mxu0
        %4387 = vmatprep.mubr.f32.mxu0 %v3482
        %4388 = vmatmul.mubr.f32.gmra.mxu0 %v3481
        %v4389 = vpop.f32.mrf.mxu0
        %v4390 = vadd.f32 %v4165, %v4389
        %v4391 = vpop.f32.mrf.mxu0
        %4392 = vmatprep.mubr.f32.mxu0 %v3491
        %4393 = vmatmul.mubr.f32.gmra.mxu0 %v3490
        %v4394 = vpop.f32.mrf.mxu0
        %v4395 = vadd.f32 %v4170, %v4394
        %v4396 = vpop.f32.mrf.mxu0
        %4397 = vmatprep.mubr.f32.mxu0 %v3500
        %4398 = vmatmul.mubr.f32.gmra.mxu0 %v3499
        %v4399 = vpop.f32.mrf.mxu0
        %v4400 = vadd.f32 %v4175, %v4399
        %v4401 = vpop.f32.mrf.mxu0
        %4402 = vmatprep.mubr.f32.mxu0 %v3509
        %4403 = vmatmul.mubr.f32.gmra.mxu0 %v3508
        %v4404 = vpop.f32.mrf.mxu0
        %v4405 = vadd.f32 %v4180, %v4404
        %v4406 = vpop.f32.mrf.mxu0
        %4407 = vmatprep.mubr.f32.mxu0 %v3518
        %4408 = vmatmul.mubr.f32.gmra.mxu0 %v3517
        %v4409 = vpop.f32.mrf.mxu0
        %v4410 = vadd.f32 %v4185, %v4409
        %v4411 = vpop.f32.mrf.mxu0
        %4412 = vmatprep.mubr.f32.mxu0 %v3527
        %4413 = vmatmul.mubr.f32.gmra.mxu0 %v3526
        %v4414 = vpop.f32.mrf.mxu0
        %v4415 = vadd.f32 %v4190, %v4414
        %v4416 = vpop.f32.mrf.mxu0
        %4417 = vmatprep.mubr.f32.mxu0 %v3536
        %4418 = vmatmul.mubr.f32.gmra.mxu0 %v3535
        %v4419 = vpop.f32.mrf.mxu0
        %v4420 = vadd.f32 %v4195, %v4419
        %v4421 = vpop.f32.mrf.mxu0
        %4422 = vmatprep.mubr.f32.mxu0 %v3545
        %4423 = vmatmul.mubr.f32.gmra.mxu0 %v3544
        %v4424 = vpop.f32.mrf.mxu0
        %v4425 = vadd.f32 %v4200, %v4424
        %v4426 = vpop.f32.mrf.mxu0
        %4427 = vmatprep.mubr.f32.mxu0 %v3554
        %4428 = vmatmul.mubr.f32.gmra.mxu0 %v3553
        %v4429 = vpop.f32.mrf.mxu0
        %v4430 = vadd.f32 %v4205, %v4429
        %v4431 = vpop.f32.mrf.mxu0
        %4432 = vmatprep.mubr.f32.mxu0 %v3563
        %4433 = vmatmul.mubr.f32.gmra.mxu0 %v3562
        %v4434 = vpop.f32.mrf.mxu0
        %v4435 = vadd.f32 %v4210, %v4434
        %v4436 = vpop.f32.mrf.mxu0
        %4437 = vmatprep.mubr.f32.mxu0 %v3572
        %4438 = vmatmul.mubr.f32.gmra.mxu0 %v3571
        %v4439 = vpop.f32.mrf.mxu0
        %v4440 = vadd.f32 %v4215, %v4439
        %v4441 = vpop.f32.mrf.mxu0
        %4442 = vmatprep.mubr.f32.mxu0 %v3581
        %4443 = vmatmul.mubr.f32.gmra.mxu0 %v3580
        %v4444 = vpop.f32.mrf.mxu0
        %v4445 = vadd.f32 %v4220, %v4444
        %v4446 = vpop.f32.mrf.mxu0
        %4447 = vmatprep.mubr.f32.mxu0 %v3590
        %4448 = vmatmul.mubr.f32.gmra.mxu0 %v3589
        %v4449 = vpop.f32.mrf.mxu0
        %v4450 = vadd.f32 %v4225, %v4449
        %v4451 = vpop.f32.mrf.mxu0
        %4452 = vmatprep.mubr.f32.mxu0 %v3599
        %4453 = vmatmul.mubr.f32.gmra.mxu0 %v3598
        %v4454 = vpop.f32.mrf.mxu0
        %v4455 = vadd.f32 %v4230, %v4454
        %v4456 = vpop.f32.mrf.mxu0
        %4457 = vmatprep.mubr.f32.mxu0 %v3608
        %4458 = vmatmul.mubr.f32.gmra.mxu0 %v3607
        %v4459 = vpop.f32.mrf.mxu0
        %v4460 = vadd.f32 %v4235, %v4459
        %v4461 = vpop.f32.mrf.mxu0
        %4462 = vmatprep.mubr.f32.mxu0 %v3617
        %4463 = vmatmul.mubr.f32.gmra.mxu0 %v3616
        %v4464 = vpop.f32.mrf.mxu0
        %v4465 = vadd.f32 %v4240, %v4464
        %v4466 = vpop.f32.mrf.mxu0
        %4467 = vmatprep.mubr.f32.mxu0 %v3626
        %4468 = vmatmul.mubr.f32.gmra.mxu0 %v3625
        %v4469 = vpop.f32.mrf.mxu0
        %v4470 = vadd.f32 %v4245, %v4469
        %v4471 = vpop.f32.mrf.mxu0
        %4472 = vmatprep.mubr.f32.mxu0 %v3635
        %4473 = vmatmul.mubr.f32.gmra.mxu0 %v3634
        %v4474 = vpop.f32.mrf.mxu0
        %v4475 = vadd.f32 %v4250, %v4474
        %v4476 = vpop.f32.mrf.mxu0
        %4477 = vmatprep.mubr.f32.mxu0 %v3644
        %4478 = vmatmul.mubr.f32.gmra.mxu0 %v3643
        %v4479 = vpop.f32.mrf.mxu0
        %v4480 = vadd.f32 %v4255, %v4479
        %v4481 = vpop.f32.mrf.mxu0
        %4482 = vmatprep.mubr.f32.mxu0 %v3653
        %4483 = vmatmul.mubr.f32.gmra.mxu0 %v3652
        %v4484 = vpop.f32.mrf.mxu0
        %v4485 = vadd.f32 %v4260, %v4484
        %v4486 = vpop.f32.mrf.mxu0
        %4487 = vmatprep.mubr.f32.mxu0 %v3662
        %4488 = vmatmul.mubr.f32.gmra.mxu0 %v3661
        %v4489 = vpop.f32.mrf.mxu0
        %v4490 = vadd.f32 %v4265, %v4489
        %v4491 = vpop.f32.mrf.mxu0
        %4492 = vmatprep.mubr.f32.mxu0 %v3671
        %4493 = vmatmul.mubr.f32.gmra.mxu0 %v3670
        %v4494 = vpop.f32.mrf.mxu0
        %v4495 = vadd.f32 %v4270, %v4494
        %v4496 = vpop.f32.mrf.mxu0
        %4497 = vmatprep.mubr.f32.mxu0 %v3680
        %4498 = vmatmul.mubr.f32.gmra.mxu0 %v3679
        %v4499 = vpop.f32.mrf.mxu0
        %v4500 = vadd.f32 %v4275, %v4499
        %v4501 = vpop.f32.mrf.mxu0
        %4502 = vdwg.mxu0
        %4503 = vmatprep.subr.mxu0 0.0
        %4504 = vmatpush1.msra.mxu0 %v3795
        %4505 = vmatprep.subr.mxu0 0.0
        %4506 = vmatpush1.msra.mxu0 %v3794
        %4507 = vmatprep.subr.mxu0 0.0
        %4508 = vmatpush1.msra.mxu0 %v3793
        %4509 = vmatprep.subr.mxu0 0.0
        %4510 = vmatpush1.msra.mxu0 %v3792
        %4511 = vmatprep.subr.mxu0 0.0
        %4512 = vmatpush1.msra.mxu0 %v3791
        %4513 = vmatprep.subr.mxu0 0.0
        %4514 = vmatpush1.msra.mxu0 %v3790
        %4515 = vmatprep.subr.mxu0 0.0
        %4516 = vmatpush1.msra.mxu0 %v3789
        %4517 = vmatprep.subr.mxu0 0.0
        %4518 = vmatpush1.msra.mxu0 %v3788
        %4519 = vmatprep.subr.mxu0 0.0
        %4520 = vmatpush1.msra.mxu0 %v3787
        %4521 = vmatprep.subr.mxu0 0.0
        %4522 = vmatpush1.msra.mxu0 %v3786
        %4523 = vmatprep.subr.mxu0 0.0
        %4524 = vmatpush1.msra.mxu0 %v3785
        %4525 = vmatprep.subr.mxu0 0.0
        %4526 = vmatpush1.msra.mxu0 %v3784
        %4527 = vmatprep.subr.mxu0 0.0
        %4528 = vmatpush1.msra.mxu0 %v3783
        %4529 = vmatprep.subr.mxu0 0.0
        %4530 = vmatpush1.msra.mxu0 %v3782
        %4531 = vmatprep.subr.mxu0 0.0
        %4532 = vmatpush1.msra.mxu0 %v3781
        %4533 = vmatprep.subr.mxu0 0.0
        %4534 = vmatpush1.msra.mxu0 %v3780
        %4535 = vmatprep.subr.mxu0 0.0
        %4536 = vmatpush2.msra.mxu0 %v3811
        %4537 = vmatprep.subr.mxu0 0.0
        %4538 = vmatpush2.msra.mxu0 %v3810
        %4539 = vmatprep.subr.mxu0 0.0
        %4540 = vmatpush2.msra.mxu0 %v3809
        %4541 = vmatprep.subr.mxu0 0.0
        %4542 = vmatpush2.msra.mxu0 %v3808
        %4543 = vmatprep.subr.mxu0 0.0
        %4544 = vmatpush2.msra.mxu0 %v3807
        %4545 = vmatprep.subr.mxu0 0.0
        %4546 = vmatpush2.msra.mxu0 %v3806
        %4547 = vmatprep.subr.mxu0 0.0
        %4548 = vmatpush2.msra.mxu0 %v3805
        %4549 = vmatprep.subr.mxu0 0.0
        %4550 = vmatpush2.msra.mxu0 %v3804
        %4551 = vmatprep.subr.mxu0 0.0
        %4552 = vmatpush2.msra.mxu0 %v3803
        %4553 = vmatprep.subr.mxu0 0.0
        %4554 = vmatpush2.msra.mxu0 %v3802
        %4555 = vmatprep.subr.mxu0 0.0
        %4556 = vmatpush2.msra.mxu0 %v3801
        %4557 = vmatprep.subr.mxu0 0.0
        %4558 = vmatpush2.msra.mxu0 %v3800
        %4559 = vmatprep.subr.mxu0 0.0
        %4560 = vmatpush2.msra.mxu0 %v3799
        %4561 = vmatprep.subr.mxu0 0.0
        %4562 = vmatpush2.msra.mxu0 %v3798
        %4563 = vmatprep.subr.mxu0 0.0
        %4564 = vmatpush2.msra.mxu0 %v3797
        %4565 = vmatprep.subr.mxu0 0.0
        %4566 = vmatpush2.msra.mxu0 %v3796
        %4567 = vmatprep.mubr.f32.mxu0 %v3403
        %4568 = vmatmul.mubr.f32.gmra.mxu0 %v3402
        %v4569 = vpop.f32.mrf.mxu0
        %v4570 = vadd.f32 %v4345, %v4569
        %v4571 = vpop.f32.mrf.mxu0
        %4572 = vmatprep.mubr.f32.mxu0 %v3412
        %4573 = vmatmul.mubr.f32.gmra.mxu0 %v3411
        %v4574 = vpop.f32.mrf.mxu0
        %v4575 = vadd.f32 %v4350, %v4574
        %v4576 = vpop.f32.mrf.mxu0
        %4577 = vmatprep.mubr.f32.mxu0 %v3421
        %4578 = vmatmul.mubr.f32.gmra.mxu0 %v3420
        %v4579 = vpop.f32.mrf.mxu0
        %v4580 = vadd.f32 %v4355, %v4579
        %v4581 = vpop.f32.mrf.mxu0
        %4582 = vmatprep.mubr.f32.mxu0 %v3430
        %4583 = vmatmul.mubr.f32.gmra.mxu0 %v3429
        %v4584 = vpop.f32.mrf.mxu0
        %v4585 = vadd.f32 %v4360, %v4584
        %v4586 = vpop.f32.mrf.mxu0
        %4587 = vmatprep.mubr.f32.mxu0 %v3439
        %4588 = vmatmul.mubr.f32.gmra.mxu0 %v3438
        %v4589 = vpop.f32.mrf.mxu0
        %v4590 = vadd.f32 %v4365, %v4589
        %v4591 = vpop.f32.mrf.mxu0
        %4592 = vmatprep.mubr.f32.mxu0 %v3448
        %4593 = vmatmul.mubr.f32.gmra.mxu0 %v3447
        %v4594 = vpop.f32.mrf.mxu0
        %v4595 = vadd.f32 %v4370, %v4594
        %v4596 = vpop.f32.mrf.mxu0
        %4597 = vmatprep.mubr.f32.mxu0 %v3457
        %4598 = vmatmul.mubr.f32.gmra.mxu0 %v3456
        %v4599 = vpop.f32.mrf.mxu0
        %v4600 = vadd.f32 %v4375, %v4599
        %v4601 = vpop.f32.mrf.mxu0
        %4602 = vmatprep.mubr.f32.mxu0 %v3466
        %4603 = vmatmul.mubr.f32.gmra.mxu0 %v3465
        %v4604 = vpop.f32.mrf.mxu0
        %v4605 = vadd.f32 %v4380, %v4604
        %v4606 = vpop.f32.mrf.mxu0
        %4607 = vmatprep.mubr.f32.mxu0 %v3475
        %4608 = vmatmul.mubr.f32.gmra.mxu0 %v3474
        %v4609 = vpop.f32.mrf.mxu0
        %v4610 = vadd.f32 %v4385, %v4609
        %v4611 = vpop.f32.mrf.mxu0
        %4612 = vmatprep.mubr.f32.mxu0 %v3484
        %4613 = vmatmul.mubr.f32.gmra.mxu0 %v3483
        %v4614 = vpop.f32.mrf.mxu0
        %v4615 = vadd.f32 %v4390, %v4614
        %v4616 = vpop.f32.mrf.mxu0
        %4617 = vmatprep.mubr.f32.mxu0 %v3493
        %4618 = vmatmul.mubr.f32.gmra.mxu0 %v3492
        %v4619 = vpop.f32.mrf.mxu0
        %v4620 = vadd.f32 %v4395, %v4619
        %v4621 = vpop.f32.mrf.mxu0
        %4622 = vmatprep.mubr.f32.mxu0 %v3502
        %4623 = vmatmul.mubr.f32.gmra.mxu0 %v3501
        %v4624 = vpop.f32.mrf.mxu0
        %v4625 = vadd.f32 %v4400, %v4624
        %v4626 = vpop.f32.mrf.mxu0
        %4627 = vmatprep.mubr.f32.mxu0 %v3511
        %4628 = vmatmul.mubr.f32.gmra.mxu0 %v3510
        %v4629 = vpop.f32.mrf.mxu0
        %v4630 = vadd.f32 %v4405, %v4629
        %v4631 = vpop.f32.mrf.mxu0
        %4632 = vmatprep.mubr.f32.mxu0 %v3520
        %4633 = vmatmul.mubr.f32.gmra.mxu0 %v3519
        %v4634 = vpop.f32.mrf.mxu0
        %v4635 = vadd.f32 %v4410, %v4634
        %v4636 = vpop.f32.mrf.mxu0
        %4637 = vmatprep.mubr.f32.mxu0 %v3529
        %4638 = vmatmul.mubr.f32.gmra.mxu0 %v3528
        %v4639 = vpop.f32.mrf.mxu0
        %v4640 = vadd.f32 %v4415, %v4639
        %v4641 = vpop.f32.mrf.mxu0
        %4642 = vmatprep.mubr.f32.mxu0 %v3538
        %4643 = vmatmul.mubr.f32.gmra.mxu0 %v3537
        %v4644 = vpop.f32.mrf.mxu0
        %v4645 = vadd.f32 %v4420, %v4644
        %v4646 = vpop.f32.mrf.mxu0
        %4647 = vmatprep.mubr.f32.mxu0 %v3547
        %4648 = vmatmul.mubr.f32.gmra.mxu0 %v3546
        %v4649 = vpop.f32.mrf.mxu0
        %v4650 = vadd.f32 %v4425, %v4649
        %v4651 = vpop.f32.mrf.mxu0
        %4652 = vmatprep.mubr.f32.mxu0 %v3556
        %4653 = vmatmul.mubr.f32.gmra.mxu0 %v3555
        %v4654 = vpop.f32.mrf.mxu0
        %v4655 = vadd.f32 %v4430, %v4654
        %v4656 = vpop.f32.mrf.mxu0
        %4657 = vmatprep.mubr.f32.mxu0 %v3565
        %4658 = vmatmul.mubr.f32.gmra.mxu0 %v3564
        %v4659 = vpop.f32.mrf.mxu0
        %v4660 = vadd.f32 %v4435, %v4659
        %v4661 = vpop.f32.mrf.mxu0
        %4662 = vmatprep.mubr.f32.mxu0 %v3574
        %4663 = vmatmul.mubr.f32.gmra.mxu0 %v3573
        %v4664 = vpop.f32.mrf.mxu0
        %v4665 = vadd.f32 %v4440, %v4664
        %v4666 = vpop.f32.mrf.mxu0
        %4667 = vmatprep.mubr.f32.mxu0 %v3583
        %4668 = vmatmul.mubr.f32.gmra.mxu0 %v3582
        %v4669 = vpop.f32.mrf.mxu0
        %v4670 = vadd.f32 %v4445, %v4669
        %v4671 = vpop.f32.mrf.mxu0
        %4672 = vmatprep.mubr.f32.mxu0 %v3592
        %4673 = vmatmul.mubr.f32.gmra.mxu0 %v3591
        %v4674 = vpop.f32.mrf.mxu0
        %v4675 = vadd.f32 %v4450, %v4674
        %v4676 = vpop.f32.mrf.mxu0
        %4677 = vmatprep.mubr.f32.mxu0 %v3601
        %4678 = vmatmul.mubr.f32.gmra.mxu0 %v3600
        %v4679 = vpop.f32.mrf.mxu0
        %v4680 = vadd.f32 %v4455, %v4679
        %v4681 = vpop.f32.mrf.mxu0
        %4682 = vmatprep.mubr.f32.mxu0 %v3610
        %4683 = vmatmul.mubr.f32.gmra.mxu0 %v3609
        %v4684 = vpop.f32.mrf.mxu0
        %v4685 = vadd.f32 %v4460, %v4684
        %v4686 = vpop.f32.mrf.mxu0
        %4687 = vmatprep.mubr.f32.mxu0 %v3619
        %4688 = vmatmul.mubr.f32.gmra.mxu0 %v3618
        %v4689 = vpop.f32.mrf.mxu0
        %v4690 = vadd.f32 %v4465, %v4689
        %v4691 = vpop.f32.mrf.mxu0
        %4692 = vmatprep.mubr.f32.mxu0 %v3628
        %4693 = vmatmul.mubr.f32.gmra.mxu0 %v3627
        %v4694 = vpop.f32.mrf.mxu0
        %v4695 = vadd.f32 %v4470, %v4694
        %v4696 = vpop.f32.mrf.mxu0
        %4697 = vmatprep.mubr.f32.mxu0 %v3637
        %4698 = vmatmul.mubr.f32.gmra.mxu0 %v3636
        %v4699 = vpop.f32.mrf.mxu0
        %v4700 = vadd.f32 %v4475, %v4699
        %v4701 = vpop.f32.mrf.mxu0
        %4702 = vmatprep.mubr.f32.mxu0 %v3646
        %4703 = vmatmul.mubr.f32.gmra.mxu0 %v3645
        %v4704 = vpop.f32.mrf.mxu0
        %v4705 = vadd.f32 %v4480, %v4704
        %v4706 = vpop.f32.mrf.mxu0
        %4707 = vmatprep.mubr.f32.mxu0 %v3655
        %4708 = vmatmul.mubr.f32.gmra.mxu0 %v3654
        %v4709 = vpop.f32.mrf.mxu0
        %v4710 = vadd.f32 %v4485, %v4709
        %v4711 = vpop.f32.mrf.mxu0
        %4712 = vmatprep.mubr.f32.mxu0 %v3664
        %4713 = vmatmul.mubr.f32.gmra.mxu0 %v3663
        %v4714 = vpop.f32.mrf.mxu0
        %v4715 = vadd.f32 %v4490, %v4714
        %v4716 = vpop.f32.mrf.mxu0
        %4717 = vmatprep.mubr.f32.mxu0 %v3673
        %4718 = vmatmul.mubr.f32.gmra.mxu0 %v3672
        %v4719 = vpop.f32.mrf.mxu0
        %v4720 = vadd.f32 %v4495, %v4719
        %v4721 = vpop.f32.mrf.mxu0
        %4722 = vmatprep.mubr.f32.mxu0 %v3682
        %4723 = vmatmul.mubr.f32.gmra.mxu0 %v3681
        %v4724 = vpop.f32.mrf.mxu0
        %v4725 = vadd.f32 %v4500, %v4724
        %v4726 = vpop.f32.mrf.mxu0
        %4727 = vdwg.mxu0
        %4728 = vmatprep.subr.mxu0 0.0
        %4729 = vmatpush1.msra.mxu0 %v3827
        %4730 = vmatprep.subr.mxu0 0.0
        %4731 = vmatpush1.msra.mxu0 %v3826
        %4732 = vmatprep.subr.mxu0 0.0
        %4733 = vmatpush1.msra.mxu0 %v3825
        %4734 = vmatprep.subr.mxu0 0.0
        %4735 = vmatpush1.msra.mxu0 %v3824
        %4736 = vmatprep.subr.mxu0 0.0
        %4737 = vmatpush1.msra.mxu0 %v3823
        %4738 = vmatprep.subr.mxu0 0.0
        %4739 = vmatpush1.msra.mxu0 %v3822
        %4740 = vmatprep.subr.mxu0 0.0
        %4741 = vmatpush1.msra.mxu0 %v3821
        %4742 = vmatprep.subr.mxu0 0.0
        %4743 = vmatpush1.msra.mxu0 %v3820
        %4744 = vmatprep.subr.mxu0 0.0
        %4745 = vmatpush1.msra.mxu0 %v3819
        %4746 = vmatprep.subr.mxu0 0.0
        %4747 = vmatpush1.msra.mxu0 %v3818
        %4748 = vmatprep.subr.mxu0 0.0
        %4749 = vmatpush1.msra.mxu0 %v3817
        %4750 = vmatprep.subr.mxu0 0.0
        %4751 = vmatpush1.msra.mxu0 %v3816
        %4752 = vmatprep.subr.mxu0 0.0
        %4753 = vmatpush1.msra.mxu0 %v3815
        %4754 = vmatprep.subr.mxu0 0.0
        %4755 = vmatpush1.msra.mxu0 %v3814
        %4756 = vmatprep.subr.mxu0 0.0
        %4757 = vmatpush1.msra.mxu0 %v3813
        %4758 = vmatprep.subr.mxu0 0.0
        %4759 = vmatpush1.msra.mxu0 %v3812
        %4760 = vmatprep.subr.mxu0 0.0
        %4761 = vmatpush2.msra.mxu0 0.0
        %4762 = vmatprep.subr.mxu0 0.0
        %4763 = vmatpush2.msra.mxu0 0.0
        %4764 = vmatprep.subr.mxu0 0.0
        %4765 = vmatpush2.msra.mxu0 0.0
        %4766 = vmatprep.subr.mxu0 0.0
        %4767 = vmatpush2.msra.mxu0 0.0
        %4768 = vmatprep.subr.mxu0 0.0
        %4769 = vmatpush2.msra.mxu0 0.0
        %4770 = vmatprep.subr.mxu0 0.0
        %4771 = vmatpush2.msra.mxu0 0.0
        %4772 = vmatprep.subr.mxu0 0.0
        %4773 = vmatpush2.msra.mxu0 0.0
        %4774 = vmatprep.subr.mxu0 0.0
        %4775 = vmatpush2.msra.mxu0 0.0
        %4776 = vmatprep.subr.mxu0 0.0
        %4777 = vmatpush2.msra.mxu0 0.0
        %4778 = vmatprep.subr.mxu0 0.0
        %4779 = vmatpush2.msra.mxu0 0.0
        %4780 = vmatprep.subr.mxu0 0.0
        %4781 = vmatpush2.msra.mxu0 0.0
        %4782 = vmatprep.subr.mxu0 0.0
        %4783 = vmatpush2.msra.mxu0 0.0
        %4784 = vmatprep.subr.mxu0 0.0
        %4785 = vmatpush2.msra.mxu0 0.0
        %4786 = vmatprep.subr.mxu0 0.0
        %4787 = vmatpush2.msra.mxu0 0.0
        %4788 = vmatprep.subr.mxu0 0.0
        %4789 = vmatpush2.msra.mxu0 0.0
        %4790 = vmatprep.subr.mxu0 0.0
        %4791 = vmatpush2.msra.mxu0 0.0
        %4792 = vmatprep.mubr.f32.mxu0 0.0
        %4793 = vmatmul.mubr.f32.gmra.mxu0 %v3404
        %v4794 = vpop.f32.mrf.mxu0
        %v4795 = vadd.f32 %v4570, %v4794
        %v4796 = vpop.f32.mrf.mxu0
        %4797 = vmatprep.mubr.f32.mxu0 0.0
        %4798 = vmatmul.mubr.f32.gmra.mxu0 %v3413
        %v4799 = vpop.f32.mrf.mxu0
        %v4800 = vadd.f32 %v4575, %v4799
        %v4801 = vpop.f32.mrf.mxu0
        %4802 = vmatprep.mubr.f32.mxu0 0.0
        %4803 = vmatmul.mubr.f32.gmra.mxu0 %v3422
        %v4804 = vpop.f32.mrf.mxu0
        %v4805 = vadd.f32 %v4580, %v4804
        %v4806 = vpop.f32.mrf.mxu0
        %4807 = vmatprep.mubr.f32.mxu0 0.0
        %4808 = vmatmul.mubr.f32.gmra.mxu0 %v3431
        %v4809 = vpop.f32.mrf.mxu0
        %v4810 = vadd.f32 %v4585, %v4809
        %v4811 = vpop.f32.mrf.mxu0
        %4812 = vmatprep.mubr.f32.mxu0 0.0
        %4813 = vmatmul.mubr.f32.gmra.mxu0 %v3440
        %v4814 = vpop.f32.mrf.mxu0
        %v4815 = vadd.f32 %v4590, %v4814
        %v4816 = vpop.f32.mrf.mxu0
        %4817 = vmatprep.mubr.f32.mxu0 0.0
        %4818 = vmatmul.mubr.f32.gmra.mxu0 %v3449
        %v4819 = vpop.f32.mrf.mxu0
        %v4820 = vadd.f32 %v4595, %v4819
        %v4821 = vpop.f32.mrf.mxu0
        %4822 = vmatprep.mubr.f32.mxu0 0.0
        %4823 = vmatmul.mubr.f32.gmra.mxu0 %v3458
        %v4824 = vpop.f32.mrf.mxu0
        %v4825 = vadd.f32 %v4600, %v4824
        %v4826 = vpop.f32.mrf.mxu0
        %4827 = vmatprep.mubr.f32.mxu0 0.0
        %4828 = vmatmul.mubr.f32.gmra.mxu0 %v3467
        %v4829 = vpop.f32.mrf.mxu0
        %v4830 = vadd.f32 %v4605, %v4829
        %v4831 = vpop.f32.mrf.mxu0
        %4832 = vmatprep.mubr.f32.mxu0 0.0
        %4833 = vmatmul.mubr.f32.gmra.mxu0 %v3476
        %v4834 = vpop.f32.mrf.mxu0
        %v4835 = vadd.f32 %v4610, %v4834
        %v4836 = vpop.f32.mrf.mxu0
        %4837 = vmatprep.mubr.f32.mxu0 0.0
        %4838 = vmatmul.mubr.f32.gmra.mxu0 %v3485
        %v4839 = vpop.f32.mrf.mxu0
        %v4840 = vadd.f32 %v4615, %v4839
        %v4841 = vpop.f32.mrf.mxu0
        %4842 = vmatprep.mubr.f32.mxu0 0.0
        %4843 = vmatmul.mubr.f32.gmra.mxu0 %v3494
        %v4844 = vpop.f32.mrf.mxu0
        %v4845 = vadd.f32 %v4620, %v4844
        %v4846 = vpop.f32.mrf.mxu0
        %4847 = vmatprep.mubr.f32.mxu0 0.0
        %4848 = vmatmul.mubr.f32.gmra.mxu0 %v3503
        %v4849 = vpop.f32.mrf.mxu0
        %v4850 = vadd.f32 %v4625, %v4849
        %v4851 = vpop.f32.mrf.mxu0
        %4852 = vmatprep.mubr.f32.mxu0 0.0
        %4853 = vmatmul.mubr.f32.gmra.mxu0 %v3512
        %v4854 = vpop.f32.mrf.mxu0
        %v4855 = vadd.f32 %v4630, %v4854
        %v4856 = vpop.f32.mrf.mxu0
        %4857 = vmatprep.mubr.f32.mxu0 0.0
        %4858 = vmatmul.mubr.f32.gmra.mxu0 %v3521
        %v4859 = vpop.f32.mrf.mxu0
        %v4860 = vadd.f32 %v4635, %v4859
        %v4861 = vpop.f32.mrf.mxu0
        %4862 = vmatprep.mubr.f32.mxu0 0.0
        %4863 = vmatmul.mubr.f32.gmra.mxu0 %v3530
        %v4864 = vpop.f32.mrf.mxu0
        %v4865 = vadd.f32 %v4640, %v4864
        %v4866 = vpop.f32.mrf.mxu0
        %4867 = vmatprep.mubr.f32.mxu0 0.0
        %4868 = vmatmul.mubr.f32.gmra.mxu0 %v3539
        %v4869 = vpop.f32.mrf.mxu0
        %v4870 = vadd.f32 %v4645, %v4869
        %v4871 = vpop.f32.mrf.mxu0
        %4872 = vmatprep.mubr.f32.mxu0 0.0
        %4873 = vmatmul.mubr.f32.gmra.mxu0 %v3548
        %v4874 = vpop.f32.mrf.mxu0
        %v4875 = vadd.f32 %v4650, %v4874
        %v4876 = vpop.f32.mrf.mxu0
        %4877 = vmatprep.mubr.f32.mxu0 0.0
        %4878 = vmatmul.mubr.f32.gmra.mxu0 %v3557
        %v4879 = vpop.f32.mrf.mxu0
        %v4880 = vadd.f32 %v4655, %v4879
        %v4881 = vpop.f32.mrf.mxu0
        %4882 = vmatprep.mubr.f32.mxu0 0.0
        %4883 = vmatmul.mubr.f32.gmra.mxu0 %v3566
        %v4884 = vpop.f32.mrf.mxu0
        %v4885 = vadd.f32 %v4660, %v4884
        %v4886 = vpop.f32.mrf.mxu0
        %4887 = vmatprep.mubr.f32.mxu0 0.0
        %4888 = vmatmul.mubr.f32.gmra.mxu0 %v3575
        %v4889 = vpop.f32.mrf.mxu0
        %v4890 = vadd.f32 %v4665, %v4889
        %v4891 = vpop.f32.mrf.mxu0
        %4892 = vmatprep.mubr.f32.mxu0 0.0
        %4893 = vmatmul.mubr.f32.gmra.mxu0 %v3584
        %v4894 = vpop.f32.mrf.mxu0
        %v4895 = vadd.f32 %v4670, %v4894
        %v4896 = vpop.f32.mrf.mxu0
        %4897 = vmatprep.mubr.f32.mxu0 0.0
        %4898 = vmatmul.mubr.f32.gmra.mxu0 %v3593
        %v4899 = vpop.f32.mrf.mxu0
        %v4900 = vadd.f32 %v4675, %v4899
        %v4901 = vpop.f32.mrf.mxu0
        %4902 = vmatprep.mubr.f32.mxu0 0.0
        %4903 = vmatmul.mubr.f32.gmra.mxu0 %v3602
        %v4904 = vpop.f32.mrf.mxu0
        %v4905 = vadd.f32 %v4680, %v4904
        %v4906 = vpop.f32.mrf.mxu0
        %4907 = vmatprep.mubr.f32.mxu0 0.0
        %4908 = vmatmul.mubr.f32.gmra.mxu0 %v3611
        %v4909 = vpop.f32.mrf.mxu0
        %v4910 = vadd.f32 %v4685, %v4909
        %v4911 = vpop.f32.mrf.mxu0
        %4912 = vmatprep.mubr.f32.mxu0 0.0
        %4913 = vmatmul.mubr.f32.gmra.mxu0 %v3620
        %v4914 = vpop.f32.mrf.mxu0
        %v4915 = vadd.f32 %v4690, %v4914
        %v4916 = vpop.f32.mrf.mxu0
        %4917 = vmatprep.mubr.f32.mxu0 0.0
        %4918 = vmatmul.mubr.f32.gmra.mxu0 %v3629
        %v4919 = vpop.f32.mrf.mxu0
        %v4920 = vadd.f32 %v4695, %v4919
        %v4921 = vpop.f32.mrf.mxu0
        %4922 = vmatprep.mubr.f32.mxu0 0.0
        %4923 = vmatmul.mubr.f32.gmra.mxu0 %v3638
        %v4924 = vpop.f32.mrf.mxu0
        %v4925 = vadd.f32 %v4700, %v4924
        %v4926 = vpop.f32.mrf.mxu0
        %4927 = vmatprep.mubr.f32.mxu0 0.0
        %4928 = vmatmul.mubr.f32.gmra.mxu0 %v3647
        %v4929 = vpop.f32.mrf.mxu0
        %v4930 = vadd.f32 %v4705, %v4929
        %v4931 = vpop.f32.mrf.mxu0
        %4932 = vmatprep.mubr.f32.mxu0 0.0
        %4933 = vmatmul.mubr.f32.gmra.mxu0 %v3656
        %v4934 = vpop.f32.mrf.mxu0
        %v4935 = vadd.f32 %v4710, %v4934
        %v4936 = vpop.f32.mrf.mxu0
        %4937 = vmatprep.mubr.f32.mxu0 0.0
        %4938 = vmatmul.mubr.f32.gmra.mxu0 %v3665
        %v4939 = vpop.f32.mrf.mxu0
        %v4940 = vadd.f32 %v4715, %v4939
        %v4941 = vpop.f32.mrf.mxu0
        %4942 = vmatprep.mubr.f32.mxu0 0.0
        %4943 = vmatmul.mubr.f32.gmra.mxu0 %v3674
        %v4944 = vpop.f32.mrf.mxu0
        %v4945 = vadd.f32 %v4720, %v4944
        %v4946 = vpop.f32.mrf.mxu0
        %4947 = vmatprep.mubr.f32.mxu0 0.0
        %4948 = vmatmul.mubr.f32.gmra.mxu0 %v3683
        %v4949 = vpop.f32.mrf.mxu0
        %v4950 = vadd.f32 %v4725, %v4949
        %v4951 = vpop.f32.mrf.mxu0
        %4952 = vdwg.mxu0
        %v4953 = vadd.f32 %v4795, %v4800
        %v4954 = vadd.f32 %v4953, %v4805
        %v4955 = vadd.f32 %v4954, %v4810
        %v4956 = vadd.f32 %v4955, %v4815
        %v4957 = vadd.f32 %v4956, %v4820
        %v4958 = vadd.f32 %v4957, %v4825
        %v4959 = vadd.f32 %v4958, %v4830
        %v4960 = vadd.f32 %v4959, %v4835
        %v4961 = vadd.f32 %v4960, %v4840
        %v4962 = vadd.f32 %v4961, %v4845
        %v4963 = vadd.f32 %v4962, %v4850
        %v4964 = vadd.f32 %v4963, %v4855
        %v4965 = vadd.f32 %v4964, %v4860
        %v4966 = vadd.f32 %v4965, %v4865
        %v4967 = vadd.f32 %v4966, %v4870
        %v4968 = vadd.f32 %v4967, %v4875
        %v4969 = vadd.f32 %v4968, %v4880
        %v4970 = vadd.f32 %v4969, %v4885
        %v4971 = vadd.f32 %v4970, %v4890
        %v4972 = vadd.f32 %v4971, %v4895
        %v4973 = vadd.f32 %v4972, %v4900
        %v4974 = vadd.f32 %v4973, %v4905
        %v4975 = vadd.f32 %v4974, %v4910
        %v4976 = vadd.f32 %v4975, %v4915
        %v4977 = vadd.f32 %v4976, %v4920
        %v4978 = vadd.f32 %v4977, %v4925
        %v4979 = vadd.f32 %v4978, %v4930
        %v4980 = vadd.f32 %v4979, %v4935
        %v4981 = vadd.f32 %v4980, %v4940
        %v4982 = vadd.f32 %v4981, %v4945
        %v4983 = vadd.f32 %v4982, %v4950
        %v4984 = vrot.slane %v4983, 4
        %v4985 = vadd.f32 %v4983, %v4984
        %v4986 = vrot.slane %v4985, 2
        %v4987 = vadd.f32 %v4985, %v4986
        %v4988 = vrot.slane %v4987, 1
        %v4989 = vadd.f32 %v4987, %v4988
        %v4990 = vmul.f32 %v4989, 0.00390625
        %v4991 = vmul.f32 %v4795, %v4795
        %v4992 = vmul.f32 %v4800, %v4800
        %v4993 = vmul.f32 %v4805, %v4805
        %v4994 = vmul.f32 %v4810, %v4810
        %v4995 = vmul.f32 %v4815, %v4815
        %v4996 = vmul.f32 %v4820, %v4820
        %v4997 = vmul.f32 %v4825, %v4825
        %v4998 = vmul.f32 %v4830, %v4830
        %v4999 = vmul.f32 %v4835, %v4835
        %v5000 = vmul.f32 %v4840, %v4840
        %v5001 = vmul.f32 %v4845, %v4845
        %v5002 = vmul.f32 %v4850, %v4850
        %v5003 = vmul.f32 %v4855, %v4855
        %v5004 = vmul.f32 %v4860, %v4860
        %v5005 = vmul.f32 %v4865, %v4865
        %v5006 = vmul.f32 %v4870, %v4870
        %v5007 = vmul.f32 %v4875, %v4875
        %v5008 = vmul.f32 %v4880, %v4880
        %v5009 = vmul.f32 %v4885, %v4885
        %v5010 = vmul.f32 %v4890, %v4890
        %v5011 = vmul.f32 %v4895, %v4895
        %v5012 = vmul.f32 %v4900, %v4900
        %v5013 = vmul.f32 %v4905, %v4905
        %v5014 = vmul.f32 %v4910, %v4910
        %v5015 = vmul.f32 %v4915, %v4915
        %v5016 = vmul.f32 %v4920, %v4920
        %v5017 = vmul.f32 %v4925, %v4925
        %v5018 = vmul.f32 %v4930, %v4930
        %v5019 = vmul.f32 %v4935, %v4935
        %v5020 = vmul.f32 %v4940, %v4940
        %v5021 = vmul.f32 %v4945, %v4945
        %v5022 = vmul.f32 %v4950, %v4950
        %v5023 = vadd.f32 %v4991, %v4992
        %v5024 = vadd.f32 %v5023, %v4993
        %v5025 = vadd.f32 %v5024, %v4994
        %v5026 = vadd.f32 %v5025, %v4995
        %v5027 = vadd.f32 %v5026, %v4996
        %v5028 = vadd.f32 %v5027, %v4997
        %v5029 = vadd.f32 %v5028, %v4998
        %v5030 = vadd.f32 %v5029, %v4999
        %v5031 = vadd.f32 %v5030, %v5000
        %v5032 = vadd.f32 %v5031, %v5001
        %v5033 = vadd.f32 %v5032, %v5002
        %v5034 = vadd.f32 %v5033, %v5003
        %v5035 = vadd.f32 %v5034, %v5004
        %v5036 = vadd.f32 %v5035, %v5005
        %v5037 = vadd.f32 %v5036, %v5006
        %v5038 = vadd.f32 %v5037, %v5007
        %v5039 = vadd.f32 %v5038, %v5008
        %v5040 = vadd.f32 %v5039, %v5009
        %v5041 = vadd.f32 %v5040, %v5010
        %v5042 = vadd.f32 %v5041, %v5011
        %v5043 = vadd.f32 %v5042, %v5012
        %v5044 = vadd.f32 %v5043, %v5013
        %v5045 = vadd.f32 %v5044, %v5014
        %v5046 = vadd.f32 %v5045, %v5015
        %v5047 = vadd.f32 %v5046, %v5016
        %v5048 = vadd.f32 %v5047, %v5017
        %v5049 = vadd.f32 %v5048, %v5018
        %v5050 = vadd.f32 %v5049, %v5019
        %v5051 = vadd.f32 %v5050, %v5020
        %v5052 = vadd.f32 %v5051, %v5021
        %v5053 = vadd.f32 %v5052, %v5022
        %v5054 = vrot.slane %v5053, 4
        %v5055 = vadd.f32 %v5053, %v5054
        %v5056 = vrot.slane %v5055, 2
        %v5057 = vadd.f32 %v5055, %v5056
        %v5058 = vrot.slane %v5057, 1
        %v5059 = vadd.f32 %v5057, %v5058
        %v5060 = vmul.f32 %v5059, 0.00390625
        %v5061 = vmul.f32 %v4990, %v4990
        %v5062 = vsub.f32 %v5060, %v5061
        %v5063 = vmax.f32 %v5062, 0.0
        %v5064 = vsub.f32 %v4795, %v4990
        %v5065 = vsub.f32 %v4800, %v4990
        %v5066 = vsub.f32 %v4805, %v4990
        %v5067 = vsub.f32 %v4810, %v4990
        %v5068 = vsub.f32 %v4815, %v4990
        %v5069 = vsub.f32 %v4820, %v4990
        %v5070 = vsub.f32 %v4825, %v4990
        %v5071 = vsub.f32 %v4830, %v4990
        %v5072 = vsub.f32 %v4835, %v4990
        %v5073 = vsub.f32 %v4840, %v4990
        %v5074 = vsub.f32 %v4845, %v4990
        %v5075 = vsub.f32 %v4850, %v4990
        %v5076 = vsub.f32 %v4855, %v4990
        %v5077 = vsub.f32 %v4860, %v4990
        %v5078 = vsub.f32 %v4865, %v4990
        %v5079 = vsub.f32 %v4870, %v4990
        %v5080 = vsub.f32 %v4875, %v4990
        %v5081 = vsub.f32 %v4880, %v4990
        %v5082 = vsub.f32 %v4885, %v4990
        %v5083 = vsub.f32 %v4890, %v4990
        %v5084 = vsub.f32 %v4895, %v4990
        %v5085 = vsub.f32 %v4900, %v4990
        %v5086 = vsub.f32 %v4905, %v4990
        %v5087 = vsub.f32 %v4910, %v4990
        %v5088 = vsub.f32 %v4915, %v4990
        %v5089 = vsub.f32 %v4920, %v4990
        %v5090 = vsub.f32 %v4925, %v4990
        %v5091 = vsub.f32 %v4930, %v4990
        %v5092 = vsub.f32 %v4935, %v4990
        %v5093 = vsub.f32 %v4940, %v4990
        %v5094 = vsub.f32 %v4945, %v4990
        %v5095 = vsub.f32 %v4950, %v4990
        %v5096 = vadd.f32 %v5063, 1e-05
        %v5097 = vrsqrt.pop %v5096
        %v5098 = vmul.f32 %v5064, %v5097
        %v5099 = vmul.f32 %v5065, %v5097
        %v5100 = vmul.f32 %v5066, %v5097
        %v5101 = vmul.f32 %v5067, %v5097
        %v5102 = vmul.f32 %v5068, %v5097
        %v5103 = vmul.f32 %v5069, %v5097
        %v5104 = vmul.f32 %v5070, %v5097
        %v5105 = vmul.f32 %v5071, %v5097
        %v5106 = vmul.f32 %v5072, %v5097
        %v5107 = vmul.f32 %v5073, %v5097
        %v5108 = vmul.f32 %v5074, %v5097
        %v5109 = vmul.f32 %v5075, %v5097
        %v5110 = vmul.f32 %v5076, %v5097
        %v5111 = vmul.f32 %v5077, %v5097
        %v5112 = vmul.f32 %v5078, %v5097
        %v5113 = vmul.f32 %v5079, %v5097
        %v5114 = vmul.f32 %v5080, %v5097
        %v5115 = vmul.f32 %v5081, %v5097
        %v5116 = vmul.f32 %v5082, %v5097
        %v5117 = vmul.f32 %v5083, %v5097
        %v5118 = vmul.f32 %v5084, %v5097
        %v5119 = vmul.f32 %v5085, %v5097
        %v5120 = vmul.f32 %v5086, %v5097
        %v5121 = vmul.f32 %v5087, %v5097
        %v5122 = vmul.f32 %v5088, %v5097
        %v5123 = vmul.f32 %v5089, %v5097
        %v5124 = vmul.f32 %v5090, %v5097
        %v5125 = vmul.f32 %v5091, %v5097
        %v5126 = vmul.f32 %v5092, %v5097
        %v5127 = vmul.f32 %v5093, %v5097
        %v5128 = vmul.f32 %v5094, %v5097
        %v5129 = vmul.f32 %v5095, %v5097
        %v5130 = vld [vmem:[%s187] sm:$0xff]
        %v5131 = vld [vmem:[%s187 + $0x8] sm:$0xff]
        %v5132 = vld [vmem:[%s187 + $0x10] sm:$0xff]
        %v5133 = vld [vmem:[%s187 + $0x18] sm:$0xff]
        %v5134 = vld [vmem:[%s187 + $0x20] sm:$0xff]
        %v5135 = vld [vmem:[%s187 + $0x28] sm:$0xff]
        %v5136 = vld [vmem:[%s187 + $0x30] sm:$0xff]
        %v5137 = vld [vmem:[%s187 + $0x38] sm:$0xff]
        %v5138 = vld [vmem:[%s187 + $0x40] sm:$0xff]
        %v5139 = vld [vmem:[%s187 + $0x48] sm:$0xff]
        %v5140 = vld [vmem:[%s187 + $0x50] sm:$0xff]
        %v5141 = vld [vmem:[%s187 + $0x58] sm:$0xff]
        %v5142 = vld [vmem:[%s187 + $0x60] sm:$0xff]
        %v5143 = vld [vmem:[%s187 + $0x68] sm:$0xff]
        %v5144 = vld [vmem:[%s187 + $0x70] sm:$0xff]
        %v5145 = vld [vmem:[%s187 + $0x78] sm:$0xff]
        %v5146 = vld [vmem:[%s187 + $0x80] sm:$0xff]
        %v5147 = vld [vmem:[%s187 + $0x88] sm:$0xff]
        %v5148 = vld [vmem:[%s187 + $0x90] sm:$0xff]
        %v5149 = vld [vmem:[%s187 + $0x98] sm:$0xff]
        %v5150 = vld [vmem:[%s187 + $0xa0] sm:$0xff]
        %v5151 = vld [vmem:[%s187 + $0xa8] sm:$0xff]
        %v5152 = vld [vmem:[%s187 + $0xb0] sm:$0xff]
        %v5153 = vld [vmem:[%s187 + $0xb8] sm:$0xff]
        %v5154 = vld [vmem:[%s187 + $0xc0] sm:$0xff]
        %v5155 = vld [vmem:[%s187 + $0xc8] sm:$0xff]
        %v5156 = vld [vmem:[%s187 + $0xd0] sm:$0xff]
        %v5157 = vld [vmem:[%s187 + $0xd8] sm:$0xff]
        %v5158 = vld [vmem:[%s187 + $0xe0] sm:$0xff]
        %v5159 = vld [vmem:[%s187 + $0xe8] sm:$0xff]
        %v5160 = vld [vmem:[%s187 + $0xf0] sm:$0xff]
        %v5161 = vld [vmem:[%s187 + $0xf8] sm:$0xff]
        %v5162 = vadd.f32 %v5098, %v5130
        %v5163 = vadd.f32 %v5099, %v5131
        %v5164 = vadd.f32 %v5100, %v5132
        %v5165 = vadd.f32 %v5101, %v5133
        %v5166 = vadd.f32 %v5102, %v5134
        %v5167 = vadd.f32 %v5103, %v5135
        %v5168 = vadd.f32 %v5104, %v5136
        %v5169 = vadd.f32 %v5105, %v5137
        %v5170 = vadd.f32 %v5106, %v5138
        %v5171 = vadd.f32 %v5107, %v5139
        %v5172 = vadd.f32 %v5108, %v5140
        %v5173 = vadd.f32 %v5109, %v5141
        %v5174 = vadd.f32 %v5110, %v5142
        %v5175 = vadd.f32 %v5111, %v5143
        %v5176 = vadd.f32 %v5112, %v5144
        %v5177 = vadd.f32 %v5113, %v5145
        %v5178 = vadd.f32 %v5114, %v5146
        %v5179 = vadd.f32 %v5115, %v5147
        %v5180 = vadd.f32 %v5116, %v5148
        %v5181 = vadd.f32 %v5117, %v5149
        %v5182 = vadd.f32 %v5118, %v5150
        %v5183 = vadd.f32 %v5119, %v5151
        %v5184 = vadd.f32 %v5120, %v5152
        %v5185 = vadd.f32 %v5121, %v5153
        %v5186 = vadd.f32 %v5122, %v5154
        %v5187 = vadd.f32 %v5123, %v5155
        %v5188 = vadd.f32 %v5124, %v5156
        %v5189 = vadd.f32 %v5125, %v5157
        %v5190 = vadd.f32 %v5126, %v5158
        %v5191 = vadd.f32 %v5127, %v5159
        %v5192 = vadd.f32 %v5128, %v5160
        %v5193 = vadd.f32 %v5129, %v5161
        %5194 = vst [vmem:[%s217] sm:$0xff] %v5162
        %5195 = vst [vmem:[%s217 + $0x8] sm:$0xff] %v5163
        %5196 = vst [vmem:[%s217 + $0x10] sm:$0xff] %v5164
        %5197 = vst [vmem:[%s217 + $0x18] sm:$0xff] %v5165
        %5198 = vst [vmem:[%s217 + $0x20] sm:$0xff] %v5166
        %5199 = vst [vmem:[%s217 + $0x28] sm:$0xff] %v5167
        %5200 = vst [vmem:[%s217 + $0x30] sm:$0xff] %v5168
        %5201 = vst [vmem:[%s217 + $0x38] sm:$0xff] %v5169
        %5202 = vst [vmem:[%s217 + $0x40] sm:$0xff] %v5170
        %5203 = vst [vmem:[%s217 + $0x48] sm:$0xff] %v5171
        %5204 = vst [vmem:[%s217 + $0x50] sm:$0xff] %v5172
        %5205 = vst [vmem:[%s217 + $0x58] sm:$0xff] %v5173
        %5206 = vst [vmem:[%s217 + $0x60] sm:$0xff] %v5174
        %5207 = vst [vmem:[%s217 + $0x68] sm:$0xff] %v5175
        %5208 = vst [vmem:[%s217 + $0x70] sm:$0xff] %v5176
        %5209 = vst [vmem:[%s217 + $0x78] sm:$0xff] %v5177
        %5210 = vst [vmem:[%s217 + $0x80] sm:$0xff] %v5178
        %5211 = vst [vmem:[%s217 + $0x88] sm:$0xff] %v5179
        %5212 = vst [vmem:[%s217 + $0x90] sm:$0xff] %v5180
        %5213 = vst [vmem:[%s217 + $0x98] sm:$0xff] %v5181
        %5214 = vst [vmem:[%s217 + $0xa0] sm:$0xff] %v5182
        %5215 = vst [vmem:[%s217 + $0xa8] sm:$0xff] %v5183
        %5216 = vst [vmem:[%s217 + $0xb0] sm:$0xff] %v5184
        %5217 = vst [vmem:[%s217 + $0xb8] sm:$0xff] %v5185
        %5218 = vst [vmem:[%s217 + $0xc0] sm:$0xff] %v5186
        %5219 = vst [vmem:[%s217 + $0xc8] sm:$0xff] %v5187
        %5220 = vst [vmem:[%s217 + $0xd0] sm:$0xff] %v5188
        %5221 = vst [vmem:[%s217 + $0xd8] sm:$0xff] %v5189
        %5222 = vst [vmem:[%s217 + $0xe0] sm:$0xff] %v5190
        %5223 = vst [vmem:[%s217 + $0xe8] sm:$0xff] %v5191
        %5224 = vst [vmem:[%s217 + $0xf0] sm:$0xff] %v5192
        %5225 = vst [vmem:[%s217 + $0xf8] sm:$0xff] %v5193
        %s5226 = sand.u32 %s97, 1
        %s5227 = scalar_lea.sflag [#allocation6], %s5226
        %s5228 = sand.u32 %s97, 1
        %s5229 = smul.addr %s5228, 256
        %s5230 = scalar_lea.vmem [#allocation10], %s5229
        // Predicated region
        $region45: #{tpu_custom_call.1} parent=31 // pred_check
          %p5231 = pneg %p107
        $region46: #{tpu_custom_call.1} parent=31 // pred_check_branch
          %5233 = sbr.rel (%p5231) target = $region48
        $region47: #{tpu_custom_call.1} parent=31 // pred_region
          %s5235 = ssub.s32 4096, 4096
          %5236 = vsyncadd %s5227, %s5235
          %s5237 = smul.addr %s21, 32
          %s5238 = smul.addr %s5237, 128
          %s5239 = scalar_lea.hbm %s3, %s5238
          %s5240 = sshll.u32 %s5230, 4
          %s5241 = int_to_ptr.vmem [resolvable:$true] %s5240
          %5246 = dma.vmem_to_hbm [thread:$0]  %s5241, 4096, %s5239, %s5227, 128, 128, 8
        $region48: #{tpu_custom_call.1} parent=31 // pred_fallthru
          _
      $region32: #{tpu_custom_call.1} parent=5 // pred_fallthru
        _
      %p5247 = scmp.le.s32.totalorder 2, %s16
      // Predicated region
      $region49: #{tpu_custom_call.1} parent=5 // pred_check
        %p5248 = pneg %p5247
      $region50: #{tpu_custom_call.1} parent=5 // pred_check_branch
        %5250 = sbr.rel (%p5248) target = $region52
      $region51: #{tpu_custom_call.1} parent=5 // pred_region
        %s5251 = ssub.s32 %s16, 2
        // Predicated region
        $region53: #{tpu_custom_call.1} parent=51 // pred_check
          %p5252 = pneg %p113
        $region54: #{tpu_custom_call.1} parent=51 // pred_check_branch
          %5254 = sbr.rel (%p5252) target = $region56
        $region55: #{tpu_custom_call.1} parent=51 // pred_region
          %s5255 = sand.u32 %s98, 1
          %s5256 = scalar_lea.sflag [#allocation6], %s5255
          %s5257 = sand.u32 %s98, 1
          %s5258 = smul.addr %s5257, 256
          %s5259 = scalar_lea.vmem [#allocation10], %s5258
          %5260 = dma.done %s5256, 4096
        $region56: #{tpu_custom_call.1} parent=51 // pred_fallthru
          _
      $region52: #{tpu_custom_call.1} parent=5 // pred_fallthru
        _
    $region6: #{tpu_custom_call.1} parent=1 // loop_footer
      %s20 = sadd.s32 1, %s16
    $region7: #{tpu_custom_call.1} parent=1 // loop_footer_branch
      %15 = sbr.rel target = $region3
    $region8: #{tpu_custom_call.1} parent=1 // loop_exit
      _
    %5261 = vsyncpa [#allocation5], 1
    %s5262 = scalar_lea.sflag [#allocation5], 1
    %5263 = vsyncpa %s5262, 1
    %5264 = vsyncpa [#allocation8], 1
    %5265 = vsyncpa [#allocation6], 1
    %s5266 = scalar_lea.sflag [#allocation6], 1
    %5267 = vsyncpa %s5266, 1

</llo_original>
